<compile_context>
chip_gen: v7x
topology: tpu7x:2x2x1
jax: 0.10.0
libtpu: 0.0.40
codegen_flags: <defaults>
</compile_context>

<pallas_src>
import jax
import jax.numpy as jnp
from jax.experimental import pallas as pl
from jax.experimental.pallas import tpu as pltpu


def _round_up(x, m):
    return ((x + m - 1) // m) * m


def _cdiv(a, b):
    return -(-a // b)


def time_encoding_kernel(t_ref, w_ref, b_ref, out_ref):
    # t_ref:   (tm, 1)  current tile of times
    # w_ref:   (1, W)   [freqs | freqs | 0-pad]    (grid-invariant block)
    # b_ref:   (1, W)   [0*F   | pi/2*F | 0-pad]   (grid-invariant block)
    # out_ref: (tm, W)  sin | cos | junk-pad, written as one unmasked full-width store
    out_ref[...] = jnp.sin(t_ref[...] * w_ref[...] + b_ref[...]).astype(out_ref.dtype)


def time_encoding(t, freqs, *, out_dtype=jnp.float32, target_out_tile_bytes=4 << 20):
    """t: [N] float, freqs: [F] float -> [N, 2F] = [sin(t*f) | cos(t*f)]."""
    N = int(t.shape[0])
    F = int(freqs.shape[0])
    compute_dtype = jnp.float32
    out_itemsize = jnp.dtype(out_dtype).itemsize

    # Fused contiguous layout: columns [0:F)=sin args, [F:2F)=cos args, [2F:W)=padding.
    W = max(128, _round_up(2 * F, 128))
    freqs_f32 = freqs.astype(compute_dtype)
    w2 = jnp.zeros((1, W), compute_dtype)
    w2 = w2.at[0, :F].set(freqs_f32)
    w2 = w2.at[0, F:2 * F].set(freqs_f32)
    bias = jnp.zeros((1, W), compute_dtype)
    bias = bias.at[0, F:2 * F].set(jnp.pi / 2)

    # Generation-aware VMEM budgeting.
    try:
        vmem_cap = pltpu.get_tpu_info().vmem_capacity_bytes
    except Exception:
        vmem_cap = 64 << 20  # conservative (v7x-sized) fallback
    if vmem_cap >= (100 << 20):      # v5e / v6e: 128 MiB physical VMEM
        tile_budget = 48 << 20
        vmem_limit_cap = 96 << 20
    else:                            # v7x: 64 MiB physical per TC
        tile_budget = 20 << 20
        vmem_limit_cap = 40 << 20

    # Per-row VMEM cost, double-buffered: output row (W * itemsize) + the lane-padded
    # (tm, 1) f32 t row, which occupies a full 128-lane vreg row in VMEM (128 * 4 B).
    per_row_bytes = 2 * (W * out_itemsize + 128 * 4)
    tm_cap = max(8, ((tile_budget - 4 * W * 4) // per_row_bytes) // 8 * 8)

    # Byte-sized row-tile target (~target_out_tile_bytes of output), clamped by VMEM.
    tm_target = max(8, (target_out_tile_bytes // (W * out_itemsize)) // 8 * 8)
    tm_target = min(tm_target, tm_cap)

    # Balance the tile against N (minimal padded-row waste) and guarantee >= 4 grid
    # steps when N allows it (>= 2 steps per TensorCore on v7x for DMA/compute overlap).
    num_tiles = max(1, _cdiv(N, tm_target))
    if N >= 4 * 8:
        num_tiles = max(num_tiles, 4)
    tm_eff = max(8, _round_up(_cdiv(N, num_tiles), 8))
    tm_eff = min(tm_eff, tm_cap)
    grid = _cdiv(N, tm_eff)
    Np = grid * tm_eff

    t_p = t.astype(compute_dtype)
    if Np != N:
        t_p = jnp.pad(t_p, (0, Np - N))
    t2 = t_p.reshape(Np, 1)

    # Explicit scoped-VMEM limit with headroom (default scoped limit is only 16 MiB on v5e).
    tile_bytes = tm_eff * per_row_bytes + 4 * W * 4
    vmem_limit = int(min(vmem_limit_cap, max(32 << 20, int(tile_bytes * 1.5) + (2 << 20))))

    cost = pl.CostEstimate(
        flops=2 * Np * W,                 # mul + add per output element
        transcendentals=Np * W,           # one sin per output element
        bytes_accessed=Np * W * out_itemsize + Np * 4 + 2 * W * 4,
    )

    out = pl.pallas_call(
        time_encoding_kernel,
        out_shape=jax.ShapeDtypeStruct((Np, W), out_dtype),
        grid_spec=pltpu.PrefetchScalarGridSpec(
            num_scalar_prefetch=0,
            grid=(grid,),
            in_specs=[
                pl.BlockSpec((tm_eff, 1), lambda i: (i, 0)),   # time tile
                pl.BlockSpec((1, W), lambda i: (0, 0)),        # fused freqs (invariant)
                pl.BlockSpec((1, W), lambda i: (0, 0)),        # phase bias (invariant)
            ],
            out_specs=pl.BlockSpec((tm_eff, W), lambda i: (i, 0)),
        ),
        compiler_params=pltpu.CompilerParams(
            dimension_semantics=("parallel",),
            vmem_limit_bytes=vmem_limit,
        ),
        cost_estimate=cost,
    )(t2, w2, bias)

    # Contiguous de-pad: leading 2F columns, leading N rows (near-free slice, no copy/concat).
    return out[:N, :2 * F]


if __name__ == "__main__":
    key = jax.random.PRNGKey(0)
    k_t, k_f, k_t2, k_f2 = jax.random.split(key, 4)

    # Case 1: lane-aligned F; tile sizing yields grid >= 4 (512-row tiles for 2F=128).
    N = 2048
    num_freqs = 64  # output width 2F = 128 (one full-lane vreg row)
    t = jax.random.normal(k_t, (N,), dtype=jnp.float32)
    freqs = jax.random.normal(k_f, (num_freqs,), dtype=jnp.float32)  # ~ torch.randn init

    out = jax.block_until_ready(time_encoding(t, freqs))
    phase = t[:, None] * freqs[None, :]
    ref = jnp.concatenate([jnp.sin(phase), jnp.cos(phase)], axis=-1)
    assert out.shape == (N, 2 * num_freqs)
    assert jnp.allclose(out, ref, atol=1e-5, rtol=1e-5)

    # Case 2: odd sizes (exercises row padding and the contiguous column de-pad path).
    N2, F2 = 100, 10
    t2 = jax.random.normal(k_t2, (N2,), dtype=jnp.float32)
    freqs2 = jax.random.normal(k_f2, (F2,), dtype=jnp.float32)
    out2 = jax.block_until_ready(time_encoding(t2, freqs2))
    phase2 = t2[:, None] * freqs2[None, :]
    ref2 = jnp.concatenate([jnp.sin(phase2), jnp.cos(phase2)], axis=-1)
    assert out2.shape == (N2, 2 * F2)
    assert jnp.allclose(out2, ref2, atol=1e-5, rtol=1e-5)

    print("KERNEL_OK")
</pallas_src>

<mosaic_0001>
module attributes {stable_mosaic.version = 11 : i64} {
  func.func @time_encoding_kernel(%arg0: i32, %arg1: memref<512x1xf32, #tpu.memory_space<vmem>>, %arg2: memref<1x128xf32, #tpu.memory_space<vmem>>, %arg3: memref<1x128xf32, #tpu.memory_space<vmem>>, %arg4: memref<512x128xf32, #tpu.memory_space<vmem>>) attributes {dimension_semantics = [#tpu.dimension_semantics<parallel>], iteration_bounds = array<i64: 4>, scalar_prefetch = 0 : i64, scratch_operands = 0 : i64, tpu.core_type = #tpu.core_type<tc>, window_params = [{transform_indices = @transform_0, window_bounds = array<i64: 512, 1>}, {pipeline_mode = #tpu.pipeline_mode<synchronous>, transform_indices = @transform_1, window_bounds = array<i64: 1, 128>}, {pipeline_mode = #tpu.pipeline_mode<synchronous>, transform_indices = @transform_2, window_bounds = array<i64: 1, 128>}, {transform_indices = @transform_3, window_bounds = array<i64: 512, 128>}]} {
    %c0 = arith.constant 0 : index
    %c0_0 = arith.constant 0 : index
    %0 = vector.load %arg1[%c0, %c0_0] : memref<512x1xf32, #tpu.memory_space<vmem>>, vector<512x1xf32>
    %c0_1 = arith.constant 0 : index
    %c0_2 = arith.constant 0 : index
    %1 = vector.load %arg2[%c0_1, %c0_2] : memref<1x128xf32, #tpu.memory_space<vmem>>, vector<1x128xf32>
    %2 = vector.broadcast %0 : vector<512x1xf32> to vector<512x128xf32>
    %3 = vector.broadcast %1 : vector<1x128xf32> to vector<512x128xf32>
    %4 = arith.mulf %2, %3 : vector<512x128xf32>
    %c0_3 = arith.constant 0 : index
    %c0_4 = arith.constant 0 : index
    %5 = vector.load %arg3[%c0_3, %c0_4] : memref<1x128xf32, #tpu.memory_space<vmem>>, vector<1x128xf32>
    %6 = vector.broadcast %5 : vector<1x128xf32> to vector<512x128xf32>
    %7 = arith.addf %4, %6 : vector<512x128xf32>
    %8 = math.sin %7 : vector<512x128xf32>
    %c0_5 = arith.constant 0 : index
    %c0_6 = arith.constant 0 : index
    %9 = vector.load %arg4[%c0_5, %c0_6] : memref<512x128xf32, #tpu.memory_space<vmem>>, vector<512x128xf32>
    tpu.vector_store %arg4[%c0_5, %c0_6], %8 {strides = array<i32>} : memref<512x128xf32, #tpu.memory_space<vmem>>, vector<512x128xf32>,
    return
  }
  func.func @transform_0(%arg0: i32) -> (i32, i32) {
    %c0_i32 = arith.constant 0 : i32
    %c0_i32_0 = arith.constant 0 : i32
    return %arg0, %c0_i32 : i32, i32
  }
  func.func @transform_1(%arg0: i32) -> (i32, i32) {
    %c0_i32 = arith.constant 0 : i32
    %c0_i32_0 = arith.constant 0 : i32
    %c0_i32_1 = arith.constant 0 : i32
    return %c0_i32, %c0_i32_0 : i32, i32
  }
  func.func @transform_2(%arg0: i32) -> (i32, i32) {
    %c0_i32 = arith.constant 0 : i32
    %c0_i32_0 = arith.constant 0 : i32
    %c0_i32_1 = arith.constant 0 : i32
    return %c0_i32, %c0_i32_0 : i32, i32
  }
  func.func @transform_3(%arg0: i32) -> (i32, i32) {
    %c0_i32 = arith.constant 0 : i32
    %c0_i32_0 = arith.constant 0 : i32
    return %arg0, %c0_i32 : i32, i32
  }
}

</mosaic_0001>

<llo_original>
// kernel: tpu_custom_call.1
$region0: #{tpu_custom_call.1}
  #allocation0 [shape = 'u32[]', space=smem, size = 0x4, offset = 0x4, fixed_abs, tag = 'smem constant byte address 0x4 - core index']
  #allocation1 [shape = 'u32[144,128]{1,0:T(1,128)}', space=vmem, size = 0x12000, scoped, tag = 'internal scratch']
  %s0 = inlined_call_operand.vmem [shape: f32[2048,1], index: 0, kind: input, shape index: {}]
  %s1 = inlined_call_operand.vmem [shape: f32[1,128], index: 1, kind: input, shape index: {}]
  %s2 = inlined_call_operand.vmem [shape: f32[1,128], index: 2, kind: input, shape index: {}]
  %s3 = inlined_call_operand.hbm [shape: f32[2048,128], index: 3, kind: output, shape index: {}]
  %s4 = sld [smem:[#allocation0]]
  $region45: #{tpu_custom_call.1} parent=0
    _
  %s6 = ssub.s32 1, %s4
  %s7 = scalar_select 0, %s6, %s4
  $region1: #{tpu_custom_call.1} parent=0
    #allocation2 [shape = 'u8[524288]{0}', space=vmem, size = 0x80000, scoped, tag = 'output window, operand 0']
    #allocation3 [shape = 's32[2]{0}', space=sflag, size = 0x8, scoped, tag = 'scoped memory for tpu_custom_call.1']
    %8 = vsyncpa [#allocation3], 0
    %s9 = scalar_lea.sflag [#allocation3], 1
    %10 = vsyncpa %s9, 0
    loop: start=0, step=1, limit=6
    $region2: #{tpu_custom_call.1} parent=1 // loop_pre_header
      _
    $region3: #{tpu_custom_call.1} parent=1 // loop_header
      %s12 = sphi 0, %s16
      %p13 = scmp.ge.s32.totalorder %s12, 6
      %s22 = sphi 0, %s24
      %s25 = sphi 0, %s22
      %s26 = sphi 0, %s25
      %s42 = sphi 0, %s26
      %s46 = sphi 0, %s46
      %s48 = sphi 0, %s46
      %s49 = sphi 0, %s48
      %s63 = sphi 0, %s49
      %s67 = sphi 0, %s67
      %s69 = sphi 0, %s67
      %s70 = sphi 0, %s69
      %s84 = sphi 0, %s70
      %s90 = sphi 0, %s92
      %s93 = sphi 0, %s90
      %s94 = sphi 0, %s93
      %s110 = sphi 0, %s94
    $region4: #{tpu_custom_call.1} parent=1 // loop_header_branch
      %15 = sbr.rel (%p13) target = $region8
    $region5: #{tpu_custom_call.1} parent=1 // loop_body
      %s17 = ssub.s32 %s12, 1
      %s18 = ssub.s32 %s12, 2
      %s19 = sadd.s32 %s12, 1
      %s20 = ssub.s32 %s12, %s19
      %p21 = scmp.eq.s32.totalorder %s20, 0
      %s23 = sadd.s32 %s22, 1
      %s24 = scalar_select %p21, %s22, %s23
      %p27 = pneg %p21
      %p28 = scmp.eq.s32.totalorder %s12, 3
      %p29 = por %p27, %p28
      %p30 = scmp.ne.s32.totalorder %s22, %s25
      %p31 = scmp.eq.s32.totalorder %s12, 0
      %p32 = por %p30, %p31
      %p33 = scmp.ne.s32.totalorder %s22, %s25
      %p34 = scmp.eq.s32.totalorder %s17, 3
      %p35 = por %p33, %p34
      %p36 = scmp.ne.s32.totalorder %s25, %s26
      %p37 = scmp.eq.s32.totalorder %s17, 0
      %p38 = por %p36, %p37
      %p39 = scmp.ne.s32.totalorder %s25, %s26
      %p40 = scmp.eq.s32.totalorder %s18, 3
      %p41 = por %p39, %p40
      %p43 = scmp.ne.s32.totalorder %s26, %s42
      %p44 = scmp.eq.s32.totalorder %s18, 0
      %p45 = por %p43, %p44
      %s47 = sadd.s32 %s46, 1
      %p50 = scmp.eq.s32.totalorder %s12, 3
      %p51 = scmp.ne.s32.totalorder %s46, %s48
      %p52 = scmp.eq.s32.totalorder %s12, 0
      %p53 = por %p51, %p52
      %p54 = scmp.ne.s32.totalorder %s46, %s48
      %p55 = scmp.eq.s32.totalorder %s17, 3
      %p56 = por %p54, %p55
      %p57 = scmp.ne.s32.totalorder %s48, %s49
      %p58 = scmp.eq.s32.totalorder %s17, 0
      %p59 = por %p57, %p58
      %p60 = scmp.ne.s32.totalorder %s48, %s49
      %p61 = scmp.eq.s32.totalorder %s18, 3
      %p62 = por %p60, %p61
      %p64 = scmp.ne.s32.totalorder %s49, %s63
      %p65 = scmp.eq.s32.totalorder %s18, 0
      %p66 = por %p64, %p65
      %s68 = sadd.s32 %s67, 1
      %p71 = scmp.eq.s32.totalorder %s12, 3
      %p72 = scmp.ne.s32.totalorder %s67, %s69
      %p73 = scmp.eq.s32.totalorder %s12, 0
      %p74 = por %p72, %p73
      %p75 = scmp.ne.s32.totalorder %s67, %s69
      %p76 = scmp.eq.s32.totalorder %s17, 3
      %p77 = por %p75, %p76
      %p78 = scmp.ne.s32.totalorder %s69, %s70
      %p79 = scmp.eq.s32.totalorder %s17, 0
      %p80 = por %p78, %p79
      %p81 = scmp.ne.s32.totalorder %s69, %s70
      %p82 = scmp.eq.s32.totalorder %s18, 3
      %p83 = por %p81, %p82
      %p85 = scmp.ne.s32.totalorder %s70, %s84
      %p86 = scmp.eq.s32.totalorder %s18, 0
      %p87 = por %p85, %p86
      %s88 = ssub.s32 %s12, %s19
      %p89 = scmp.eq.s32.totalorder %s88, 0
      %s91 = sadd.s32 %s90, 1
      %s92 = scalar_select %p89, %s90, %s91
      %p95 = pneg %p89
      %p96 = scmp.eq.s32.totalorder %s12, 3
      %p97 = por %p95, %p96
      %p98 = scmp.ne.s32.totalorder %s90, %s93
      %p99 = scmp.eq.s32.totalorder %s12, 0
      %p100 = por %p98, %p99
      %p101 = scmp.ne.s32.totalorder %s90, %s93
      %p102 = scmp.eq.s32.totalorder %s17, 3
      %p103 = por %p101, %p102
      %p104 = scmp.ne.s32.totalorder %s93, %s94
      %p105 = scmp.eq.s32.totalorder %s17, 0
      %p106 = por %p104, %p105
      %p107 = scmp.ne.s32.totalorder %s93, %s94
      %p108 = scmp.eq.s32.totalorder %s18, 3
      %p109 = por %p107, %p108
      %p111 = scmp.ne.s32.totalorder %s94, %s110
      %p112 = scmp.eq.s32.totalorder %s18, 0
      %p113 = por %p111, %p112
      %p114 = scmp.le.s32.totalorder 1, %s12
      %p115 = scmp.lt.s32.totalorder %s12, 5
      %p116 = pnand %p114, %p115
      %p117 = pneg %p116
      // Predicated region
      $region9: #{tpu_custom_call.1} parent=5 // pred_check
        _
      $region10: #{tpu_custom_call.1} parent=5 // pred_check_branch
        %119 = sbr.rel (%p116) target = $region12
      $region11: #{tpu_custom_call.1} parent=5 // pred_region
        %s120 = ssub.s32 %s12, 1
        // Predicated region
        $region13: #{tpu_custom_call.1} parent=11 // pred_check
          %p121 = pneg %p59
        $region14: #{tpu_custom_call.1} parent=11 // pred_check_branch
          %123 = sbr.rel (%p121) target = $region16
        $region15: #{tpu_custom_call.1} parent=11 // pred_region
          _
        $region16: #{tpu_custom_call.1} parent=11 // pred_fallthru
          _
        // Predicated region
        $region17: #{tpu_custom_call.1} parent=11 // pred_check
          %p124 = pneg %p80
        $region18: #{tpu_custom_call.1} parent=11 // pred_check_branch
          %126 = sbr.rel (%p124) target = $region20
        $region19: #{tpu_custom_call.1} parent=11 // pred_region
          _
        $region20: #{tpu_custom_call.1} parent=11 // pred_fallthru
          _
      $region12: #{tpu_custom_call.1} parent=5 // pred_fallthru
        _
      %p127 = scmp.lt.s32.totalorder %s12, 4
      // Predicated region
      $region21: #{tpu_custom_call.1} parent=5 // pred_check
        %p128 = pneg %p127
      $region22: #{tpu_custom_call.1} parent=5 // pred_check_branch
        %130 = sbr.rel (%p128) target = $region24
      $region23: #{tpu_custom_call.1} parent=5 // pred_region
        // Predicated region
        $region25: #{tpu_custom_call.1} parent=23 // pred_check
          %p131 = pneg %p32
        $region26: #{tpu_custom_call.1} parent=23 // pred_check_branch
          %133 = sbr.rel (%p131) target = $region28
        $region27: #{tpu_custom_call.1} parent=23 // pred_region
          %s134 = smul.u32 64, %s12
          %p135 = scmp.lt.s32.totalorder %s134, 255
          %s136 = scalar_select %p135, %s134, 255
          %s137 = smul.addr %s136, 8
          %s138 = scalar_lea.vmem %s0, %s137
          %s139 = smul.u32 64, %s12
        $region28: #{tpu_custom_call.1} parent=23 // pred_fallthru
          _
      $region24: #{tpu_custom_call.1} parent=5 // pred_fallthru
        _
      %p140 = scmp.le.s32.totalorder 1, %s12
      %p141 = scmp.lt.s32.totalorder %s12, 5
      %p142 = pnand %p140, %p141
      %p143 = pneg %p142
      // Predicated region
      $region29: #{tpu_custom_call.1} parent=5 // pred_check
        _
      $region30: #{tpu_custom_call.1} parent=5 // pred_check_branch
        %145 = sbr.rel (%p142) target = $region32
      $region31: #{tpu_custom_call.1} parent=5 // pred_region
        %s146 = ssub.s32 %s12, 1
        %s147 = smul.u32 64, %s17
        %p148 = scmp.lt.s32.totalorder %s147, 255
        %s149 = scalar_select %p148, %s147, 255
        %s150 = smul.addr %s149, 8
        %s151 = scalar_lea.vmem %s0, %s150
        %p152 = pneg %p38
        %p153 = pneg %p35
        %p154 = pneg %p59
        %p155 = pneg %p56
        %p156 = pneg %p80
        %p157 = pneg %p77
        %p158 = pneg %p106
        %p159 = pneg %p103
        %s160 = sand.u32 %s93, 1
        %s161 = scalar_lea.sflag [#allocation3], %s160
        %s162 = sand.u32 %s93, 1
        %s163 = smul.addr %s162, 512
        %s164 = scalar_lea.vmem [#allocation2], %s163
        %s165 = smul.u32 64, %s17
        %p166 = scmp.lt.s32.totalorder %s165, 255
        %s167 = scalar_select %p166, %s165, 255
        %s168 = smul.addr %s167, 8
        %s169 = scalar_lea.vmem %s0, %s168
        %s170 = smul.u32 64, %s17
        %s171 = smul.u32 64, %s17
        %v172 = vld [vmem:[%s169] sm:$0xff]
        %v173 = vld [vmem:[%s169 + $0x8] sm:$0xff]
        %v174 = vld [vmem:[%s169 + $0x10] sm:$0xff]
        %v175 = vld [vmem:[%s169 + $0x18] sm:$0xff]
        %v176 = vld [vmem:[%s169 + $0x20] sm:$0xff]
        %v177 = vld [vmem:[%s169 + $0x28] sm:$0xff]
        %v178 = vld [vmem:[%s169 + $0x30] sm:$0xff]
        %v179 = vld [vmem:[%s169 + $0x38] sm:$0xff]
        %v180 = vld [vmem:[%s169 + $0x40] sm:$0xff]
        %v181 = vld [vmem:[%s169 + $0x48] sm:$0xff]
        %v182 = vld [vmem:[%s169 + $0x50] sm:$0xff]
        %v183 = vld [vmem:[%s169 + $0x58] sm:$0xff]
        %v184 = vld [vmem:[%s169 + $0x60] sm:$0xff]
        %v185 = vld [vmem:[%s169 + $0x68] sm:$0xff]
        %v186 = vld [vmem:[%s169 + $0x70] sm:$0xff]
        %v187 = vld [vmem:[%s169 + $0x78] sm:$0xff]
        %v188 = vld [vmem:[%s169 + $0x80] sm:$0xff]
        %v189 = vld [vmem:[%s169 + $0x88] sm:$0xff]
        %v190 = vld [vmem:[%s169 + $0x90] sm:$0xff]
        %v191 = vld [vmem:[%s169 + $0x98] sm:$0xff]
        %v192 = vld [vmem:[%s169 + $0xa0] sm:$0xff]
        %v193 = vld [vmem:[%s169 + $0xa8] sm:$0xff]
        %v194 = vld [vmem:[%s169 + $0xb0] sm:$0xff]
        %v195 = vld [vmem:[%s169 + $0xb8] sm:$0xff]
        %v196 = vld [vmem:[%s169 + $0xc0] sm:$0xff]
        %v197 = vld [vmem:[%s169 + $0xc8] sm:$0xff]
        %v198 = vld [vmem:[%s169 + $0xd0] sm:$0xff]
        %v199 = vld [vmem:[%s169 + $0xd8] sm:$0xff]
        %v200 = vld [vmem:[%s169 + $0xe0] sm:$0xff]
        %v201 = vld [vmem:[%s169 + $0xe8] sm:$0xff]
        %v202 = vld [vmem:[%s169 + $0xf0] sm:$0xff]
        %v203 = vld [vmem:[%s169 + $0xf8] sm:$0xff]
        %v204 = vld [vmem:[%s169 + $0x100] sm:$0xff]
        %v205 = vld [vmem:[%s169 + $0x108] sm:$0xff]
        %v206 = vld [vmem:[%s169 + $0x110] sm:$0xff]
        %v207 = vld [vmem:[%s169 + $0x118] sm:$0xff]
        %v208 = vld [vmem:[%s169 + $0x120] sm:$0xff]
        %v209 = vld [vmem:[%s169 + $0x128] sm:$0xff]
        %v210 = vld [vmem:[%s169 + $0x130] sm:$0xff]
        %v211 = vld [vmem:[%s169 + $0x138] sm:$0xff]
        %v212 = vld [vmem:[%s169 + $0x140] sm:$0xff]
        %v213 = vld [vmem:[%s169 + $0x148] sm:$0xff]
        %v214 = vld [vmem:[%s169 + $0x150] sm:$0xff]
        %v215 = vld [vmem:[%s169 + $0x158] sm:$0xff]
        %v216 = vld [vmem:[%s169 + $0x160] sm:$0xff]
        %v217 = vld [vmem:[%s169 + $0x168] sm:$0xff]
        %v218 = vld [vmem:[%s169 + $0x170] sm:$0xff]
        %v219 = vld [vmem:[%s169 + $0x178] sm:$0xff]
        %v220 = vld [vmem:[%s169 + $0x180] sm:$0xff]
        %v221 = vld [vmem:[%s169 + $0x188] sm:$0xff]
        %v222 = vld [vmem:[%s169 + $0x190] sm:$0xff]
        %v223 = vld [vmem:[%s169 + $0x198] sm:$0xff]
        %v224 = vld [vmem:[%s169 + $0x1a0] sm:$0xff]
        %v225 = vld [vmem:[%s169 + $0x1a8] sm:$0xff]
        %v226 = vld [vmem:[%s169 + $0x1b0] sm:$0xff]
        %v227 = vld [vmem:[%s169 + $0x1b8] sm:$0xff]
        %v228 = vld [vmem:[%s169 + $0x1c0] sm:$0xff]
        %v229 = vld [vmem:[%s169 + $0x1c8] sm:$0xff]
        %v230 = vld [vmem:[%s169 + $0x1d0] sm:$0xff]
        %v231 = vld [vmem:[%s169 + $0x1d8] sm:$0xff]
        %v232 = vld [vmem:[%s169 + $0x1e0] sm:$0xff]
        %v233 = vld [vmem:[%s169 + $0x1e8] sm:$0xff]
        %v234 = vld [vmem:[%s169 + $0x1f0] sm:$0xff]
        %v235 = vld [vmem:[%s169 + $0x1f8] sm:$0xff]
        %v236 = vld [vmem:[%s1] sm:$0x1]
        %238 = vset.pattern.permute.xlu0 0
        %239 = vperm.xlu0 %238, %v172
        %v240 = vpop.permute.xlu0 %239
        %243 = vset.pattern.permute.xlu0 0
        %244 = vperm.xlu0 %243, %v173
        %v245 = vpop.permute.xlu0 %244
        %248 = vset.pattern.permute.xlu0 0
        %249 = vperm.xlu0 %248, %v174
        %v250 = vpop.permute.xlu0 %249
        %253 = vset.pattern.permute.xlu0 0
        %254 = vperm.xlu0 %253, %v175
        %v255 = vpop.permute.xlu0 %254
        %258 = vset.pattern.permute.xlu0 0
        %259 = vperm.xlu0 %258, %v176
        %v260 = vpop.permute.xlu0 %259
        %263 = vset.pattern.permute.xlu0 0
        %264 = vperm.xlu0 %263, %v177
        %v265 = vpop.permute.xlu0 %264
        %268 = vset.pattern.permute.xlu0 0
        %269 = vperm.xlu0 %268, %v178
        %v270 = vpop.permute.xlu0 %269
        %273 = vset.pattern.permute.xlu0 0
        %274 = vperm.xlu0 %273, %v179
        %v275 = vpop.permute.xlu0 %274
        %278 = vset.pattern.permute.xlu0 0
        %279 = vperm.xlu0 %278, %v180
        %v280 = vpop.permute.xlu0 %279
        %283 = vset.pattern.permute.xlu0 0
        %284 = vperm.xlu0 %283, %v181
        %v285 = vpop.permute.xlu0 %284
        %288 = vset.pattern.permute.xlu0 0
        %289 = vperm.xlu0 %288, %v182
        %v290 = vpop.permute.xlu0 %289
        %293 = vset.pattern.permute.xlu0 0
        %294 = vperm.xlu0 %293, %v183
        %v295 = vpop.permute.xlu0 %294
        %298 = vset.pattern.permute.xlu0 0
        %299 = vperm.xlu0 %298, %v184
        %v300 = vpop.permute.xlu0 %299
        %303 = vset.pattern.permute.xlu0 0
        %304 = vperm.xlu0 %303, %v185
        %v305 = vpop.permute.xlu0 %304
        %308 = vset.pattern.permute.xlu0 0
        %309 = vperm.xlu0 %308, %v186
        %v310 = vpop.permute.xlu0 %309
        %313 = vset.pattern.permute.xlu0 0
        %314 = vperm.xlu0 %313, %v187
        %v315 = vpop.permute.xlu0 %314
        %318 = vset.pattern.permute.xlu0 0
        %319 = vperm.xlu0 %318, %v188
        %v320 = vpop.permute.xlu0 %319
        %323 = vset.pattern.permute.xlu0 0
        %324 = vperm.xlu0 %323, %v189
        %v325 = vpop.permute.xlu0 %324
        %328 = vset.pattern.permute.xlu0 0
        %329 = vperm.xlu0 %328, %v190
        %v330 = vpop.permute.xlu0 %329
        %333 = vset.pattern.permute.xlu0 0
        %334 = vperm.xlu0 %333, %v191
        %v335 = vpop.permute.xlu0 %334
        %338 = vset.pattern.permute.xlu0 0
        %339 = vperm.xlu0 %338, %v192
        %v340 = vpop.permute.xlu0 %339
        %343 = vset.pattern.permute.xlu0 0
        %344 = vperm.xlu0 %343, %v193
        %v345 = vpop.permute.xlu0 %344
        %348 = vset.pattern.permute.xlu0 0
        %349 = vperm.xlu0 %348, %v194
        %v350 = vpop.permute.xlu0 %349
        %353 = vset.pattern.permute.xlu0 0
        %354 = vperm.xlu0 %353, %v195
        %v355 = vpop.permute.xlu0 %354
        %358 = vset.pattern.permute.xlu0 0
        %359 = vperm.xlu0 %358, %v196
        %v360 = vpop.permute.xlu0 %359
        %363 = vset.pattern.permute.xlu0 0
        %364 = vperm.xlu0 %363, %v197
        %v365 = vpop.permute.xlu0 %364
        %368 = vset.pattern.permute.xlu0 0
        %369 = vperm.xlu0 %368, %v198
        %v370 = vpop.permute.xlu0 %369
        %373 = vset.pattern.permute.xlu0 0
        %374 = vperm.xlu0 %373, %v199
        %v375 = vpop.permute.xlu0 %374
        %378 = vset.pattern.permute.xlu0 0
        %379 = vperm.xlu0 %378, %v200
        %v380 = vpop.permute.xlu0 %379
        %383 = vset.pattern.permute.xlu0 0
        %384 = vperm.xlu0 %383, %v201
        %v385 = vpop.permute.xlu0 %384
        %388 = vset.pattern.permute.xlu0 0
        %389 = vperm.xlu0 %388, %v202
        %v390 = vpop.permute.xlu0 %389
        %393 = vset.pattern.permute.xlu0 0
        %394 = vperm.xlu0 %393, %v203
        %v395 = vpop.permute.xlu0 %394
        %398 = vset.pattern.permute.xlu0 0
        %399 = vperm.xlu0 %398, %v204
        %v400 = vpop.permute.xlu0 %399
        %403 = vset.pattern.permute.xlu0 0
        %404 = vperm.xlu0 %403, %v205
        %v405 = vpop.permute.xlu0 %404
        %408 = vset.pattern.permute.xlu0 0
        %409 = vperm.xlu0 %408, %v206
        %v410 = vpop.permute.xlu0 %409
        %413 = vset.pattern.permute.xlu0 0
        %414 = vperm.xlu0 %413, %v207
        %v415 = vpop.permute.xlu0 %414
        %418 = vset.pattern.permute.xlu0 0
        %419 = vperm.xlu0 %418, %v208
        %v420 = vpop.permute.xlu0 %419
        %423 = vset.pattern.permute.xlu0 0
        %424 = vperm.xlu0 %423, %v209
        %v425 = vpop.permute.xlu0 %424
        %428 = vset.pattern.permute.xlu0 0
        %429 = vperm.xlu0 %428, %v210
        %v430 = vpop.permute.xlu0 %429
        %433 = vset.pattern.permute.xlu0 0
        %434 = vperm.xlu0 %433, %v211
        %v435 = vpop.permute.xlu0 %434
        %438 = vset.pattern.permute.xlu0 0
        %439 = vperm.xlu0 %438, %v212
        %v440 = vpop.permute.xlu0 %439
        %443 = vset.pattern.permute.xlu0 0
        %444 = vperm.xlu0 %443, %v213
        %v445 = vpop.permute.xlu0 %444
        %448 = vset.pattern.permute.xlu0 0
        %449 = vperm.xlu0 %448, %v214
        %v450 = vpop.permute.xlu0 %449
        %453 = vset.pattern.permute.xlu0 0
        %454 = vperm.xlu0 %453, %v215
        %v455 = vpop.permute.xlu0 %454
        %458 = vset.pattern.permute.xlu0 0
        %459 = vperm.xlu0 %458, %v216
        %v460 = vpop.permute.xlu0 %459
        %463 = vset.pattern.permute.xlu0 0
        %464 = vperm.xlu0 %463, %v217
        %v465 = vpop.permute.xlu0 %464
        %468 = vset.pattern.permute.xlu0 0
        %469 = vperm.xlu0 %468, %v218
        %v470 = vpop.permute.xlu0 %469
        %473 = vset.pattern.permute.xlu0 0
        %474 = vperm.xlu0 %473, %v219
        %v475 = vpop.permute.xlu0 %474
        %478 = vset.pattern.permute.xlu0 0
        %479 = vperm.xlu0 %478, %v220
        %v480 = vpop.permute.xlu0 %479
        %483 = vset.pattern.permute.xlu0 0
        %484 = vperm.xlu0 %483, %v221
        %v485 = vpop.permute.xlu0 %484
        %488 = vset.pattern.permute.xlu0 0
        %489 = vperm.xlu0 %488, %v222
        %v490 = vpop.permute.xlu0 %489
        %493 = vset.pattern.permute.xlu0 0
        %494 = vperm.xlu0 %493, %v223
        %v495 = vpop.permute.xlu0 %494
        %498 = vset.pattern.permute.xlu0 0
        %499 = vperm.xlu0 %498, %v224
        %v500 = vpop.permute.xlu0 %499
        %503 = vset.pattern.permute.xlu0 0
        %504 = vperm.xlu0 %503, %v225
        %v505 = vpop.permute.xlu0 %504
        %508 = vset.pattern.permute.xlu0 0
        %509 = vperm.xlu0 %508, %v226
        %v510 = vpop.permute.xlu0 %509
        %513 = vset.pattern.permute.xlu0 0
        %514 = vperm.xlu0 %513, %v227
        %v515 = vpop.permute.xlu0 %514
        %518 = vset.pattern.permute.xlu0 0
        %519 = vperm.xlu0 %518, %v228
        %v520 = vpop.permute.xlu0 %519
        %523 = vset.pattern.permute.xlu0 0
        %524 = vperm.xlu0 %523, %v229
        %v525 = vpop.permute.xlu0 %524
        %528 = vset.pattern.permute.xlu0 0
        %529 = vperm.xlu0 %528, %v230
        %v530 = vpop.permute.xlu0 %529
        %533 = vset.pattern.permute.xlu0 0
        %534 = vperm.xlu0 %533, %v231
        %v535 = vpop.permute.xlu0 %534
        %538 = vset.pattern.permute.xlu0 0
        %539 = vperm.xlu0 %538, %v232
        %v540 = vpop.permute.xlu0 %539
        %543 = vset.pattern.permute.xlu0 0
        %544 = vperm.xlu0 %543, %v233
        %v545 = vpop.permute.xlu0 %544
        %548 = vset.pattern.permute.xlu0 0
        %549 = vperm.xlu0 %548, %v234
        %v550 = vpop.permute.xlu0 %549
        %553 = vset.pattern.permute.xlu0 0
        %554 = vperm.xlu0 %553, %v235
        %v555 = vpop.permute.xlu0 %554
        %v558 = vlaneseq
        %v559 = vshrl.u32 %v558, 7
        %v560 = vsub.s32 0, %v559
        %v561 = vrot.slane %v236, %v560
        %v563 = vmul.f32 %v240, %v561
        %v564 = vmul.f32 %v245, %v561
        %v565 = vmul.f32 %v250, %v561
        %v566 = vmul.f32 %v255, %v561
        %v567 = vmul.f32 %v260, %v561
        %v568 = vmul.f32 %v265, %v561
        %v569 = vmul.f32 %v270, %v561
        %v570 = vmul.f32 %v275, %v561
        %v571 = vmul.f32 %v280, %v561
        %v572 = vmul.f32 %v285, %v561
        %v573 = vmul.f32 %v290, %v561
        %v574 = vmul.f32 %v295, %v561
        %v575 = vmul.f32 %v300, %v561
        %v576 = vmul.f32 %v305, %v561
        %v577 = vmul.f32 %v310, %v561
        %v578 = vmul.f32 %v315, %v561
        %v579 = vmul.f32 %v320, %v561
        %v580 = vmul.f32 %v325, %v561
        %v581 = vmul.f32 %v330, %v561
        %v582 = vmul.f32 %v335, %v561
        %v583 = vmul.f32 %v340, %v561
        %v584 = vmul.f32 %v345, %v561
        %v585 = vmul.f32 %v350, %v561
        %v586 = vmul.f32 %v355, %v561
        %v587 = vmul.f32 %v360, %v561
        %v588 = vmul.f32 %v365, %v561
        %v589 = vmul.f32 %v370, %v561
        %v590 = vmul.f32 %v375, %v561
        %v591 = vmul.f32 %v380, %v561
        %v592 = vmul.f32 %v385, %v561
        %v593 = vmul.f32 %v390, %v561
        %v594 = vmul.f32 %v395, %v561
        %v595 = vmul.f32 %v400, %v561
        %v596 = vmul.f32 %v405, %v561
        %v597 = vmul.f32 %v410, %v561
        %v598 = vmul.f32 %v415, %v561
        %v599 = vmul.f32 %v420, %v561
        %v600 = vmul.f32 %v425, %v561
        %v601 = vmul.f32 %v430, %v561
        %v602 = vmul.f32 %v435, %v561
        %v603 = vmul.f32 %v440, %v561
        %v604 = vmul.f32 %v445, %v561
        %v605 = vmul.f32 %v450, %v561
        %v606 = vmul.f32 %v455, %v561
        %v607 = vmul.f32 %v460, %v561
        %v608 = vmul.f32 %v465, %v561
        %v609 = vmul.f32 %v470, %v561
        %v610 = vmul.f32 %v475, %v561
        %v611 = vmul.f32 %v480, %v561
        %v612 = vmul.f32 %v485, %v561
        %v613 = vmul.f32 %v490, %v561
        %v614 = vmul.f32 %v495, %v561
        %v615 = vmul.f32 %v500, %v561
        %v616 = vmul.f32 %v505, %v561
        %v617 = vmul.f32 %v510, %v561
        %v618 = vmul.f32 %v515, %v561
        %v619 = vmul.f32 %v520, %v561
        %v620 = vmul.f32 %v525, %v561
        %v621 = vmul.f32 %v530, %v561
        %v622 = vmul.f32 %v535, %v561
        %v623 = vmul.f32 %v540, %v561
        %v624 = vmul.f32 %v545, %v561
        %v625 = vmul.f32 %v550, %v561
        %v626 = vmul.f32 %v555, %v561
        %v627 = vld [vmem:[%s2] sm:$0x1]
        %v629 = vlaneseq
        %v630 = vshrl.u32 %v629, 7
        %v631 = vsub.s32 0, %v630
        %v632 = vrot.slane %v627, %v631
        %v634 = vadd.f32 %v563, %v632
        %v635 = vadd.f32 %v564, %v632
        %v636 = vadd.f32 %v565, %v632
        %v637 = vadd.f32 %v566, %v632
        %v638 = vadd.f32 %v567, %v632
        %v639 = vadd.f32 %v568, %v632
        %v640 = vadd.f32 %v569, %v632
        %v641 = vadd.f32 %v570, %v632
        %v642 = vadd.f32 %v571, %v632
        %v643 = vadd.f32 %v572, %v632
        %v644 = vadd.f32 %v573, %v632
        %v645 = vadd.f32 %v574, %v632
        %v646 = vadd.f32 %v575, %v632
        %v647 = vadd.f32 %v576, %v632
        %v648 = vadd.f32 %v577, %v632
        %v649 = vadd.f32 %v578, %v632
        %v650 = vadd.f32 %v579, %v632
        %v651 = vadd.f32 %v580, %v632
        %v652 = vadd.f32 %v581, %v632
        %v653 = vadd.f32 %v582, %v632
        %v654 = vadd.f32 %v583, %v632
        %v655 = vadd.f32 %v584, %v632
        %v656 = vadd.f32 %v585, %v632
        %v657 = vadd.f32 %v586, %v632
        %v658 = vadd.f32 %v587, %v632
        %v659 = vadd.f32 %v588, %v632
        %v660 = vadd.f32 %v589, %v632
        %v661 = vadd.f32 %v590, %v632
        %v662 = vadd.f32 %v591, %v632
        %v663 = vadd.f32 %v592, %v632
        %v664 = vadd.f32 %v593, %v632
        %v665 = vadd.f32 %v594, %v632
        %v666 = vadd.f32 %v595, %v632
        %v667 = vadd.f32 %v596, %v632
        %v668 = vadd.f32 %v597, %v632
        %v669 = vadd.f32 %v598, %v632
        %v670 = vadd.f32 %v599, %v632
        %v671 = vadd.f32 %v600, %v632
        %v672 = vadd.f32 %v601, %v632
        %v673 = vadd.f32 %v602, %v632
        %v674 = vadd.f32 %v603, %v632
        %v675 = vadd.f32 %v604, %v632
        %v676 = vadd.f32 %v605, %v632
        %v677 = vadd.f32 %v606, %v632
        %v678 = vadd.f32 %v607, %v632
        %v679 = vadd.f32 %v608, %v632
        %v680 = vadd.f32 %v609, %v632
        %v681 = vadd.f32 %v610, %v632
        %v682 = vadd.f32 %v611, %v632
        %v683 = vadd.f32 %v612, %v632
        %v684 = vadd.f32 %v613, %v632
        %v685 = vadd.f32 %v614, %v632
        %v686 = vadd.f32 %v615, %v632
        %v687 = vadd.f32 %v616, %v632
        %v688 = vadd.f32 %v617, %v632
        %v689 = vadd.f32 %v618, %v632
        %v690 = vadd.f32 %v619, %v632
        %v691 = vadd.f32 %v620, %v632
        %v692 = vadd.f32 %v621, %v632
        %v693 = vadd.f32 %v622, %v632
        %v694 = vadd.f32 %v623, %v632
        %v695 = vadd.f32 %v624, %v632
        %v696 = vadd.f32 %v625, %v632
        %v697 = vadd.f32 %v626, %v632
        %v698 = vand.u32 2147483647, %v634
        %vm699 = vcmp.le.f32.partialorder %v698, 0.7853982
        %vm700 = vcmp.lt.s32.totalorder %v634, 0
        %v701 = vand.u32 %v634, 2139095040
        %v702 = vshrl.u32 %v701, 23
        %v703 = vsub.s32 %v702, 127
        %v704 = vand.u32 2147483647, %v634
        %v705 = vand.u32 %v704, 8388607
        %v706 = vor.u32 %v705, 8388608
        %v707 = vsub.s32 0, %v706
        %v708 = vadd.s32 %v703, 1
        %vm709 = vcmp.gt.s32.totalorder %v708, 0
        %v710 = vsel %vm709, %v708, 0
        %v711 = vshrl.u32 %v710, 5
        %v712 = vand.u32 %v710, 31
        %v713 = vsub.s32 32, %v712
        %v714 = vshrl.u32 683565275, %v713
        %v715 = vshll.u32 683565275, %v712
        %v716 = vshrl.u32 2475754826, %v713
        %v717 = vor.u32 %v715, %v716
        %v718 = vshll.u32 2475754826, %v712
        %v719 = vshrl.u32 2131351028, %v713
        %v720 = vor.u32 %v718, %v719
        %v721 = vshll.u32 2131351028, %v712
        %v722 = vshrl.u32 2102212464, %v713
        %v723 = vor.u32 %v721, %v722
        %v724 = vshll.u32 2102212464, %v712
        %v725 = vshrl.u32 920167782, %v713
        %v726 = vor.u32 %v724, %v725
        %v727 = vshll.u32 920167782, %v712
        %v728 = vshrl.u32 1326507024, %v713
        %v729 = vor.u32 %v727, %v728
        %vm730 = vcmp.lt.s32.totalorder %v711, 1
        %vm731 = vcmp.lt.s32.totalorder %v711, 2
        %vm732 = vcmp.lt.s32.totalorder %v711, 3
        %vm733 = vcmp.lt.s32.totalorder %v711, 4
        %v734 = vsel %vm730, %v714, %v717
        %v735 = vsel %vm733, %v723, 2102212464
        %v736 = vsel %vm732, %v720, %v735
        %v737 = vsel %vm731, %v734, %v736
        %v738 = vsel %vm730, %v717, %v720
        %v739 = vsel %vm733, %v726, 920167782
        %v740 = vsel %vm732, %v723, %v739
        %v741 = vsel %vm731, %v738, %v740
        %v742 = vsel %vm730, %v720, %v723
        %v743 = vsel %vm733, %v729, 1326507024
        %v744 = vsel %vm732, %v726, %v743
        %v745 = vsel %vm731, %v742, %v744
        %v746 = vshll.u32 %v706, 8
        %v747 = vmul.u32.u64.compose %v746, %v745
        %v748 = vextract.low.u32 %v747
        %v749 = vextract.high.u32 %v747
        %v750 = vmul.u32.u64.compose %v746, %v741
        %v751 = vextract.low.u32 %v750
        %v752 = vextract.high.u32 %v750
        %v753 = vmul.u32 %v746, %v737
        %v754 = vadd.s32 %v749, %v751
        %vm755 = vc.u32 %v749, %v751
        %v756 = vadd.s32 %v752, 1
        %v757 = vsel %vm755, %v756, %v752
        %v758 = vadd.s32 %v753, %v757
        %v759 = vadd.s32 %v758, 536870912
        %v760 = vshrl.u32 %v759, 30
        %v761 = vshll.u32 %v760, 30
        %v762 = vsub.s32 %v758, %v761
        %vm763 = vcmp.lt.s32.totalorder %v762, 0
        %v764 = vsub.s32 0, %v762
        %v765 = vsel %vm763, %v764, %v762
        %v766 = vclz %v765
        %v767 = vsub.s32 %v766, 2
        %vm768 = vcmp.gt.s32.totalorder 0, %v767
        %v769 = vsel %vm768, 0, %v767
        %v770 = vsub.s32 32, %v769
        %v771 = vshll.u32 %v762, %v769
        %v772 = vshrl.u32 %v754, %v770
        %v773 = vor.u32 %v771, %v772
        %v774 = vsub.s32 4294967266, %v769
        %v775 = vadd.s32 %v774, 127
        %v776 = vshll.u32 %v775, 23
        %v777 = vor.u32 4788187, %v776
        %v778 = vand.u32 2147483647, %v777
        %v780 = vcvt.s32.f32 %v773
        %v781 = vmul.f32 %v780, %v778
        %v782 = vxor.u32 %v781, 2147483648
        %v783 = vsel %vm700, %v782, %v781
        %v784 = vsub.s32 4, %v760
        %v785 = vsel %vm700, %v784, %v760
        %v786 = vsel %vm699, %v634, %v783
        %v787 = vsel %vm699, 0, %v785
        %v788 = vcosq.f32.pop %v786
        %v789 = vsinq.f32.pop %v786
        %vm790 = vweird.f32 %v634
        %v791 = vadd.s32 %v787, 3
        %v792 = vand.u32 %v791, 3
        %vm793 = vcmp.lt.s32.totalorder %v792, 2
        %vm794 = vcmp.eq.s32.totalorder %v792, 0
        %v795 = vxor.u32 %v789, 2147483648
        %v796 = vsel %vm794, %v788, %v795
        %vm797 = vcmp.eq.s32.totalorder %v792, 2
        %v798 = vxor.u32 %v788, 2147483648
        %v799 = vsel %vm797, %v798, %v789
        %v800 = vsel %vm793, %v796, %v799
        %v801 = vsel %vm790, nan, %v800
        %v802 = vand.u32 2147483647, %v635
        %vm803 = vcmp.le.f32.partialorder %v802, 0.7853982
        %vm804 = vcmp.lt.s32.totalorder %v635, 0
        %v805 = vand.u32 %v635, 2139095040
        %v806 = vshrl.u32 %v805, 23
        %v807 = vsub.s32 %v806, 127
        %v808 = vand.u32 2147483647, %v635
        %v809 = vand.u32 %v808, 8388607
        %v810 = vor.u32 %v809, 8388608
        %v811 = vsub.s32 0, %v810
        %v812 = vadd.s32 %v807, 1
        %vm813 = vcmp.gt.s32.totalorder %v812, 0
        %v814 = vsel %vm813, %v812, 0
        %v815 = vshrl.u32 %v814, 5
        %v816 = vand.u32 %v814, 31
        %v817 = vsub.s32 32, %v816
        %v818 = vshrl.u32 683565275, %v817
        %v819 = vshll.u32 683565275, %v816
        %v820 = vshrl.u32 2475754826, %v817
        %v821 = vor.u32 %v819, %v820
        %v822 = vshll.u32 2475754826, %v816
        %v823 = vshrl.u32 2131351028, %v817
        %v824 = vor.u32 %v822, %v823
        %v825 = vshll.u32 2131351028, %v816
        %v826 = vshrl.u32 2102212464, %v817
        %v827 = vor.u32 %v825, %v826
        %v828 = vshll.u32 2102212464, %v816
        %v829 = vshrl.u32 920167782, %v817
        %v830 = vor.u32 %v828, %v829
        %v831 = vshll.u32 920167782, %v816
        %v832 = vshrl.u32 1326507024, %v817
        %v833 = vor.u32 %v831, %v832
        %vm834 = vcmp.lt.s32.totalorder %v815, 1
        %vm835 = vcmp.lt.s32.totalorder %v815, 2
        %vm836 = vcmp.lt.s32.totalorder %v815, 3
        %vm837 = vcmp.lt.s32.totalorder %v815, 4
        %v838 = vsel %vm834, %v818, %v821
        %v839 = vsel %vm837, %v827, 2102212464
        %v840 = vsel %vm836, %v824, %v839
        %v841 = vsel %vm835, %v838, %v840
        %v842 = vsel %vm834, %v821, %v824
        %v843 = vsel %vm837, %v830, 920167782
        %v844 = vsel %vm836, %v827, %v843
        %v845 = vsel %vm835, %v842, %v844
        %v846 = vsel %vm834, %v824, %v827
        %v847 = vsel %vm837, %v833, 1326507024
        %v848 = vsel %vm836, %v830, %v847
        %v849 = vsel %vm835, %v846, %v848
        %v850 = vshll.u32 %v810, 8
        %v851 = vmul.u32.u64.compose %v850, %v849
        %v852 = vextract.low.u32 %v851
        %v853 = vextract.high.u32 %v851
        %v854 = vmul.u32.u64.compose %v850, %v845
        %v855 = vextract.low.u32 %v854
        %v856 = vextract.high.u32 %v854
        %v857 = vmul.u32 %v850, %v841
        %v858 = vadd.s32 %v853, %v855
        %vm859 = vc.u32 %v853, %v855
        %v860 = vadd.s32 %v856, 1
        %v861 = vsel %vm859, %v860, %v856
        %v862 = vadd.s32 %v857, %v861
        %v863 = vadd.s32 %v862, 536870912
        %v864 = vshrl.u32 %v863, 30
        %v865 = vshll.u32 %v864, 30
        %v866 = vsub.s32 %v862, %v865
        %vm867 = vcmp.lt.s32.totalorder %v866, 0
        %v868 = vsub.s32 0, %v866
        %v869 = vsel %vm867, %v868, %v866
        %v870 = vclz %v869
        %v871 = vsub.s32 %v870, 2
        %vm872 = vcmp.gt.s32.totalorder 0, %v871
        %v873 = vsel %vm872, 0, %v871
        %v874 = vsub.s32 32, %v873
        %v875 = vshll.u32 %v866, %v873
        %v876 = vshrl.u32 %v858, %v874
        %v877 = vor.u32 %v875, %v876
        %v878 = vsub.s32 4294967266, %v873
        %v879 = vadd.s32 %v878, 127
        %v880 = vshll.u32 %v879, 23
        %v881 = vor.u32 4788187, %v880
        %v882 = vand.u32 2147483647, %v881
        %v884 = vcvt.s32.f32 %v877
        %v885 = vmul.f32 %v884, %v882
        %v886 = vxor.u32 %v885, 2147483648
        %v887 = vsel %vm804, %v886, %v885
        %v888 = vsub.s32 4, %v864
        %v889 = vsel %vm804, %v888, %v864
        %v890 = vsel %vm803, %v635, %v887
        %v891 = vsel %vm803, 0, %v889
        %v892 = vcosq.f32.pop %v890
        %v893 = vsinq.f32.pop %v890
        %vm894 = vweird.f32 %v635
        %v895 = vadd.s32 %v891, 3
        %v896 = vand.u32 %v895, 3
        %vm897 = vcmp.lt.s32.totalorder %v896, 2
        %vm898 = vcmp.eq.s32.totalorder %v896, 0
        %v899 = vxor.u32 %v893, 2147483648
        %v900 = vsel %vm898, %v892, %v899
        %vm901 = vcmp.eq.s32.totalorder %v896, 2
        %v902 = vxor.u32 %v892, 2147483648
        %v903 = vsel %vm901, %v902, %v893
        %v904 = vsel %vm897, %v900, %v903
        %v905 = vsel %vm894, nan, %v904
        %v906 = vand.u32 2147483647, %v636
        %vm907 = vcmp.le.f32.partialorder %v906, 0.7853982
        %vm908 = vcmp.lt.s32.totalorder %v636, 0
        %v909 = vand.u32 %v636, 2139095040
        %v910 = vshrl.u32 %v909, 23
        %v911 = vsub.s32 %v910, 127
        %v912 = vand.u32 2147483647, %v636
        %v913 = vand.u32 %v912, 8388607
        %v914 = vor.u32 %v913, 8388608
        %v915 = vsub.s32 0, %v914
        %v916 = vadd.s32 %v911, 1
        %vm917 = vcmp.gt.s32.totalorder %v916, 0
        %v918 = vsel %vm917, %v916, 0
        %v919 = vshrl.u32 %v918, 5
        %v920 = vand.u32 %v918, 31
        %v921 = vsub.s32 32, %v920
        %v922 = vshrl.u32 683565275, %v921
        %v923 = vshll.u32 683565275, %v920
        %v924 = vshrl.u32 2475754826, %v921
        %v925 = vor.u32 %v923, %v924
        %v926 = vshll.u32 2475754826, %v920
        %v927 = vshrl.u32 2131351028, %v921
        %v928 = vor.u32 %v926, %v927
        %v929 = vshll.u32 2131351028, %v920
        %v930 = vshrl.u32 2102212464, %v921
        %v931 = vor.u32 %v929, %v930
        %v932 = vshll.u32 2102212464, %v920
        %v933 = vshrl.u32 920167782, %v921
        %v934 = vor.u32 %v932, %v933
        %v935 = vshll.u32 920167782, %v920
        %v936 = vshrl.u32 1326507024, %v921
        %v937 = vor.u32 %v935, %v936
        %vm938 = vcmp.lt.s32.totalorder %v919, 1
        %vm939 = vcmp.lt.s32.totalorder %v919, 2
        %vm940 = vcmp.lt.s32.totalorder %v919, 3
        %vm941 = vcmp.lt.s32.totalorder %v919, 4
        %v942 = vsel %vm938, %v922, %v925
        %v943 = vsel %vm941, %v931, 2102212464
        %v944 = vsel %vm940, %v928, %v943
        %v945 = vsel %vm939, %v942, %v944
        %v946 = vsel %vm938, %v925, %v928
        %v947 = vsel %vm941, %v934, 920167782
        %v948 = vsel %vm940, %v931, %v947
        %v949 = vsel %vm939, %v946, %v948
        %v950 = vsel %vm938, %v928, %v931
        %v951 = vsel %vm941, %v937, 1326507024
        %v952 = vsel %vm940, %v934, %v951
        %v953 = vsel %vm939, %v950, %v952
        %v954 = vshll.u32 %v914, 8
        %v955 = vmul.u32.u64.compose %v954, %v953
        %v956 = vextract.low.u32 %v955
        %v957 = vextract.high.u32 %v955
        %v958 = vmul.u32.u64.compose %v954, %v949
        %v959 = vextract.low.u32 %v958
        %v960 = vextract.high.u32 %v958
        %v961 = vmul.u32 %v954, %v945
        %v962 = vadd.s32 %v957, %v959
        %vm963 = vc.u32 %v957, %v959
        %v964 = vadd.s32 %v960, 1
        %v965 = vsel %vm963, %v964, %v960
        %v966 = vadd.s32 %v961, %v965
        %v967 = vadd.s32 %v966, 536870912
        %v968 = vshrl.u32 %v967, 30
        %v969 = vshll.u32 %v968, 30
        %v970 = vsub.s32 %v966, %v969
        %vm971 = vcmp.lt.s32.totalorder %v970, 0
        %v972 = vsub.s32 0, %v970
        %v973 = vsel %vm971, %v972, %v970
        %v974 = vclz %v973
        %v975 = vsub.s32 %v974, 2
        %vm976 = vcmp.gt.s32.totalorder 0, %v975
        %v977 = vsel %vm976, 0, %v975
        %v978 = vsub.s32 32, %v977
        %v979 = vshll.u32 %v970, %v977
        %v980 = vshrl.u32 %v962, %v978
        %v981 = vor.u32 %v979, %v980
        %v982 = vsub.s32 4294967266, %v977
        %v983 = vadd.s32 %v982, 127
        %v984 = vshll.u32 %v983, 23
        %v985 = vor.u32 4788187, %v984
        %v986 = vand.u32 2147483647, %v985
        %v988 = vcvt.s32.f32 %v981
        %v989 = vmul.f32 %v988, %v986
        %v990 = vxor.u32 %v989, 2147483648
        %v991 = vsel %vm908, %v990, %v989
        %v992 = vsub.s32 4, %v968
        %v993 = vsel %vm908, %v992, %v968
        %v994 = vsel %vm907, %v636, %v991
        %v995 = vsel %vm907, 0, %v993
        %v996 = vcosq.f32.pop %v994
        %v997 = vsinq.f32.pop %v994
        %vm998 = vweird.f32 %v636
        %v999 = vadd.s32 %v995, 3
        %v1000 = vand.u32 %v999, 3
        %vm1001 = vcmp.lt.s32.totalorder %v1000, 2
        %vm1002 = vcmp.eq.s32.totalorder %v1000, 0
        %v1003 = vxor.u32 %v997, 2147483648
        %v1004 = vsel %vm1002, %v996, %v1003
        %vm1005 = vcmp.eq.s32.totalorder %v1000, 2
        %v1006 = vxor.u32 %v996, 2147483648
        %v1007 = vsel %vm1005, %v1006, %v997
        %v1008 = vsel %vm1001, %v1004, %v1007
        %v1009 = vsel %vm998, nan, %v1008
        %v1010 = vand.u32 2147483647, %v637
        %vm1011 = vcmp.le.f32.partialorder %v1010, 0.7853982
        %vm1012 = vcmp.lt.s32.totalorder %v637, 0
        %v1013 = vand.u32 %v637, 2139095040
        %v1014 = vshrl.u32 %v1013, 23
        %v1015 = vsub.s32 %v1014, 127
        %v1016 = vand.u32 2147483647, %v637
        %v1017 = vand.u32 %v1016, 8388607
        %v1018 = vor.u32 %v1017, 8388608
        %v1019 = vsub.s32 0, %v1018
        %v1020 = vadd.s32 %v1015, 1
        %vm1021 = vcmp.gt.s32.totalorder %v1020, 0
        %v1022 = vsel %vm1021, %v1020, 0
        %v1023 = vshrl.u32 %v1022, 5
        %v1024 = vand.u32 %v1022, 31
        %v1025 = vsub.s32 32, %v1024
        %v1026 = vshrl.u32 683565275, %v1025
        %v1027 = vshll.u32 683565275, %v1024
        %v1028 = vshrl.u32 2475754826, %v1025
        %v1029 = vor.u32 %v1027, %v1028
        %v1030 = vshll.u32 2475754826, %v1024
        %v1031 = vshrl.u32 2131351028, %v1025
        %v1032 = vor.u32 %v1030, %v1031
        %v1033 = vshll.u32 2131351028, %v1024
        %v1034 = vshrl.u32 2102212464, %v1025
        %v1035 = vor.u32 %v1033, %v1034
        %v1036 = vshll.u32 2102212464, %v1024
        %v1037 = vshrl.u32 920167782, %v1025
        %v1038 = vor.u32 %v1036, %v1037
        %v1039 = vshll.u32 920167782, %v1024
        %v1040 = vshrl.u32 1326507024, %v1025
        %v1041 = vor.u32 %v1039, %v1040
        %vm1042 = vcmp.lt.s32.totalorder %v1023, 1
        %vm1043 = vcmp.lt.s32.totalorder %v1023, 2
        %vm1044 = vcmp.lt.s32.totalorder %v1023, 3
        %vm1045 = vcmp.lt.s32.totalorder %v1023, 4
        %v1046 = vsel %vm1042, %v1026, %v1029
        %v1047 = vsel %vm1045, %v1035, 2102212464
        %v1048 = vsel %vm1044, %v1032, %v1047
        %v1049 = vsel %vm1043, %v1046, %v1048
        %v1050 = vsel %vm1042, %v1029, %v1032
        %v1051 = vsel %vm1045, %v1038, 920167782
        %v1052 = vsel %vm1044, %v1035, %v1051
        %v1053 = vsel %vm1043, %v1050, %v1052
        %v1054 = vsel %vm1042, %v1032, %v1035
        %v1055 = vsel %vm1045, %v1041, 1326507024
        %v1056 = vsel %vm1044, %v1038, %v1055
        %v1057 = vsel %vm1043, %v1054, %v1056
        %v1058 = vshll.u32 %v1018, 8
        %v1059 = vmul.u32.u64.compose %v1058, %v1057
        %v1060 = vextract.low.u32 %v1059
        %v1061 = vextract.high.u32 %v1059
        %v1062 = vmul.u32.u64.compose %v1058, %v1053
        %v1063 = vextract.low.u32 %v1062
        %v1064 = vextract.high.u32 %v1062
        %v1065 = vmul.u32 %v1058, %v1049
        %v1066 = vadd.s32 %v1061, %v1063
        %vm1067 = vc.u32 %v1061, %v1063
        %v1068 = vadd.s32 %v1064, 1
        %v1069 = vsel %vm1067, %v1068, %v1064
        %v1070 = vadd.s32 %v1065, %v1069
        %v1071 = vadd.s32 %v1070, 536870912
        %v1072 = vshrl.u32 %v1071, 30
        %v1073 = vshll.u32 %v1072, 30
        %v1074 = vsub.s32 %v1070, %v1073
        %vm1075 = vcmp.lt.s32.totalorder %v1074, 0
        %v1076 = vsub.s32 0, %v1074
        %v1077 = vsel %vm1075, %v1076, %v1074
        %v1078 = vclz %v1077
        %v1079 = vsub.s32 %v1078, 2
        %vm1080 = vcmp.gt.s32.totalorder 0, %v1079
        %v1081 = vsel %vm1080, 0, %v1079
        %v1082 = vsub.s32 32, %v1081
        %v1083 = vshll.u32 %v1074, %v1081
        %v1084 = vshrl.u32 %v1066, %v1082
        %v1085 = vor.u32 %v1083, %v1084
        %v1086 = vsub.s32 4294967266, %v1081
        %v1087 = vadd.s32 %v1086, 127
        %v1088 = vshll.u32 %v1087, 23
        %v1089 = vor.u32 4788187, %v1088
        %v1090 = vand.u32 2147483647, %v1089
        %v1092 = vcvt.s32.f32 %v1085
        %v1093 = vmul.f32 %v1092, %v1090
        %v1094 = vxor.u32 %v1093, 2147483648
        %v1095 = vsel %vm1012, %v1094, %v1093
        %v1096 = vsub.s32 4, %v1072
        %v1097 = vsel %vm1012, %v1096, %v1072
        %v1098 = vsel %vm1011, %v637, %v1095
        %v1099 = vsel %vm1011, 0, %v1097
        %v1100 = vcosq.f32.pop %v1098
        %v1101 = vsinq.f32.pop %v1098
        %vm1102 = vweird.f32 %v637
        %v1103 = vadd.s32 %v1099, 3
        %v1104 = vand.u32 %v1103, 3
        %vm1105 = vcmp.lt.s32.totalorder %v1104, 2
        %vm1106 = vcmp.eq.s32.totalorder %v1104, 0
        %v1107 = vxor.u32 %v1101, 2147483648
        %v1108 = vsel %vm1106, %v1100, %v1107
        %vm1109 = vcmp.eq.s32.totalorder %v1104, 2
        %v1110 = vxor.u32 %v1100, 2147483648
        %v1111 = vsel %vm1109, %v1110, %v1101
        %v1112 = vsel %vm1105, %v1108, %v1111
        %v1113 = vsel %vm1102, nan, %v1112
        %v1114 = vand.u32 2147483647, %v638
        %vm1115 = vcmp.le.f32.partialorder %v1114, 0.7853982
        %vm1116 = vcmp.lt.s32.totalorder %v638, 0
        %v1117 = vand.u32 %v638, 2139095040
        %v1118 = vshrl.u32 %v1117, 23
        %v1119 = vsub.s32 %v1118, 127
        %v1120 = vand.u32 2147483647, %v638
        %v1121 = vand.u32 %v1120, 8388607
        %v1122 = vor.u32 %v1121, 8388608
        %v1123 = vsub.s32 0, %v1122
        %v1124 = vadd.s32 %v1119, 1
        %vm1125 = vcmp.gt.s32.totalorder %v1124, 0
        %v1126 = vsel %vm1125, %v1124, 0
        %v1127 = vshrl.u32 %v1126, 5
        %v1128 = vand.u32 %v1126, 31
        %v1129 = vsub.s32 32, %v1128
        %v1130 = vshrl.u32 683565275, %v1129
        %v1131 = vshll.u32 683565275, %v1128
        %v1132 = vshrl.u32 2475754826, %v1129
        %v1133 = vor.u32 %v1131, %v1132
        %v1134 = vshll.u32 2475754826, %v1128
        %v1135 = vshrl.u32 2131351028, %v1129
        %v1136 = vor.u32 %v1134, %v1135
        %v1137 = vshll.u32 2131351028, %v1128
        %v1138 = vshrl.u32 2102212464, %v1129
        %v1139 = vor.u32 %v1137, %v1138
        %v1140 = vshll.u32 2102212464, %v1128
        %v1141 = vshrl.u32 920167782, %v1129
        %v1142 = vor.u32 %v1140, %v1141
        %v1143 = vshll.u32 920167782, %v1128
        %v1144 = vshrl.u32 1326507024, %v1129
        %v1145 = vor.u32 %v1143, %v1144
        %vm1146 = vcmp.lt.s32.totalorder %v1127, 1
        %vm1147 = vcmp.lt.s32.totalorder %v1127, 2
        %vm1148 = vcmp.lt.s32.totalorder %v1127, 3
        %vm1149 = vcmp.lt.s32.totalorder %v1127, 4
        %v1150 = vsel %vm1146, %v1130, %v1133
        %v1151 = vsel %vm1149, %v1139, 2102212464
        %v1152 = vsel %vm1148, %v1136, %v1151
        %v1153 = vsel %vm1147, %v1150, %v1152
        %v1154 = vsel %vm1146, %v1133, %v1136
        %v1155 = vsel %vm1149, %v1142, 920167782
        %v1156 = vsel %vm1148, %v1139, %v1155
        %v1157 = vsel %vm1147, %v1154, %v1156
        %v1158 = vsel %vm1146, %v1136, %v1139
        %v1159 = vsel %vm1149, %v1145, 1326507024
        %v1160 = vsel %vm1148, %v1142, %v1159
        %v1161 = vsel %vm1147, %v1158, %v1160
        %v1162 = vshll.u32 %v1122, 8
        %v1163 = vmul.u32.u64.compose %v1162, %v1161
        %v1164 = vextract.low.u32 %v1163
        %v1165 = vextract.high.u32 %v1163
        %v1166 = vmul.u32.u64.compose %v1162, %v1157
        %v1167 = vextract.low.u32 %v1166
        %v1168 = vextract.high.u32 %v1166
        %v1169 = vmul.u32 %v1162, %v1153
        %v1170 = vadd.s32 %v1165, %v1167
        %vm1171 = vc.u32 %v1165, %v1167
        %v1172 = vadd.s32 %v1168, 1
        %v1173 = vsel %vm1171, %v1172, %v1168
        %v1174 = vadd.s32 %v1169, %v1173
        %v1175 = vadd.s32 %v1174, 536870912
        %v1176 = vshrl.u32 %v1175, 30
        %v1177 = vshll.u32 %v1176, 30
        %v1178 = vsub.s32 %v1174, %v1177
        %vm1179 = vcmp.lt.s32.totalorder %v1178, 0
        %v1180 = vsub.s32 0, %v1178
        %v1181 = vsel %vm1179, %v1180, %v1178
        %v1182 = vclz %v1181
        %v1183 = vsub.s32 %v1182, 2
        %vm1184 = vcmp.gt.s32.totalorder 0, %v1183
        %v1185 = vsel %vm1184, 0, %v1183
        %v1186 = vsub.s32 32, %v1185
        %v1187 = vshll.u32 %v1178, %v1185
        %v1188 = vshrl.u32 %v1170, %v1186
        %v1189 = vor.u32 %v1187, %v1188
        %v1190 = vsub.s32 4294967266, %v1185
        %v1191 = vadd.s32 %v1190, 127
        %v1192 = vshll.u32 %v1191, 23
        %v1193 = vor.u32 4788187, %v1192
        %v1194 = vand.u32 2147483647, %v1193
        %v1196 = vcvt.s32.f32 %v1189
        %v1197 = vmul.f32 %v1196, %v1194
        %v1198 = vxor.u32 %v1197, 2147483648
        %v1199 = vsel %vm1116, %v1198, %v1197
        %v1200 = vsub.s32 4, %v1176
        %v1201 = vsel %vm1116, %v1200, %v1176
        %v1202 = vsel %vm1115, %v638, %v1199
        %v1203 = vsel %vm1115, 0, %v1201
        %v1204 = vcosq.f32.pop %v1202
        %v1205 = vsinq.f32.pop %v1202
        %vm1206 = vweird.f32 %v638
        %v1207 = vadd.s32 %v1203, 3
        %v1208 = vand.u32 %v1207, 3
        %vm1209 = vcmp.lt.s32.totalorder %v1208, 2
        %vm1210 = vcmp.eq.s32.totalorder %v1208, 0
        %v1211 = vxor.u32 %v1205, 2147483648
        %v1212 = vsel %vm1210, %v1204, %v1211
        %vm1213 = vcmp.eq.s32.totalorder %v1208, 2
        %v1214 = vxor.u32 %v1204, 2147483648
        %v1215 = vsel %vm1213, %v1214, %v1205
        %v1216 = vsel %vm1209, %v1212, %v1215
        %v1217 = vsel %vm1206, nan, %v1216
        %v1218 = vand.u32 2147483647, %v639
        %vm1219 = vcmp.le.f32.partialorder %v1218, 0.7853982
        %vm1220 = vcmp.lt.s32.totalorder %v639, 0
        %v1221 = vand.u32 %v639, 2139095040
        %v1222 = vshrl.u32 %v1221, 23
        %v1223 = vsub.s32 %v1222, 127
        %v1224 = vand.u32 2147483647, %v639
        %v1225 = vand.u32 %v1224, 8388607
        %v1226 = vor.u32 %v1225, 8388608
        %v1227 = vsub.s32 0, %v1226
        %v1228 = vadd.s32 %v1223, 1
        %vm1229 = vcmp.gt.s32.totalorder %v1228, 0
        %v1230 = vsel %vm1229, %v1228, 0
        %v1231 = vshrl.u32 %v1230, 5
        %v1232 = vand.u32 %v1230, 31
        %v1233 = vsub.s32 32, %v1232
        %v1234 = vshrl.u32 683565275, %v1233
        %v1235 = vshll.u32 683565275, %v1232
        %v1236 = vshrl.u32 2475754826, %v1233
        %v1237 = vor.u32 %v1235, %v1236
        %v1238 = vshll.u32 2475754826, %v1232
        %v1239 = vshrl.u32 2131351028, %v1233
        %v1240 = vor.u32 %v1238, %v1239
        %v1241 = vshll.u32 2131351028, %v1232
        %v1242 = vshrl.u32 2102212464, %v1233
        %v1243 = vor.u32 %v1241, %v1242
        %v1244 = vshll.u32 2102212464, %v1232
        %v1245 = vshrl.u32 920167782, %v1233
        %v1246 = vor.u32 %v1244, %v1245
        %v1247 = vshll.u32 920167782, %v1232
        %v1248 = vshrl.u32 1326507024, %v1233
        %v1249 = vor.u32 %v1247, %v1248
        %vm1250 = vcmp.lt.s32.totalorder %v1231, 1
        %vm1251 = vcmp.lt.s32.totalorder %v1231, 2
        %vm1252 = vcmp.lt.s32.totalorder %v1231, 3
        %vm1253 = vcmp.lt.s32.totalorder %v1231, 4
        %v1254 = vsel %vm1250, %v1234, %v1237
        %v1255 = vsel %vm1253, %v1243, 2102212464
        %v1256 = vsel %vm1252, %v1240, %v1255
        %v1257 = vsel %vm1251, %v1254, %v1256
        %v1258 = vsel %vm1250, %v1237, %v1240
        %v1259 = vsel %vm1253, %v1246, 920167782
        %v1260 = vsel %vm1252, %v1243, %v1259
        %v1261 = vsel %vm1251, %v1258, %v1260
        %v1262 = vsel %vm1250, %v1240, %v1243
        %v1263 = vsel %vm1253, %v1249, 1326507024
        %v1264 = vsel %vm1252, %v1246, %v1263
        %v1265 = vsel %vm1251, %v1262, %v1264
        %v1266 = vshll.u32 %v1226, 8
        %v1267 = vmul.u32.u64.compose %v1266, %v1265
        %v1268 = vextract.low.u32 %v1267
        %v1269 = vextract.high.u32 %v1267
        %v1270 = vmul.u32.u64.compose %v1266, %v1261
        %v1271 = vextract.low.u32 %v1270
        %v1272 = vextract.high.u32 %v1270
        %v1273 = vmul.u32 %v1266, %v1257
        %v1274 = vadd.s32 %v1269, %v1271
        %vm1275 = vc.u32 %v1269, %v1271
        %v1276 = vadd.s32 %v1272, 1
        %v1277 = vsel %vm1275, %v1276, %v1272
        %v1278 = vadd.s32 %v1273, %v1277
        %v1279 = vadd.s32 %v1278, 536870912
        %v1280 = vshrl.u32 %v1279, 30
        %v1281 = vshll.u32 %v1280, 30
        %v1282 = vsub.s32 %v1278, %v1281
        %vm1283 = vcmp.lt.s32.totalorder %v1282, 0
        %v1284 = vsub.s32 0, %v1282
        %v1285 = vsel %vm1283, %v1284, %v1282
        %v1286 = vclz %v1285
        %v1287 = vsub.s32 %v1286, 2
        %vm1288 = vcmp.gt.s32.totalorder 0, %v1287
        %v1289 = vsel %vm1288, 0, %v1287
        %v1290 = vsub.s32 32, %v1289
        %v1291 = vshll.u32 %v1282, %v1289
        %v1292 = vshrl.u32 %v1274, %v1290
        %v1293 = vor.u32 %v1291, %v1292
        %v1294 = vsub.s32 4294967266, %v1289
        %v1295 = vadd.s32 %v1294, 127
        %v1296 = vshll.u32 %v1295, 23
        %v1297 = vor.u32 4788187, %v1296
        %v1298 = vand.u32 2147483647, %v1297
        %v1300 = vcvt.s32.f32 %v1293
        %v1301 = vmul.f32 %v1300, %v1298
        %v1302 = vxor.u32 %v1301, 2147483648
        %v1303 = vsel %vm1220, %v1302, %v1301
        %v1304 = vsub.s32 4, %v1280
        %v1305 = vsel %vm1220, %v1304, %v1280
        %v1306 = vsel %vm1219, %v639, %v1303
        %v1307 = vsel %vm1219, 0, %v1305
        %v1308 = vcosq.f32.pop %v1306
        %v1309 = vsinq.f32.pop %v1306
        %vm1310 = vweird.f32 %v639
        %v1311 = vadd.s32 %v1307, 3
        %v1312 = vand.u32 %v1311, 3
        %vm1313 = vcmp.lt.s32.totalorder %v1312, 2
        %vm1314 = vcmp.eq.s32.totalorder %v1312, 0
        %v1315 = vxor.u32 %v1309, 2147483648
        %v1316 = vsel %vm1314, %v1308, %v1315
        %vm1317 = vcmp.eq.s32.totalorder %v1312, 2
        %v1318 = vxor.u32 %v1308, 2147483648
        %v1319 = vsel %vm1317, %v1318, %v1309
        %v1320 = vsel %vm1313, %v1316, %v1319
        %v1321 = vsel %vm1310, nan, %v1320
        %v1322 = vand.u32 2147483647, %v640
        %vm1323 = vcmp.le.f32.partialorder %v1322, 0.7853982
        %vm1324 = vcmp.lt.s32.totalorder %v640, 0
        %v1325 = vand.u32 %v640, 2139095040
        %v1326 = vshrl.u32 %v1325, 23
        %v1327 = vsub.s32 %v1326, 127
        %v1328 = vand.u32 2147483647, %v640
        %v1329 = vand.u32 %v1328, 8388607
        %v1330 = vor.u32 %v1329, 8388608
        %v1331 = vsub.s32 0, %v1330
        %v1332 = vadd.s32 %v1327, 1
        %vm1333 = vcmp.gt.s32.totalorder %v1332, 0
        %v1334 = vsel %vm1333, %v1332, 0
        %v1335 = vshrl.u32 %v1334, 5
        %v1336 = vand.u32 %v1334, 31
        %v1337 = vsub.s32 32, %v1336
        %v1338 = vshrl.u32 683565275, %v1337
        %v1339 = vshll.u32 683565275, %v1336
        %v1340 = vshrl.u32 2475754826, %v1337
        %v1341 = vor.u32 %v1339, %v1340
        %v1342 = vshll.u32 2475754826, %v1336
        %v1343 = vshrl.u32 2131351028, %v1337
        %v1344 = vor.u32 %v1342, %v1343
        %v1345 = vshll.u32 2131351028, %v1336
        %v1346 = vshrl.u32 2102212464, %v1337
        %v1347 = vor.u32 %v1345, %v1346
        %v1348 = vshll.u32 2102212464, %v1336
        %v1349 = vshrl.u32 920167782, %v1337
        %v1350 = vor.u32 %v1348, %v1349
        %v1351 = vshll.u32 920167782, %v1336
        %v1352 = vshrl.u32 1326507024, %v1337
        %v1353 = vor.u32 %v1351, %v1352
        %vm1354 = vcmp.lt.s32.totalorder %v1335, 1
        %vm1355 = vcmp.lt.s32.totalorder %v1335, 2
        %vm1356 = vcmp.lt.s32.totalorder %v1335, 3
        %vm1357 = vcmp.lt.s32.totalorder %v1335, 4
        %v1358 = vsel %vm1354, %v1338, %v1341
        %v1359 = vsel %vm1357, %v1347, 2102212464
        %v1360 = vsel %vm1356, %v1344, %v1359
        %v1361 = vsel %vm1355, %v1358, %v1360
        %v1362 = vsel %vm1354, %v1341, %v1344
        %v1363 = vsel %vm1357, %v1350, 920167782
        %v1364 = vsel %vm1356, %v1347, %v1363
        %v1365 = vsel %vm1355, %v1362, %v1364
        %v1366 = vsel %vm1354, %v1344, %v1347
        %v1367 = vsel %vm1357, %v1353, 1326507024
        %v1368 = vsel %vm1356, %v1350, %v1367
        %v1369 = vsel %vm1355, %v1366, %v1368
        %v1370 = vshll.u32 %v1330, 8
        %v1371 = vmul.u32.u64.compose %v1370, %v1369
        %v1372 = vextract.low.u32 %v1371
        %v1373 = vextract.high.u32 %v1371
        %v1374 = vmul.u32.u64.compose %v1370, %v1365
        %v1375 = vextract.low.u32 %v1374
        %v1376 = vextract.high.u32 %v1374
        %v1377 = vmul.u32 %v1370, %v1361
        %v1378 = vadd.s32 %v1373, %v1375
        %vm1379 = vc.u32 %v1373, %v1375
        %v1380 = vadd.s32 %v1376, 1
        %v1381 = vsel %vm1379, %v1380, %v1376
        %v1382 = vadd.s32 %v1377, %v1381
        %v1383 = vadd.s32 %v1382, 536870912
        %v1384 = vshrl.u32 %v1383, 30
        %v1385 = vshll.u32 %v1384, 30
        %v1386 = vsub.s32 %v1382, %v1385
        %vm1387 = vcmp.lt.s32.totalorder %v1386, 0
        %v1388 = vsub.s32 0, %v1386
        %v1389 = vsel %vm1387, %v1388, %v1386
        %v1390 = vclz %v1389
        %v1391 = vsub.s32 %v1390, 2
        %vm1392 = vcmp.gt.s32.totalorder 0, %v1391
        %v1393 = vsel %vm1392, 0, %v1391
        %v1394 = vsub.s32 32, %v1393
        %v1395 = vshll.u32 %v1386, %v1393
        %v1396 = vshrl.u32 %v1378, %v1394
        %v1397 = vor.u32 %v1395, %v1396
        %v1398 = vsub.s32 4294967266, %v1393
        %v1399 = vadd.s32 %v1398, 127
        %v1400 = vshll.u32 %v1399, 23
        %v1401 = vor.u32 4788187, %v1400
        %v1402 = vand.u32 2147483647, %v1401
        %v1404 = vcvt.s32.f32 %v1397
        %v1405 = vmul.f32 %v1404, %v1402
        %v1406 = vxor.u32 %v1405, 2147483648
        %v1407 = vsel %vm1324, %v1406, %v1405
        %v1408 = vsub.s32 4, %v1384
        %v1409 = vsel %vm1324, %v1408, %v1384
        %v1410 = vsel %vm1323, %v640, %v1407
        %v1411 = vsel %vm1323, 0, %v1409
        %v1412 = vcosq.f32.pop %v1410
        %v1413 = vsinq.f32.pop %v1410
        %vm1414 = vweird.f32 %v640
        %v1415 = vadd.s32 %v1411, 3
        %v1416 = vand.u32 %v1415, 3
        %vm1417 = vcmp.lt.s32.totalorder %v1416, 2
        %vm1418 = vcmp.eq.s32.totalorder %v1416, 0
        %v1419 = vxor.u32 %v1413, 2147483648
        %v1420 = vsel %vm1418, %v1412, %v1419
        %vm1421 = vcmp.eq.s32.totalorder %v1416, 2
        %v1422 = vxor.u32 %v1412, 2147483648
        %v1423 = vsel %vm1421, %v1422, %v1413
        %v1424 = vsel %vm1417, %v1420, %v1423
        %v1425 = vsel %vm1414, nan, %v1424
        %v1426 = vand.u32 2147483647, %v641
        %vm1427 = vcmp.le.f32.partialorder %v1426, 0.7853982
        %vm1428 = vcmp.lt.s32.totalorder %v641, 0
        %v1429 = vand.u32 %v641, 2139095040
        %v1430 = vshrl.u32 %v1429, 23
        %v1431 = vsub.s32 %v1430, 127
        %v1432 = vand.u32 2147483647, %v641
        %v1433 = vand.u32 %v1432, 8388607
        %v1434 = vor.u32 %v1433, 8388608
        %v1435 = vsub.s32 0, %v1434
        %v1436 = vadd.s32 %v1431, 1
        %vm1437 = vcmp.gt.s32.totalorder %v1436, 0
        %v1438 = vsel %vm1437, %v1436, 0
        %v1439 = vshrl.u32 %v1438, 5
        %v1440 = vand.u32 %v1438, 31
        %v1441 = vsub.s32 32, %v1440
        %v1442 = vshrl.u32 683565275, %v1441
        %v1443 = vshll.u32 683565275, %v1440
        %v1444 = vshrl.u32 2475754826, %v1441
        %v1445 = vor.u32 %v1443, %v1444
        %v1446 = vshll.u32 2475754826, %v1440
        %v1447 = vshrl.u32 2131351028, %v1441
        %v1448 = vor.u32 %v1446, %v1447
        %v1449 = vshll.u32 2131351028, %v1440
        %v1450 = vshrl.u32 2102212464, %v1441
        %v1451 = vor.u32 %v1449, %v1450
        %v1452 = vshll.u32 2102212464, %v1440
        %v1453 = vshrl.u32 920167782, %v1441
        %v1454 = vor.u32 %v1452, %v1453
        %v1455 = vshll.u32 920167782, %v1440
        %v1456 = vshrl.u32 1326507024, %v1441
        %v1457 = vor.u32 %v1455, %v1456
        %vm1458 = vcmp.lt.s32.totalorder %v1439, 1
        %vm1459 = vcmp.lt.s32.totalorder %v1439, 2
        %vm1460 = vcmp.lt.s32.totalorder %v1439, 3
        %vm1461 = vcmp.lt.s32.totalorder %v1439, 4
        %v1462 = vsel %vm1458, %v1442, %v1445
        %v1463 = vsel %vm1461, %v1451, 2102212464
        %v1464 = vsel %vm1460, %v1448, %v1463
        %v1465 = vsel %vm1459, %v1462, %v1464
        %v1466 = vsel %vm1458, %v1445, %v1448
        %v1467 = vsel %vm1461, %v1454, 920167782
        %v1468 = vsel %vm1460, %v1451, %v1467
        %v1469 = vsel %vm1459, %v1466, %v1468
        %v1470 = vsel %vm1458, %v1448, %v1451
        %v1471 = vsel %vm1461, %v1457, 1326507024
        %v1472 = vsel %vm1460, %v1454, %v1471
        %v1473 = vsel %vm1459, %v1470, %v1472
        %v1474 = vshll.u32 %v1434, 8
        %v1475 = vmul.u32.u64.compose %v1474, %v1473
        %v1476 = vextract.low.u32 %v1475
        %v1477 = vextract.high.u32 %v1475
        %v1478 = vmul.u32.u64.compose %v1474, %v1469
        %v1479 = vextract.low.u32 %v1478
        %v1480 = vextract.high.u32 %v1478
        %v1481 = vmul.u32 %v1474, %v1465
        %v1482 = vadd.s32 %v1477, %v1479
        %vm1483 = vc.u32 %v1477, %v1479
        %v1484 = vadd.s32 %v1480, 1
        %v1485 = vsel %vm1483, %v1484, %v1480
        %v1486 = vadd.s32 %v1481, %v1485
        %v1487 = vadd.s32 %v1486, 536870912
        %v1488 = vshrl.u32 %v1487, 30
        %v1489 = vshll.u32 %v1488, 30
        %v1490 = vsub.s32 %v1486, %v1489
        %vm1491 = vcmp.lt.s32.totalorder %v1490, 0
        %v1492 = vsub.s32 0, %v1490
        %v1493 = vsel %vm1491, %v1492, %v1490
        %v1494 = vclz %v1493
        %v1495 = vsub.s32 %v1494, 2
        %vm1496 = vcmp.gt.s32.totalorder 0, %v1495
        %v1497 = vsel %vm1496, 0, %v1495
        %v1498 = vsub.s32 32, %v1497
        %v1499 = vshll.u32 %v1490, %v1497
        %v1500 = vshrl.u32 %v1482, %v1498
        %v1501 = vor.u32 %v1499, %v1500
        %v1502 = vsub.s32 4294967266, %v1497
        %v1503 = vadd.s32 %v1502, 127
        %v1504 = vshll.u32 %v1503, 23
        %v1505 = vor.u32 4788187, %v1504
        %v1506 = vand.u32 2147483647, %v1505
        %v1508 = vcvt.s32.f32 %v1501
        %v1509 = vmul.f32 %v1508, %v1506
        %v1510 = vxor.u32 %v1509, 2147483648
        %v1511 = vsel %vm1428, %v1510, %v1509
        %v1512 = vsub.s32 4, %v1488
        %v1513 = vsel %vm1428, %v1512, %v1488
        %v1514 = vsel %vm1427, %v641, %v1511
        %v1515 = vsel %vm1427, 0, %v1513
        %v1516 = vcosq.f32.pop %v1514
        %v1517 = vsinq.f32.pop %v1514
        %vm1518 = vweird.f32 %v641
        %v1519 = vadd.s32 %v1515, 3
        %v1520 = vand.u32 %v1519, 3
        %vm1521 = vcmp.lt.s32.totalorder %v1520, 2
        %vm1522 = vcmp.eq.s32.totalorder %v1520, 0
        %v1523 = vxor.u32 %v1517, 2147483648
        %v1524 = vsel %vm1522, %v1516, %v1523
        %vm1525 = vcmp.eq.s32.totalorder %v1520, 2
        %v1526 = vxor.u32 %v1516, 2147483648
        %v1527 = vsel %vm1525, %v1526, %v1517
        %v1528 = vsel %vm1521, %v1524, %v1527
        %v1529 = vsel %vm1518, nan, %v1528
        %v1530 = vand.u32 2147483647, %v642
        %vm1531 = vcmp.le.f32.partialorder %v1530, 0.7853982
        %vm1532 = vcmp.lt.s32.totalorder %v642, 0
        %v1533 = vand.u32 %v642, 2139095040
        %v1534 = vshrl.u32 %v1533, 23
        %v1535 = vsub.s32 %v1534, 127
        %v1536 = vand.u32 2147483647, %v642
        %v1537 = vand.u32 %v1536, 8388607
        %v1538 = vor.u32 %v1537, 8388608
        %v1539 = vsub.s32 0, %v1538
        %v1540 = vadd.s32 %v1535, 1
        %vm1541 = vcmp.gt.s32.totalorder %v1540, 0
        %v1542 = vsel %vm1541, %v1540, 0
        %v1543 = vshrl.u32 %v1542, 5
        %v1544 = vand.u32 %v1542, 31
        %v1545 = vsub.s32 32, %v1544
        %v1546 = vshrl.u32 683565275, %v1545
        %v1547 = vshll.u32 683565275, %v1544
        %v1548 = vshrl.u32 2475754826, %v1545
        %v1549 = vor.u32 %v1547, %v1548
        %v1550 = vshll.u32 2475754826, %v1544
        %v1551 = vshrl.u32 2131351028, %v1545
        %v1552 = vor.u32 %v1550, %v1551
        %v1553 = vshll.u32 2131351028, %v1544
        %v1554 = vshrl.u32 2102212464, %v1545
        %v1555 = vor.u32 %v1553, %v1554
        %v1556 = vshll.u32 2102212464, %v1544
        %v1557 = vshrl.u32 920167782, %v1545
        %v1558 = vor.u32 %v1556, %v1557
        %v1559 = vshll.u32 920167782, %v1544
        %v1560 = vshrl.u32 1326507024, %v1545
        %v1561 = vor.u32 %v1559, %v1560
        %vm1562 = vcmp.lt.s32.totalorder %v1543, 1
        %vm1563 = vcmp.lt.s32.totalorder %v1543, 2
        %vm1564 = vcmp.lt.s32.totalorder %v1543, 3
        %vm1565 = vcmp.lt.s32.totalorder %v1543, 4
        %v1566 = vsel %vm1562, %v1546, %v1549
        %v1567 = vsel %vm1565, %v1555, 2102212464
        %v1568 = vsel %vm1564, %v1552, %v1567
        %v1569 = vsel %vm1563, %v1566, %v1568
        %v1570 = vsel %vm1562, %v1549, %v1552
        %v1571 = vsel %vm1565, %v1558, 920167782
        %v1572 = vsel %vm1564, %v1555, %v1571
        %v1573 = vsel %vm1563, %v1570, %v1572
        %v1574 = vsel %vm1562, %v1552, %v1555
        %v1575 = vsel %vm1565, %v1561, 1326507024
        %v1576 = vsel %vm1564, %v1558, %v1575
        %v1577 = vsel %vm1563, %v1574, %v1576
        %v1578 = vshll.u32 %v1538, 8
        %v1579 = vmul.u32.u64.compose %v1578, %v1577
        %v1580 = vextract.low.u32 %v1579
        %v1581 = vextract.high.u32 %v1579
        %v1582 = vmul.u32.u64.compose %v1578, %v1573
        %v1583 = vextract.low.u32 %v1582
        %v1584 = vextract.high.u32 %v1582
        %v1585 = vmul.u32 %v1578, %v1569
        %v1586 = vadd.s32 %v1581, %v1583
        %vm1587 = vc.u32 %v1581, %v1583
        %v1588 = vadd.s32 %v1584, 1
        %v1589 = vsel %vm1587, %v1588, %v1584
        %v1590 = vadd.s32 %v1585, %v1589
        %v1591 = vadd.s32 %v1590, 536870912
        %v1592 = vshrl.u32 %v1591, 30
        %v1593 = vshll.u32 %v1592, 30
        %v1594 = vsub.s32 %v1590, %v1593
        %vm1595 = vcmp.lt.s32.totalorder %v1594, 0
        %v1596 = vsub.s32 0, %v1594
        %v1597 = vsel %vm1595, %v1596, %v1594
        %v1598 = vclz %v1597
        %v1599 = vsub.s32 %v1598, 2
        %vm1600 = vcmp.gt.s32.totalorder 0, %v1599
        %v1601 = vsel %vm1600, 0, %v1599
        %v1602 = vsub.s32 32, %v1601
        %v1603 = vshll.u32 %v1594, %v1601
        %v1604 = vshrl.u32 %v1586, %v1602
        %v1605 = vor.u32 %v1603, %v1604
        %v1606 = vsub.s32 4294967266, %v1601
        %v1607 = vadd.s32 %v1606, 127
        %v1608 = vshll.u32 %v1607, 23
        %v1609 = vor.u32 4788187, %v1608
        %v1610 = vand.u32 2147483647, %v1609
        %v1612 = vcvt.s32.f32 %v1605
        %v1613 = vmul.f32 %v1612, %v1610
        %v1614 = vxor.u32 %v1613, 2147483648
        %v1615 = vsel %vm1532, %v1614, %v1613
        %v1616 = vsub.s32 4, %v1592
        %v1617 = vsel %vm1532, %v1616, %v1592
        %v1618 = vsel %vm1531, %v642, %v1615
        %v1619 = vsel %vm1531, 0, %v1617
        %v1620 = vcosq.f32.pop %v1618
        %v1621 = vsinq.f32.pop %v1618
        %vm1622 = vweird.f32 %v642
        %v1623 = vadd.s32 %v1619, 3
        %v1624 = vand.u32 %v1623, 3
        %vm1625 = vcmp.lt.s32.totalorder %v1624, 2
        %vm1626 = vcmp.eq.s32.totalorder %v1624, 0
        %v1627 = vxor.u32 %v1621, 2147483648
        %v1628 = vsel %vm1626, %v1620, %v1627
        %vm1629 = vcmp.eq.s32.totalorder %v1624, 2
        %v1630 = vxor.u32 %v1620, 2147483648
        %v1631 = vsel %vm1629, %v1630, %v1621
        %v1632 = vsel %vm1625, %v1628, %v1631
        %v1633 = vsel %vm1622, nan, %v1632
        %v1634 = vand.u32 2147483647, %v643
        %vm1635 = vcmp.le.f32.partialorder %v1634, 0.7853982
        %vm1636 = vcmp.lt.s32.totalorder %v643, 0
        %v1637 = vand.u32 %v643, 2139095040
        %v1638 = vshrl.u32 %v1637, 23
        %v1639 = vsub.s32 %v1638, 127
        %v1640 = vand.u32 2147483647, %v643
        %v1641 = vand.u32 %v1640, 8388607
        %v1642 = vor.u32 %v1641, 8388608
        %v1643 = vsub.s32 0, %v1642
        %v1644 = vadd.s32 %v1639, 1
        %vm1645 = vcmp.gt.s32.totalorder %v1644, 0
        %v1646 = vsel %vm1645, %v1644, 0
        %v1647 = vshrl.u32 %v1646, 5
        %v1648 = vand.u32 %v1646, 31
        %v1649 = vsub.s32 32, %v1648
        %v1650 = vshrl.u32 683565275, %v1649
        %v1651 = vshll.u32 683565275, %v1648
        %v1652 = vshrl.u32 2475754826, %v1649
        %v1653 = vor.u32 %v1651, %v1652
        %v1654 = vshll.u32 2475754826, %v1648
        %v1655 = vshrl.u32 2131351028, %v1649
        %v1656 = vor.u32 %v1654, %v1655
        %v1657 = vshll.u32 2131351028, %v1648
        %v1658 = vshrl.u32 2102212464, %v1649
        %v1659 = vor.u32 %v1657, %v1658
        %v1660 = vshll.u32 2102212464, %v1648
        %v1661 = vshrl.u32 920167782, %v1649
        %v1662 = vor.u32 %v1660, %v1661
        %v1663 = vshll.u32 920167782, %v1648
        %v1664 = vshrl.u32 1326507024, %v1649
        %v1665 = vor.u32 %v1663, %v1664
        %vm1666 = vcmp.lt.s32.totalorder %v1647, 1
        %vm1667 = vcmp.lt.s32.totalorder %v1647, 2
        %vm1668 = vcmp.lt.s32.totalorder %v1647, 3
        %vm1669 = vcmp.lt.s32.totalorder %v1647, 4
        %v1670 = vsel %vm1666, %v1650, %v1653
        %v1671 = vsel %vm1669, %v1659, 2102212464
        %v1672 = vsel %vm1668, %v1656, %v1671
        %v1673 = vsel %vm1667, %v1670, %v1672
        %v1674 = vsel %vm1666, %v1653, %v1656
        %v1675 = vsel %vm1669, %v1662, 920167782
        %v1676 = vsel %vm1668, %v1659, %v1675
        %v1677 = vsel %vm1667, %v1674, %v1676
        %v1678 = vsel %vm1666, %v1656, %v1659
        %v1679 = vsel %vm1669, %v1665, 1326507024
        %v1680 = vsel %vm1668, %v1662, %v1679
        %v1681 = vsel %vm1667, %v1678, %v1680
        %v1682 = vshll.u32 %v1642, 8
        %v1683 = vmul.u32.u64.compose %v1682, %v1681
        %v1684 = vextract.low.u32 %v1683
        %v1685 = vextract.high.u32 %v1683
        %v1686 = vmul.u32.u64.compose %v1682, %v1677
        %v1687 = vextract.low.u32 %v1686
        %v1688 = vextract.high.u32 %v1686
        %v1689 = vmul.u32 %v1682, %v1673
        %v1690 = vadd.s32 %v1685, %v1687
        %vm1691 = vc.u32 %v1685, %v1687
        %v1692 = vadd.s32 %v1688, 1
        %v1693 = vsel %vm1691, %v1692, %v1688
        %v1694 = vadd.s32 %v1689, %v1693
        %v1695 = vadd.s32 %v1694, 536870912
        %v1696 = vshrl.u32 %v1695, 30
        %v1697 = vshll.u32 %v1696, 30
        %v1698 = vsub.s32 %v1694, %v1697
        %vm1699 = vcmp.lt.s32.totalorder %v1698, 0
        %v1700 = vsub.s32 0, %v1698
        %v1701 = vsel %vm1699, %v1700, %v1698
        %v1702 = vclz %v1701
        %v1703 = vsub.s32 %v1702, 2
        %vm1704 = vcmp.gt.s32.totalorder 0, %v1703
        %v1705 = vsel %vm1704, 0, %v1703
        %v1706 = vsub.s32 32, %v1705
        %v1707 = vshll.u32 %v1698, %v1705
        %v1708 = vshrl.u32 %v1690, %v1706
        %v1709 = vor.u32 %v1707, %v1708
        %v1710 = vsub.s32 4294967266, %v1705
        %v1711 = vadd.s32 %v1710, 127
        %v1712 = vshll.u32 %v1711, 23
        %v1713 = vor.u32 4788187, %v1712
        %v1714 = vand.u32 2147483647, %v1713
        %v1716 = vcvt.s32.f32 %v1709
        %v1717 = vmul.f32 %v1716, %v1714
        %v1718 = vxor.u32 %v1717, 2147483648
        %v1719 = vsel %vm1636, %v1718, %v1717
        %v1720 = vsub.s32 4, %v1696
        %v1721 = vsel %vm1636, %v1720, %v1696
        %v1722 = vsel %vm1635, %v643, %v1719
        %v1723 = vsel %vm1635, 0, %v1721
        %v1724 = vcosq.f32.pop %v1722
        %v1725 = vsinq.f32.pop %v1722
        %vm1726 = vweird.f32 %v643
        %v1727 = vadd.s32 %v1723, 3
        %v1728 = vand.u32 %v1727, 3
        %vm1729 = vcmp.lt.s32.totalorder %v1728, 2
        %vm1730 = vcmp.eq.s32.totalorder %v1728, 0
        %v1731 = vxor.u32 %v1725, 2147483648
        %v1732 = vsel %vm1730, %v1724, %v1731
        %vm1733 = vcmp.eq.s32.totalorder %v1728, 2
        %v1734 = vxor.u32 %v1724, 2147483648
        %v1735 = vsel %vm1733, %v1734, %v1725
        %v1736 = vsel %vm1729, %v1732, %v1735
        %v1737 = vsel %vm1726, nan, %v1736
        %v1738 = vand.u32 2147483647, %v644
        %vm1739 = vcmp.le.f32.partialorder %v1738, 0.7853982
        %vm1740 = vcmp.lt.s32.totalorder %v644, 0
        %v1741 = vand.u32 %v644, 2139095040
        %v1742 = vshrl.u32 %v1741, 23
        %v1743 = vsub.s32 %v1742, 127
        %v1744 = vand.u32 2147483647, %v644
        %v1745 = vand.u32 %v1744, 8388607
        %v1746 = vor.u32 %v1745, 8388608
        %v1747 = vsub.s32 0, %v1746
        %v1748 = vadd.s32 %v1743, 1
        %vm1749 = vcmp.gt.s32.totalorder %v1748, 0
        %v1750 = vsel %vm1749, %v1748, 0
        %v1751 = vshrl.u32 %v1750, 5
        %v1752 = vand.u32 %v1750, 31
        %v1753 = vsub.s32 32, %v1752
        %v1754 = vshrl.u32 683565275, %v1753
        %v1755 = vshll.u32 683565275, %v1752
        %v1756 = vshrl.u32 2475754826, %v1753
        %v1757 = vor.u32 %v1755, %v1756
        %v1758 = vshll.u32 2475754826, %v1752
        %v1759 = vshrl.u32 2131351028, %v1753
        %v1760 = vor.u32 %v1758, %v1759
        %v1761 = vshll.u32 2131351028, %v1752
        %v1762 = vshrl.u32 2102212464, %v1753
        %v1763 = vor.u32 %v1761, %v1762
        %v1764 = vshll.u32 2102212464, %v1752
        %v1765 = vshrl.u32 920167782, %v1753
        %v1766 = vor.u32 %v1764, %v1765
        %v1767 = vshll.u32 920167782, %v1752
        %v1768 = vshrl.u32 1326507024, %v1753
        %v1769 = vor.u32 %v1767, %v1768
        %vm1770 = vcmp.lt.s32.totalorder %v1751, 1
        %vm1771 = vcmp.lt.s32.totalorder %v1751, 2
        %vm1772 = vcmp.lt.s32.totalorder %v1751, 3
        %vm1773 = vcmp.lt.s32.totalorder %v1751, 4
        %v1774 = vsel %vm1770, %v1754, %v1757
        %v1775 = vsel %vm1773, %v1763, 2102212464
        %v1776 = vsel %vm1772, %v1760, %v1775
        %v1777 = vsel %vm1771, %v1774, %v1776
        %v1778 = vsel %vm1770, %v1757, %v1760
        %v1779 = vsel %vm1773, %v1766, 920167782
        %v1780 = vsel %vm1772, %v1763, %v1779
        %v1781 = vsel %vm1771, %v1778, %v1780
        %v1782 = vsel %vm1770, %v1760, %v1763
        %v1783 = vsel %vm1773, %v1769, 1326507024
        %v1784 = vsel %vm1772, %v1766, %v1783
        %v1785 = vsel %vm1771, %v1782, %v1784
        %v1786 = vshll.u32 %v1746, 8
        %v1787 = vmul.u32.u64.compose %v1786, %v1785
        %v1788 = vextract.low.u32 %v1787
        %v1789 = vextract.high.u32 %v1787
        %v1790 = vmul.u32.u64.compose %v1786, %v1781
        %v1791 = vextract.low.u32 %v1790
        %v1792 = vextract.high.u32 %v1790
        %v1793 = vmul.u32 %v1786, %v1777
        %v1794 = vadd.s32 %v1789, %v1791
        %vm1795 = vc.u32 %v1789, %v1791
        %v1796 = vadd.s32 %v1792, 1
        %v1797 = vsel %vm1795, %v1796, %v1792
        %v1798 = vadd.s32 %v1793, %v1797
        %v1799 = vadd.s32 %v1798, 536870912
        %v1800 = vshrl.u32 %v1799, 30
        %v1801 = vshll.u32 %v1800, 30
        %v1802 = vsub.s32 %v1798, %v1801
        %vm1803 = vcmp.lt.s32.totalorder %v1802, 0
        %v1804 = vsub.s32 0, %v1802
        %v1805 = vsel %vm1803, %v1804, %v1802
        %v1806 = vclz %v1805
        %v1807 = vsub.s32 %v1806, 2
        %vm1808 = vcmp.gt.s32.totalorder 0, %v1807
        %v1809 = vsel %vm1808, 0, %v1807
        %v1810 = vsub.s32 32, %v1809
        %v1811 = vshll.u32 %v1802, %v1809
        %v1812 = vshrl.u32 %v1794, %v1810
        %v1813 = vor.u32 %v1811, %v1812
        %v1814 = vsub.s32 4294967266, %v1809
        %v1815 = vadd.s32 %v1814, 127
        %v1816 = vshll.u32 %v1815, 23
        %v1817 = vor.u32 4788187, %v1816
        %v1818 = vand.u32 2147483647, %v1817
        %v1820 = vcvt.s32.f32 %v1813
        %v1821 = vmul.f32 %v1820, %v1818
        %v1822 = vxor.u32 %v1821, 2147483648
        %v1823 = vsel %vm1740, %v1822, %v1821
        %v1824 = vsub.s32 4, %v1800
        %v1825 = vsel %vm1740, %v1824, %v1800
        %v1826 = vsel %vm1739, %v644, %v1823
        %v1827 = vsel %vm1739, 0, %v1825
        %v1828 = vcosq.f32.pop %v1826
        %v1829 = vsinq.f32.pop %v1826
        %vm1830 = vweird.f32 %v644
        %v1831 = vadd.s32 %v1827, 3
        %v1832 = vand.u32 %v1831, 3
        %vm1833 = vcmp.lt.s32.totalorder %v1832, 2
        %vm1834 = vcmp.eq.s32.totalorder %v1832, 0
        %v1835 = vxor.u32 %v1829, 2147483648
        %v1836 = vsel %vm1834, %v1828, %v1835
        %vm1837 = vcmp.eq.s32.totalorder %v1832, 2
        %v1838 = vxor.u32 %v1828, 2147483648
        %v1839 = vsel %vm1837, %v1838, %v1829
        %v1840 = vsel %vm1833, %v1836, %v1839
        %v1841 = vsel %vm1830, nan, %v1840
        %v1842 = vand.u32 2147483647, %v645
        %vm1843 = vcmp.le.f32.partialorder %v1842, 0.7853982
        %vm1844 = vcmp.lt.s32.totalorder %v645, 0
        %v1845 = vand.u32 %v645, 2139095040
        %v1846 = vshrl.u32 %v1845, 23
        %v1847 = vsub.s32 %v1846, 127
        %v1848 = vand.u32 2147483647, %v645
        %v1849 = vand.u32 %v1848, 8388607
        %v1850 = vor.u32 %v1849, 8388608
        %v1851 = vsub.s32 0, %v1850
        %v1852 = vadd.s32 %v1847, 1
        %vm1853 = vcmp.gt.s32.totalorder %v1852, 0
        %v1854 = vsel %vm1853, %v1852, 0
        %v1855 = vshrl.u32 %v1854, 5
        %v1856 = vand.u32 %v1854, 31
        %v1857 = vsub.s32 32, %v1856
        %v1858 = vshrl.u32 683565275, %v1857
        %v1859 = vshll.u32 683565275, %v1856
        %v1860 = vshrl.u32 2475754826, %v1857
        %v1861 = vor.u32 %v1859, %v1860
        %v1862 = vshll.u32 2475754826, %v1856
        %v1863 = vshrl.u32 2131351028, %v1857
        %v1864 = vor.u32 %v1862, %v1863
        %v1865 = vshll.u32 2131351028, %v1856
        %v1866 = vshrl.u32 2102212464, %v1857
        %v1867 = vor.u32 %v1865, %v1866
        %v1868 = vshll.u32 2102212464, %v1856
        %v1869 = vshrl.u32 920167782, %v1857
        %v1870 = vor.u32 %v1868, %v1869
        %v1871 = vshll.u32 920167782, %v1856
        %v1872 = vshrl.u32 1326507024, %v1857
        %v1873 = vor.u32 %v1871, %v1872
        %vm1874 = vcmp.lt.s32.totalorder %v1855, 1
        %vm1875 = vcmp.lt.s32.totalorder %v1855, 2
        %vm1876 = vcmp.lt.s32.totalorder %v1855, 3
        %vm1877 = vcmp.lt.s32.totalorder %v1855, 4
        %v1878 = vsel %vm1874, %v1858, %v1861
        %v1879 = vsel %vm1877, %v1867, 2102212464
        %v1880 = vsel %vm1876, %v1864, %v1879
        %v1881 = vsel %vm1875, %v1878, %v1880
        %v1882 = vsel %vm1874, %v1861, %v1864
        %v1883 = vsel %vm1877, %v1870, 920167782
        %v1884 = vsel %vm1876, %v1867, %v1883
        %v1885 = vsel %vm1875, %v1882, %v1884
        %v1886 = vsel %vm1874, %v1864, %v1867
        %v1887 = vsel %vm1877, %v1873, 1326507024
        %v1888 = vsel %vm1876, %v1870, %v1887
        %v1889 = vsel %vm1875, %v1886, %v1888
        %v1890 = vshll.u32 %v1850, 8
        %v1891 = vmul.u32.u64.compose %v1890, %v1889
        %v1892 = vextract.low.u32 %v1891
        %v1893 = vextract.high.u32 %v1891
        %v1894 = vmul.u32.u64.compose %v1890, %v1885
        %v1895 = vextract.low.u32 %v1894
        %v1896 = vextract.high.u32 %v1894
        %v1897 = vmul.u32 %v1890, %v1881
        %v1898 = vadd.s32 %v1893, %v1895
        %vm1899 = vc.u32 %v1893, %v1895
        %v1900 = vadd.s32 %v1896, 1
        %v1901 = vsel %vm1899, %v1900, %v1896
        %v1902 = vadd.s32 %v1897, %v1901
        %v1903 = vadd.s32 %v1902, 536870912
        %v1904 = vshrl.u32 %v1903, 30
        %v1905 = vshll.u32 %v1904, 30
        %v1906 = vsub.s32 %v1902, %v1905
        %vm1907 = vcmp.lt.s32.totalorder %v1906, 0
        %v1908 = vsub.s32 0, %v1906
        %v1909 = vsel %vm1907, %v1908, %v1906
        %v1910 = vclz %v1909
        %v1911 = vsub.s32 %v1910, 2
        %vm1912 = vcmp.gt.s32.totalorder 0, %v1911
        %v1913 = vsel %vm1912, 0, %v1911
        %v1914 = vsub.s32 32, %v1913
        %v1915 = vshll.u32 %v1906, %v1913
        %v1916 = vshrl.u32 %v1898, %v1914
        %v1917 = vor.u32 %v1915, %v1916
        %v1918 = vsub.s32 4294967266, %v1913
        %v1919 = vadd.s32 %v1918, 127
        %v1920 = vshll.u32 %v1919, 23
        %v1921 = vor.u32 4788187, %v1920
        %v1922 = vand.u32 2147483647, %v1921
        %v1924 = vcvt.s32.f32 %v1917
        %v1925 = vmul.f32 %v1924, %v1922
        %v1926 = vxor.u32 %v1925, 2147483648
        %v1927 = vsel %vm1844, %v1926, %v1925
        %v1928 = vsub.s32 4, %v1904
        %v1929 = vsel %vm1844, %v1928, %v1904
        %v1930 = vsel %vm1843, %v645, %v1927
        %v1931 = vsel %vm1843, 0, %v1929
        %v1932 = vcosq.f32.pop %v1930
        %v1933 = vsinq.f32.pop %v1930
        %vm1934 = vweird.f32 %v645
        %v1935 = vadd.s32 %v1931, 3
        %v1936 = vand.u32 %v1935, 3
        %vm1937 = vcmp.lt.s32.totalorder %v1936, 2
        %vm1938 = vcmp.eq.s32.totalorder %v1936, 0
        %v1939 = vxor.u32 %v1933, 2147483648
        %v1940 = vsel %vm1938, %v1932, %v1939
        %vm1941 = vcmp.eq.s32.totalorder %v1936, 2
        %v1942 = vxor.u32 %v1932, 2147483648
        %v1943 = vsel %vm1941, %v1942, %v1933
        %v1944 = vsel %vm1937, %v1940, %v1943
        %v1945 = vsel %vm1934, nan, %v1944
        %v1946 = vand.u32 2147483647, %v646
        %vm1947 = vcmp.le.f32.partialorder %v1946, 0.7853982
        %vm1948 = vcmp.lt.s32.totalorder %v646, 0
        %v1949 = vand.u32 %v646, 2139095040
        %v1950 = vshrl.u32 %v1949, 23
        %v1951 = vsub.s32 %v1950, 127
        %v1952 = vand.u32 2147483647, %v646
        %v1953 = vand.u32 %v1952, 8388607
        %v1954 = vor.u32 %v1953, 8388608
        %v1955 = vsub.s32 0, %v1954
        %v1956 = vadd.s32 %v1951, 1
        %vm1957 = vcmp.gt.s32.totalorder %v1956, 0
        %v1958 = vsel %vm1957, %v1956, 0
        %v1959 = vshrl.u32 %v1958, 5
        %v1960 = vand.u32 %v1958, 31
        %v1961 = vsub.s32 32, %v1960
        %v1962 = vshrl.u32 683565275, %v1961
        %v1963 = vshll.u32 683565275, %v1960
        %v1964 = vshrl.u32 2475754826, %v1961
        %v1965 = vor.u32 %v1963, %v1964
        %v1966 = vshll.u32 2475754826, %v1960
        %v1967 = vshrl.u32 2131351028, %v1961
        %v1968 = vor.u32 %v1966, %v1967
        %v1969 = vshll.u32 2131351028, %v1960
        %v1970 = vshrl.u32 2102212464, %v1961
        %v1971 = vor.u32 %v1969, %v1970
        %v1972 = vshll.u32 2102212464, %v1960
        %v1973 = vshrl.u32 920167782, %v1961
        %v1974 = vor.u32 %v1972, %v1973
        %v1975 = vshll.u32 920167782, %v1960
        %v1976 = vshrl.u32 1326507024, %v1961
        %v1977 = vor.u32 %v1975, %v1976
        %vm1978 = vcmp.lt.s32.totalorder %v1959, 1
        %vm1979 = vcmp.lt.s32.totalorder %v1959, 2
        %vm1980 = vcmp.lt.s32.totalorder %v1959, 3
        %vm1981 = vcmp.lt.s32.totalorder %v1959, 4
        %v1982 = vsel %vm1978, %v1962, %v1965
        %v1983 = vsel %vm1981, %v1971, 2102212464
        %v1984 = vsel %vm1980, %v1968, %v1983
        %v1985 = vsel %vm1979, %v1982, %v1984
        %v1986 = vsel %vm1978, %v1965, %v1968
        %v1987 = vsel %vm1981, %v1974, 920167782
        %v1988 = vsel %vm1980, %v1971, %v1987
        %v1989 = vsel %vm1979, %v1986, %v1988
        %v1990 = vsel %vm1978, %v1968, %v1971
        %v1991 = vsel %vm1981, %v1977, 1326507024
        %v1992 = vsel %vm1980, %v1974, %v1991
        %v1993 = vsel %vm1979, %v1990, %v1992
        %v1994 = vshll.u32 %v1954, 8
        %v1995 = vmul.u32.u64.compose %v1994, %v1993
        %v1996 = vextract.low.u32 %v1995
        %v1997 = vextract.high.u32 %v1995
        %v1998 = vmul.u32.u64.compose %v1994, %v1989
        %v1999 = vextract.low.u32 %v1998
        %v2000 = vextract.high.u32 %v1998
        %v2001 = vmul.u32 %v1994, %v1985
        %v2002 = vadd.s32 %v1997, %v1999
        %vm2003 = vc.u32 %v1997, %v1999
        %v2004 = vadd.s32 %v2000, 1
        %v2005 = vsel %vm2003, %v2004, %v2000
        %v2006 = vadd.s32 %v2001, %v2005
        %v2007 = vadd.s32 %v2006, 536870912
        %v2008 = vshrl.u32 %v2007, 30
        %v2009 = vshll.u32 %v2008, 30
        %v2010 = vsub.s32 %v2006, %v2009
        %vm2011 = vcmp.lt.s32.totalorder %v2010, 0
        %v2012 = vsub.s32 0, %v2010
        %v2013 = vsel %vm2011, %v2012, %v2010
        %v2014 = vclz %v2013
        %v2015 = vsub.s32 %v2014, 2
        %vm2016 = vcmp.gt.s32.totalorder 0, %v2015
        %v2017 = vsel %vm2016, 0, %v2015
        %v2018 = vsub.s32 32, %v2017
        %v2019 = vshll.u32 %v2010, %v2017
        %v2020 = vshrl.u32 %v2002, %v2018
        %v2021 = vor.u32 %v2019, %v2020
        %v2022 = vsub.s32 4294967266, %v2017
        %v2023 = vadd.s32 %v2022, 127
        %v2024 = vshll.u32 %v2023, 23
        %v2025 = vor.u32 4788187, %v2024
        %v2026 = vand.u32 2147483647, %v2025
        %v2028 = vcvt.s32.f32 %v2021
        %v2029 = vmul.f32 %v2028, %v2026
        %v2030 = vxor.u32 %v2029, 2147483648
        %v2031 = vsel %vm1948, %v2030, %v2029
        %v2032 = vsub.s32 4, %v2008
        %v2033 = vsel %vm1948, %v2032, %v2008
        %v2034 = vsel %vm1947, %v646, %v2031
        %v2035 = vsel %vm1947, 0, %v2033
        %v2036 = vcosq.f32.pop %v2034
        %v2037 = vsinq.f32.pop %v2034
        %vm2038 = vweird.f32 %v646
        %v2039 = vadd.s32 %v2035, 3
        %v2040 = vand.u32 %v2039, 3
        %vm2041 = vcmp.lt.s32.totalorder %v2040, 2
        %vm2042 = vcmp.eq.s32.totalorder %v2040, 0
        %v2043 = vxor.u32 %v2037, 2147483648
        %v2044 = vsel %vm2042, %v2036, %v2043
        %vm2045 = vcmp.eq.s32.totalorder %v2040, 2
        %v2046 = vxor.u32 %v2036, 2147483648
        %v2047 = vsel %vm2045, %v2046, %v2037
        %v2048 = vsel %vm2041, %v2044, %v2047
        %v2049 = vsel %vm2038, nan, %v2048
        %v2050 = vand.u32 2147483647, %v647
        %vm2051 = vcmp.le.f32.partialorder %v2050, 0.7853982
        %vm2052 = vcmp.lt.s32.totalorder %v647, 0
        %v2053 = vand.u32 %v647, 2139095040
        %v2054 = vshrl.u32 %v2053, 23
        %v2055 = vsub.s32 %v2054, 127
        %v2056 = vand.u32 2147483647, %v647
        %v2057 = vand.u32 %v2056, 8388607
        %v2058 = vor.u32 %v2057, 8388608
        %v2059 = vsub.s32 0, %v2058
        %v2060 = vadd.s32 %v2055, 1
        %vm2061 = vcmp.gt.s32.totalorder %v2060, 0
        %v2062 = vsel %vm2061, %v2060, 0
        %v2063 = vshrl.u32 %v2062, 5
        %v2064 = vand.u32 %v2062, 31
        %v2065 = vsub.s32 32, %v2064
        %v2066 = vshrl.u32 683565275, %v2065
        %v2067 = vshll.u32 683565275, %v2064
        %v2068 = vshrl.u32 2475754826, %v2065
        %v2069 = vor.u32 %v2067, %v2068
        %v2070 = vshll.u32 2475754826, %v2064
        %v2071 = vshrl.u32 2131351028, %v2065
        %v2072 = vor.u32 %v2070, %v2071
        %v2073 = vshll.u32 2131351028, %v2064
        %v2074 = vshrl.u32 2102212464, %v2065
        %v2075 = vor.u32 %v2073, %v2074
        %v2076 = vshll.u32 2102212464, %v2064
        %v2077 = vshrl.u32 920167782, %v2065
        %v2078 = vor.u32 %v2076, %v2077
        %v2079 = vshll.u32 920167782, %v2064
        %v2080 = vshrl.u32 1326507024, %v2065
        %v2081 = vor.u32 %v2079, %v2080
        %vm2082 = vcmp.lt.s32.totalorder %v2063, 1
        %vm2083 = vcmp.lt.s32.totalorder %v2063, 2
        %vm2084 = vcmp.lt.s32.totalorder %v2063, 3
        %vm2085 = vcmp.lt.s32.totalorder %v2063, 4
        %v2086 = vsel %vm2082, %v2066, %v2069
        %v2087 = vsel %vm2085, %v2075, 2102212464
        %v2088 = vsel %vm2084, %v2072, %v2087
        %v2089 = vsel %vm2083, %v2086, %v2088
        %v2090 = vsel %vm2082, %v2069, %v2072
        %v2091 = vsel %vm2085, %v2078, 920167782
        %v2092 = vsel %vm2084, %v2075, %v2091
        %v2093 = vsel %vm2083, %v2090, %v2092
        %v2094 = vsel %vm2082, %v2072, %v2075
        %v2095 = vsel %vm2085, %v2081, 1326507024
        %v2096 = vsel %vm2084, %v2078, %v2095
        %v2097 = vsel %vm2083, %v2094, %v2096
        %v2098 = vshll.u32 %v2058, 8
        %v2099 = vmul.u32.u64.compose %v2098, %v2097
        %v2100 = vextract.low.u32 %v2099
        %v2101 = vextract.high.u32 %v2099
        %v2102 = vmul.u32.u64.compose %v2098, %v2093
        %v2103 = vextract.low.u32 %v2102
        %v2104 = vextract.high.u32 %v2102
        %v2105 = vmul.u32 %v2098, %v2089
        %v2106 = vadd.s32 %v2101, %v2103
        %vm2107 = vc.u32 %v2101, %v2103
        %v2108 = vadd.s32 %v2104, 1
        %v2109 = vsel %vm2107, %v2108, %v2104
        %v2110 = vadd.s32 %v2105, %v2109
        %v2111 = vadd.s32 %v2110, 536870912
        %v2112 = vshrl.u32 %v2111, 30
        %v2113 = vshll.u32 %v2112, 30
        %v2114 = vsub.s32 %v2110, %v2113
        %vm2115 = vcmp.lt.s32.totalorder %v2114, 0
        %v2116 = vsub.s32 0, %v2114
        %v2117 = vsel %vm2115, %v2116, %v2114
        %v2118 = vclz %v2117
        %v2119 = vsub.s32 %v2118, 2
        %vm2120 = vcmp.gt.s32.totalorder 0, %v2119
        %v2121 = vsel %vm2120, 0, %v2119
        %v2122 = vsub.s32 32, %v2121
        %v2123 = vshll.u32 %v2114, %v2121
        %v2124 = vshrl.u32 %v2106, %v2122
        %v2125 = vor.u32 %v2123, %v2124
        %v2126 = vsub.s32 4294967266, %v2121
        %v2127 = vadd.s32 %v2126, 127
        %v2128 = vshll.u32 %v2127, 23
        %v2129 = vor.u32 4788187, %v2128
        %v2130 = vand.u32 2147483647, %v2129
        %v2132 = vcvt.s32.f32 %v2125
        %v2133 = vmul.f32 %v2132, %v2130
        %v2134 = vxor.u32 %v2133, 2147483648
        %v2135 = vsel %vm2052, %v2134, %v2133
        %v2136 = vsub.s32 4, %v2112
        %v2137 = vsel %vm2052, %v2136, %v2112
        %v2138 = vsel %vm2051, %v647, %v2135
        %v2139 = vsel %vm2051, 0, %v2137
        %v2140 = vcosq.f32.pop %v2138
        %v2141 = vsinq.f32.pop %v2138
        %vm2142 = vweird.f32 %v647
        %v2143 = vadd.s32 %v2139, 3
        %v2144 = vand.u32 %v2143, 3
        %vm2145 = vcmp.lt.s32.totalorder %v2144, 2
        %vm2146 = vcmp.eq.s32.totalorder %v2144, 0
        %v2147 = vxor.u32 %v2141, 2147483648
        %v2148 = vsel %vm2146, %v2140, %v2147
        %vm2149 = vcmp.eq.s32.totalorder %v2144, 2
        %v2150 = vxor.u32 %v2140, 2147483648
        %v2151 = vsel %vm2149, %v2150, %v2141
        %v2152 = vsel %vm2145, %v2148, %v2151
        %v2153 = vsel %vm2142, nan, %v2152
        %v2154 = vand.u32 2147483647, %v648
        %vm2155 = vcmp.le.f32.partialorder %v2154, 0.7853982
        %vm2156 = vcmp.lt.s32.totalorder %v648, 0
        %v2157 = vand.u32 %v648, 2139095040
        %v2158 = vshrl.u32 %v2157, 23
        %v2159 = vsub.s32 %v2158, 127
        %v2160 = vand.u32 2147483647, %v648
        %v2161 = vand.u32 %v2160, 8388607
        %v2162 = vor.u32 %v2161, 8388608
        %v2163 = vsub.s32 0, %v2162
        %v2164 = vadd.s32 %v2159, 1
        %vm2165 = vcmp.gt.s32.totalorder %v2164, 0
        %v2166 = vsel %vm2165, %v2164, 0
        %v2167 = vshrl.u32 %v2166, 5
        %v2168 = vand.u32 %v2166, 31
        %v2169 = vsub.s32 32, %v2168
        %v2170 = vshrl.u32 683565275, %v2169
        %v2171 = vshll.u32 683565275, %v2168
        %v2172 = vshrl.u32 2475754826, %v2169
        %v2173 = vor.u32 %v2171, %v2172
        %v2174 = vshll.u32 2475754826, %v2168
        %v2175 = vshrl.u32 2131351028, %v2169
        %v2176 = vor.u32 %v2174, %v2175
        %v2177 = vshll.u32 2131351028, %v2168
        %v2178 = vshrl.u32 2102212464, %v2169
        %v2179 = vor.u32 %v2177, %v2178
        %v2180 = vshll.u32 2102212464, %v2168
        %v2181 = vshrl.u32 920167782, %v2169
        %v2182 = vor.u32 %v2180, %v2181
        %v2183 = vshll.u32 920167782, %v2168
        %v2184 = vshrl.u32 1326507024, %v2169
        %v2185 = vor.u32 %v2183, %v2184
        %vm2186 = vcmp.lt.s32.totalorder %v2167, 1
        %vm2187 = vcmp.lt.s32.totalorder %v2167, 2
        %vm2188 = vcmp.lt.s32.totalorder %v2167, 3
        %vm2189 = vcmp.lt.s32.totalorder %v2167, 4
        %v2190 = vsel %vm2186, %v2170, %v2173
        %v2191 = vsel %vm2189, %v2179, 2102212464
        %v2192 = vsel %vm2188, %v2176, %v2191
        %v2193 = vsel %vm2187, %v2190, %v2192
        %v2194 = vsel %vm2186, %v2173, %v2176
        %v2195 = vsel %vm2189, %v2182, 920167782
        %v2196 = vsel %vm2188, %v2179, %v2195
        %v2197 = vsel %vm2187, %v2194, %v2196
        %v2198 = vsel %vm2186, %v2176, %v2179
        %v2199 = vsel %vm2189, %v2185, 1326507024
        %v2200 = vsel %vm2188, %v2182, %v2199
        %v2201 = vsel %vm2187, %v2198, %v2200
        %v2202 = vshll.u32 %v2162, 8
        %v2203 = vmul.u32.u64.compose %v2202, %v2201
        %v2204 = vextract.low.u32 %v2203
        %v2205 = vextract.high.u32 %v2203
        %v2206 = vmul.u32.u64.compose %v2202, %v2197
        %v2207 = vextract.low.u32 %v2206
        %v2208 = vextract.high.u32 %v2206
        %v2209 = vmul.u32 %v2202, %v2193
        %v2210 = vadd.s32 %v2205, %v2207
        %vm2211 = vc.u32 %v2205, %v2207
        %v2212 = vadd.s32 %v2208, 1
        %v2213 = vsel %vm2211, %v2212, %v2208
        %v2214 = vadd.s32 %v2209, %v2213
        %v2215 = vadd.s32 %v2214, 536870912
        %v2216 = vshrl.u32 %v2215, 30
        %v2217 = vshll.u32 %v2216, 30
        %v2218 = vsub.s32 %v2214, %v2217
        %vm2219 = vcmp.lt.s32.totalorder %v2218, 0
        %v2220 = vsub.s32 0, %v2218
        %v2221 = vsel %vm2219, %v2220, %v2218
        %v2222 = vclz %v2221
        %v2223 = vsub.s32 %v2222, 2
        %vm2224 = vcmp.gt.s32.totalorder 0, %v2223
        %v2225 = vsel %vm2224, 0, %v2223
        %v2226 = vsub.s32 32, %v2225
        %v2227 = vshll.u32 %v2218, %v2225
        %v2228 = vshrl.u32 %v2210, %v2226
        %v2229 = vor.u32 %v2227, %v2228
        %v2230 = vsub.s32 4294967266, %v2225
        %v2231 = vadd.s32 %v2230, 127
        %v2232 = vshll.u32 %v2231, 23
        %v2233 = vor.u32 4788187, %v2232
        %v2234 = vand.u32 2147483647, %v2233
        %v2236 = vcvt.s32.f32 %v2229
        %v2237 = vmul.f32 %v2236, %v2234
        %v2238 = vxor.u32 %v2237, 2147483648
        %v2239 = vsel %vm2156, %v2238, %v2237
        %v2240 = vsub.s32 4, %v2216
        %v2241 = vsel %vm2156, %v2240, %v2216
        %v2242 = vsel %vm2155, %v648, %v2239
        %v2243 = vsel %vm2155, 0, %v2241
        %v2244 = vcosq.f32.pop %v2242
        %v2245 = vsinq.f32.pop %v2242
        %vm2246 = vweird.f32 %v648
        %v2247 = vadd.s32 %v2243, 3
        %v2248 = vand.u32 %v2247, 3
        %vm2249 = vcmp.lt.s32.totalorder %v2248, 2
        %vm2250 = vcmp.eq.s32.totalorder %v2248, 0
        %v2251 = vxor.u32 %v2245, 2147483648
        %v2252 = vsel %vm2250, %v2244, %v2251
        %vm2253 = vcmp.eq.s32.totalorder %v2248, 2
        %v2254 = vxor.u32 %v2244, 2147483648
        %v2255 = vsel %vm2253, %v2254, %v2245
        %v2256 = vsel %vm2249, %v2252, %v2255
        %v2257 = vsel %vm2246, nan, %v2256
        %v2258 = vand.u32 2147483647, %v649
        %vm2259 = vcmp.le.f32.partialorder %v2258, 0.7853982
        %vm2260 = vcmp.lt.s32.totalorder %v649, 0
        %v2261 = vand.u32 %v649, 2139095040
        %v2262 = vshrl.u32 %v2261, 23
        %v2263 = vsub.s32 %v2262, 127
        %v2264 = vand.u32 2147483647, %v649
        %v2265 = vand.u32 %v2264, 8388607
        %v2266 = vor.u32 %v2265, 8388608
        %v2267 = vsub.s32 0, %v2266
        %v2268 = vadd.s32 %v2263, 1
        %vm2269 = vcmp.gt.s32.totalorder %v2268, 0
        %v2270 = vsel %vm2269, %v2268, 0
        %v2271 = vshrl.u32 %v2270, 5
        %v2272 = vand.u32 %v2270, 31
        %v2273 = vsub.s32 32, %v2272
        %v2274 = vshrl.u32 683565275, %v2273
        %v2275 = vshll.u32 683565275, %v2272
        %v2276 = vshrl.u32 2475754826, %v2273
        %v2277 = vor.u32 %v2275, %v2276
        %v2278 = vshll.u32 2475754826, %v2272
        %v2279 = vshrl.u32 2131351028, %v2273
        %v2280 = vor.u32 %v2278, %v2279
        %v2281 = vshll.u32 2131351028, %v2272
        %v2282 = vshrl.u32 2102212464, %v2273
        %v2283 = vor.u32 %v2281, %v2282
        %v2284 = vshll.u32 2102212464, %v2272
        %v2285 = vshrl.u32 920167782, %v2273
        %v2286 = vor.u32 %v2284, %v2285
        %v2287 = vshll.u32 920167782, %v2272
        %v2288 = vshrl.u32 1326507024, %v2273
        %v2289 = vor.u32 %v2287, %v2288
        %vm2290 = vcmp.lt.s32.totalorder %v2271, 1
        %vm2291 = vcmp.lt.s32.totalorder %v2271, 2
        %vm2292 = vcmp.lt.s32.totalorder %v2271, 3
        %vm2293 = vcmp.lt.s32.totalorder %v2271, 4
        %v2294 = vsel %vm2290, %v2274, %v2277
        %v2295 = vsel %vm2293, %v2283, 2102212464
        %v2296 = vsel %vm2292, %v2280, %v2295
        %v2297 = vsel %vm2291, %v2294, %v2296
        %v2298 = vsel %vm2290, %v2277, %v2280
        %v2299 = vsel %vm2293, %v2286, 920167782
        %v2300 = vsel %vm2292, %v2283, %v2299
        %v2301 = vsel %vm2291, %v2298, %v2300
        %v2302 = vsel %vm2290, %v2280, %v2283
        %v2303 = vsel %vm2293, %v2289, 1326507024
        %v2304 = vsel %vm2292, %v2286, %v2303
        %v2305 = vsel %vm2291, %v2302, %v2304
        %v2306 = vshll.u32 %v2266, 8
        %v2307 = vmul.u32.u64.compose %v2306, %v2305
        %v2308 = vextract.low.u32 %v2307
        %v2309 = vextract.high.u32 %v2307
        %v2310 = vmul.u32.u64.compose %v2306, %v2301
        %v2311 = vextract.low.u32 %v2310
        %v2312 = vextract.high.u32 %v2310
        %v2313 = vmul.u32 %v2306, %v2297
        %v2314 = vadd.s32 %v2309, %v2311
        %vm2315 = vc.u32 %v2309, %v2311
        %v2316 = vadd.s32 %v2312, 1
        %v2317 = vsel %vm2315, %v2316, %v2312
        %v2318 = vadd.s32 %v2313, %v2317
        %v2319 = vadd.s32 %v2318, 536870912
        %v2320 = vshrl.u32 %v2319, 30
        %v2321 = vshll.u32 %v2320, 30
        %v2322 = vsub.s32 %v2318, %v2321
        %vm2323 = vcmp.lt.s32.totalorder %v2322, 0
        %v2324 = vsub.s32 0, %v2322
        %v2325 = vsel %vm2323, %v2324, %v2322
        %v2326 = vclz %v2325
        %v2327 = vsub.s32 %v2326, 2
        %vm2328 = vcmp.gt.s32.totalorder 0, %v2327
        %v2329 = vsel %vm2328, 0, %v2327
        %v2330 = vsub.s32 32, %v2329
        %v2331 = vshll.u32 %v2322, %v2329
        %v2332 = vshrl.u32 %v2314, %v2330
        %v2333 = vor.u32 %v2331, %v2332
        %v2334 = vsub.s32 4294967266, %v2329
        %v2335 = vadd.s32 %v2334, 127
        %v2336 = vshll.u32 %v2335, 23
        %v2337 = vor.u32 4788187, %v2336
        %v2338 = vand.u32 2147483647, %v2337
        %v2340 = vcvt.s32.f32 %v2333
        %v2341 = vmul.f32 %v2340, %v2338
        %v2342 = vxor.u32 %v2341, 2147483648
        %v2343 = vsel %vm2260, %v2342, %v2341
        %v2344 = vsub.s32 4, %v2320
        %v2345 = vsel %vm2260, %v2344, %v2320
        %v2346 = vsel %vm2259, %v649, %v2343
        %v2347 = vsel %vm2259, 0, %v2345
        %v2348 = vcosq.f32.pop %v2346
        %v2349 = vsinq.f32.pop %v2346
        %vm2350 = vweird.f32 %v649
        %v2351 = vadd.s32 %v2347, 3
        %v2352 = vand.u32 %v2351, 3
        %vm2353 = vcmp.lt.s32.totalorder %v2352, 2
        %vm2354 = vcmp.eq.s32.totalorder %v2352, 0
        %v2355 = vxor.u32 %v2349, 2147483648
        %v2356 = vsel %vm2354, %v2348, %v2355
        %vm2357 = vcmp.eq.s32.totalorder %v2352, 2
        %v2358 = vxor.u32 %v2348, 2147483648
        %v2359 = vsel %vm2357, %v2358, %v2349
        %v2360 = vsel %vm2353, %v2356, %v2359
        %v2361 = vsel %vm2350, nan, %v2360
        %v2362 = vand.u32 2147483647, %v650
        %vm2363 = vcmp.le.f32.partialorder %v2362, 0.7853982
        %vm2364 = vcmp.lt.s32.totalorder %v650, 0
        %v2365 = vand.u32 %v650, 2139095040
        %v2366 = vshrl.u32 %v2365, 23
        %v2367 = vsub.s32 %v2366, 127
        %v2368 = vand.u32 2147483647, %v650
        %v2369 = vand.u32 %v2368, 8388607
        %v2370 = vor.u32 %v2369, 8388608
        %v2371 = vsub.s32 0, %v2370
        %v2372 = vadd.s32 %v2367, 1
        %vm2373 = vcmp.gt.s32.totalorder %v2372, 0
        %v2374 = vsel %vm2373, %v2372, 0
        %v2375 = vshrl.u32 %v2374, 5
        %v2376 = vand.u32 %v2374, 31
        %v2377 = vsub.s32 32, %v2376
        %v2378 = vshrl.u32 683565275, %v2377
        %v2379 = vshll.u32 683565275, %v2376
        %v2380 = vshrl.u32 2475754826, %v2377
        %v2381 = vor.u32 %v2379, %v2380
        %v2382 = vshll.u32 2475754826, %v2376
        %v2383 = vshrl.u32 2131351028, %v2377
        %v2384 = vor.u32 %v2382, %v2383
        %v2385 = vshll.u32 2131351028, %v2376
        %v2386 = vshrl.u32 2102212464, %v2377
        %v2387 = vor.u32 %v2385, %v2386
        %v2388 = vshll.u32 2102212464, %v2376
        %v2389 = vshrl.u32 920167782, %v2377
        %v2390 = vor.u32 %v2388, %v2389
        %v2391 = vshll.u32 920167782, %v2376
        %v2392 = vshrl.u32 1326507024, %v2377
        %v2393 = vor.u32 %v2391, %v2392
        %vm2394 = vcmp.lt.s32.totalorder %v2375, 1
        %vm2395 = vcmp.lt.s32.totalorder %v2375, 2
        %vm2396 = vcmp.lt.s32.totalorder %v2375, 3
        %vm2397 = vcmp.lt.s32.totalorder %v2375, 4
        %v2398 = vsel %vm2394, %v2378, %v2381
        %v2399 = vsel %vm2397, %v2387, 2102212464
        %v2400 = vsel %vm2396, %v2384, %v2399
        %v2401 = vsel %vm2395, %v2398, %v2400
        %v2402 = vsel %vm2394, %v2381, %v2384
        %v2403 = vsel %vm2397, %v2390, 920167782
        %v2404 = vsel %vm2396, %v2387, %v2403
        %v2405 = vsel %vm2395, %v2402, %v2404
        %v2406 = vsel %vm2394, %v2384, %v2387
        %v2407 = vsel %vm2397, %v2393, 1326507024
        %v2408 = vsel %vm2396, %v2390, %v2407
        %v2409 = vsel %vm2395, %v2406, %v2408
        %v2410 = vshll.u32 %v2370, 8
        %v2411 = vmul.u32.u64.compose %v2410, %v2409
        %v2412 = vextract.low.u32 %v2411
        %v2413 = vextract.high.u32 %v2411
        %v2414 = vmul.u32.u64.compose %v2410, %v2405
        %v2415 = vextract.low.u32 %v2414
        %v2416 = vextract.high.u32 %v2414
        %v2417 = vmul.u32 %v2410, %v2401
        %v2418 = vadd.s32 %v2413, %v2415
        %vm2419 = vc.u32 %v2413, %v2415
        %v2420 = vadd.s32 %v2416, 1
        %v2421 = vsel %vm2419, %v2420, %v2416
        %v2422 = vadd.s32 %v2417, %v2421
        %v2423 = vadd.s32 %v2422, 536870912
        %v2424 = vshrl.u32 %v2423, 30
        %v2425 = vshll.u32 %v2424, 30
        %v2426 = vsub.s32 %v2422, %v2425
        %vm2427 = vcmp.lt.s32.totalorder %v2426, 0
        %v2428 = vsub.s32 0, %v2426
        %v2429 = vsel %vm2427, %v2428, %v2426
        %v2430 = vclz %v2429
        %v2431 = vsub.s32 %v2430, 2
        %vm2432 = vcmp.gt.s32.totalorder 0, %v2431
        %v2433 = vsel %vm2432, 0, %v2431
        %v2434 = vsub.s32 32, %v2433
        %v2435 = vshll.u32 %v2426, %v2433
        %v2436 = vshrl.u32 %v2418, %v2434
        %v2437 = vor.u32 %v2435, %v2436
        %v2438 = vsub.s32 4294967266, %v2433
        %v2439 = vadd.s32 %v2438, 127
        %v2440 = vshll.u32 %v2439, 23
        %v2441 = vor.u32 4788187, %v2440
        %v2442 = vand.u32 2147483647, %v2441
        %v2444 = vcvt.s32.f32 %v2437
        %v2445 = vmul.f32 %v2444, %v2442
        %v2446 = vxor.u32 %v2445, 2147483648
        %v2447 = vsel %vm2364, %v2446, %v2445
        %v2448 = vsub.s32 4, %v2424
        %v2449 = vsel %vm2364, %v2448, %v2424
        %v2450 = vsel %vm2363, %v650, %v2447
        %v2451 = vsel %vm2363, 0, %v2449
        %v2452 = vcosq.f32.pop %v2450
        %v2453 = vsinq.f32.pop %v2450
        %vm2454 = vweird.f32 %v650
        %v2455 = vadd.s32 %v2451, 3
        %v2456 = vand.u32 %v2455, 3
        %vm2457 = vcmp.lt.s32.totalorder %v2456, 2
        %vm2458 = vcmp.eq.s32.totalorder %v2456, 0
        %v2459 = vxor.u32 %v2453, 2147483648
        %v2460 = vsel %vm2458, %v2452, %v2459
        %vm2461 = vcmp.eq.s32.totalorder %v2456, 2
        %v2462 = vxor.u32 %v2452, 2147483648
        %v2463 = vsel %vm2461, %v2462, %v2453
        %v2464 = vsel %vm2457, %v2460, %v2463
        %v2465 = vsel %vm2454, nan, %v2464
        %v2466 = vand.u32 2147483647, %v651
        %vm2467 = vcmp.le.f32.partialorder %v2466, 0.7853982
        %vm2468 = vcmp.lt.s32.totalorder %v651, 0
        %v2469 = vand.u32 %v651, 2139095040
        %v2470 = vshrl.u32 %v2469, 23
        %v2471 = vsub.s32 %v2470, 127
        %v2472 = vand.u32 2147483647, %v651
        %v2473 = vand.u32 %v2472, 8388607
        %v2474 = vor.u32 %v2473, 8388608
        %v2475 = vsub.s32 0, %v2474
        %v2476 = vadd.s32 %v2471, 1
        %vm2477 = vcmp.gt.s32.totalorder %v2476, 0
        %v2478 = vsel %vm2477, %v2476, 0
        %v2479 = vshrl.u32 %v2478, 5
        %v2480 = vand.u32 %v2478, 31
        %v2481 = vsub.s32 32, %v2480
        %v2482 = vshrl.u32 683565275, %v2481
        %v2483 = vshll.u32 683565275, %v2480
        %v2484 = vshrl.u32 2475754826, %v2481
        %v2485 = vor.u32 %v2483, %v2484
        %v2486 = vshll.u32 2475754826, %v2480
        %v2487 = vshrl.u32 2131351028, %v2481
        %v2488 = vor.u32 %v2486, %v2487
        %v2489 = vshll.u32 2131351028, %v2480
        %v2490 = vshrl.u32 2102212464, %v2481
        %v2491 = vor.u32 %v2489, %v2490
        %v2492 = vshll.u32 2102212464, %v2480
        %v2493 = vshrl.u32 920167782, %v2481
        %v2494 = vor.u32 %v2492, %v2493
        %v2495 = vshll.u32 920167782, %v2480
        %v2496 = vshrl.u32 1326507024, %v2481
        %v2497 = vor.u32 %v2495, %v2496
        %vm2498 = vcmp.lt.s32.totalorder %v2479, 1
        %vm2499 = vcmp.lt.s32.totalorder %v2479, 2
        %vm2500 = vcmp.lt.s32.totalorder %v2479, 3
        %vm2501 = vcmp.lt.s32.totalorder %v2479, 4
        %v2502 = vsel %vm2498, %v2482, %v2485
        %v2503 = vsel %vm2501, %v2491, 2102212464
        %v2504 = vsel %vm2500, %v2488, %v2503
        %v2505 = vsel %vm2499, %v2502, %v2504
        %v2506 = vsel %vm2498, %v2485, %v2488
        %v2507 = vsel %vm2501, %v2494, 920167782
        %v2508 = vsel %vm2500, %v2491, %v2507
        %v2509 = vsel %vm2499, %v2506, %v2508
        %v2510 = vsel %vm2498, %v2488, %v2491
        %v2511 = vsel %vm2501, %v2497, 1326507024
        %v2512 = vsel %vm2500, %v2494, %v2511
        %v2513 = vsel %vm2499, %v2510, %v2512
        %v2514 = vshll.u32 %v2474, 8
        %v2515 = vmul.u32.u64.compose %v2514, %v2513
        %v2516 = vextract.low.u32 %v2515
        %v2517 = vextract.high.u32 %v2515
        %v2518 = vmul.u32.u64.compose %v2514, %v2509
        %v2519 = vextract.low.u32 %v2518
        %v2520 = vextract.high.u32 %v2518
        %v2521 = vmul.u32 %v2514, %v2505
        %v2522 = vadd.s32 %v2517, %v2519
        %vm2523 = vc.u32 %v2517, %v2519
        %v2524 = vadd.s32 %v2520, 1
        %v2525 = vsel %vm2523, %v2524, %v2520
        %v2526 = vadd.s32 %v2521, %v2525
        %v2527 = vadd.s32 %v2526, 536870912
        %v2528 = vshrl.u32 %v2527, 30
        %v2529 = vshll.u32 %v2528, 30
        %v2530 = vsub.s32 %v2526, %v2529
        %vm2531 = vcmp.lt.s32.totalorder %v2530, 0
        %v2532 = vsub.s32 0, %v2530
        %v2533 = vsel %vm2531, %v2532, %v2530
        %v2534 = vclz %v2533
        %v2535 = vsub.s32 %v2534, 2
        %vm2536 = vcmp.gt.s32.totalorder 0, %v2535
        %v2537 = vsel %vm2536, 0, %v2535
        %v2538 = vsub.s32 32, %v2537
        %v2539 = vshll.u32 %v2530, %v2537
        %v2540 = vshrl.u32 %v2522, %v2538
        %v2541 = vor.u32 %v2539, %v2540
        %v2542 = vsub.s32 4294967266, %v2537
        %v2543 = vadd.s32 %v2542, 127
        %v2544 = vshll.u32 %v2543, 23
        %v2545 = vor.u32 4788187, %v2544
        %v2546 = vand.u32 2147483647, %v2545
        %v2548 = vcvt.s32.f32 %v2541
        %v2549 = vmul.f32 %v2548, %v2546
        %v2550 = vxor.u32 %v2549, 2147483648
        %v2551 = vsel %vm2468, %v2550, %v2549
        %v2552 = vsub.s32 4, %v2528
        %v2553 = vsel %vm2468, %v2552, %v2528
        %v2554 = vsel %vm2467, %v651, %v2551
        %v2555 = vsel %vm2467, 0, %v2553
        %v2556 = vcosq.f32.pop %v2554
        %v2557 = vsinq.f32.pop %v2554
        %vm2558 = vweird.f32 %v651
        %v2559 = vadd.s32 %v2555, 3
        %v2560 = vand.u32 %v2559, 3
        %vm2561 = vcmp.lt.s32.totalorder %v2560, 2
        %vm2562 = vcmp.eq.s32.totalorder %v2560, 0
        %v2563 = vxor.u32 %v2557, 2147483648
        %v2564 = vsel %vm2562, %v2556, %v2563
        %vm2565 = vcmp.eq.s32.totalorder %v2560, 2
        %v2566 = vxor.u32 %v2556, 2147483648
        %v2567 = vsel %vm2565, %v2566, %v2557
        %v2568 = vsel %vm2561, %v2564, %v2567
        %v2569 = vsel %vm2558, nan, %v2568
        %v2570 = vand.u32 2147483647, %v652
        %vm2571 = vcmp.le.f32.partialorder %v2570, 0.7853982
        %vm2572 = vcmp.lt.s32.totalorder %v652, 0
        %v2573 = vand.u32 %v652, 2139095040
        %v2574 = vshrl.u32 %v2573, 23
        %v2575 = vsub.s32 %v2574, 127
        %v2576 = vand.u32 2147483647, %v652
        %v2577 = vand.u32 %v2576, 8388607
        %v2578 = vor.u32 %v2577, 8388608
        %v2579 = vsub.s32 0, %v2578
        %v2580 = vadd.s32 %v2575, 1
        %vm2581 = vcmp.gt.s32.totalorder %v2580, 0
        %v2582 = vsel %vm2581, %v2580, 0
        %v2583 = vshrl.u32 %v2582, 5
        %v2584 = vand.u32 %v2582, 31
        %v2585 = vsub.s32 32, %v2584
        %v2586 = vshrl.u32 683565275, %v2585
        %v2587 = vshll.u32 683565275, %v2584
        %v2588 = vshrl.u32 2475754826, %v2585
        %v2589 = vor.u32 %v2587, %v2588
        %v2590 = vshll.u32 2475754826, %v2584
        %v2591 = vshrl.u32 2131351028, %v2585
        %v2592 = vor.u32 %v2590, %v2591
        %v2593 = vshll.u32 2131351028, %v2584
        %v2594 = vshrl.u32 2102212464, %v2585
        %v2595 = vor.u32 %v2593, %v2594
        %v2596 = vshll.u32 2102212464, %v2584
        %v2597 = vshrl.u32 920167782, %v2585
        %v2598 = vor.u32 %v2596, %v2597
        %v2599 = vshll.u32 920167782, %v2584
        %v2600 = vshrl.u32 1326507024, %v2585
        %v2601 = vor.u32 %v2599, %v2600
        %vm2602 = vcmp.lt.s32.totalorder %v2583, 1
        %vm2603 = vcmp.lt.s32.totalorder %v2583, 2
        %vm2604 = vcmp.lt.s32.totalorder %v2583, 3
        %vm2605 = vcmp.lt.s32.totalorder %v2583, 4
        %v2606 = vsel %vm2602, %v2586, %v2589
        %v2607 = vsel %vm2605, %v2595, 2102212464
        %v2608 = vsel %vm2604, %v2592, %v2607
        %v2609 = vsel %vm2603, %v2606, %v2608
        %v2610 = vsel %vm2602, %v2589, %v2592
        %v2611 = vsel %vm2605, %v2598, 920167782
        %v2612 = vsel %vm2604, %v2595, %v2611
        %v2613 = vsel %vm2603, %v2610, %v2612
        %v2614 = vsel %vm2602, %v2592, %v2595
        %v2615 = vsel %vm2605, %v2601, 1326507024
        %v2616 = vsel %vm2604, %v2598, %v2615
        %v2617 = vsel %vm2603, %v2614, %v2616
        %v2618 = vshll.u32 %v2578, 8
        %v2619 = vmul.u32.u64.compose %v2618, %v2617
        %v2620 = vextract.low.u32 %v2619
        %v2621 = vextract.high.u32 %v2619
        %v2622 = vmul.u32.u64.compose %v2618, %v2613
        %v2623 = vextract.low.u32 %v2622
        %v2624 = vextract.high.u32 %v2622
        %v2625 = vmul.u32 %v2618, %v2609
        %v2626 = vadd.s32 %v2621, %v2623
        %vm2627 = vc.u32 %v2621, %v2623
        %v2628 = vadd.s32 %v2624, 1
        %v2629 = vsel %vm2627, %v2628, %v2624
        %v2630 = vadd.s32 %v2625, %v2629
        %v2631 = vadd.s32 %v2630, 536870912
        %v2632 = vshrl.u32 %v2631, 30
        %v2633 = vshll.u32 %v2632, 30
        %v2634 = vsub.s32 %v2630, %v2633
        %vm2635 = vcmp.lt.s32.totalorder %v2634, 0
        %v2636 = vsub.s32 0, %v2634
        %v2637 = vsel %vm2635, %v2636, %v2634
        %v2638 = vclz %v2637
        %v2639 = vsub.s32 %v2638, 2
        %vm2640 = vcmp.gt.s32.totalorder 0, %v2639
        %v2641 = vsel %vm2640, 0, %v2639
        %v2642 = vsub.s32 32, %v2641
        %v2643 = vshll.u32 %v2634, %v2641
        %v2644 = vshrl.u32 %v2626, %v2642
        %v2645 = vor.u32 %v2643, %v2644
        %v2646 = vsub.s32 4294967266, %v2641
        %v2647 = vadd.s32 %v2646, 127
        %v2648 = vshll.u32 %v2647, 23
        %v2649 = vor.u32 4788187, %v2648
        %v2650 = vand.u32 2147483647, %v2649
        %v2652 = vcvt.s32.f32 %v2645
        %v2653 = vmul.f32 %v2652, %v2650
        %v2654 = vxor.u32 %v2653, 2147483648
        %v2655 = vsel %vm2572, %v2654, %v2653
        %v2656 = vsub.s32 4, %v2632
        %v2657 = vsel %vm2572, %v2656, %v2632
        %v2658 = vsel %vm2571, %v652, %v2655
        %v2659 = vsel %vm2571, 0, %v2657
        %v2660 = vcosq.f32.pop %v2658
        %v2661 = vsinq.f32.pop %v2658
        %vm2662 = vweird.f32 %v652
        %v2663 = vadd.s32 %v2659, 3
        %v2664 = vand.u32 %v2663, 3
        %vm2665 = vcmp.lt.s32.totalorder %v2664, 2
        %vm2666 = vcmp.eq.s32.totalorder %v2664, 0
        %v2667 = vxor.u32 %v2661, 2147483648
        %v2668 = vsel %vm2666, %v2660, %v2667
        %vm2669 = vcmp.eq.s32.totalorder %v2664, 2
        %v2670 = vxor.u32 %v2660, 2147483648
        %v2671 = vsel %vm2669, %v2670, %v2661
        %v2672 = vsel %vm2665, %v2668, %v2671
        %v2673 = vsel %vm2662, nan, %v2672
        %v2674 = vand.u32 2147483647, %v653
        %vm2675 = vcmp.le.f32.partialorder %v2674, 0.7853982
        %vm2676 = vcmp.lt.s32.totalorder %v653, 0
        %v2677 = vand.u32 %v653, 2139095040
        %v2678 = vshrl.u32 %v2677, 23
        %v2679 = vsub.s32 %v2678, 127
        %v2680 = vand.u32 2147483647, %v653
        %v2681 = vand.u32 %v2680, 8388607
        %v2682 = vor.u32 %v2681, 8388608
        %v2683 = vsub.s32 0, %v2682
        %v2684 = vadd.s32 %v2679, 1
        %vm2685 = vcmp.gt.s32.totalorder %v2684, 0
        %v2686 = vsel %vm2685, %v2684, 0
        %v2687 = vshrl.u32 %v2686, 5
        %v2688 = vand.u32 %v2686, 31
        %v2689 = vsub.s32 32, %v2688
        %v2690 = vshrl.u32 683565275, %v2689
        %v2691 = vshll.u32 683565275, %v2688
        %v2692 = vshrl.u32 2475754826, %v2689
        %v2693 = vor.u32 %v2691, %v2692
        %v2694 = vshll.u32 2475754826, %v2688
        %v2695 = vshrl.u32 2131351028, %v2689
        %v2696 = vor.u32 %v2694, %v2695
        %v2697 = vshll.u32 2131351028, %v2688
        %v2698 = vshrl.u32 2102212464, %v2689
        %v2699 = vor.u32 %v2697, %v2698
        %v2700 = vshll.u32 2102212464, %v2688
        %v2701 = vshrl.u32 920167782, %v2689
        %v2702 = vor.u32 %v2700, %v2701
        %v2703 = vshll.u32 920167782, %v2688
        %v2704 = vshrl.u32 1326507024, %v2689
        %v2705 = vor.u32 %v2703, %v2704
        %vm2706 = vcmp.lt.s32.totalorder %v2687, 1
        %vm2707 = vcmp.lt.s32.totalorder %v2687, 2
        %vm2708 = vcmp.lt.s32.totalorder %v2687, 3
        %vm2709 = vcmp.lt.s32.totalorder %v2687, 4
        %v2710 = vsel %vm2706, %v2690, %v2693
        %v2711 = vsel %vm2709, %v2699, 2102212464
        %v2712 = vsel %vm2708, %v2696, %v2711
        %v2713 = vsel %vm2707, %v2710, %v2712
        %v2714 = vsel %vm2706, %v2693, %v2696
        %v2715 = vsel %vm2709, %v2702, 920167782
        %v2716 = vsel %vm2708, %v2699, %v2715
        %v2717 = vsel %vm2707, %v2714, %v2716
        %v2718 = vsel %vm2706, %v2696, %v2699
        %v2719 = vsel %vm2709, %v2705, 1326507024
        %v2720 = vsel %vm2708, %v2702, %v2719
        %v2721 = vsel %vm2707, %v2718, %v2720
        %v2722 = vshll.u32 %v2682, 8
        %v2723 = vmul.u32.u64.compose %v2722, %v2721
        %v2724 = vextract.low.u32 %v2723
        %v2725 = vextract.high.u32 %v2723
        %v2726 = vmul.u32.u64.compose %v2722, %v2717
        %v2727 = vextract.low.u32 %v2726
        %v2728 = vextract.high.u32 %v2726
        %v2729 = vmul.u32 %v2722, %v2713
        %v2730 = vadd.s32 %v2725, %v2727
        %vm2731 = vc.u32 %v2725, %v2727
        %v2732 = vadd.s32 %v2728, 1
        %v2733 = vsel %vm2731, %v2732, %v2728
        %v2734 = vadd.s32 %v2729, %v2733
        %v2735 = vadd.s32 %v2734, 536870912
        %v2736 = vshrl.u32 %v2735, 30
        %v2737 = vshll.u32 %v2736, 30
        %v2738 = vsub.s32 %v2734, %v2737
        %vm2739 = vcmp.lt.s32.totalorder %v2738, 0
        %v2740 = vsub.s32 0, %v2738
        %v2741 = vsel %vm2739, %v2740, %v2738
        %v2742 = vclz %v2741
        %v2743 = vsub.s32 %v2742, 2
        %vm2744 = vcmp.gt.s32.totalorder 0, %v2743
        %v2745 = vsel %vm2744, 0, %v2743
        %v2746 = vsub.s32 32, %v2745
        %v2747 = vshll.u32 %v2738, %v2745
        %v2748 = vshrl.u32 %v2730, %v2746
        %v2749 = vor.u32 %v2747, %v2748
        %v2750 = vsub.s32 4294967266, %v2745
        %v2751 = vadd.s32 %v2750, 127
        %v2752 = vshll.u32 %v2751, 23
        %v2753 = vor.u32 4788187, %v2752
        %v2754 = vand.u32 2147483647, %v2753
        %v2756 = vcvt.s32.f32 %v2749
        %v2757 = vmul.f32 %v2756, %v2754
        %v2758 = vxor.u32 %v2757, 2147483648
        %v2759 = vsel %vm2676, %v2758, %v2757
        %v2760 = vsub.s32 4, %v2736
        %v2761 = vsel %vm2676, %v2760, %v2736
        %v2762 = vsel %vm2675, %v653, %v2759
        %v2763 = vsel %vm2675, 0, %v2761
        %v2764 = vcosq.f32.pop %v2762
        %v2765 = vsinq.f32.pop %v2762
        %vm2766 = vweird.f32 %v653
        %v2767 = vadd.s32 %v2763, 3
        %v2768 = vand.u32 %v2767, 3
        %vm2769 = vcmp.lt.s32.totalorder %v2768, 2
        %vm2770 = vcmp.eq.s32.totalorder %v2768, 0
        %v2771 = vxor.u32 %v2765, 2147483648
        %v2772 = vsel %vm2770, %v2764, %v2771
        %vm2773 = vcmp.eq.s32.totalorder %v2768, 2
        %v2774 = vxor.u32 %v2764, 2147483648
        %v2775 = vsel %vm2773, %v2774, %v2765
        %v2776 = vsel %vm2769, %v2772, %v2775
        %v2777 = vsel %vm2766, nan, %v2776
        %v2778 = vand.u32 2147483647, %v654
        %vm2779 = vcmp.le.f32.partialorder %v2778, 0.7853982
        %vm2780 = vcmp.lt.s32.totalorder %v654, 0
        %v2781 = vand.u32 %v654, 2139095040
        %v2782 = vshrl.u32 %v2781, 23
        %v2783 = vsub.s32 %v2782, 127
        %v2784 = vand.u32 2147483647, %v654
        %v2785 = vand.u32 %v2784, 8388607
        %v2786 = vor.u32 %v2785, 8388608
        %v2787 = vsub.s32 0, %v2786
        %v2788 = vadd.s32 %v2783, 1
        %vm2789 = vcmp.gt.s32.totalorder %v2788, 0
        %v2790 = vsel %vm2789, %v2788, 0
        %v2791 = vshrl.u32 %v2790, 5
        %v2792 = vand.u32 %v2790, 31
        %v2793 = vsub.s32 32, %v2792
        %v2794 = vshrl.u32 683565275, %v2793
        %v2795 = vshll.u32 683565275, %v2792
        %v2796 = vshrl.u32 2475754826, %v2793
        %v2797 = vor.u32 %v2795, %v2796
        %v2798 = vshll.u32 2475754826, %v2792
        %v2799 = vshrl.u32 2131351028, %v2793
        %v2800 = vor.u32 %v2798, %v2799
        %v2801 = vshll.u32 2131351028, %v2792
        %v2802 = vshrl.u32 2102212464, %v2793
        %v2803 = vor.u32 %v2801, %v2802
        %v2804 = vshll.u32 2102212464, %v2792
        %v2805 = vshrl.u32 920167782, %v2793
        %v2806 = vor.u32 %v2804, %v2805
        %v2807 = vshll.u32 920167782, %v2792
        %v2808 = vshrl.u32 1326507024, %v2793
        %v2809 = vor.u32 %v2807, %v2808
        %vm2810 = vcmp.lt.s32.totalorder %v2791, 1
        %vm2811 = vcmp.lt.s32.totalorder %v2791, 2
        %vm2812 = vcmp.lt.s32.totalorder %v2791, 3
        %vm2813 = vcmp.lt.s32.totalorder %v2791, 4
        %v2814 = vsel %vm2810, %v2794, %v2797
        %v2815 = vsel %vm2813, %v2803, 2102212464
        %v2816 = vsel %vm2812, %v2800, %v2815
        %v2817 = vsel %vm2811, %v2814, %v2816
        %v2818 = vsel %vm2810, %v2797, %v2800
        %v2819 = vsel %vm2813, %v2806, 920167782
        %v2820 = vsel %vm2812, %v2803, %v2819
        %v2821 = vsel %vm2811, %v2818, %v2820
        %v2822 = vsel %vm2810, %v2800, %v2803
        %v2823 = vsel %vm2813, %v2809, 1326507024
        %v2824 = vsel %vm2812, %v2806, %v2823
        %v2825 = vsel %vm2811, %v2822, %v2824
        %v2826 = vshll.u32 %v2786, 8
        %v2827 = vmul.u32.u64.compose %v2826, %v2825
        %v2828 = vextract.low.u32 %v2827
        %v2829 = vextract.high.u32 %v2827
        %v2830 = vmul.u32.u64.compose %v2826, %v2821
        %v2831 = vextract.low.u32 %v2830
        %v2832 = vextract.high.u32 %v2830
        %v2833 = vmul.u32 %v2826, %v2817
        %v2834 = vadd.s32 %v2829, %v2831
        %vm2835 = vc.u32 %v2829, %v2831
        %v2836 = vadd.s32 %v2832, 1
        %v2837 = vsel %vm2835, %v2836, %v2832
        %v2838 = vadd.s32 %v2833, %v2837
        %v2839 = vadd.s32 %v2838, 536870912
        %v2840 = vshrl.u32 %v2839, 30
        %v2841 = vshll.u32 %v2840, 30
        %v2842 = vsub.s32 %v2838, %v2841
        %vm2843 = vcmp.lt.s32.totalorder %v2842, 0
        %v2844 = vsub.s32 0, %v2842
        %v2845 = vsel %vm2843, %v2844, %v2842
        %v2846 = vclz %v2845
        %v2847 = vsub.s32 %v2846, 2
        %vm2848 = vcmp.gt.s32.totalorder 0, %v2847
        %v2849 = vsel %vm2848, 0, %v2847
        %v2850 = vsub.s32 32, %v2849
        %v2851 = vshll.u32 %v2842, %v2849
        %v2852 = vshrl.u32 %v2834, %v2850
        %v2853 = vor.u32 %v2851, %v2852
        %v2854 = vsub.s32 4294967266, %v2849
        %v2855 = vadd.s32 %v2854, 127
        %v2856 = vshll.u32 %v2855, 23
        %v2857 = vor.u32 4788187, %v2856
        %v2858 = vand.u32 2147483647, %v2857
        %v2860 = vcvt.s32.f32 %v2853
        %v2861 = vmul.f32 %v2860, %v2858
        %v2862 = vxor.u32 %v2861, 2147483648
        %v2863 = vsel %vm2780, %v2862, %v2861
        %v2864 = vsub.s32 4, %v2840
        %v2865 = vsel %vm2780, %v2864, %v2840
        %v2866 = vsel %vm2779, %v654, %v2863
        %v2867 = vsel %vm2779, 0, %v2865
        %v2868 = vcosq.f32.pop %v2866
        %v2869 = vsinq.f32.pop %v2866
        %vm2870 = vweird.f32 %v654
        %v2871 = vadd.s32 %v2867, 3
        %v2872 = vand.u32 %v2871, 3
        %vm2873 = vcmp.lt.s32.totalorder %v2872, 2
        %vm2874 = vcmp.eq.s32.totalorder %v2872, 0
        %v2875 = vxor.u32 %v2869, 2147483648
        %v2876 = vsel %vm2874, %v2868, %v2875
        %vm2877 = vcmp.eq.s32.totalorder %v2872, 2
        %v2878 = vxor.u32 %v2868, 2147483648
        %v2879 = vsel %vm2877, %v2878, %v2869
        %v2880 = vsel %vm2873, %v2876, %v2879
        %v2881 = vsel %vm2870, nan, %v2880
        %v2882 = vand.u32 2147483647, %v655
        %vm2883 = vcmp.le.f32.partialorder %v2882, 0.7853982
        %vm2884 = vcmp.lt.s32.totalorder %v655, 0
        %v2885 = vand.u32 %v655, 2139095040
        %v2886 = vshrl.u32 %v2885, 23
        %v2887 = vsub.s32 %v2886, 127
        %v2888 = vand.u32 2147483647, %v655
        %v2889 = vand.u32 %v2888, 8388607
        %v2890 = vor.u32 %v2889, 8388608
        %v2891 = vsub.s32 0, %v2890
        %v2892 = vadd.s32 %v2887, 1
        %vm2893 = vcmp.gt.s32.totalorder %v2892, 0
        %v2894 = vsel %vm2893, %v2892, 0
        %v2895 = vshrl.u32 %v2894, 5
        %v2896 = vand.u32 %v2894, 31
        %v2897 = vsub.s32 32, %v2896
        %v2898 = vshrl.u32 683565275, %v2897
        %v2899 = vshll.u32 683565275, %v2896
        %v2900 = vshrl.u32 2475754826, %v2897
        %v2901 = vor.u32 %v2899, %v2900
        %v2902 = vshll.u32 2475754826, %v2896
        %v2903 = vshrl.u32 2131351028, %v2897
        %v2904 = vor.u32 %v2902, %v2903
        %v2905 = vshll.u32 2131351028, %v2896
        %v2906 = vshrl.u32 2102212464, %v2897
        %v2907 = vor.u32 %v2905, %v2906
        %v2908 = vshll.u32 2102212464, %v2896
        %v2909 = vshrl.u32 920167782, %v2897
        %v2910 = vor.u32 %v2908, %v2909
        %v2911 = vshll.u32 920167782, %v2896
        %v2912 = vshrl.u32 1326507024, %v2897
        %v2913 = vor.u32 %v2911, %v2912
        %vm2914 = vcmp.lt.s32.totalorder %v2895, 1
        %vm2915 = vcmp.lt.s32.totalorder %v2895, 2
        %vm2916 = vcmp.lt.s32.totalorder %v2895, 3
        %vm2917 = vcmp.lt.s32.totalorder %v2895, 4
        %v2918 = vsel %vm2914, %v2898, %v2901
        %v2919 = vsel %vm2917, %v2907, 2102212464
        %v2920 = vsel %vm2916, %v2904, %v2919
        %v2921 = vsel %vm2915, %v2918, %v2920
        %v2922 = vsel %vm2914, %v2901, %v2904
        %v2923 = vsel %vm2917, %v2910, 920167782
        %v2924 = vsel %vm2916, %v2907, %v2923
        %v2925 = vsel %vm2915, %v2922, %v2924
        %v2926 = vsel %vm2914, %v2904, %v2907
        %v2927 = vsel %vm2917, %v2913, 1326507024
        %v2928 = vsel %vm2916, %v2910, %v2927
        %v2929 = vsel %vm2915, %v2926, %v2928
        %v2930 = vshll.u32 %v2890, 8
        %v2931 = vmul.u32.u64.compose %v2930, %v2929
        %v2932 = vextract.low.u32 %v2931
        %v2933 = vextract.high.u32 %v2931
        %v2934 = vmul.u32.u64.compose %v2930, %v2925
        %v2935 = vextract.low.u32 %v2934
        %v2936 = vextract.high.u32 %v2934
        %v2937 = vmul.u32 %v2930, %v2921
        %v2938 = vadd.s32 %v2933, %v2935
        %vm2939 = vc.u32 %v2933, %v2935
        %v2940 = vadd.s32 %v2936, 1
        %v2941 = vsel %vm2939, %v2940, %v2936
        %v2942 = vadd.s32 %v2937, %v2941
        %v2943 = vadd.s32 %v2942, 536870912
        %v2944 = vshrl.u32 %v2943, 30
        %v2945 = vshll.u32 %v2944, 30
        %v2946 = vsub.s32 %v2942, %v2945
        %vm2947 = vcmp.lt.s32.totalorder %v2946, 0
        %v2948 = vsub.s32 0, %v2946
        %v2949 = vsel %vm2947, %v2948, %v2946
        %v2950 = vclz %v2949
        %v2951 = vsub.s32 %v2950, 2
        %vm2952 = vcmp.gt.s32.totalorder 0, %v2951
        %v2953 = vsel %vm2952, 0, %v2951
        %v2954 = vsub.s32 32, %v2953
        %v2955 = vshll.u32 %v2946, %v2953
        %v2956 = vshrl.u32 %v2938, %v2954
        %v2957 = vor.u32 %v2955, %v2956
        %v2958 = vsub.s32 4294967266, %v2953
        %v2959 = vadd.s32 %v2958, 127
        %v2960 = vshll.u32 %v2959, 23
        %v2961 = vor.u32 4788187, %v2960
        %v2962 = vand.u32 2147483647, %v2961
        %v2964 = vcvt.s32.f32 %v2957
        %v2965 = vmul.f32 %v2964, %v2962
        %v2966 = vxor.u32 %v2965, 2147483648
        %v2967 = vsel %vm2884, %v2966, %v2965
        %v2968 = vsub.s32 4, %v2944
        %v2969 = vsel %vm2884, %v2968, %v2944
        %v2970 = vsel %vm2883, %v655, %v2967
        %v2971 = vsel %vm2883, 0, %v2969
        %v2972 = vcosq.f32.pop %v2970
        %v2973 = vsinq.f32.pop %v2970
        %vm2974 = vweird.f32 %v655
        %v2975 = vadd.s32 %v2971, 3
        %v2976 = vand.u32 %v2975, 3
        %vm2977 = vcmp.lt.s32.totalorder %v2976, 2
        %vm2978 = vcmp.eq.s32.totalorder %v2976, 0
        %v2979 = vxor.u32 %v2973, 2147483648
        %v2980 = vsel %vm2978, %v2972, %v2979
        %vm2981 = vcmp.eq.s32.totalorder %v2976, 2
        %v2982 = vxor.u32 %v2972, 2147483648
        %v2983 = vsel %vm2981, %v2982, %v2973
        %v2984 = vsel %vm2977, %v2980, %v2983
        %v2985 = vsel %vm2974, nan, %v2984
        %v2986 = vand.u32 2147483647, %v656
        %vm2987 = vcmp.le.f32.partialorder %v2986, 0.7853982
        %vm2988 = vcmp.lt.s32.totalorder %v656, 0
        %v2989 = vand.u32 %v656, 2139095040
        %v2990 = vshrl.u32 %v2989, 23
        %v2991 = vsub.s32 %v2990, 127
        %v2992 = vand.u32 2147483647, %v656
        %v2993 = vand.u32 %v2992, 8388607
        %v2994 = vor.u32 %v2993, 8388608
        %v2995 = vsub.s32 0, %v2994
        %v2996 = vadd.s32 %v2991, 1
        %vm2997 = vcmp.gt.s32.totalorder %v2996, 0
        %v2998 = vsel %vm2997, %v2996, 0
        %v2999 = vshrl.u32 %v2998, 5
        %v3000 = vand.u32 %v2998, 31
        %v3001 = vsub.s32 32, %v3000
        %v3002 = vshrl.u32 683565275, %v3001
        %v3003 = vshll.u32 683565275, %v3000
        %v3004 = vshrl.u32 2475754826, %v3001
        %v3005 = vor.u32 %v3003, %v3004
        %v3006 = vshll.u32 2475754826, %v3000
        %v3007 = vshrl.u32 2131351028, %v3001
        %v3008 = vor.u32 %v3006, %v3007
        %v3009 = vshll.u32 2131351028, %v3000
        %v3010 = vshrl.u32 2102212464, %v3001
        %v3011 = vor.u32 %v3009, %v3010
        %v3012 = vshll.u32 2102212464, %v3000
        %v3013 = vshrl.u32 920167782, %v3001
        %v3014 = vor.u32 %v3012, %v3013
        %v3015 = vshll.u32 920167782, %v3000
        %v3016 = vshrl.u32 1326507024, %v3001
        %v3017 = vor.u32 %v3015, %v3016
        %vm3018 = vcmp.lt.s32.totalorder %v2999, 1
        %vm3019 = vcmp.lt.s32.totalorder %v2999, 2
        %vm3020 = vcmp.lt.s32.totalorder %v2999, 3
        %vm3021 = vcmp.lt.s32.totalorder %v2999, 4
        %v3022 = vsel %vm3018, %v3002, %v3005
        %v3023 = vsel %vm3021, %v3011, 2102212464
        %v3024 = vsel %vm3020, %v3008, %v3023
        %v3025 = vsel %vm3019, %v3022, %v3024
        %v3026 = vsel %vm3018, %v3005, %v3008
        %v3027 = vsel %vm3021, %v3014, 920167782
        %v3028 = vsel %vm3020, %v3011, %v3027
        %v3029 = vsel %vm3019, %v3026, %v3028
        %v3030 = vsel %vm3018, %v3008, %v3011
        %v3031 = vsel %vm3021, %v3017, 1326507024
        %v3032 = vsel %vm3020, %v3014, %v3031
        %v3033 = vsel %vm3019, %v3030, %v3032
        %v3034 = vshll.u32 %v2994, 8
        %v3035 = vmul.u32.u64.compose %v3034, %v3033
        %v3036 = vextract.low.u32 %v3035
        %v3037 = vextract.high.u32 %v3035
        %v3038 = vmul.u32.u64.compose %v3034, %v3029
        %v3039 = vextract.low.u32 %v3038
        %v3040 = vextract.high.u32 %v3038
        %v3041 = vmul.u32 %v3034, %v3025
        %v3042 = vadd.s32 %v3037, %v3039
        %vm3043 = vc.u32 %v3037, %v3039
        %v3044 = vadd.s32 %v3040, 1
        %v3045 = vsel %vm3043, %v3044, %v3040
        %v3046 = vadd.s32 %v3041, %v3045
        %v3047 = vadd.s32 %v3046, 536870912
        %v3048 = vshrl.u32 %v3047, 30
        %v3049 = vshll.u32 %v3048, 30
        %v3050 = vsub.s32 %v3046, %v3049
        %vm3051 = vcmp.lt.s32.totalorder %v3050, 0
        %v3052 = vsub.s32 0, %v3050
        %v3053 = vsel %vm3051, %v3052, %v3050
        %v3054 = vclz %v3053
        %v3055 = vsub.s32 %v3054, 2
        %vm3056 = vcmp.gt.s32.totalorder 0, %v3055
        %v3057 = vsel %vm3056, 0, %v3055
        %v3058 = vsub.s32 32, %v3057
        %v3059 = vshll.u32 %v3050, %v3057
        %v3060 = vshrl.u32 %v3042, %v3058
        %v3061 = vor.u32 %v3059, %v3060
        %v3062 = vsub.s32 4294967266, %v3057
        %v3063 = vadd.s32 %v3062, 127
        %v3064 = vshll.u32 %v3063, 23
        %v3065 = vor.u32 4788187, %v3064
        %v3066 = vand.u32 2147483647, %v3065
        %v3068 = vcvt.s32.f32 %v3061
        %v3069 = vmul.f32 %v3068, %v3066
        %v3070 = vxor.u32 %v3069, 2147483648
        %v3071 = vsel %vm2988, %v3070, %v3069
        %v3072 = vsub.s32 4, %v3048
        %v3073 = vsel %vm2988, %v3072, %v3048
        %v3074 = vsel %vm2987, %v656, %v3071
        %v3075 = vsel %vm2987, 0, %v3073
        %v3076 = vcosq.f32.pop %v3074
        %v3077 = vsinq.f32.pop %v3074
        %vm3078 = vweird.f32 %v656
        %v3079 = vadd.s32 %v3075, 3
        %v3080 = vand.u32 %v3079, 3
        %vm3081 = vcmp.lt.s32.totalorder %v3080, 2
        %vm3082 = vcmp.eq.s32.totalorder %v3080, 0
        %v3083 = vxor.u32 %v3077, 2147483648
        %v3084 = vsel %vm3082, %v3076, %v3083
        %vm3085 = vcmp.eq.s32.totalorder %v3080, 2
        %v3086 = vxor.u32 %v3076, 2147483648
        %v3087 = vsel %vm3085, %v3086, %v3077
        %v3088 = vsel %vm3081, %v3084, %v3087
        %v3089 = vsel %vm3078, nan, %v3088
        %v3090 = vand.u32 2147483647, %v657
        %vm3091 = vcmp.le.f32.partialorder %v3090, 0.7853982
        %vm3092 = vcmp.lt.s32.totalorder %v657, 0
        %v3093 = vand.u32 %v657, 2139095040
        %v3094 = vshrl.u32 %v3093, 23
        %v3095 = vsub.s32 %v3094, 127
        %v3096 = vand.u32 2147483647, %v657
        %v3097 = vand.u32 %v3096, 8388607
        %v3098 = vor.u32 %v3097, 8388608
        %v3099 = vsub.s32 0, %v3098
        %v3100 = vadd.s32 %v3095, 1
        %vm3101 = vcmp.gt.s32.totalorder %v3100, 0
        %v3102 = vsel %vm3101, %v3100, 0
        %v3103 = vshrl.u32 %v3102, 5
        %v3104 = vand.u32 %v3102, 31
        %v3105 = vsub.s32 32, %v3104
        %v3106 = vshrl.u32 683565275, %v3105
        %v3107 = vshll.u32 683565275, %v3104
        %v3108 = vshrl.u32 2475754826, %v3105
        %v3109 = vor.u32 %v3107, %v3108
        %v3110 = vshll.u32 2475754826, %v3104
        %v3111 = vshrl.u32 2131351028, %v3105
        %v3112 = vor.u32 %v3110, %v3111
        %v3113 = vshll.u32 2131351028, %v3104
        %v3114 = vshrl.u32 2102212464, %v3105
        %v3115 = vor.u32 %v3113, %v3114
        %v3116 = vshll.u32 2102212464, %v3104
        %v3117 = vshrl.u32 920167782, %v3105
        %v3118 = vor.u32 %v3116, %v3117
        %v3119 = vshll.u32 920167782, %v3104
        %v3120 = vshrl.u32 1326507024, %v3105
        %v3121 = vor.u32 %v3119, %v3120
        %vm3122 = vcmp.lt.s32.totalorder %v3103, 1
        %vm3123 = vcmp.lt.s32.totalorder %v3103, 2
        %vm3124 = vcmp.lt.s32.totalorder %v3103, 3
        %vm3125 = vcmp.lt.s32.totalorder %v3103, 4
        %v3126 = vsel %vm3122, %v3106, %v3109
        %v3127 = vsel %vm3125, %v3115, 2102212464
        %v3128 = vsel %vm3124, %v3112, %v3127
        %v3129 = vsel %vm3123, %v3126, %v3128
        %v3130 = vsel %vm3122, %v3109, %v3112
        %v3131 = vsel %vm3125, %v3118, 920167782
        %v3132 = vsel %vm3124, %v3115, %v3131
        %v3133 = vsel %vm3123, %v3130, %v3132
        %v3134 = vsel %vm3122, %v3112, %v3115
        %v3135 = vsel %vm3125, %v3121, 1326507024
        %v3136 = vsel %vm3124, %v3118, %v3135
        %v3137 = vsel %vm3123, %v3134, %v3136
        %v3138 = vshll.u32 %v3098, 8
        %v3139 = vmul.u32.u64.compose %v3138, %v3137
        %v3140 = vextract.low.u32 %v3139
        %v3141 = vextract.high.u32 %v3139
        %v3142 = vmul.u32.u64.compose %v3138, %v3133
        %v3143 = vextract.low.u32 %v3142
        %v3144 = vextract.high.u32 %v3142
        %v3145 = vmul.u32 %v3138, %v3129
        %v3146 = vadd.s32 %v3141, %v3143
        %vm3147 = vc.u32 %v3141, %v3143
        %v3148 = vadd.s32 %v3144, 1
        %v3149 = vsel %vm3147, %v3148, %v3144
        %v3150 = vadd.s32 %v3145, %v3149
        %v3151 = vadd.s32 %v3150, 536870912
        %v3152 = vshrl.u32 %v3151, 30
        %v3153 = vshll.u32 %v3152, 30
        %v3154 = vsub.s32 %v3150, %v3153
        %vm3155 = vcmp.lt.s32.totalorder %v3154, 0
        %v3156 = vsub.s32 0, %v3154
        %v3157 = vsel %vm3155, %v3156, %v3154
        %v3158 = vclz %v3157
        %v3159 = vsub.s32 %v3158, 2
        %vm3160 = vcmp.gt.s32.totalorder 0, %v3159
        %v3161 = vsel %vm3160, 0, %v3159
        %v3162 = vsub.s32 32, %v3161
        %v3163 = vshll.u32 %v3154, %v3161
        %v3164 = vshrl.u32 %v3146, %v3162
        %v3165 = vor.u32 %v3163, %v3164
        %v3166 = vsub.s32 4294967266, %v3161
        %v3167 = vadd.s32 %v3166, 127
        %v3168 = vshll.u32 %v3167, 23
        %v3169 = vor.u32 4788187, %v3168
        %v3170 = vand.u32 2147483647, %v3169
        %v3172 = vcvt.s32.f32 %v3165
        %v3173 = vmul.f32 %v3172, %v3170
        %v3174 = vxor.u32 %v3173, 2147483648
        %v3175 = vsel %vm3092, %v3174, %v3173
        %v3176 = vsub.s32 4, %v3152
        %v3177 = vsel %vm3092, %v3176, %v3152
        %v3178 = vsel %vm3091, %v657, %v3175
        %v3179 = vsel %vm3091, 0, %v3177
        %v3180 = vcosq.f32.pop %v3178
        %v3181 = vsinq.f32.pop %v3178
        %vm3182 = vweird.f32 %v657
        %v3183 = vadd.s32 %v3179, 3
        %v3184 = vand.u32 %v3183, 3
        %vm3185 = vcmp.lt.s32.totalorder %v3184, 2
        %vm3186 = vcmp.eq.s32.totalorder %v3184, 0
        %v3187 = vxor.u32 %v3181, 2147483648
        %v3188 = vsel %vm3186, %v3180, %v3187
        %vm3189 = vcmp.eq.s32.totalorder %v3184, 2
        %v3190 = vxor.u32 %v3180, 2147483648
        %v3191 = vsel %vm3189, %v3190, %v3181
        %v3192 = vsel %vm3185, %v3188, %v3191
        %v3193 = vsel %vm3182, nan, %v3192
        %v3194 = vand.u32 2147483647, %v658
        %vm3195 = vcmp.le.f32.partialorder %v3194, 0.7853982
        %vm3196 = vcmp.lt.s32.totalorder %v658, 0
        %v3197 = vand.u32 %v658, 2139095040
        %v3198 = vshrl.u32 %v3197, 23
        %v3199 = vsub.s32 %v3198, 127
        %v3200 = vand.u32 2147483647, %v658
        %v3201 = vand.u32 %v3200, 8388607
        %v3202 = vor.u32 %v3201, 8388608
        %v3203 = vsub.s32 0, %v3202
        %v3204 = vadd.s32 %v3199, 1
        %vm3205 = vcmp.gt.s32.totalorder %v3204, 0
        %v3206 = vsel %vm3205, %v3204, 0
        %v3207 = vshrl.u32 %v3206, 5
        %v3208 = vand.u32 %v3206, 31
        %v3209 = vsub.s32 32, %v3208
        %v3210 = vshrl.u32 683565275, %v3209
        %v3211 = vshll.u32 683565275, %v3208
        %v3212 = vshrl.u32 2475754826, %v3209
        %v3213 = vor.u32 %v3211, %v3212
        %v3214 = vshll.u32 2475754826, %v3208
        %v3215 = vshrl.u32 2131351028, %v3209
        %v3216 = vor.u32 %v3214, %v3215
        %v3217 = vshll.u32 2131351028, %v3208
        %v3218 = vshrl.u32 2102212464, %v3209
        %v3219 = vor.u32 %v3217, %v3218
        %v3220 = vshll.u32 2102212464, %v3208
        %v3221 = vshrl.u32 920167782, %v3209
        %v3222 = vor.u32 %v3220, %v3221
        %v3223 = vshll.u32 920167782, %v3208
        %v3224 = vshrl.u32 1326507024, %v3209
        %v3225 = vor.u32 %v3223, %v3224
        %vm3226 = vcmp.lt.s32.totalorder %v3207, 1
        %vm3227 = vcmp.lt.s32.totalorder %v3207, 2
        %vm3228 = vcmp.lt.s32.totalorder %v3207, 3
        %vm3229 = vcmp.lt.s32.totalorder %v3207, 4
        %v3230 = vsel %vm3226, %v3210, %v3213
        %v3231 = vsel %vm3229, %v3219, 2102212464
        %v3232 = vsel %vm3228, %v3216, %v3231
        %v3233 = vsel %vm3227, %v3230, %v3232
        %v3234 = vsel %vm3226, %v3213, %v3216
        %v3235 = vsel %vm3229, %v3222, 920167782
        %v3236 = vsel %vm3228, %v3219, %v3235
        %v3237 = vsel %vm3227, %v3234, %v3236
        %v3238 = vsel %vm3226, %v3216, %v3219
        %v3239 = vsel %vm3229, %v3225, 1326507024
        %v3240 = vsel %vm3228, %v3222, %v3239
        %v3241 = vsel %vm3227, %v3238, %v3240
        %v3242 = vshll.u32 %v3202, 8
        %v3243 = vmul.u32.u64.compose %v3242, %v3241
        %v3244 = vextract.low.u32 %v3243
        %v3245 = vextract.high.u32 %v3243
        %v3246 = vmul.u32.u64.compose %v3242, %v3237
        %v3247 = vextract.low.u32 %v3246
        %v3248 = vextract.high.u32 %v3246
        %v3249 = vmul.u32 %v3242, %v3233
        %v3250 = vadd.s32 %v3245, %v3247
        %vm3251 = vc.u32 %v3245, %v3247
        %v3252 = vadd.s32 %v3248, 1
        %v3253 = vsel %vm3251, %v3252, %v3248
        %v3254 = vadd.s32 %v3249, %v3253
        %v3255 = vadd.s32 %v3254, 536870912
        %v3256 = vshrl.u32 %v3255, 30
        %v3257 = vshll.u32 %v3256, 30
        %v3258 = vsub.s32 %v3254, %v3257
        %vm3259 = vcmp.lt.s32.totalorder %v3258, 0
        %v3260 = vsub.s32 0, %v3258
        %v3261 = vsel %vm3259, %v3260, %v3258
        %v3262 = vclz %v3261
        %v3263 = vsub.s32 %v3262, 2
        %vm3264 = vcmp.gt.s32.totalorder 0, %v3263
        %v3265 = vsel %vm3264, 0, %v3263
        %v3266 = vsub.s32 32, %v3265
        %v3267 = vshll.u32 %v3258, %v3265
        %v3268 = vshrl.u32 %v3250, %v3266
        %v3269 = vor.u32 %v3267, %v3268
        %v3270 = vsub.s32 4294967266, %v3265
        %v3271 = vadd.s32 %v3270, 127
        %v3272 = vshll.u32 %v3271, 23
        %v3273 = vor.u32 4788187, %v3272
        %v3274 = vand.u32 2147483647, %v3273
        %v3276 = vcvt.s32.f32 %v3269
        %v3277 = vmul.f32 %v3276, %v3274
        %v3278 = vxor.u32 %v3277, 2147483648
        %v3279 = vsel %vm3196, %v3278, %v3277
        %v3280 = vsub.s32 4, %v3256
        %v3281 = vsel %vm3196, %v3280, %v3256
        %v3282 = vsel %vm3195, %v658, %v3279
        %v3283 = vsel %vm3195, 0, %v3281
        %v3284 = vcosq.f32.pop %v3282
        %v3285 = vsinq.f32.pop %v3282
        %vm3286 = vweird.f32 %v658
        %v3287 = vadd.s32 %v3283, 3
        %v3288 = vand.u32 %v3287, 3
        %vm3289 = vcmp.lt.s32.totalorder %v3288, 2
        %vm3290 = vcmp.eq.s32.totalorder %v3288, 0
        %v3291 = vxor.u32 %v3285, 2147483648
        %v3292 = vsel %vm3290, %v3284, %v3291
        %vm3293 = vcmp.eq.s32.totalorder %v3288, 2
        %v3294 = vxor.u32 %v3284, 2147483648
        %v3295 = vsel %vm3293, %v3294, %v3285
        %v3296 = vsel %vm3289, %v3292, %v3295
        %v3297 = vsel %vm3286, nan, %v3296
        %v3298 = vand.u32 2147483647, %v659
        %vm3299 = vcmp.le.f32.partialorder %v3298, 0.7853982
        %vm3300 = vcmp.lt.s32.totalorder %v659, 0
        %v3301 = vand.u32 %v659, 2139095040
        %v3302 = vshrl.u32 %v3301, 23
        %v3303 = vsub.s32 %v3302, 127
        %v3304 = vand.u32 2147483647, %v659
        %v3305 = vand.u32 %v3304, 8388607
        %v3306 = vor.u32 %v3305, 8388608
        %v3307 = vsub.s32 0, %v3306
        %v3308 = vadd.s32 %v3303, 1
        %vm3309 = vcmp.gt.s32.totalorder %v3308, 0
        %v3310 = vsel %vm3309, %v3308, 0
        %v3311 = vshrl.u32 %v3310, 5
        %v3312 = vand.u32 %v3310, 31
        %v3313 = vsub.s32 32, %v3312
        %v3314 = vshrl.u32 683565275, %v3313
        %v3315 = vshll.u32 683565275, %v3312
        %v3316 = vshrl.u32 2475754826, %v3313
        %v3317 = vor.u32 %v3315, %v3316
        %v3318 = vshll.u32 2475754826, %v3312
        %v3319 = vshrl.u32 2131351028, %v3313
        %v3320 = vor.u32 %v3318, %v3319
        %v3321 = vshll.u32 2131351028, %v3312
        %v3322 = vshrl.u32 2102212464, %v3313
        %v3323 = vor.u32 %v3321, %v3322
        %v3324 = vshll.u32 2102212464, %v3312
        %v3325 = vshrl.u32 920167782, %v3313
        %v3326 = vor.u32 %v3324, %v3325
        %v3327 = vshll.u32 920167782, %v3312
        %v3328 = vshrl.u32 1326507024, %v3313
        %v3329 = vor.u32 %v3327, %v3328
        %vm3330 = vcmp.lt.s32.totalorder %v3311, 1
        %vm3331 = vcmp.lt.s32.totalorder %v3311, 2
        %vm3332 = vcmp.lt.s32.totalorder %v3311, 3
        %vm3333 = vcmp.lt.s32.totalorder %v3311, 4
        %v3334 = vsel %vm3330, %v3314, %v3317
        %v3335 = vsel %vm3333, %v3323, 2102212464
        %v3336 = vsel %vm3332, %v3320, %v3335
        %v3337 = vsel %vm3331, %v3334, %v3336
        %v3338 = vsel %vm3330, %v3317, %v3320
        %v3339 = vsel %vm3333, %v3326, 920167782
        %v3340 = vsel %vm3332, %v3323, %v3339
        %v3341 = vsel %vm3331, %v3338, %v3340
        %v3342 = vsel %vm3330, %v3320, %v3323
        %v3343 = vsel %vm3333, %v3329, 1326507024
        %v3344 = vsel %vm3332, %v3326, %v3343
        %v3345 = vsel %vm3331, %v3342, %v3344
        %v3346 = vshll.u32 %v3306, 8
        %v3347 = vmul.u32.u64.compose %v3346, %v3345
        %v3348 = vextract.low.u32 %v3347
        %v3349 = vextract.high.u32 %v3347
        %v3350 = vmul.u32.u64.compose %v3346, %v3341
        %v3351 = vextract.low.u32 %v3350
        %v3352 = vextract.high.u32 %v3350
        %v3353 = vmul.u32 %v3346, %v3337
        %v3354 = vadd.s32 %v3349, %v3351
        %vm3355 = vc.u32 %v3349, %v3351
        %v3356 = vadd.s32 %v3352, 1
        %v3357 = vsel %vm3355, %v3356, %v3352
        %v3358 = vadd.s32 %v3353, %v3357
        %v3359 = vadd.s32 %v3358, 536870912
        %v3360 = vshrl.u32 %v3359, 30
        %v3361 = vshll.u32 %v3360, 30
        %v3362 = vsub.s32 %v3358, %v3361
        %vm3363 = vcmp.lt.s32.totalorder %v3362, 0
        %v3364 = vsub.s32 0, %v3362
        %v3365 = vsel %vm3363, %v3364, %v3362
        %v3366 = vclz %v3365
        %v3367 = vsub.s32 %v3366, 2
        %vm3368 = vcmp.gt.s32.totalorder 0, %v3367
        %v3369 = vsel %vm3368, 0, %v3367
        %v3370 = vsub.s32 32, %v3369
        %v3371 = vshll.u32 %v3362, %v3369
        %v3372 = vshrl.u32 %v3354, %v3370
        %v3373 = vor.u32 %v3371, %v3372
        %v3374 = vsub.s32 4294967266, %v3369
        %v3375 = vadd.s32 %v3374, 127
        %v3376 = vshll.u32 %v3375, 23
        %v3377 = vor.u32 4788187, %v3376
        %v3378 = vand.u32 2147483647, %v3377
        %v3380 = vcvt.s32.f32 %v3373
        %v3381 = vmul.f32 %v3380, %v3378
        %v3382 = vxor.u32 %v3381, 2147483648
        %v3383 = vsel %vm3300, %v3382, %v3381
        %v3384 = vsub.s32 4, %v3360
        %v3385 = vsel %vm3300, %v3384, %v3360
        %v3386 = vsel %vm3299, %v659, %v3383
        %v3387 = vsel %vm3299, 0, %v3385
        %v3388 = vcosq.f32.pop %v3386
        %v3389 = vsinq.f32.pop %v3386
        %vm3390 = vweird.f32 %v659
        %v3391 = vadd.s32 %v3387, 3
        %v3392 = vand.u32 %v3391, 3
        %vm3393 = vcmp.lt.s32.totalorder %v3392, 2
        %vm3394 = vcmp.eq.s32.totalorder %v3392, 0
        %v3395 = vxor.u32 %v3389, 2147483648
        %v3396 = vsel %vm3394, %v3388, %v3395
        %vm3397 = vcmp.eq.s32.totalorder %v3392, 2
        %v3398 = vxor.u32 %v3388, 2147483648
        %v3399 = vsel %vm3397, %v3398, %v3389
        %v3400 = vsel %vm3393, %v3396, %v3399
        %v3401 = vsel %vm3390, nan, %v3400
        %v3402 = vand.u32 2147483647, %v660
        %vm3403 = vcmp.le.f32.partialorder %v3402, 0.7853982
        %vm3404 = vcmp.lt.s32.totalorder %v660, 0
        %v3405 = vand.u32 %v660, 2139095040
        %v3406 = vshrl.u32 %v3405, 23
        %v3407 = vsub.s32 %v3406, 127
        %v3408 = vand.u32 2147483647, %v660
        %v3409 = vand.u32 %v3408, 8388607
        %v3410 = vor.u32 %v3409, 8388608
        %v3411 = vsub.s32 0, %v3410
        %v3412 = vadd.s32 %v3407, 1
        %vm3413 = vcmp.gt.s32.totalorder %v3412, 0
        %v3414 = vsel %vm3413, %v3412, 0
        %v3415 = vshrl.u32 %v3414, 5
        %v3416 = vand.u32 %v3414, 31
        %v3417 = vsub.s32 32, %v3416
        %v3418 = vshrl.u32 683565275, %v3417
        %v3419 = vshll.u32 683565275, %v3416
        %v3420 = vshrl.u32 2475754826, %v3417
        %v3421 = vor.u32 %v3419, %v3420
        %v3422 = vshll.u32 2475754826, %v3416
        %v3423 = vshrl.u32 2131351028, %v3417
        %v3424 = vor.u32 %v3422, %v3423
        %v3425 = vshll.u32 2131351028, %v3416
        %v3426 = vshrl.u32 2102212464, %v3417
        %v3427 = vor.u32 %v3425, %v3426
        %v3428 = vshll.u32 2102212464, %v3416
        %v3429 = vshrl.u32 920167782, %v3417
        %v3430 = vor.u32 %v3428, %v3429
        %v3431 = vshll.u32 920167782, %v3416
        %v3432 = vshrl.u32 1326507024, %v3417
        %v3433 = vor.u32 %v3431, %v3432
        %vm3434 = vcmp.lt.s32.totalorder %v3415, 1
        %vm3435 = vcmp.lt.s32.totalorder %v3415, 2
        %vm3436 = vcmp.lt.s32.totalorder %v3415, 3
        %vm3437 = vcmp.lt.s32.totalorder %v3415, 4
        %v3438 = vsel %vm3434, %v3418, %v3421
        %v3439 = vsel %vm3437, %v3427, 2102212464
        %v3440 = vsel %vm3436, %v3424, %v3439
        %v3441 = vsel %vm3435, %v3438, %v3440
        %v3442 = vsel %vm3434, %v3421, %v3424
        %v3443 = vsel %vm3437, %v3430, 920167782
        %v3444 = vsel %vm3436, %v3427, %v3443
        %v3445 = vsel %vm3435, %v3442, %v3444
        %v3446 = vsel %vm3434, %v3424, %v3427
        %v3447 = vsel %vm3437, %v3433, 1326507024
        %v3448 = vsel %vm3436, %v3430, %v3447
        %v3449 = vsel %vm3435, %v3446, %v3448
        %v3450 = vshll.u32 %v3410, 8
        %v3451 = vmul.u32.u64.compose %v3450, %v3449
        %v3452 = vextract.low.u32 %v3451
        %v3453 = vextract.high.u32 %v3451
        %v3454 = vmul.u32.u64.compose %v3450, %v3445
        %v3455 = vextract.low.u32 %v3454
        %v3456 = vextract.high.u32 %v3454
        %v3457 = vmul.u32 %v3450, %v3441
        %v3458 = vadd.s32 %v3453, %v3455
        %vm3459 = vc.u32 %v3453, %v3455
        %v3460 = vadd.s32 %v3456, 1
        %v3461 = vsel %vm3459, %v3460, %v3456
        %v3462 = vadd.s32 %v3457, %v3461
        %v3463 = vadd.s32 %v3462, 536870912
        %v3464 = vshrl.u32 %v3463, 30
        %v3465 = vshll.u32 %v3464, 30
        %v3466 = vsub.s32 %v3462, %v3465
        %vm3467 = vcmp.lt.s32.totalorder %v3466, 0
        %v3468 = vsub.s32 0, %v3466
        %v3469 = vsel %vm3467, %v3468, %v3466
        %v3470 = vclz %v3469
        %v3471 = vsub.s32 %v3470, 2
        %vm3472 = vcmp.gt.s32.totalorder 0, %v3471
        %v3473 = vsel %vm3472, 0, %v3471
        %v3474 = vsub.s32 32, %v3473
        %v3475 = vshll.u32 %v3466, %v3473
        %v3476 = vshrl.u32 %v3458, %v3474
        %v3477 = vor.u32 %v3475, %v3476
        %v3478 = vsub.s32 4294967266, %v3473
        %v3479 = vadd.s32 %v3478, 127
        %v3480 = vshll.u32 %v3479, 23
        %v3481 = vor.u32 4788187, %v3480
        %v3482 = vand.u32 2147483647, %v3481
        %v3484 = vcvt.s32.f32 %v3477
        %v3485 = vmul.f32 %v3484, %v3482
        %v3486 = vxor.u32 %v3485, 2147483648
        %v3487 = vsel %vm3404, %v3486, %v3485
        %v3488 = vsub.s32 4, %v3464
        %v3489 = vsel %vm3404, %v3488, %v3464
        %v3490 = vsel %vm3403, %v660, %v3487
        %v3491 = vsel %vm3403, 0, %v3489
        %v3492 = vcosq.f32.pop %v3490
        %v3493 = vsinq.f32.pop %v3490
        %vm3494 = vweird.f32 %v660
        %v3495 = vadd.s32 %v3491, 3
        %v3496 = vand.u32 %v3495, 3
        %vm3497 = vcmp.lt.s32.totalorder %v3496, 2
        %vm3498 = vcmp.eq.s32.totalorder %v3496, 0
        %v3499 = vxor.u32 %v3493, 2147483648
        %v3500 = vsel %vm3498, %v3492, %v3499
        %vm3501 = vcmp.eq.s32.totalorder %v3496, 2
        %v3502 = vxor.u32 %v3492, 2147483648
        %v3503 = vsel %vm3501, %v3502, %v3493
        %v3504 = vsel %vm3497, %v3500, %v3503
        %v3505 = vsel %vm3494, nan, %v3504
        %v3506 = vand.u32 2147483647, %v661
        %vm3507 = vcmp.le.f32.partialorder %v3506, 0.7853982
        %vm3508 = vcmp.lt.s32.totalorder %v661, 0
        %v3509 = vand.u32 %v661, 2139095040
        %v3510 = vshrl.u32 %v3509, 23
        %v3511 = vsub.s32 %v3510, 127
        %v3512 = vand.u32 2147483647, %v661
        %v3513 = vand.u32 %v3512, 8388607
        %v3514 = vor.u32 %v3513, 8388608
        %v3515 = vsub.s32 0, %v3514
        %v3516 = vadd.s32 %v3511, 1
        %vm3517 = vcmp.gt.s32.totalorder %v3516, 0
        %v3518 = vsel %vm3517, %v3516, 0
        %v3519 = vshrl.u32 %v3518, 5
        %v3520 = vand.u32 %v3518, 31
        %v3521 = vsub.s32 32, %v3520
        %v3522 = vshrl.u32 683565275, %v3521
        %v3523 = vshll.u32 683565275, %v3520
        %v3524 = vshrl.u32 2475754826, %v3521
        %v3525 = vor.u32 %v3523, %v3524
        %v3526 = vshll.u32 2475754826, %v3520
        %v3527 = vshrl.u32 2131351028, %v3521
        %v3528 = vor.u32 %v3526, %v3527
        %v3529 = vshll.u32 2131351028, %v3520
        %v3530 = vshrl.u32 2102212464, %v3521
        %v3531 = vor.u32 %v3529, %v3530
        %v3532 = vshll.u32 2102212464, %v3520
        %v3533 = vshrl.u32 920167782, %v3521
        %v3534 = vor.u32 %v3532, %v3533
        %v3535 = vshll.u32 920167782, %v3520
        %v3536 = vshrl.u32 1326507024, %v3521
        %v3537 = vor.u32 %v3535, %v3536
        %vm3538 = vcmp.lt.s32.totalorder %v3519, 1
        %vm3539 = vcmp.lt.s32.totalorder %v3519, 2
        %vm3540 = vcmp.lt.s32.totalorder %v3519, 3
        %vm3541 = vcmp.lt.s32.totalorder %v3519, 4
        %v3542 = vsel %vm3538, %v3522, %v3525
        %v3543 = vsel %vm3541, %v3531, 2102212464
        %v3544 = vsel %vm3540, %v3528, %v3543
        %v3545 = vsel %vm3539, %v3542, %v3544
        %v3546 = vsel %vm3538, %v3525, %v3528
        %v3547 = vsel %vm3541, %v3534, 920167782
        %v3548 = vsel %vm3540, %v3531, %v3547
        %v3549 = vsel %vm3539, %v3546, %v3548
        %v3550 = vsel %vm3538, %v3528, %v3531
        %v3551 = vsel %vm3541, %v3537, 1326507024
        %v3552 = vsel %vm3540, %v3534, %v3551
        %v3553 = vsel %vm3539, %v3550, %v3552
        %v3554 = vshll.u32 %v3514, 8
        %v3555 = vmul.u32.u64.compose %v3554, %v3553
        %v3556 = vextract.low.u32 %v3555
        %v3557 = vextract.high.u32 %v3555
        %v3558 = vmul.u32.u64.compose %v3554, %v3549
        %v3559 = vextract.low.u32 %v3558
        %v3560 = vextract.high.u32 %v3558
        %v3561 = vmul.u32 %v3554, %v3545
        %v3562 = vadd.s32 %v3557, %v3559
        %vm3563 = vc.u32 %v3557, %v3559
        %v3564 = vadd.s32 %v3560, 1
        %v3565 = vsel %vm3563, %v3564, %v3560
        %v3566 = vadd.s32 %v3561, %v3565
        %v3567 = vadd.s32 %v3566, 536870912
        %v3568 = vshrl.u32 %v3567, 30
        %v3569 = vshll.u32 %v3568, 30
        %v3570 = vsub.s32 %v3566, %v3569
        %vm3571 = vcmp.lt.s32.totalorder %v3570, 0
        %v3572 = vsub.s32 0, %v3570
        %v3573 = vsel %vm3571, %v3572, %v3570
        %v3574 = vclz %v3573
        %v3575 = vsub.s32 %v3574, 2
        %vm3576 = vcmp.gt.s32.totalorder 0, %v3575
        %v3577 = vsel %vm3576, 0, %v3575
        %v3578 = vsub.s32 32, %v3577
        %v3579 = vshll.u32 %v3570, %v3577
        %v3580 = vshrl.u32 %v3562, %v3578
        %v3581 = vor.u32 %v3579, %v3580
        %v3582 = vsub.s32 4294967266, %v3577
        %v3583 = vadd.s32 %v3582, 127
        %v3584 = vshll.u32 %v3583, 23
        %v3585 = vor.u32 4788187, %v3584
        %v3586 = vand.u32 2147483647, %v3585
        %v3588 = vcvt.s32.f32 %v3581
        %v3589 = vmul.f32 %v3588, %v3586
        %v3590 = vxor.u32 %v3589, 2147483648
        %v3591 = vsel %vm3508, %v3590, %v3589
        %v3592 = vsub.s32 4, %v3568
        %v3593 = vsel %vm3508, %v3592, %v3568
        %v3594 = vsel %vm3507, %v661, %v3591
        %v3595 = vsel %vm3507, 0, %v3593
        %v3596 = vcosq.f32.pop %v3594
        %v3597 = vsinq.f32.pop %v3594
        %vm3598 = vweird.f32 %v661
        %v3599 = vadd.s32 %v3595, 3
        %v3600 = vand.u32 %v3599, 3
        %vm3601 = vcmp.lt.s32.totalorder %v3600, 2
        %vm3602 = vcmp.eq.s32.totalorder %v3600, 0
        %v3603 = vxor.u32 %v3597, 2147483648
        %v3604 = vsel %vm3602, %v3596, %v3603
        %vm3605 = vcmp.eq.s32.totalorder %v3600, 2
        %v3606 = vxor.u32 %v3596, 2147483648
        %v3607 = vsel %vm3605, %v3606, %v3597
        %v3608 = vsel %vm3601, %v3604, %v3607
        %v3609 = vsel %vm3598, nan, %v3608
        %v3610 = vand.u32 2147483647, %v662
        %vm3611 = vcmp.le.f32.partialorder %v3610, 0.7853982
        %vm3612 = vcmp.lt.s32.totalorder %v662, 0
        %v3613 = vand.u32 %v662, 2139095040
        %v3614 = vshrl.u32 %v3613, 23
        %v3615 = vsub.s32 %v3614, 127
        %v3616 = vand.u32 2147483647, %v662
        %v3617 = vand.u32 %v3616, 8388607
        %v3618 = vor.u32 %v3617, 8388608
        %v3619 = vsub.s32 0, %v3618
        %v3620 = vadd.s32 %v3615, 1
        %vm3621 = vcmp.gt.s32.totalorder %v3620, 0
        %v3622 = vsel %vm3621, %v3620, 0
        %v3623 = vshrl.u32 %v3622, 5
        %v3624 = vand.u32 %v3622, 31
        %v3625 = vsub.s32 32, %v3624
        %v3626 = vshrl.u32 683565275, %v3625
        %v3627 = vshll.u32 683565275, %v3624
        %v3628 = vshrl.u32 2475754826, %v3625
        %v3629 = vor.u32 %v3627, %v3628
        %v3630 = vshll.u32 2475754826, %v3624
        %v3631 = vshrl.u32 2131351028, %v3625
        %v3632 = vor.u32 %v3630, %v3631
        %v3633 = vshll.u32 2131351028, %v3624
        %v3634 = vshrl.u32 2102212464, %v3625
        %v3635 = vor.u32 %v3633, %v3634
        %v3636 = vshll.u32 2102212464, %v3624
        %v3637 = vshrl.u32 920167782, %v3625
        %v3638 = vor.u32 %v3636, %v3637
        %v3639 = vshll.u32 920167782, %v3624
        %v3640 = vshrl.u32 1326507024, %v3625
        %v3641 = vor.u32 %v3639, %v3640
        %vm3642 = vcmp.lt.s32.totalorder %v3623, 1
        %vm3643 = vcmp.lt.s32.totalorder %v3623, 2
        %vm3644 = vcmp.lt.s32.totalorder %v3623, 3
        %vm3645 = vcmp.lt.s32.totalorder %v3623, 4
        %v3646 = vsel %vm3642, %v3626, %v3629
        %v3647 = vsel %vm3645, %v3635, 2102212464
        %v3648 = vsel %vm3644, %v3632, %v3647
        %v3649 = vsel %vm3643, %v3646, %v3648
        %v3650 = vsel %vm3642, %v3629, %v3632
        %v3651 = vsel %vm3645, %v3638, 920167782
        %v3652 = vsel %vm3644, %v3635, %v3651
        %v3653 = vsel %vm3643, %v3650, %v3652
        %v3654 = vsel %vm3642, %v3632, %v3635
        %v3655 = vsel %vm3645, %v3641, 1326507024
        %v3656 = vsel %vm3644, %v3638, %v3655
        %v3657 = vsel %vm3643, %v3654, %v3656
        %v3658 = vshll.u32 %v3618, 8
        %v3659 = vmul.u32.u64.compose %v3658, %v3657
        %v3660 = vextract.low.u32 %v3659
        %v3661 = vextract.high.u32 %v3659
        %v3662 = vmul.u32.u64.compose %v3658, %v3653
        %v3663 = vextract.low.u32 %v3662
        %v3664 = vextract.high.u32 %v3662
        %v3665 = vmul.u32 %v3658, %v3649
        %v3666 = vadd.s32 %v3661, %v3663
        %vm3667 = vc.u32 %v3661, %v3663
        %v3668 = vadd.s32 %v3664, 1
        %v3669 = vsel %vm3667, %v3668, %v3664
        %v3670 = vadd.s32 %v3665, %v3669
        %v3671 = vadd.s32 %v3670, 536870912
        %v3672 = vshrl.u32 %v3671, 30
        %v3673 = vshll.u32 %v3672, 30
        %v3674 = vsub.s32 %v3670, %v3673
        %vm3675 = vcmp.lt.s32.totalorder %v3674, 0
        %v3676 = vsub.s32 0, %v3674
        %v3677 = vsel %vm3675, %v3676, %v3674
        %v3678 = vclz %v3677
        %v3679 = vsub.s32 %v3678, 2
        %vm3680 = vcmp.gt.s32.totalorder 0, %v3679
        %v3681 = vsel %vm3680, 0, %v3679
        %v3682 = vsub.s32 32, %v3681
        %v3683 = vshll.u32 %v3674, %v3681
        %v3684 = vshrl.u32 %v3666, %v3682
        %v3685 = vor.u32 %v3683, %v3684
        %v3686 = vsub.s32 4294967266, %v3681
        %v3687 = vadd.s32 %v3686, 127
        %v3688 = vshll.u32 %v3687, 23
        %v3689 = vor.u32 4788187, %v3688
        %v3690 = vand.u32 2147483647, %v3689
        %v3692 = vcvt.s32.f32 %v3685
        %v3693 = vmul.f32 %v3692, %v3690
        %v3694 = vxor.u32 %v3693, 2147483648
        %v3695 = vsel %vm3612, %v3694, %v3693
        %v3696 = vsub.s32 4, %v3672
        %v3697 = vsel %vm3612, %v3696, %v3672
        %v3698 = vsel %vm3611, %v662, %v3695
        %v3699 = vsel %vm3611, 0, %v3697
        %v3700 = vcosq.f32.pop %v3698
        %v3701 = vsinq.f32.pop %v3698
        %vm3702 = vweird.f32 %v662
        %v3703 = vadd.s32 %v3699, 3
        %v3704 = vand.u32 %v3703, 3
        %vm3705 = vcmp.lt.s32.totalorder %v3704, 2
        %vm3706 = vcmp.eq.s32.totalorder %v3704, 0
        %v3707 = vxor.u32 %v3701, 2147483648
        %v3708 = vsel %vm3706, %v3700, %v3707
        %vm3709 = vcmp.eq.s32.totalorder %v3704, 2
        %v3710 = vxor.u32 %v3700, 2147483648
        %v3711 = vsel %vm3709, %v3710, %v3701
        %v3712 = vsel %vm3705, %v3708, %v3711
        %v3713 = vsel %vm3702, nan, %v3712
        %v3714 = vand.u32 2147483647, %v663
        %vm3715 = vcmp.le.f32.partialorder %v3714, 0.7853982
        %vm3716 = vcmp.lt.s32.totalorder %v663, 0
        %v3717 = vand.u32 %v663, 2139095040
        %v3718 = vshrl.u32 %v3717, 23
        %v3719 = vsub.s32 %v3718, 127
        %v3720 = vand.u32 2147483647, %v663
        %v3721 = vand.u32 %v3720, 8388607
        %v3722 = vor.u32 %v3721, 8388608
        %v3723 = vsub.s32 0, %v3722
        %v3724 = vadd.s32 %v3719, 1
        %vm3725 = vcmp.gt.s32.totalorder %v3724, 0
        %v3726 = vsel %vm3725, %v3724, 0
        %v3727 = vshrl.u32 %v3726, 5
        %v3728 = vand.u32 %v3726, 31
        %v3729 = vsub.s32 32, %v3728
        %v3730 = vshrl.u32 683565275, %v3729
        %v3731 = vshll.u32 683565275, %v3728
        %v3732 = vshrl.u32 2475754826, %v3729
        %v3733 = vor.u32 %v3731, %v3732
        %v3734 = vshll.u32 2475754826, %v3728
        %v3735 = vshrl.u32 2131351028, %v3729
        %v3736 = vor.u32 %v3734, %v3735
        %v3737 = vshll.u32 2131351028, %v3728
        %v3738 = vshrl.u32 2102212464, %v3729
        %v3739 = vor.u32 %v3737, %v3738
        %v3740 = vshll.u32 2102212464, %v3728
        %v3741 = vshrl.u32 920167782, %v3729
        %v3742 = vor.u32 %v3740, %v3741
        %v3743 = vshll.u32 920167782, %v3728
        %v3744 = vshrl.u32 1326507024, %v3729
        %v3745 = vor.u32 %v3743, %v3744
        %vm3746 = vcmp.lt.s32.totalorder %v3727, 1
        %vm3747 = vcmp.lt.s32.totalorder %v3727, 2
        %vm3748 = vcmp.lt.s32.totalorder %v3727, 3
        %vm3749 = vcmp.lt.s32.totalorder %v3727, 4
        %v3750 = vsel %vm3746, %v3730, %v3733
        %v3751 = vsel %vm3749, %v3739, 2102212464
        %v3752 = vsel %vm3748, %v3736, %v3751
        %v3753 = vsel %vm3747, %v3750, %v3752
        %v3754 = vsel %vm3746, %v3733, %v3736
        %v3755 = vsel %vm3749, %v3742, 920167782
        %v3756 = vsel %vm3748, %v3739, %v3755
        %v3757 = vsel %vm3747, %v3754, %v3756
        %v3758 = vsel %vm3746, %v3736, %v3739
        %v3759 = vsel %vm3749, %v3745, 1326507024
        %v3760 = vsel %vm3748, %v3742, %v3759
        %v3761 = vsel %vm3747, %v3758, %v3760
        %v3762 = vshll.u32 %v3722, 8
        %v3763 = vmul.u32.u64.compose %v3762, %v3761
        %v3764 = vextract.low.u32 %v3763
        %v3765 = vextract.high.u32 %v3763
        %v3766 = vmul.u32.u64.compose %v3762, %v3757
        %v3767 = vextract.low.u32 %v3766
        %v3768 = vextract.high.u32 %v3766
        %v3769 = vmul.u32 %v3762, %v3753
        %v3770 = vadd.s32 %v3765, %v3767
        %vm3771 = vc.u32 %v3765, %v3767
        %v3772 = vadd.s32 %v3768, 1
        %v3773 = vsel %vm3771, %v3772, %v3768
        %v3774 = vadd.s32 %v3769, %v3773
        %v3775 = vadd.s32 %v3774, 536870912
        %v3776 = vshrl.u32 %v3775, 30
        %v3777 = vshll.u32 %v3776, 30
        %v3778 = vsub.s32 %v3774, %v3777
        %vm3779 = vcmp.lt.s32.totalorder %v3778, 0
        %v3780 = vsub.s32 0, %v3778
        %v3781 = vsel %vm3779, %v3780, %v3778
        %v3782 = vclz %v3781
        %v3783 = vsub.s32 %v3782, 2
        %vm3784 = vcmp.gt.s32.totalorder 0, %v3783
        %v3785 = vsel %vm3784, 0, %v3783
        %v3786 = vsub.s32 32, %v3785
        %v3787 = vshll.u32 %v3778, %v3785
        %v3788 = vshrl.u32 %v3770, %v3786
        %v3789 = vor.u32 %v3787, %v3788
        %v3790 = vsub.s32 4294967266, %v3785
        %v3791 = vadd.s32 %v3790, 127
        %v3792 = vshll.u32 %v3791, 23
        %v3793 = vor.u32 4788187, %v3792
        %v3794 = vand.u32 2147483647, %v3793
        %v3796 = vcvt.s32.f32 %v3789
        %v3797 = vmul.f32 %v3796, %v3794
        %v3798 = vxor.u32 %v3797, 2147483648
        %v3799 = vsel %vm3716, %v3798, %v3797
        %v3800 = vsub.s32 4, %v3776
        %v3801 = vsel %vm3716, %v3800, %v3776
        %v3802 = vsel %vm3715, %v663, %v3799
        %v3803 = vsel %vm3715, 0, %v3801
        %v3804 = vcosq.f32.pop %v3802
        %v3805 = vsinq.f32.pop %v3802
        %vm3806 = vweird.f32 %v663
        %v3807 = vadd.s32 %v3803, 3
        %v3808 = vand.u32 %v3807, 3
        %vm3809 = vcmp.lt.s32.totalorder %v3808, 2
        %vm3810 = vcmp.eq.s32.totalorder %v3808, 0
        %v3811 = vxor.u32 %v3805, 2147483648
        %v3812 = vsel %vm3810, %v3804, %v3811
        %vm3813 = vcmp.eq.s32.totalorder %v3808, 2
        %v3814 = vxor.u32 %v3804, 2147483648
        %v3815 = vsel %vm3813, %v3814, %v3805
        %v3816 = vsel %vm3809, %v3812, %v3815
        %v3817 = vsel %vm3806, nan, %v3816
        %v3818 = vand.u32 2147483647, %v664
        %vm3819 = vcmp.le.f32.partialorder %v3818, 0.7853982
        %vm3820 = vcmp.lt.s32.totalorder %v664, 0
        %v3821 = vand.u32 %v664, 2139095040
        %v3822 = vshrl.u32 %v3821, 23
        %v3823 = vsub.s32 %v3822, 127
        %v3824 = vand.u32 2147483647, %v664
        %v3825 = vand.u32 %v3824, 8388607
        %v3826 = vor.u32 %v3825, 8388608
        %v3827 = vsub.s32 0, %v3826
        %v3828 = vadd.s32 %v3823, 1
        %vm3829 = vcmp.gt.s32.totalorder %v3828, 0
        %v3830 = vsel %vm3829, %v3828, 0
        %v3831 = vshrl.u32 %v3830, 5
        %v3832 = vand.u32 %v3830, 31
        %v3833 = vsub.s32 32, %v3832
        %v3834 = vshrl.u32 683565275, %v3833
        %v3835 = vshll.u32 683565275, %v3832
        %v3836 = vshrl.u32 2475754826, %v3833
        %v3837 = vor.u32 %v3835, %v3836
        %v3838 = vshll.u32 2475754826, %v3832
        %v3839 = vshrl.u32 2131351028, %v3833
        %v3840 = vor.u32 %v3838, %v3839
        %v3841 = vshll.u32 2131351028, %v3832
        %v3842 = vshrl.u32 2102212464, %v3833
        %v3843 = vor.u32 %v3841, %v3842
        %v3844 = vshll.u32 2102212464, %v3832
        %v3845 = vshrl.u32 920167782, %v3833
        %v3846 = vor.u32 %v3844, %v3845
        %v3847 = vshll.u32 920167782, %v3832
        %v3848 = vshrl.u32 1326507024, %v3833
        %v3849 = vor.u32 %v3847, %v3848
        %vm3850 = vcmp.lt.s32.totalorder %v3831, 1
        %vm3851 = vcmp.lt.s32.totalorder %v3831, 2
        %vm3852 = vcmp.lt.s32.totalorder %v3831, 3
        %vm3853 = vcmp.lt.s32.totalorder %v3831, 4
        %v3854 = vsel %vm3850, %v3834, %v3837
        %v3855 = vsel %vm3853, %v3843, 2102212464
        %v3856 = vsel %vm3852, %v3840, %v3855
        %v3857 = vsel %vm3851, %v3854, %v3856
        %v3858 = vsel %vm3850, %v3837, %v3840
        %v3859 = vsel %vm3853, %v3846, 920167782
        %v3860 = vsel %vm3852, %v3843, %v3859
        %v3861 = vsel %vm3851, %v3858, %v3860
        %v3862 = vsel %vm3850, %v3840, %v3843
        %v3863 = vsel %vm3853, %v3849, 1326507024
        %v3864 = vsel %vm3852, %v3846, %v3863
        %v3865 = vsel %vm3851, %v3862, %v3864
        %v3866 = vshll.u32 %v3826, 8
        %v3867 = vmul.u32.u64.compose %v3866, %v3865
        %v3868 = vextract.low.u32 %v3867
        %v3869 = vextract.high.u32 %v3867
        %v3870 = vmul.u32.u64.compose %v3866, %v3861
        %v3871 = vextract.low.u32 %v3870
        %v3872 = vextract.high.u32 %v3870
        %v3873 = vmul.u32 %v3866, %v3857
        %v3874 = vadd.s32 %v3869, %v3871
        %vm3875 = vc.u32 %v3869, %v3871
        %v3876 = vadd.s32 %v3872, 1
        %v3877 = vsel %vm3875, %v3876, %v3872
        %v3878 = vadd.s32 %v3873, %v3877
        %v3879 = vadd.s32 %v3878, 536870912
        %v3880 = vshrl.u32 %v3879, 30
        %v3881 = vshll.u32 %v3880, 30
        %v3882 = vsub.s32 %v3878, %v3881
        %vm3883 = vcmp.lt.s32.totalorder %v3882, 0
        %v3884 = vsub.s32 0, %v3882
        %v3885 = vsel %vm3883, %v3884, %v3882
        %v3886 = vclz %v3885
        %v3887 = vsub.s32 %v3886, 2
        %vm3888 = vcmp.gt.s32.totalorder 0, %v3887
        %v3889 = vsel %vm3888, 0, %v3887
        %v3890 = vsub.s32 32, %v3889
        %v3891 = vshll.u32 %v3882, %v3889
        %v3892 = vshrl.u32 %v3874, %v3890
        %v3893 = vor.u32 %v3891, %v3892
        %v3894 = vsub.s32 4294967266, %v3889
        %v3895 = vadd.s32 %v3894, 127
        %v3896 = vshll.u32 %v3895, 23
        %v3897 = vor.u32 4788187, %v3896
        %v3898 = vand.u32 2147483647, %v3897
        %v3900 = vcvt.s32.f32 %v3893
        %v3901 = vmul.f32 %v3900, %v3898
        %v3902 = vxor.u32 %v3901, 2147483648
        %v3903 = vsel %vm3820, %v3902, %v3901
        %v3904 = vsub.s32 4, %v3880
        %v3905 = vsel %vm3820, %v3904, %v3880
        %v3906 = vsel %vm3819, %v664, %v3903
        %v3907 = vsel %vm3819, 0, %v3905
        %v3908 = vcosq.f32.pop %v3906
        %v3909 = vsinq.f32.pop %v3906
        %vm3910 = vweird.f32 %v664
        %v3911 = vadd.s32 %v3907, 3
        %v3912 = vand.u32 %v3911, 3
        %vm3913 = vcmp.lt.s32.totalorder %v3912, 2
        %vm3914 = vcmp.eq.s32.totalorder %v3912, 0
        %v3915 = vxor.u32 %v3909, 2147483648
        %v3916 = vsel %vm3914, %v3908, %v3915
        %vm3917 = vcmp.eq.s32.totalorder %v3912, 2
        %v3918 = vxor.u32 %v3908, 2147483648
        %v3919 = vsel %vm3917, %v3918, %v3909
        %v3920 = vsel %vm3913, %v3916, %v3919
        %v3921 = vsel %vm3910, nan, %v3920
        %v3922 = vand.u32 2147483647, %v665
        %vm3923 = vcmp.le.f32.partialorder %v3922, 0.7853982
        %vm3924 = vcmp.lt.s32.totalorder %v665, 0
        %v3925 = vand.u32 %v665, 2139095040
        %v3926 = vshrl.u32 %v3925, 23
        %v3927 = vsub.s32 %v3926, 127
        %v3928 = vand.u32 2147483647, %v665
        %v3929 = vand.u32 %v3928, 8388607
        %v3930 = vor.u32 %v3929, 8388608
        %v3931 = vsub.s32 0, %v3930
        %v3932 = vadd.s32 %v3927, 1
        %vm3933 = vcmp.gt.s32.totalorder %v3932, 0
        %v3934 = vsel %vm3933, %v3932, 0
        %v3935 = vshrl.u32 %v3934, 5
        %v3936 = vand.u32 %v3934, 31
        %v3937 = vsub.s32 32, %v3936
        %v3938 = vshrl.u32 683565275, %v3937
        %v3939 = vshll.u32 683565275, %v3936
        %v3940 = vshrl.u32 2475754826, %v3937
        %v3941 = vor.u32 %v3939, %v3940
        %v3942 = vshll.u32 2475754826, %v3936
        %v3943 = vshrl.u32 2131351028, %v3937
        %v3944 = vor.u32 %v3942, %v3943
        %v3945 = vshll.u32 2131351028, %v3936
        %v3946 = vshrl.u32 2102212464, %v3937
        %v3947 = vor.u32 %v3945, %v3946
        %v3948 = vshll.u32 2102212464, %v3936
        %v3949 = vshrl.u32 920167782, %v3937
        %v3950 = vor.u32 %v3948, %v3949
        %v3951 = vshll.u32 920167782, %v3936
        %v3952 = vshrl.u32 1326507024, %v3937
        %v3953 = vor.u32 %v3951, %v3952
        %vm3954 = vcmp.lt.s32.totalorder %v3935, 1
        %vm3955 = vcmp.lt.s32.totalorder %v3935, 2
        %vm3956 = vcmp.lt.s32.totalorder %v3935, 3
        %vm3957 = vcmp.lt.s32.totalorder %v3935, 4
        %v3958 = vsel %vm3954, %v3938, %v3941
        %v3959 = vsel %vm3957, %v3947, 2102212464
        %v3960 = vsel %vm3956, %v3944, %v3959
        %v3961 = vsel %vm3955, %v3958, %v3960
        %v3962 = vsel %vm3954, %v3941, %v3944
        %v3963 = vsel %vm3957, %v3950, 920167782
        %v3964 = vsel %vm3956, %v3947, %v3963
        %v3965 = vsel %vm3955, %v3962, %v3964
        %v3966 = vsel %vm3954, %v3944, %v3947
        %v3967 = vsel %vm3957, %v3953, 1326507024
        %v3968 = vsel %vm3956, %v3950, %v3967
        %v3969 = vsel %vm3955, %v3966, %v3968
        %v3970 = vshll.u32 %v3930, 8
        %v3971 = vmul.u32.u64.compose %v3970, %v3969
        %v3972 = vextract.low.u32 %v3971
        %v3973 = vextract.high.u32 %v3971
        %v3974 = vmul.u32.u64.compose %v3970, %v3965
        %v3975 = vextract.low.u32 %v3974
        %v3976 = vextract.high.u32 %v3974
        %v3977 = vmul.u32 %v3970, %v3961
        %v3978 = vadd.s32 %v3973, %v3975
        %vm3979 = vc.u32 %v3973, %v3975
        %v3980 = vadd.s32 %v3976, 1
        %v3981 = vsel %vm3979, %v3980, %v3976
        %v3982 = vadd.s32 %v3977, %v3981
        %v3983 = vadd.s32 %v3982, 536870912
        %v3984 = vshrl.u32 %v3983, 30
        %v3985 = vshll.u32 %v3984, 30
        %v3986 = vsub.s32 %v3982, %v3985
        %vm3987 = vcmp.lt.s32.totalorder %v3986, 0
        %v3988 = vsub.s32 0, %v3986
        %v3989 = vsel %vm3987, %v3988, %v3986
        %v3990 = vclz %v3989
        %v3991 = vsub.s32 %v3990, 2
        %vm3992 = vcmp.gt.s32.totalorder 0, %v3991
        %v3993 = vsel %vm3992, 0, %v3991
        %v3994 = vsub.s32 32, %v3993
        %v3995 = vshll.u32 %v3986, %v3993
        %v3996 = vshrl.u32 %v3978, %v3994
        %v3997 = vor.u32 %v3995, %v3996
        %v3998 = vsub.s32 4294967266, %v3993
        %v3999 = vadd.s32 %v3998, 127
        %v4000 = vshll.u32 %v3999, 23
        %v4001 = vor.u32 4788187, %v4000
        %v4002 = vand.u32 2147483647, %v4001
        %v4004 = vcvt.s32.f32 %v3997
        %v4005 = vmul.f32 %v4004, %v4002
        %v4006 = vxor.u32 %v4005, 2147483648
        %v4007 = vsel %vm3924, %v4006, %v4005
        %v4008 = vsub.s32 4, %v3984
        %v4009 = vsel %vm3924, %v4008, %v3984
        %v4010 = vsel %vm3923, %v665, %v4007
        %v4011 = vsel %vm3923, 0, %v4009
        %v4012 = vcosq.f32.pop %v4010
        %v4013 = vsinq.f32.pop %v4010
        %vm4014 = vweird.f32 %v665
        %v4015 = vadd.s32 %v4011, 3
        %v4016 = vand.u32 %v4015, 3
        %vm4017 = vcmp.lt.s32.totalorder %v4016, 2
        %vm4018 = vcmp.eq.s32.totalorder %v4016, 0
        %v4019 = vxor.u32 %v4013, 2147483648
        %v4020 = vsel %vm4018, %v4012, %v4019
        %vm4021 = vcmp.eq.s32.totalorder %v4016, 2
        %v4022 = vxor.u32 %v4012, 2147483648
        %v4023 = vsel %vm4021, %v4022, %v4013
        %v4024 = vsel %vm4017, %v4020, %v4023
        %v4025 = vsel %vm4014, nan, %v4024
        %v4026 = vand.u32 2147483647, %v666
        %vm4027 = vcmp.le.f32.partialorder %v4026, 0.7853982
        %vm4028 = vcmp.lt.s32.totalorder %v666, 0
        %v4029 = vand.u32 %v666, 2139095040
        %v4030 = vshrl.u32 %v4029, 23
        %v4031 = vsub.s32 %v4030, 127
        %v4032 = vand.u32 2147483647, %v666
        %v4033 = vand.u32 %v4032, 8388607
        %v4034 = vor.u32 %v4033, 8388608
        %v4035 = vsub.s32 0, %v4034
        %v4036 = vadd.s32 %v4031, 1
        %vm4037 = vcmp.gt.s32.totalorder %v4036, 0
        %v4038 = vsel %vm4037, %v4036, 0
        %v4039 = vshrl.u32 %v4038, 5
        %v4040 = vand.u32 %v4038, 31
        %v4041 = vsub.s32 32, %v4040
        %v4042 = vshrl.u32 683565275, %v4041
        %v4043 = vshll.u32 683565275, %v4040
        %v4044 = vshrl.u32 2475754826, %v4041
        %v4045 = vor.u32 %v4043, %v4044
        %v4046 = vshll.u32 2475754826, %v4040
        %v4047 = vshrl.u32 2131351028, %v4041
        %v4048 = vor.u32 %v4046, %v4047
        %v4049 = vshll.u32 2131351028, %v4040
        %v4050 = vshrl.u32 2102212464, %v4041
        %v4051 = vor.u32 %v4049, %v4050
        %v4052 = vshll.u32 2102212464, %v4040
        %v4053 = vshrl.u32 920167782, %v4041
        %v4054 = vor.u32 %v4052, %v4053
        %v4055 = vshll.u32 920167782, %v4040
        %v4056 = vshrl.u32 1326507024, %v4041
        %v4057 = vor.u32 %v4055, %v4056
        %vm4058 = vcmp.lt.s32.totalorder %v4039, 1
        %vm4059 = vcmp.lt.s32.totalorder %v4039, 2
        %vm4060 = vcmp.lt.s32.totalorder %v4039, 3
        %vm4061 = vcmp.lt.s32.totalorder %v4039, 4
        %v4062 = vsel %vm4058, %v4042, %v4045
        %v4063 = vsel %vm4061, %v4051, 2102212464
        %v4064 = vsel %vm4060, %v4048, %v4063
        %v4065 = vsel %vm4059, %v4062, %v4064
        %v4066 = vsel %vm4058, %v4045, %v4048
        %v4067 = vsel %vm4061, %v4054, 920167782
        %v4068 = vsel %vm4060, %v4051, %v4067
        %v4069 = vsel %vm4059, %v4066, %v4068
        %v4070 = vsel %vm4058, %v4048, %v4051
        %v4071 = vsel %vm4061, %v4057, 1326507024
        %v4072 = vsel %vm4060, %v4054, %v4071
        %v4073 = vsel %vm4059, %v4070, %v4072
        %v4074 = vshll.u32 %v4034, 8
        %v4075 = vmul.u32.u64.compose %v4074, %v4073
        %v4076 = vextract.low.u32 %v4075
        %v4077 = vextract.high.u32 %v4075
        %v4078 = vmul.u32.u64.compose %v4074, %v4069
        %v4079 = vextract.low.u32 %v4078
        %v4080 = vextract.high.u32 %v4078
        %v4081 = vmul.u32 %v4074, %v4065
        %v4082 = vadd.s32 %v4077, %v4079
        %vm4083 = vc.u32 %v4077, %v4079
        %v4084 = vadd.s32 %v4080, 1
        %v4085 = vsel %vm4083, %v4084, %v4080
        %v4086 = vadd.s32 %v4081, %v4085
        %v4087 = vadd.s32 %v4086, 536870912
        %v4088 = vshrl.u32 %v4087, 30
        %v4089 = vshll.u32 %v4088, 30
        %v4090 = vsub.s32 %v4086, %v4089
        %vm4091 = vcmp.lt.s32.totalorder %v4090, 0
        %v4092 = vsub.s32 0, %v4090
        %v4093 = vsel %vm4091, %v4092, %v4090
        %v4094 = vclz %v4093
        %v4095 = vsub.s32 %v4094, 2
        %vm4096 = vcmp.gt.s32.totalorder 0, %v4095
        %v4097 = vsel %vm4096, 0, %v4095
        %v4098 = vsub.s32 32, %v4097
        %v4099 = vshll.u32 %v4090, %v4097
        %v4100 = vshrl.u32 %v4082, %v4098
        %v4101 = vor.u32 %v4099, %v4100
        %v4102 = vsub.s32 4294967266, %v4097
        %v4103 = vadd.s32 %v4102, 127
        %v4104 = vshll.u32 %v4103, 23
        %v4105 = vor.u32 4788187, %v4104
        %v4106 = vand.u32 2147483647, %v4105
        %v4108 = vcvt.s32.f32 %v4101
        %v4109 = vmul.f32 %v4108, %v4106
        %v4110 = vxor.u32 %v4109, 2147483648
        %v4111 = vsel %vm4028, %v4110, %v4109
        %v4112 = vsub.s32 4, %v4088
        %v4113 = vsel %vm4028, %v4112, %v4088
        %v4114 = vsel %vm4027, %v666, %v4111
        %v4115 = vsel %vm4027, 0, %v4113
        %v4116 = vcosq.f32.pop %v4114
        %v4117 = vsinq.f32.pop %v4114
        %vm4118 = vweird.f32 %v666
        %v4119 = vadd.s32 %v4115, 3
        %v4120 = vand.u32 %v4119, 3
        %vm4121 = vcmp.lt.s32.totalorder %v4120, 2
        %vm4122 = vcmp.eq.s32.totalorder %v4120, 0
        %v4123 = vxor.u32 %v4117, 2147483648
        %v4124 = vsel %vm4122, %v4116, %v4123
        %vm4125 = vcmp.eq.s32.totalorder %v4120, 2
        %v4126 = vxor.u32 %v4116, 2147483648
        %v4127 = vsel %vm4125, %v4126, %v4117
        %v4128 = vsel %vm4121, %v4124, %v4127
        %v4129 = vsel %vm4118, nan, %v4128
        %v4130 = vand.u32 2147483647, %v667
        %vm4131 = vcmp.le.f32.partialorder %v4130, 0.7853982
        %vm4132 = vcmp.lt.s32.totalorder %v667, 0
        %v4133 = vand.u32 %v667, 2139095040
        %v4134 = vshrl.u32 %v4133, 23
        %v4135 = vsub.s32 %v4134, 127
        %v4136 = vand.u32 2147483647, %v667
        %v4137 = vand.u32 %v4136, 8388607
        %v4138 = vor.u32 %v4137, 8388608
        %v4139 = vsub.s32 0, %v4138
        %v4140 = vadd.s32 %v4135, 1
        %vm4141 = vcmp.gt.s32.totalorder %v4140, 0
        %v4142 = vsel %vm4141, %v4140, 0
        %v4143 = vshrl.u32 %v4142, 5
        %v4144 = vand.u32 %v4142, 31
        %v4145 = vsub.s32 32, %v4144
        %v4146 = vshrl.u32 683565275, %v4145
        %v4147 = vshll.u32 683565275, %v4144
        %v4148 = vshrl.u32 2475754826, %v4145
        %v4149 = vor.u32 %v4147, %v4148
        %v4150 = vshll.u32 2475754826, %v4144
        %v4151 = vshrl.u32 2131351028, %v4145
        %v4152 = vor.u32 %v4150, %v4151
        %v4153 = vshll.u32 2131351028, %v4144
        %v4154 = vshrl.u32 2102212464, %v4145
        %v4155 = vor.u32 %v4153, %v4154
        %v4156 = vshll.u32 2102212464, %v4144
        %v4157 = vshrl.u32 920167782, %v4145
        %v4158 = vor.u32 %v4156, %v4157
        %v4159 = vshll.u32 920167782, %v4144
        %v4160 = vshrl.u32 1326507024, %v4145
        %v4161 = vor.u32 %v4159, %v4160
        %vm4162 = vcmp.lt.s32.totalorder %v4143, 1
        %vm4163 = vcmp.lt.s32.totalorder %v4143, 2
        %vm4164 = vcmp.lt.s32.totalorder %v4143, 3
        %vm4165 = vcmp.lt.s32.totalorder %v4143, 4
        %v4166 = vsel %vm4162, %v4146, %v4149
        %v4167 = vsel %vm4165, %v4155, 2102212464
        %v4168 = vsel %vm4164, %v4152, %v4167
        %v4169 = vsel %vm4163, %v4166, %v4168
        %v4170 = vsel %vm4162, %v4149, %v4152
        %v4171 = vsel %vm4165, %v4158, 920167782
        %v4172 = vsel %vm4164, %v4155, %v4171
        %v4173 = vsel %vm4163, %v4170, %v4172
        %v4174 = vsel %vm4162, %v4152, %v4155
        %v4175 = vsel %vm4165, %v4161, 1326507024
        %v4176 = vsel %vm4164, %v4158, %v4175
        %v4177 = vsel %vm4163, %v4174, %v4176
        %v4178 = vshll.u32 %v4138, 8
        %v4179 = vmul.u32.u64.compose %v4178, %v4177
        %v4180 = vextract.low.u32 %v4179
        %v4181 = vextract.high.u32 %v4179
        %v4182 = vmul.u32.u64.compose %v4178, %v4173
        %v4183 = vextract.low.u32 %v4182
        %v4184 = vextract.high.u32 %v4182
        %v4185 = vmul.u32 %v4178, %v4169
        %v4186 = vadd.s32 %v4181, %v4183
        %vm4187 = vc.u32 %v4181, %v4183
        %v4188 = vadd.s32 %v4184, 1
        %v4189 = vsel %vm4187, %v4188, %v4184
        %v4190 = vadd.s32 %v4185, %v4189
        %v4191 = vadd.s32 %v4190, 536870912
        %v4192 = vshrl.u32 %v4191, 30
        %v4193 = vshll.u32 %v4192, 30
        %v4194 = vsub.s32 %v4190, %v4193
        %vm4195 = vcmp.lt.s32.totalorder %v4194, 0
        %v4196 = vsub.s32 0, %v4194
        %v4197 = vsel %vm4195, %v4196, %v4194
        %v4198 = vclz %v4197
        %v4199 = vsub.s32 %v4198, 2
        %vm4200 = vcmp.gt.s32.totalorder 0, %v4199
        %v4201 = vsel %vm4200, 0, %v4199
        %v4202 = vsub.s32 32, %v4201
        %v4203 = vshll.u32 %v4194, %v4201
        %v4204 = vshrl.u32 %v4186, %v4202
        %v4205 = vor.u32 %v4203, %v4204
        %v4206 = vsub.s32 4294967266, %v4201
        %v4207 = vadd.s32 %v4206, 127
        %v4208 = vshll.u32 %v4207, 23
        %v4209 = vor.u32 4788187, %v4208
        %v4210 = vand.u32 2147483647, %v4209
        %v4212 = vcvt.s32.f32 %v4205
        %v4213 = vmul.f32 %v4212, %v4210
        %v4214 = vxor.u32 %v4213, 2147483648
        %v4215 = vsel %vm4132, %v4214, %v4213
        %v4216 = vsub.s32 4, %v4192
        %v4217 = vsel %vm4132, %v4216, %v4192
        %v4218 = vsel %vm4131, %v667, %v4215
        %v4219 = vsel %vm4131, 0, %v4217
        %v4220 = vcosq.f32.pop %v4218
        %v4221 = vsinq.f32.pop %v4218
        %vm4222 = vweird.f32 %v667
        %v4223 = vadd.s32 %v4219, 3
        %v4224 = vand.u32 %v4223, 3
        %vm4225 = vcmp.lt.s32.totalorder %v4224, 2
        %vm4226 = vcmp.eq.s32.totalorder %v4224, 0
        %v4227 = vxor.u32 %v4221, 2147483648
        %v4228 = vsel %vm4226, %v4220, %v4227
        %vm4229 = vcmp.eq.s32.totalorder %v4224, 2
        %v4230 = vxor.u32 %v4220, 2147483648
        %v4231 = vsel %vm4229, %v4230, %v4221
        %v4232 = vsel %vm4225, %v4228, %v4231
        %v4233 = vsel %vm4222, nan, %v4232
        %v4234 = vand.u32 2147483647, %v668
        %vm4235 = vcmp.le.f32.partialorder %v4234, 0.7853982
        %vm4236 = vcmp.lt.s32.totalorder %v668, 0
        %v4237 = vand.u32 %v668, 2139095040
        %v4238 = vshrl.u32 %v4237, 23
        %v4239 = vsub.s32 %v4238, 127
        %v4240 = vand.u32 2147483647, %v668
        %v4241 = vand.u32 %v4240, 8388607
        %v4242 = vor.u32 %v4241, 8388608
        %v4243 = vsub.s32 0, %v4242
        %v4244 = vadd.s32 %v4239, 1
        %vm4245 = vcmp.gt.s32.totalorder %v4244, 0
        %v4246 = vsel %vm4245, %v4244, 0
        %v4247 = vshrl.u32 %v4246, 5
        %v4248 = vand.u32 %v4246, 31
        %v4249 = vsub.s32 32, %v4248
        %v4250 = vshrl.u32 683565275, %v4249
        %v4251 = vshll.u32 683565275, %v4248
        %v4252 = vshrl.u32 2475754826, %v4249
        %v4253 = vor.u32 %v4251, %v4252
        %v4254 = vshll.u32 2475754826, %v4248
        %v4255 = vshrl.u32 2131351028, %v4249
        %v4256 = vor.u32 %v4254, %v4255
        %v4257 = vshll.u32 2131351028, %v4248
        %v4258 = vshrl.u32 2102212464, %v4249
        %v4259 = vor.u32 %v4257, %v4258
        %v4260 = vshll.u32 2102212464, %v4248
        %v4261 = vshrl.u32 920167782, %v4249
        %v4262 = vor.u32 %v4260, %v4261
        %v4263 = vshll.u32 920167782, %v4248
        %v4264 = vshrl.u32 1326507024, %v4249
        %v4265 = vor.u32 %v4263, %v4264
        %vm4266 = vcmp.lt.s32.totalorder %v4247, 1
        %vm4267 = vcmp.lt.s32.totalorder %v4247, 2
        %vm4268 = vcmp.lt.s32.totalorder %v4247, 3
        %vm4269 = vcmp.lt.s32.totalorder %v4247, 4
        %v4270 = vsel %vm4266, %v4250, %v4253
        %v4271 = vsel %vm4269, %v4259, 2102212464
        %v4272 = vsel %vm4268, %v4256, %v4271
        %v4273 = vsel %vm4267, %v4270, %v4272
        %v4274 = vsel %vm4266, %v4253, %v4256
        %v4275 = vsel %vm4269, %v4262, 920167782
        %v4276 = vsel %vm4268, %v4259, %v4275
        %v4277 = vsel %vm4267, %v4274, %v4276
        %v4278 = vsel %vm4266, %v4256, %v4259
        %v4279 = vsel %vm4269, %v4265, 1326507024
        %v4280 = vsel %vm4268, %v4262, %v4279
        %v4281 = vsel %vm4267, %v4278, %v4280
        %v4282 = vshll.u32 %v4242, 8
        %v4283 = vmul.u32.u64.compose %v4282, %v4281
        %v4284 = vextract.low.u32 %v4283
        %v4285 = vextract.high.u32 %v4283
        %v4286 = vmul.u32.u64.compose %v4282, %v4277
        %v4287 = vextract.low.u32 %v4286
        %v4288 = vextract.high.u32 %v4286
        %v4289 = vmul.u32 %v4282, %v4273
        %v4290 = vadd.s32 %v4285, %v4287
        %vm4291 = vc.u32 %v4285, %v4287
        %v4292 = vadd.s32 %v4288, 1
        %v4293 = vsel %vm4291, %v4292, %v4288
        %v4294 = vadd.s32 %v4289, %v4293
        %v4295 = vadd.s32 %v4294, 536870912
        %v4296 = vshrl.u32 %v4295, 30
        %v4297 = vshll.u32 %v4296, 30
        %v4298 = vsub.s32 %v4294, %v4297
        %vm4299 = vcmp.lt.s32.totalorder %v4298, 0
        %v4300 = vsub.s32 0, %v4298
        %v4301 = vsel %vm4299, %v4300, %v4298
        %v4302 = vclz %v4301
        %v4303 = vsub.s32 %v4302, 2
        %vm4304 = vcmp.gt.s32.totalorder 0, %v4303
        %v4305 = vsel %vm4304, 0, %v4303
        %v4306 = vsub.s32 32, %v4305
        %v4307 = vshll.u32 %v4298, %v4305
        %v4308 = vshrl.u32 %v4290, %v4306
        %v4309 = vor.u32 %v4307, %v4308
        %v4310 = vsub.s32 4294967266, %v4305
        %v4311 = vadd.s32 %v4310, 127
        %v4312 = vshll.u32 %v4311, 23
        %v4313 = vor.u32 4788187, %v4312
        %v4314 = vand.u32 2147483647, %v4313
        %v4316 = vcvt.s32.f32 %v4309
        %v4317 = vmul.f32 %v4316, %v4314
        %v4318 = vxor.u32 %v4317, 2147483648
        %v4319 = vsel %vm4236, %v4318, %v4317
        %v4320 = vsub.s32 4, %v4296
        %v4321 = vsel %vm4236, %v4320, %v4296
        %v4322 = vsel %vm4235, %v668, %v4319
        %v4323 = vsel %vm4235, 0, %v4321
        %v4324 = vcosq.f32.pop %v4322
        %v4325 = vsinq.f32.pop %v4322
        %vm4326 = vweird.f32 %v668
        %v4327 = vadd.s32 %v4323, 3
        %v4328 = vand.u32 %v4327, 3
        %vm4329 = vcmp.lt.s32.totalorder %v4328, 2
        %vm4330 = vcmp.eq.s32.totalorder %v4328, 0
        %v4331 = vxor.u32 %v4325, 2147483648
        %v4332 = vsel %vm4330, %v4324, %v4331
        %vm4333 = vcmp.eq.s32.totalorder %v4328, 2
        %v4334 = vxor.u32 %v4324, 2147483648
        %v4335 = vsel %vm4333, %v4334, %v4325
        %v4336 = vsel %vm4329, %v4332, %v4335
        %v4337 = vsel %vm4326, nan, %v4336
        %v4338 = vand.u32 2147483647, %v669
        %vm4339 = vcmp.le.f32.partialorder %v4338, 0.7853982
        %vm4340 = vcmp.lt.s32.totalorder %v669, 0
        %v4341 = vand.u32 %v669, 2139095040
        %v4342 = vshrl.u32 %v4341, 23
        %v4343 = vsub.s32 %v4342, 127
        %v4344 = vand.u32 2147483647, %v669
        %v4345 = vand.u32 %v4344, 8388607
        %v4346 = vor.u32 %v4345, 8388608
        %v4347 = vsub.s32 0, %v4346
        %v4348 = vadd.s32 %v4343, 1
        %vm4349 = vcmp.gt.s32.totalorder %v4348, 0
        %v4350 = vsel %vm4349, %v4348, 0
        %v4351 = vshrl.u32 %v4350, 5
        %v4352 = vand.u32 %v4350, 31
        %v4353 = vsub.s32 32, %v4352
        %v4354 = vshrl.u32 683565275, %v4353
        %v4355 = vshll.u32 683565275, %v4352
        %v4356 = vshrl.u32 2475754826, %v4353
        %v4357 = vor.u32 %v4355, %v4356
        %v4358 = vshll.u32 2475754826, %v4352
        %v4359 = vshrl.u32 2131351028, %v4353
        %v4360 = vor.u32 %v4358, %v4359
        %v4361 = vshll.u32 2131351028, %v4352
        %v4362 = vshrl.u32 2102212464, %v4353
        %v4363 = vor.u32 %v4361, %v4362
        %v4364 = vshll.u32 2102212464, %v4352
        %v4365 = vshrl.u32 920167782, %v4353
        %v4366 = vor.u32 %v4364, %v4365
        %v4367 = vshll.u32 920167782, %v4352
        %v4368 = vshrl.u32 1326507024, %v4353
        %v4369 = vor.u32 %v4367, %v4368
        %vm4370 = vcmp.lt.s32.totalorder %v4351, 1
        %vm4371 = vcmp.lt.s32.totalorder %v4351, 2
        %vm4372 = vcmp.lt.s32.totalorder %v4351, 3
        %vm4373 = vcmp.lt.s32.totalorder %v4351, 4
        %v4374 = vsel %vm4370, %v4354, %v4357
        %v4375 = vsel %vm4373, %v4363, 2102212464
        %v4376 = vsel %vm4372, %v4360, %v4375
        %v4377 = vsel %vm4371, %v4374, %v4376
        %v4378 = vsel %vm4370, %v4357, %v4360
        %v4379 = vsel %vm4373, %v4366, 920167782
        %v4380 = vsel %vm4372, %v4363, %v4379
        %v4381 = vsel %vm4371, %v4378, %v4380
        %v4382 = vsel %vm4370, %v4360, %v4363
        %v4383 = vsel %vm4373, %v4369, 1326507024
        %v4384 = vsel %vm4372, %v4366, %v4383
        %v4385 = vsel %vm4371, %v4382, %v4384
        %v4386 = vshll.u32 %v4346, 8
        %v4387 = vmul.u32.u64.compose %v4386, %v4385
        %v4388 = vextract.low.u32 %v4387
        %v4389 = vextract.high.u32 %v4387
        %v4390 = vmul.u32.u64.compose %v4386, %v4381
        %v4391 = vextract.low.u32 %v4390
        %v4392 = vextract.high.u32 %v4390
        %v4393 = vmul.u32 %v4386, %v4377
        %v4394 = vadd.s32 %v4389, %v4391
        %vm4395 = vc.u32 %v4389, %v4391
        %v4396 = vadd.s32 %v4392, 1
        %v4397 = vsel %vm4395, %v4396, %v4392
        %v4398 = vadd.s32 %v4393, %v4397
        %v4399 = vadd.s32 %v4398, 536870912
        %v4400 = vshrl.u32 %v4399, 30
        %v4401 = vshll.u32 %v4400, 30
        %v4402 = vsub.s32 %v4398, %v4401
        %vm4403 = vcmp.lt.s32.totalorder %v4402, 0
        %v4404 = vsub.s32 0, %v4402
        %v4405 = vsel %vm4403, %v4404, %v4402
        %v4406 = vclz %v4405
        %v4407 = vsub.s32 %v4406, 2
        %vm4408 = vcmp.gt.s32.totalorder 0, %v4407
        %v4409 = vsel %vm4408, 0, %v4407
        %v4410 = vsub.s32 32, %v4409
        %v4411 = vshll.u32 %v4402, %v4409
        %v4412 = vshrl.u32 %v4394, %v4410
        %v4413 = vor.u32 %v4411, %v4412
        %v4414 = vsub.s32 4294967266, %v4409
        %v4415 = vadd.s32 %v4414, 127
        %v4416 = vshll.u32 %v4415, 23
        %v4417 = vor.u32 4788187, %v4416
        %v4418 = vand.u32 2147483647, %v4417
        %v4420 = vcvt.s32.f32 %v4413
        %v4421 = vmul.f32 %v4420, %v4418
        %v4422 = vxor.u32 %v4421, 2147483648
        %v4423 = vsel %vm4340, %v4422, %v4421
        %v4424 = vsub.s32 4, %v4400
        %v4425 = vsel %vm4340, %v4424, %v4400
        %v4426 = vsel %vm4339, %v669, %v4423
        %v4427 = vsel %vm4339, 0, %v4425
        %v4428 = vcosq.f32.pop %v4426
        %v4429 = vsinq.f32.pop %v4426
        %vm4430 = vweird.f32 %v669
        %v4431 = vadd.s32 %v4427, 3
        %v4432 = vand.u32 %v4431, 3
        %vm4433 = vcmp.lt.s32.totalorder %v4432, 2
        %vm4434 = vcmp.eq.s32.totalorder %v4432, 0
        %v4435 = vxor.u32 %v4429, 2147483648
        %v4436 = vsel %vm4434, %v4428, %v4435
        %vm4437 = vcmp.eq.s32.totalorder %v4432, 2
        %v4438 = vxor.u32 %v4428, 2147483648
        %v4439 = vsel %vm4437, %v4438, %v4429
        %v4440 = vsel %vm4433, %v4436, %v4439
        %v4441 = vsel %vm4430, nan, %v4440
        %v4442 = vand.u32 2147483647, %v670
        %vm4443 = vcmp.le.f32.partialorder %v4442, 0.7853982
        %vm4444 = vcmp.lt.s32.totalorder %v670, 0
        %v4445 = vand.u32 %v670, 2139095040
        %v4446 = vshrl.u32 %v4445, 23
        %v4447 = vsub.s32 %v4446, 127
        %v4448 = vand.u32 2147483647, %v670
        %v4449 = vand.u32 %v4448, 8388607
        %v4450 = vor.u32 %v4449, 8388608
        %v4451 = vsub.s32 0, %v4450
        %v4452 = vadd.s32 %v4447, 1
        %vm4453 = vcmp.gt.s32.totalorder %v4452, 0
        %v4454 = vsel %vm4453, %v4452, 0
        %v4455 = vshrl.u32 %v4454, 5
        %v4456 = vand.u32 %v4454, 31
        %v4457 = vsub.s32 32, %v4456
        %v4458 = vshrl.u32 683565275, %v4457
        %v4459 = vshll.u32 683565275, %v4456
        %v4460 = vshrl.u32 2475754826, %v4457
        %v4461 = vor.u32 %v4459, %v4460
        %v4462 = vshll.u32 2475754826, %v4456
        %v4463 = vshrl.u32 2131351028, %v4457
        %v4464 = vor.u32 %v4462, %v4463
        %v4465 = vshll.u32 2131351028, %v4456
        %v4466 = vshrl.u32 2102212464, %v4457
        %v4467 = vor.u32 %v4465, %v4466
        %v4468 = vshll.u32 2102212464, %v4456
        %v4469 = vshrl.u32 920167782, %v4457
        %v4470 = vor.u32 %v4468, %v4469
        %v4471 = vshll.u32 920167782, %v4456
        %v4472 = vshrl.u32 1326507024, %v4457
        %v4473 = vor.u32 %v4471, %v4472
        %vm4474 = vcmp.lt.s32.totalorder %v4455, 1
        %vm4475 = vcmp.lt.s32.totalorder %v4455, 2
        %vm4476 = vcmp.lt.s32.totalorder %v4455, 3
        %vm4477 = vcmp.lt.s32.totalorder %v4455, 4
        %v4478 = vsel %vm4474, %v4458, %v4461
        %v4479 = vsel %vm4477, %v4467, 2102212464
        %v4480 = vsel %vm4476, %v4464, %v4479
        %v4481 = vsel %vm4475, %v4478, %v4480
        %v4482 = vsel %vm4474, %v4461, %v4464
        %v4483 = vsel %vm4477, %v4470, 920167782
        %v4484 = vsel %vm4476, %v4467, %v4483
        %v4485 = vsel %vm4475, %v4482, %v4484
        %v4486 = vsel %vm4474, %v4464, %v4467
        %v4487 = vsel %vm4477, %v4473, 1326507024
        %v4488 = vsel %vm4476, %v4470, %v4487
        %v4489 = vsel %vm4475, %v4486, %v4488
        %v4490 = vshll.u32 %v4450, 8
        %v4491 = vmul.u32.u64.compose %v4490, %v4489
        %v4492 = vextract.low.u32 %v4491
        %v4493 = vextract.high.u32 %v4491
        %v4494 = vmul.u32.u64.compose %v4490, %v4485
        %v4495 = vextract.low.u32 %v4494
        %v4496 = vextract.high.u32 %v4494
        %v4497 = vmul.u32 %v4490, %v4481
        %v4498 = vadd.s32 %v4493, %v4495
        %vm4499 = vc.u32 %v4493, %v4495
        %v4500 = vadd.s32 %v4496, 1
        %v4501 = vsel %vm4499, %v4500, %v4496
        %v4502 = vadd.s32 %v4497, %v4501
        %v4503 = vadd.s32 %v4502, 536870912
        %v4504 = vshrl.u32 %v4503, 30
        %v4505 = vshll.u32 %v4504, 30
        %v4506 = vsub.s32 %v4502, %v4505
        %vm4507 = vcmp.lt.s32.totalorder %v4506, 0
        %v4508 = vsub.s32 0, %v4506
        %v4509 = vsel %vm4507, %v4508, %v4506
        %v4510 = vclz %v4509
        %v4511 = vsub.s32 %v4510, 2
        %vm4512 = vcmp.gt.s32.totalorder 0, %v4511
        %v4513 = vsel %vm4512, 0, %v4511
        %v4514 = vsub.s32 32, %v4513
        %v4515 = vshll.u32 %v4506, %v4513
        %v4516 = vshrl.u32 %v4498, %v4514
        %v4517 = vor.u32 %v4515, %v4516
        %v4518 = vsub.s32 4294967266, %v4513
        %v4519 = vadd.s32 %v4518, 127
        %v4520 = vshll.u32 %v4519, 23
        %v4521 = vor.u32 4788187, %v4520
        %v4522 = vand.u32 2147483647, %v4521
        %v4524 = vcvt.s32.f32 %v4517
        %v4525 = vmul.f32 %v4524, %v4522
        %v4526 = vxor.u32 %v4525, 2147483648
        %v4527 = vsel %vm4444, %v4526, %v4525
        %v4528 = vsub.s32 4, %v4504
        %v4529 = vsel %vm4444, %v4528, %v4504
        %v4530 = vsel %vm4443, %v670, %v4527
        %v4531 = vsel %vm4443, 0, %v4529
        %v4532 = vcosq.f32.pop %v4530
        %v4533 = vsinq.f32.pop %v4530
        %vm4534 = vweird.f32 %v670
        %v4535 = vadd.s32 %v4531, 3
        %v4536 = vand.u32 %v4535, 3
        %vm4537 = vcmp.lt.s32.totalorder %v4536, 2
        %vm4538 = vcmp.eq.s32.totalorder %v4536, 0
        %v4539 = vxor.u32 %v4533, 2147483648
        %v4540 = vsel %vm4538, %v4532, %v4539
        %vm4541 = vcmp.eq.s32.totalorder %v4536, 2
        %v4542 = vxor.u32 %v4532, 2147483648
        %v4543 = vsel %vm4541, %v4542, %v4533
        %v4544 = vsel %vm4537, %v4540, %v4543
        %v4545 = vsel %vm4534, nan, %v4544
        %v4546 = vand.u32 2147483647, %v671
        %vm4547 = vcmp.le.f32.partialorder %v4546, 0.7853982
        %vm4548 = vcmp.lt.s32.totalorder %v671, 0
        %v4549 = vand.u32 %v671, 2139095040
        %v4550 = vshrl.u32 %v4549, 23
        %v4551 = vsub.s32 %v4550, 127
        %v4552 = vand.u32 2147483647, %v671
        %v4553 = vand.u32 %v4552, 8388607
        %v4554 = vor.u32 %v4553, 8388608
        %v4555 = vsub.s32 0, %v4554
        %v4556 = vadd.s32 %v4551, 1
        %vm4557 = vcmp.gt.s32.totalorder %v4556, 0
        %v4558 = vsel %vm4557, %v4556, 0
        %v4559 = vshrl.u32 %v4558, 5
        %v4560 = vand.u32 %v4558, 31
        %v4561 = vsub.s32 32, %v4560
        %v4562 = vshrl.u32 683565275, %v4561
        %v4563 = vshll.u32 683565275, %v4560
        %v4564 = vshrl.u32 2475754826, %v4561
        %v4565 = vor.u32 %v4563, %v4564
        %v4566 = vshll.u32 2475754826, %v4560
        %v4567 = vshrl.u32 2131351028, %v4561
        %v4568 = vor.u32 %v4566, %v4567
        %v4569 = vshll.u32 2131351028, %v4560
        %v4570 = vshrl.u32 2102212464, %v4561
        %v4571 = vor.u32 %v4569, %v4570
        %v4572 = vshll.u32 2102212464, %v4560
        %v4573 = vshrl.u32 920167782, %v4561
        %v4574 = vor.u32 %v4572, %v4573
        %v4575 = vshll.u32 920167782, %v4560
        %v4576 = vshrl.u32 1326507024, %v4561
        %v4577 = vor.u32 %v4575, %v4576
        %vm4578 = vcmp.lt.s32.totalorder %v4559, 1
        %vm4579 = vcmp.lt.s32.totalorder %v4559, 2
        %vm4580 = vcmp.lt.s32.totalorder %v4559, 3
        %vm4581 = vcmp.lt.s32.totalorder %v4559, 4
        %v4582 = vsel %vm4578, %v4562, %v4565
        %v4583 = vsel %vm4581, %v4571, 2102212464
        %v4584 = vsel %vm4580, %v4568, %v4583
        %v4585 = vsel %vm4579, %v4582, %v4584
        %v4586 = vsel %vm4578, %v4565, %v4568
        %v4587 = vsel %vm4581, %v4574, 920167782
        %v4588 = vsel %vm4580, %v4571, %v4587
        %v4589 = vsel %vm4579, %v4586, %v4588
        %v4590 = vsel %vm4578, %v4568, %v4571
        %v4591 = vsel %vm4581, %v4577, 1326507024
        %v4592 = vsel %vm4580, %v4574, %v4591
        %v4593 = vsel %vm4579, %v4590, %v4592
        %v4594 = vshll.u32 %v4554, 8
        %v4595 = vmul.u32.u64.compose %v4594, %v4593
        %v4596 = vextract.low.u32 %v4595
        %v4597 = vextract.high.u32 %v4595
        %v4598 = vmul.u32.u64.compose %v4594, %v4589
        %v4599 = vextract.low.u32 %v4598
        %v4600 = vextract.high.u32 %v4598
        %v4601 = vmul.u32 %v4594, %v4585
        %v4602 = vadd.s32 %v4597, %v4599
        %vm4603 = vc.u32 %v4597, %v4599
        %v4604 = vadd.s32 %v4600, 1
        %v4605 = vsel %vm4603, %v4604, %v4600
        %v4606 = vadd.s32 %v4601, %v4605
        %v4607 = vadd.s32 %v4606, 536870912
        %v4608 = vshrl.u32 %v4607, 30
        %v4609 = vshll.u32 %v4608, 30
        %v4610 = vsub.s32 %v4606, %v4609
        %vm4611 = vcmp.lt.s32.totalorder %v4610, 0
        %v4612 = vsub.s32 0, %v4610
        %v4613 = vsel %vm4611, %v4612, %v4610
        %v4614 = vclz %v4613
        %v4615 = vsub.s32 %v4614, 2
        %vm4616 = vcmp.gt.s32.totalorder 0, %v4615
        %v4617 = vsel %vm4616, 0, %v4615
        %v4618 = vsub.s32 32, %v4617
        %v4619 = vshll.u32 %v4610, %v4617
        %v4620 = vshrl.u32 %v4602, %v4618
        %v4621 = vor.u32 %v4619, %v4620
        %v4622 = vsub.s32 4294967266, %v4617
        %v4623 = vadd.s32 %v4622, 127
        %v4624 = vshll.u32 %v4623, 23
        %v4625 = vor.u32 4788187, %v4624
        %v4626 = vand.u32 2147483647, %v4625
        %v4628 = vcvt.s32.f32 %v4621
        %v4629 = vmul.f32 %v4628, %v4626
        %v4630 = vxor.u32 %v4629, 2147483648
        %v4631 = vsel %vm4548, %v4630, %v4629
        %v4632 = vsub.s32 4, %v4608
        %v4633 = vsel %vm4548, %v4632, %v4608
        %v4634 = vsel %vm4547, %v671, %v4631
        %v4635 = vsel %vm4547, 0, %v4633
        %v4636 = vcosq.f32.pop %v4634
        %v4637 = vsinq.f32.pop %v4634
        %vm4638 = vweird.f32 %v671
        %v4639 = vadd.s32 %v4635, 3
        %v4640 = vand.u32 %v4639, 3
        %vm4641 = vcmp.lt.s32.totalorder %v4640, 2
        %vm4642 = vcmp.eq.s32.totalorder %v4640, 0
        %v4643 = vxor.u32 %v4637, 2147483648
        %v4644 = vsel %vm4642, %v4636, %v4643
        %vm4645 = vcmp.eq.s32.totalorder %v4640, 2
        %v4646 = vxor.u32 %v4636, 2147483648
        %v4647 = vsel %vm4645, %v4646, %v4637
        %v4648 = vsel %vm4641, %v4644, %v4647
        %v4649 = vsel %vm4638, nan, %v4648
        %v4650 = vand.u32 2147483647, %v672
        %vm4651 = vcmp.le.f32.partialorder %v4650, 0.7853982
        %vm4652 = vcmp.lt.s32.totalorder %v672, 0
        %v4653 = vand.u32 %v672, 2139095040
        %v4654 = vshrl.u32 %v4653, 23
        %v4655 = vsub.s32 %v4654, 127
        %v4656 = vand.u32 2147483647, %v672
        %v4657 = vand.u32 %v4656, 8388607
        %v4658 = vor.u32 %v4657, 8388608
        %v4659 = vsub.s32 0, %v4658
        %v4660 = vadd.s32 %v4655, 1
        %vm4661 = vcmp.gt.s32.totalorder %v4660, 0
        %v4662 = vsel %vm4661, %v4660, 0
        %v4663 = vshrl.u32 %v4662, 5
        %v4664 = vand.u32 %v4662, 31
        %v4665 = vsub.s32 32, %v4664
        %v4666 = vshrl.u32 683565275, %v4665
        %v4667 = vshll.u32 683565275, %v4664
        %v4668 = vshrl.u32 2475754826, %v4665
        %v4669 = vor.u32 %v4667, %v4668
        %v4670 = vshll.u32 2475754826, %v4664
        %v4671 = vshrl.u32 2131351028, %v4665
        %v4672 = vor.u32 %v4670, %v4671
        %v4673 = vshll.u32 2131351028, %v4664
        %v4674 = vshrl.u32 2102212464, %v4665
        %v4675 = vor.u32 %v4673, %v4674
        %v4676 = vshll.u32 2102212464, %v4664
        %v4677 = vshrl.u32 920167782, %v4665
        %v4678 = vor.u32 %v4676, %v4677
        %v4679 = vshll.u32 920167782, %v4664
        %v4680 = vshrl.u32 1326507024, %v4665
        %v4681 = vor.u32 %v4679, %v4680
        %vm4682 = vcmp.lt.s32.totalorder %v4663, 1
        %vm4683 = vcmp.lt.s32.totalorder %v4663, 2
        %vm4684 = vcmp.lt.s32.totalorder %v4663, 3
        %vm4685 = vcmp.lt.s32.totalorder %v4663, 4
        %v4686 = vsel %vm4682, %v4666, %v4669
        %v4687 = vsel %vm4685, %v4675, 2102212464
        %v4688 = vsel %vm4684, %v4672, %v4687
        %v4689 = vsel %vm4683, %v4686, %v4688
        %v4690 = vsel %vm4682, %v4669, %v4672
        %v4691 = vsel %vm4685, %v4678, 920167782
        %v4692 = vsel %vm4684, %v4675, %v4691
        %v4693 = vsel %vm4683, %v4690, %v4692
        %v4694 = vsel %vm4682, %v4672, %v4675
        %v4695 = vsel %vm4685, %v4681, 1326507024
        %v4696 = vsel %vm4684, %v4678, %v4695
        %v4697 = vsel %vm4683, %v4694, %v4696
        %v4698 = vshll.u32 %v4658, 8
        %v4699 = vmul.u32.u64.compose %v4698, %v4697
        %v4700 = vextract.low.u32 %v4699
        %v4701 = vextract.high.u32 %v4699
        %v4702 = vmul.u32.u64.compose %v4698, %v4693
        %v4703 = vextract.low.u32 %v4702
        %v4704 = vextract.high.u32 %v4702
        %v4705 = vmul.u32 %v4698, %v4689
        %v4706 = vadd.s32 %v4701, %v4703
        %vm4707 = vc.u32 %v4701, %v4703
        %v4708 = vadd.s32 %v4704, 1
        %v4709 = vsel %vm4707, %v4708, %v4704
        %v4710 = vadd.s32 %v4705, %v4709
        %v4711 = vadd.s32 %v4710, 536870912
        %v4712 = vshrl.u32 %v4711, 30
        %v4713 = vshll.u32 %v4712, 30
        %v4714 = vsub.s32 %v4710, %v4713
        %vm4715 = vcmp.lt.s32.totalorder %v4714, 0
        %v4716 = vsub.s32 0, %v4714
        %v4717 = vsel %vm4715, %v4716, %v4714
        %v4718 = vclz %v4717
        %v4719 = vsub.s32 %v4718, 2
        %vm4720 = vcmp.gt.s32.totalorder 0, %v4719
        %v4721 = vsel %vm4720, 0, %v4719
        %v4722 = vsub.s32 32, %v4721
        %v4723 = vshll.u32 %v4714, %v4721
        %v4724 = vshrl.u32 %v4706, %v4722
        %v4725 = vor.u32 %v4723, %v4724
        %v4726 = vsub.s32 4294967266, %v4721
        %v4727 = vadd.s32 %v4726, 127
        %v4728 = vshll.u32 %v4727, 23
        %v4729 = vor.u32 4788187, %v4728
        %v4730 = vand.u32 2147483647, %v4729
        %v4732 = vcvt.s32.f32 %v4725
        %v4733 = vmul.f32 %v4732, %v4730
        %v4734 = vxor.u32 %v4733, 2147483648
        %v4735 = vsel %vm4652, %v4734, %v4733
        %v4736 = vsub.s32 4, %v4712
        %v4737 = vsel %vm4652, %v4736, %v4712
        %v4738 = vsel %vm4651, %v672, %v4735
        %v4739 = vsel %vm4651, 0, %v4737
        %v4740 = vcosq.f32.pop %v4738
        %v4741 = vsinq.f32.pop %v4738
        %vm4742 = vweird.f32 %v672
        %v4743 = vadd.s32 %v4739, 3
        %v4744 = vand.u32 %v4743, 3
        %vm4745 = vcmp.lt.s32.totalorder %v4744, 2
        %vm4746 = vcmp.eq.s32.totalorder %v4744, 0
        %v4747 = vxor.u32 %v4741, 2147483648
        %v4748 = vsel %vm4746, %v4740, %v4747
        %vm4749 = vcmp.eq.s32.totalorder %v4744, 2
        %v4750 = vxor.u32 %v4740, 2147483648
        %v4751 = vsel %vm4749, %v4750, %v4741
        %v4752 = vsel %vm4745, %v4748, %v4751
        %v4753 = vsel %vm4742, nan, %v4752
        %v4754 = vand.u32 2147483647, %v673
        %vm4755 = vcmp.le.f32.partialorder %v4754, 0.7853982
        %vm4756 = vcmp.lt.s32.totalorder %v673, 0
        %v4757 = vand.u32 %v673, 2139095040
        %v4758 = vshrl.u32 %v4757, 23
        %v4759 = vsub.s32 %v4758, 127
        %v4760 = vand.u32 2147483647, %v673
        %v4761 = vand.u32 %v4760, 8388607
        %v4762 = vor.u32 %v4761, 8388608
        %v4763 = vsub.s32 0, %v4762
        %v4764 = vadd.s32 %v4759, 1
        %vm4765 = vcmp.gt.s32.totalorder %v4764, 0
        %v4766 = vsel %vm4765, %v4764, 0
        %v4767 = vshrl.u32 %v4766, 5
        %v4768 = vand.u32 %v4766, 31
        %v4769 = vsub.s32 32, %v4768
        %v4770 = vshrl.u32 683565275, %v4769
        %v4771 = vshll.u32 683565275, %v4768
        %v4772 = vshrl.u32 2475754826, %v4769
        %v4773 = vor.u32 %v4771, %v4772
        %v4774 = vshll.u32 2475754826, %v4768
        %v4775 = vshrl.u32 2131351028, %v4769
        %v4776 = vor.u32 %v4774, %v4775
        %v4777 = vshll.u32 2131351028, %v4768
        %v4778 = vshrl.u32 2102212464, %v4769
        %v4779 = vor.u32 %v4777, %v4778
        %v4780 = vshll.u32 2102212464, %v4768
        %v4781 = vshrl.u32 920167782, %v4769
        %v4782 = vor.u32 %v4780, %v4781
        %v4783 = vshll.u32 920167782, %v4768
        %v4784 = vshrl.u32 1326507024, %v4769
        %v4785 = vor.u32 %v4783, %v4784
        %vm4786 = vcmp.lt.s32.totalorder %v4767, 1
        %vm4787 = vcmp.lt.s32.totalorder %v4767, 2
        %vm4788 = vcmp.lt.s32.totalorder %v4767, 3
        %vm4789 = vcmp.lt.s32.totalorder %v4767, 4
        %v4790 = vsel %vm4786, %v4770, %v4773
        %v4791 = vsel %vm4789, %v4779, 2102212464
        %v4792 = vsel %vm4788, %v4776, %v4791
        %v4793 = vsel %vm4787, %v4790, %v4792
        %v4794 = vsel %vm4786, %v4773, %v4776
        %v4795 = vsel %vm4789, %v4782, 920167782
        %v4796 = vsel %vm4788, %v4779, %v4795
        %v4797 = vsel %vm4787, %v4794, %v4796
        %v4798 = vsel %vm4786, %v4776, %v4779
        %v4799 = vsel %vm4789, %v4785, 1326507024
        %v4800 = vsel %vm4788, %v4782, %v4799
        %v4801 = vsel %vm4787, %v4798, %v4800
        %v4802 = vshll.u32 %v4762, 8
        %v4803 = vmul.u32.u64.compose %v4802, %v4801
        %v4804 = vextract.low.u32 %v4803
        %v4805 = vextract.high.u32 %v4803
        %v4806 = vmul.u32.u64.compose %v4802, %v4797
        %v4807 = vextract.low.u32 %v4806
        %v4808 = vextract.high.u32 %v4806
        %v4809 = vmul.u32 %v4802, %v4793
        %v4810 = vadd.s32 %v4805, %v4807
        %vm4811 = vc.u32 %v4805, %v4807
        %v4812 = vadd.s32 %v4808, 1
        %v4813 = vsel %vm4811, %v4812, %v4808
        %v4814 = vadd.s32 %v4809, %v4813
        %v4815 = vadd.s32 %v4814, 536870912
        %v4816 = vshrl.u32 %v4815, 30
        %v4817 = vshll.u32 %v4816, 30
        %v4818 = vsub.s32 %v4814, %v4817
        %vm4819 = vcmp.lt.s32.totalorder %v4818, 0
        %v4820 = vsub.s32 0, %v4818
        %v4821 = vsel %vm4819, %v4820, %v4818
        %v4822 = vclz %v4821
        %v4823 = vsub.s32 %v4822, 2
        %vm4824 = vcmp.gt.s32.totalorder 0, %v4823
        %v4825 = vsel %vm4824, 0, %v4823
        %v4826 = vsub.s32 32, %v4825
        %v4827 = vshll.u32 %v4818, %v4825
        %v4828 = vshrl.u32 %v4810, %v4826
        %v4829 = vor.u32 %v4827, %v4828
        %v4830 = vsub.s32 4294967266, %v4825
        %v4831 = vadd.s32 %v4830, 127
        %v4832 = vshll.u32 %v4831, 23
        %v4833 = vor.u32 4788187, %v4832
        %v4834 = vand.u32 2147483647, %v4833
        %v4836 = vcvt.s32.f32 %v4829
        %v4837 = vmul.f32 %v4836, %v4834
        %v4838 = vxor.u32 %v4837, 2147483648
        %v4839 = vsel %vm4756, %v4838, %v4837
        %v4840 = vsub.s32 4, %v4816
        %v4841 = vsel %vm4756, %v4840, %v4816
        %v4842 = vsel %vm4755, %v673, %v4839
        %v4843 = vsel %vm4755, 0, %v4841
        %v4844 = vcosq.f32.pop %v4842
        %v4845 = vsinq.f32.pop %v4842
        %vm4846 = vweird.f32 %v673
        %v4847 = vadd.s32 %v4843, 3
        %v4848 = vand.u32 %v4847, 3
        %vm4849 = vcmp.lt.s32.totalorder %v4848, 2
        %vm4850 = vcmp.eq.s32.totalorder %v4848, 0
        %v4851 = vxor.u32 %v4845, 2147483648
        %v4852 = vsel %vm4850, %v4844, %v4851
        %vm4853 = vcmp.eq.s32.totalorder %v4848, 2
        %v4854 = vxor.u32 %v4844, 2147483648
        %v4855 = vsel %vm4853, %v4854, %v4845
        %v4856 = vsel %vm4849, %v4852, %v4855
        %v4857 = vsel %vm4846, nan, %v4856
        %v4858 = vand.u32 2147483647, %v674
        %vm4859 = vcmp.le.f32.partialorder %v4858, 0.7853982
        %vm4860 = vcmp.lt.s32.totalorder %v674, 0
        %v4861 = vand.u32 %v674, 2139095040
        %v4862 = vshrl.u32 %v4861, 23
        %v4863 = vsub.s32 %v4862, 127
        %v4864 = vand.u32 2147483647, %v674
        %v4865 = vand.u32 %v4864, 8388607
        %v4866 = vor.u32 %v4865, 8388608
        %v4867 = vsub.s32 0, %v4866
        %v4868 = vadd.s32 %v4863, 1
        %vm4869 = vcmp.gt.s32.totalorder %v4868, 0
        %v4870 = vsel %vm4869, %v4868, 0
        %v4871 = vshrl.u32 %v4870, 5
        %v4872 = vand.u32 %v4870, 31
        %v4873 = vsub.s32 32, %v4872
        %v4874 = vshrl.u32 683565275, %v4873
        %v4875 = vshll.u32 683565275, %v4872
        %v4876 = vshrl.u32 2475754826, %v4873
        %v4877 = vor.u32 %v4875, %v4876
        %v4878 = vshll.u32 2475754826, %v4872
        %v4879 = vshrl.u32 2131351028, %v4873
        %v4880 = vor.u32 %v4878, %v4879
        %v4881 = vshll.u32 2131351028, %v4872
        %v4882 = vshrl.u32 2102212464, %v4873
        %v4883 = vor.u32 %v4881, %v4882
        %v4884 = vshll.u32 2102212464, %v4872
        %v4885 = vshrl.u32 920167782, %v4873
        %v4886 = vor.u32 %v4884, %v4885
        %v4887 = vshll.u32 920167782, %v4872
        %v4888 = vshrl.u32 1326507024, %v4873
        %v4889 = vor.u32 %v4887, %v4888
        %vm4890 = vcmp.lt.s32.totalorder %v4871, 1
        %vm4891 = vcmp.lt.s32.totalorder %v4871, 2
        %vm4892 = vcmp.lt.s32.totalorder %v4871, 3
        %vm4893 = vcmp.lt.s32.totalorder %v4871, 4
        %v4894 = vsel %vm4890, %v4874, %v4877
        %v4895 = vsel %vm4893, %v4883, 2102212464
        %v4896 = vsel %vm4892, %v4880, %v4895
        %v4897 = vsel %vm4891, %v4894, %v4896
        %v4898 = vsel %vm4890, %v4877, %v4880
        %v4899 = vsel %vm4893, %v4886, 920167782
        %v4900 = vsel %vm4892, %v4883, %v4899
        %v4901 = vsel %vm4891, %v4898, %v4900
        %v4902 = vsel %vm4890, %v4880, %v4883
        %v4903 = vsel %vm4893, %v4889, 1326507024
        %v4904 = vsel %vm4892, %v4886, %v4903
        %v4905 = vsel %vm4891, %v4902, %v4904
        %v4906 = vshll.u32 %v4866, 8
        %v4907 = vmul.u32.u64.compose %v4906, %v4905
        %v4908 = vextract.low.u32 %v4907
        %v4909 = vextract.high.u32 %v4907
        %v4910 = vmul.u32.u64.compose %v4906, %v4901
        %v4911 = vextract.low.u32 %v4910
        %v4912 = vextract.high.u32 %v4910
        %v4913 = vmul.u32 %v4906, %v4897
        %v4914 = vadd.s32 %v4909, %v4911
        %vm4915 = vc.u32 %v4909, %v4911
        %v4916 = vadd.s32 %v4912, 1
        %v4917 = vsel %vm4915, %v4916, %v4912
        %v4918 = vadd.s32 %v4913, %v4917
        %v4919 = vadd.s32 %v4918, 536870912
        %v4920 = vshrl.u32 %v4919, 30
        %v4921 = vshll.u32 %v4920, 30
        %v4922 = vsub.s32 %v4918, %v4921
        %vm4923 = vcmp.lt.s32.totalorder %v4922, 0
        %v4924 = vsub.s32 0, %v4922
        %v4925 = vsel %vm4923, %v4924, %v4922
        %v4926 = vclz %v4925
        %v4927 = vsub.s32 %v4926, 2
        %vm4928 = vcmp.gt.s32.totalorder 0, %v4927
        %v4929 = vsel %vm4928, 0, %v4927
        %v4930 = vsub.s32 32, %v4929
        %v4931 = vshll.u32 %v4922, %v4929
        %v4932 = vshrl.u32 %v4914, %v4930
        %v4933 = vor.u32 %v4931, %v4932
        %v4934 = vsub.s32 4294967266, %v4929
        %v4935 = vadd.s32 %v4934, 127
        %v4936 = vshll.u32 %v4935, 23
        %v4937 = vor.u32 4788187, %v4936
        %v4938 = vand.u32 2147483647, %v4937
        %v4940 = vcvt.s32.f32 %v4933
        %v4941 = vmul.f32 %v4940, %v4938
        %v4942 = vxor.u32 %v4941, 2147483648
        %v4943 = vsel %vm4860, %v4942, %v4941
        %v4944 = vsub.s32 4, %v4920
        %v4945 = vsel %vm4860, %v4944, %v4920
        %v4946 = vsel %vm4859, %v674, %v4943
        %v4947 = vsel %vm4859, 0, %v4945
        %v4948 = vcosq.f32.pop %v4946
        %v4949 = vsinq.f32.pop %v4946
        %vm4950 = vweird.f32 %v674
        %v4951 = vadd.s32 %v4947, 3
        %v4952 = vand.u32 %v4951, 3
        %vm4953 = vcmp.lt.s32.totalorder %v4952, 2
        %vm4954 = vcmp.eq.s32.totalorder %v4952, 0
        %v4955 = vxor.u32 %v4949, 2147483648
        %v4956 = vsel %vm4954, %v4948, %v4955
        %vm4957 = vcmp.eq.s32.totalorder %v4952, 2
        %v4958 = vxor.u32 %v4948, 2147483648
        %v4959 = vsel %vm4957, %v4958, %v4949
        %v4960 = vsel %vm4953, %v4956, %v4959
        %v4961 = vsel %vm4950, nan, %v4960
        %v4962 = vand.u32 2147483647, %v675
        %vm4963 = vcmp.le.f32.partialorder %v4962, 0.7853982
        %vm4964 = vcmp.lt.s32.totalorder %v675, 0
        %v4965 = vand.u32 %v675, 2139095040
        %v4966 = vshrl.u32 %v4965, 23
        %v4967 = vsub.s32 %v4966, 127
        %v4968 = vand.u32 2147483647, %v675
        %v4969 = vand.u32 %v4968, 8388607
        %v4970 = vor.u32 %v4969, 8388608
        %v4971 = vsub.s32 0, %v4970
        %v4972 = vadd.s32 %v4967, 1
        %vm4973 = vcmp.gt.s32.totalorder %v4972, 0
        %v4974 = vsel %vm4973, %v4972, 0
        %v4975 = vshrl.u32 %v4974, 5
        %v4976 = vand.u32 %v4974, 31
        %v4977 = vsub.s32 32, %v4976
        %v4978 = vshrl.u32 683565275, %v4977
        %v4979 = vshll.u32 683565275, %v4976
        %v4980 = vshrl.u32 2475754826, %v4977
        %v4981 = vor.u32 %v4979, %v4980
        %v4982 = vshll.u32 2475754826, %v4976
        %v4983 = vshrl.u32 2131351028, %v4977
        %v4984 = vor.u32 %v4982, %v4983
        %v4985 = vshll.u32 2131351028, %v4976
        %v4986 = vshrl.u32 2102212464, %v4977
        %v4987 = vor.u32 %v4985, %v4986
        %v4988 = vshll.u32 2102212464, %v4976
        %v4989 = vshrl.u32 920167782, %v4977
        %v4990 = vor.u32 %v4988, %v4989
        %v4991 = vshll.u32 920167782, %v4976
        %v4992 = vshrl.u32 1326507024, %v4977
        %v4993 = vor.u32 %v4991, %v4992
        %vm4994 = vcmp.lt.s32.totalorder %v4975, 1
        %vm4995 = vcmp.lt.s32.totalorder %v4975, 2
        %vm4996 = vcmp.lt.s32.totalorder %v4975, 3
        %vm4997 = vcmp.lt.s32.totalorder %v4975, 4
        %v4998 = vsel %vm4994, %v4978, %v4981
        %v4999 = vsel %vm4997, %v4987, 2102212464
        %v5000 = vsel %vm4996, %v4984, %v4999
        %v5001 = vsel %vm4995, %v4998, %v5000
        %v5002 = vsel %vm4994, %v4981, %v4984
        %v5003 = vsel %vm4997, %v4990, 920167782
        %v5004 = vsel %vm4996, %v4987, %v5003
        %v5005 = vsel %vm4995, %v5002, %v5004
        %v5006 = vsel %vm4994, %v4984, %v4987
        %v5007 = vsel %vm4997, %v4993, 1326507024
        %v5008 = vsel %vm4996, %v4990, %v5007
        %v5009 = vsel %vm4995, %v5006, %v5008
        %v5010 = vshll.u32 %v4970, 8
        %v5011 = vmul.u32.u64.compose %v5010, %v5009
        %v5012 = vextract.low.u32 %v5011
        %v5013 = vextract.high.u32 %v5011
        %v5014 = vmul.u32.u64.compose %v5010, %v5005
        %v5015 = vextract.low.u32 %v5014
        %v5016 = vextract.high.u32 %v5014
        %v5017 = vmul.u32 %v5010, %v5001
        %v5018 = vadd.s32 %v5013, %v5015
        %vm5019 = vc.u32 %v5013, %v5015
        %v5020 = vadd.s32 %v5016, 1
        %v5021 = vsel %vm5019, %v5020, %v5016
        %v5022 = vadd.s32 %v5017, %v5021
        %v5023 = vadd.s32 %v5022, 536870912
        %v5024 = vshrl.u32 %v5023, 30
        %v5025 = vshll.u32 %v5024, 30
        %v5026 = vsub.s32 %v5022, %v5025
        %vm5027 = vcmp.lt.s32.totalorder %v5026, 0
        %v5028 = vsub.s32 0, %v5026
        %v5029 = vsel %vm5027, %v5028, %v5026
        %v5030 = vclz %v5029
        %v5031 = vsub.s32 %v5030, 2
        %vm5032 = vcmp.gt.s32.totalorder 0, %v5031
        %v5033 = vsel %vm5032, 0, %v5031
        %v5034 = vsub.s32 32, %v5033
        %v5035 = vshll.u32 %v5026, %v5033
        %v5036 = vshrl.u32 %v5018, %v5034
        %v5037 = vor.u32 %v5035, %v5036
        %v5038 = vsub.s32 4294967266, %v5033
        %v5039 = vadd.s32 %v5038, 127
        %v5040 = vshll.u32 %v5039, 23
        %v5041 = vor.u32 4788187, %v5040
        %v5042 = vand.u32 2147483647, %v5041
        %v5044 = vcvt.s32.f32 %v5037
        %v5045 = vmul.f32 %v5044, %v5042
        %v5046 = vxor.u32 %v5045, 2147483648
        %v5047 = vsel %vm4964, %v5046, %v5045
        %v5048 = vsub.s32 4, %v5024
        %v5049 = vsel %vm4964, %v5048, %v5024
        %v5050 = vsel %vm4963, %v675, %v5047
        %v5051 = vsel %vm4963, 0, %v5049
        %v5052 = vcosq.f32.pop %v5050
        %v5053 = vsinq.f32.pop %v5050
        %vm5054 = vweird.f32 %v675
        %v5055 = vadd.s32 %v5051, 3
        %v5056 = vand.u32 %v5055, 3
        %vm5057 = vcmp.lt.s32.totalorder %v5056, 2
        %vm5058 = vcmp.eq.s32.totalorder %v5056, 0
        %v5059 = vxor.u32 %v5053, 2147483648
        %v5060 = vsel %vm5058, %v5052, %v5059
        %vm5061 = vcmp.eq.s32.totalorder %v5056, 2
        %v5062 = vxor.u32 %v5052, 2147483648
        %v5063 = vsel %vm5061, %v5062, %v5053
        %v5064 = vsel %vm5057, %v5060, %v5063
        %v5065 = vsel %vm5054, nan, %v5064
        %v5066 = vand.u32 2147483647, %v676
        %vm5067 = vcmp.le.f32.partialorder %v5066, 0.7853982
        %vm5068 = vcmp.lt.s32.totalorder %v676, 0
        %v5069 = vand.u32 %v676, 2139095040
        %v5070 = vshrl.u32 %v5069, 23
        %v5071 = vsub.s32 %v5070, 127
        %v5072 = vand.u32 2147483647, %v676
        %v5073 = vand.u32 %v5072, 8388607
        %v5074 = vor.u32 %v5073, 8388608
        %v5075 = vsub.s32 0, %v5074
        %v5076 = vadd.s32 %v5071, 1
        %vm5077 = vcmp.gt.s32.totalorder %v5076, 0
        %v5078 = vsel %vm5077, %v5076, 0
        %v5079 = vshrl.u32 %v5078, 5
        %v5080 = vand.u32 %v5078, 31
        %v5081 = vsub.s32 32, %v5080
        %v5082 = vshrl.u32 683565275, %v5081
        %v5083 = vshll.u32 683565275, %v5080
        %v5084 = vshrl.u32 2475754826, %v5081
        %v5085 = vor.u32 %v5083, %v5084
        %v5086 = vshll.u32 2475754826, %v5080
        %v5087 = vshrl.u32 2131351028, %v5081
        %v5088 = vor.u32 %v5086, %v5087
        %v5089 = vshll.u32 2131351028, %v5080
        %v5090 = vshrl.u32 2102212464, %v5081
        %v5091 = vor.u32 %v5089, %v5090
        %v5092 = vshll.u32 2102212464, %v5080
        %v5093 = vshrl.u32 920167782, %v5081
        %v5094 = vor.u32 %v5092, %v5093
        %v5095 = vshll.u32 920167782, %v5080
        %v5096 = vshrl.u32 1326507024, %v5081
        %v5097 = vor.u32 %v5095, %v5096
        %vm5098 = vcmp.lt.s32.totalorder %v5079, 1
        %vm5099 = vcmp.lt.s32.totalorder %v5079, 2
        %vm5100 = vcmp.lt.s32.totalorder %v5079, 3
        %vm5101 = vcmp.lt.s32.totalorder %v5079, 4
        %v5102 = vsel %vm5098, %v5082, %v5085
        %v5103 = vsel %vm5101, %v5091, 2102212464
        %v5104 = vsel %vm5100, %v5088, %v5103
        %v5105 = vsel %vm5099, %v5102, %v5104
        %v5106 = vsel %vm5098, %v5085, %v5088
        %v5107 = vsel %vm5101, %v5094, 920167782
        %v5108 = vsel %vm5100, %v5091, %v5107
        %v5109 = vsel %vm5099, %v5106, %v5108
        %v5110 = vsel %vm5098, %v5088, %v5091
        %v5111 = vsel %vm5101, %v5097, 1326507024
        %v5112 = vsel %vm5100, %v5094, %v5111
        %v5113 = vsel %vm5099, %v5110, %v5112
        %v5114 = vshll.u32 %v5074, 8
        %v5115 = vmul.u32.u64.compose %v5114, %v5113
        %v5116 = vextract.low.u32 %v5115
        %v5117 = vextract.high.u32 %v5115
        %v5118 = vmul.u32.u64.compose %v5114, %v5109
        %v5119 = vextract.low.u32 %v5118
        %v5120 = vextract.high.u32 %v5118
        %v5121 = vmul.u32 %v5114, %v5105
        %v5122 = vadd.s32 %v5117, %v5119
        %vm5123 = vc.u32 %v5117, %v5119
        %v5124 = vadd.s32 %v5120, 1
        %v5125 = vsel %vm5123, %v5124, %v5120
        %v5126 = vadd.s32 %v5121, %v5125
        %v5127 = vadd.s32 %v5126, 536870912
        %v5128 = vshrl.u32 %v5127, 30
        %v5129 = vshll.u32 %v5128, 30
        %v5130 = vsub.s32 %v5126, %v5129
        %vm5131 = vcmp.lt.s32.totalorder %v5130, 0
        %v5132 = vsub.s32 0, %v5130
        %v5133 = vsel %vm5131, %v5132, %v5130
        %v5134 = vclz %v5133
        %v5135 = vsub.s32 %v5134, 2
        %vm5136 = vcmp.gt.s32.totalorder 0, %v5135
        %v5137 = vsel %vm5136, 0, %v5135
        %v5138 = vsub.s32 32, %v5137
        %v5139 = vshll.u32 %v5130, %v5137
        %v5140 = vshrl.u32 %v5122, %v5138
        %v5141 = vor.u32 %v5139, %v5140
        %v5142 = vsub.s32 4294967266, %v5137
        %v5143 = vadd.s32 %v5142, 127
        %v5144 = vshll.u32 %v5143, 23
        %v5145 = vor.u32 4788187, %v5144
        %v5146 = vand.u32 2147483647, %v5145
        %v5148 = vcvt.s32.f32 %v5141
        %v5149 = vmul.f32 %v5148, %v5146
        %v5150 = vxor.u32 %v5149, 2147483648
        %v5151 = vsel %vm5068, %v5150, %v5149
        %v5152 = vsub.s32 4, %v5128
        %v5153 = vsel %vm5068, %v5152, %v5128
        %v5154 = vsel %vm5067, %v676, %v5151
        %v5155 = vsel %vm5067, 0, %v5153
        %v5156 = vcosq.f32.pop %v5154
        %v5157 = vsinq.f32.pop %v5154
        %vm5158 = vweird.f32 %v676
        %v5159 = vadd.s32 %v5155, 3
        %v5160 = vand.u32 %v5159, 3
        %vm5161 = vcmp.lt.s32.totalorder %v5160, 2
        %vm5162 = vcmp.eq.s32.totalorder %v5160, 0
        %v5163 = vxor.u32 %v5157, 2147483648
        %v5164 = vsel %vm5162, %v5156, %v5163
        %vm5165 = vcmp.eq.s32.totalorder %v5160, 2
        %v5166 = vxor.u32 %v5156, 2147483648
        %v5167 = vsel %vm5165, %v5166, %v5157
        %v5168 = vsel %vm5161, %v5164, %v5167
        %v5169 = vsel %vm5158, nan, %v5168
        %v5170 = vand.u32 2147483647, %v677
        %vm5171 = vcmp.le.f32.partialorder %v5170, 0.7853982
        %vm5172 = vcmp.lt.s32.totalorder %v677, 0
        %v5173 = vand.u32 %v677, 2139095040
        %v5174 = vshrl.u32 %v5173, 23
        %v5175 = vsub.s32 %v5174, 127
        %v5176 = vand.u32 2147483647, %v677
        %v5177 = vand.u32 %v5176, 8388607
        %v5178 = vor.u32 %v5177, 8388608
        %v5179 = vsub.s32 0, %v5178
        %v5180 = vadd.s32 %v5175, 1
        %vm5181 = vcmp.gt.s32.totalorder %v5180, 0
        %v5182 = vsel %vm5181, %v5180, 0
        %v5183 = vshrl.u32 %v5182, 5
        %v5184 = vand.u32 %v5182, 31
        %v5185 = vsub.s32 32, %v5184
        %v5186 = vshrl.u32 683565275, %v5185
        %v5187 = vshll.u32 683565275, %v5184
        %v5188 = vshrl.u32 2475754826, %v5185
        %v5189 = vor.u32 %v5187, %v5188
        %v5190 = vshll.u32 2475754826, %v5184
        %v5191 = vshrl.u32 2131351028, %v5185
        %v5192 = vor.u32 %v5190, %v5191
        %v5193 = vshll.u32 2131351028, %v5184
        %v5194 = vshrl.u32 2102212464, %v5185
        %v5195 = vor.u32 %v5193, %v5194
        %v5196 = vshll.u32 2102212464, %v5184
        %v5197 = vshrl.u32 920167782, %v5185
        %v5198 = vor.u32 %v5196, %v5197
        %v5199 = vshll.u32 920167782, %v5184
        %v5200 = vshrl.u32 1326507024, %v5185
        %v5201 = vor.u32 %v5199, %v5200
        %vm5202 = vcmp.lt.s32.totalorder %v5183, 1
        %vm5203 = vcmp.lt.s32.totalorder %v5183, 2
        %vm5204 = vcmp.lt.s32.totalorder %v5183, 3
        %vm5205 = vcmp.lt.s32.totalorder %v5183, 4
        %v5206 = vsel %vm5202, %v5186, %v5189
        %v5207 = vsel %vm5205, %v5195, 2102212464
        %v5208 = vsel %vm5204, %v5192, %v5207
        %v5209 = vsel %vm5203, %v5206, %v5208
        %v5210 = vsel %vm5202, %v5189, %v5192
        %v5211 = vsel %vm5205, %v5198, 920167782
        %v5212 = vsel %vm5204, %v5195, %v5211
        %v5213 = vsel %vm5203, %v5210, %v5212
        %v5214 = vsel %vm5202, %v5192, %v5195
        %v5215 = vsel %vm5205, %v5201, 1326507024
        %v5216 = vsel %vm5204, %v5198, %v5215
        %v5217 = vsel %vm5203, %v5214, %v5216
        %v5218 = vshll.u32 %v5178, 8
        %v5219 = vmul.u32.u64.compose %v5218, %v5217
        %v5220 = vextract.low.u32 %v5219
        %v5221 = vextract.high.u32 %v5219
        %v5222 = vmul.u32.u64.compose %v5218, %v5213
        %v5223 = vextract.low.u32 %v5222
        %v5224 = vextract.high.u32 %v5222
        %v5225 = vmul.u32 %v5218, %v5209
        %v5226 = vadd.s32 %v5221, %v5223
        %vm5227 = vc.u32 %v5221, %v5223
        %v5228 = vadd.s32 %v5224, 1
        %v5229 = vsel %vm5227, %v5228, %v5224
        %v5230 = vadd.s32 %v5225, %v5229
        %v5231 = vadd.s32 %v5230, 536870912
        %v5232 = vshrl.u32 %v5231, 30
        %v5233 = vshll.u32 %v5232, 30
        %v5234 = vsub.s32 %v5230, %v5233
        %vm5235 = vcmp.lt.s32.totalorder %v5234, 0
        %v5236 = vsub.s32 0, %v5234
        %v5237 = vsel %vm5235, %v5236, %v5234
        %v5238 = vclz %v5237
        %v5239 = vsub.s32 %v5238, 2
        %vm5240 = vcmp.gt.s32.totalorder 0, %v5239
        %v5241 = vsel %vm5240, 0, %v5239
        %v5242 = vsub.s32 32, %v5241
        %v5243 = vshll.u32 %v5234, %v5241
        %v5244 = vshrl.u32 %v5226, %v5242
        %v5245 = vor.u32 %v5243, %v5244
        %v5246 = vsub.s32 4294967266, %v5241
        %v5247 = vadd.s32 %v5246, 127
        %v5248 = vshll.u32 %v5247, 23
        %v5249 = vor.u32 4788187, %v5248
        %v5250 = vand.u32 2147483647, %v5249
        %v5252 = vcvt.s32.f32 %v5245
        %v5253 = vmul.f32 %v5252, %v5250
        %v5254 = vxor.u32 %v5253, 2147483648
        %v5255 = vsel %vm5172, %v5254, %v5253
        %v5256 = vsub.s32 4, %v5232
        %v5257 = vsel %vm5172, %v5256, %v5232
        %v5258 = vsel %vm5171, %v677, %v5255
        %v5259 = vsel %vm5171, 0, %v5257
        %v5260 = vcosq.f32.pop %v5258
        %v5261 = vsinq.f32.pop %v5258
        %vm5262 = vweird.f32 %v677
        %v5263 = vadd.s32 %v5259, 3
        %v5264 = vand.u32 %v5263, 3
        %vm5265 = vcmp.lt.s32.totalorder %v5264, 2
        %vm5266 = vcmp.eq.s32.totalorder %v5264, 0
        %v5267 = vxor.u32 %v5261, 2147483648
        %v5268 = vsel %vm5266, %v5260, %v5267
        %vm5269 = vcmp.eq.s32.totalorder %v5264, 2
        %v5270 = vxor.u32 %v5260, 2147483648
        %v5271 = vsel %vm5269, %v5270, %v5261
        %v5272 = vsel %vm5265, %v5268, %v5271
        %v5273 = vsel %vm5262, nan, %v5272
        %v5274 = vand.u32 2147483647, %v678
        %vm5275 = vcmp.le.f32.partialorder %v5274, 0.7853982
        %vm5276 = vcmp.lt.s32.totalorder %v678, 0
        %v5277 = vand.u32 %v678, 2139095040
        %v5278 = vshrl.u32 %v5277, 23
        %v5279 = vsub.s32 %v5278, 127
        %v5280 = vand.u32 2147483647, %v678
        %v5281 = vand.u32 %v5280, 8388607
        %v5282 = vor.u32 %v5281, 8388608
        %v5283 = vsub.s32 0, %v5282
        %v5284 = vadd.s32 %v5279, 1
        %vm5285 = vcmp.gt.s32.totalorder %v5284, 0
        %v5286 = vsel %vm5285, %v5284, 0
        %v5287 = vshrl.u32 %v5286, 5
        %v5288 = vand.u32 %v5286, 31
        %v5289 = vsub.s32 32, %v5288
        %v5290 = vshrl.u32 683565275, %v5289
        %v5291 = vshll.u32 683565275, %v5288
        %v5292 = vshrl.u32 2475754826, %v5289
        %v5293 = vor.u32 %v5291, %v5292
        %v5294 = vshll.u32 2475754826, %v5288
        %v5295 = vshrl.u32 2131351028, %v5289
        %v5296 = vor.u32 %v5294, %v5295
        %v5297 = vshll.u32 2131351028, %v5288
        %v5298 = vshrl.u32 2102212464, %v5289
        %v5299 = vor.u32 %v5297, %v5298
        %v5300 = vshll.u32 2102212464, %v5288
        %v5301 = vshrl.u32 920167782, %v5289
        %v5302 = vor.u32 %v5300, %v5301
        %v5303 = vshll.u32 920167782, %v5288
        %v5304 = vshrl.u32 1326507024, %v5289
        %v5305 = vor.u32 %v5303, %v5304
        %vm5306 = vcmp.lt.s32.totalorder %v5287, 1
        %vm5307 = vcmp.lt.s32.totalorder %v5287, 2
        %vm5308 = vcmp.lt.s32.totalorder %v5287, 3
        %vm5309 = vcmp.lt.s32.totalorder %v5287, 4
        %v5310 = vsel %vm5306, %v5290, %v5293
        %v5311 = vsel %vm5309, %v5299, 2102212464
        %v5312 = vsel %vm5308, %v5296, %v5311
        %v5313 = vsel %vm5307, %v5310, %v5312
        %v5314 = vsel %vm5306, %v5293, %v5296
        %v5315 = vsel %vm5309, %v5302, 920167782
        %v5316 = vsel %vm5308, %v5299, %v5315
        %v5317 = vsel %vm5307, %v5314, %v5316
        %v5318 = vsel %vm5306, %v5296, %v5299
        %v5319 = vsel %vm5309, %v5305, 1326507024
        %v5320 = vsel %vm5308, %v5302, %v5319
        %v5321 = vsel %vm5307, %v5318, %v5320
        %v5322 = vshll.u32 %v5282, 8
        %v5323 = vmul.u32.u64.compose %v5322, %v5321
        %v5324 = vextract.low.u32 %v5323
        %v5325 = vextract.high.u32 %v5323
        %v5326 = vmul.u32.u64.compose %v5322, %v5317
        %v5327 = vextract.low.u32 %v5326
        %v5328 = vextract.high.u32 %v5326
        %v5329 = vmul.u32 %v5322, %v5313
        %v5330 = vadd.s32 %v5325, %v5327
        %vm5331 = vc.u32 %v5325, %v5327
        %v5332 = vadd.s32 %v5328, 1
        %v5333 = vsel %vm5331, %v5332, %v5328
        %v5334 = vadd.s32 %v5329, %v5333
        %v5335 = vadd.s32 %v5334, 536870912
        %v5336 = vshrl.u32 %v5335, 30
        %v5337 = vshll.u32 %v5336, 30
        %v5338 = vsub.s32 %v5334, %v5337
        %vm5339 = vcmp.lt.s32.totalorder %v5338, 0
        %v5340 = vsub.s32 0, %v5338
        %v5341 = vsel %vm5339, %v5340, %v5338
        %v5342 = vclz %v5341
        %v5343 = vsub.s32 %v5342, 2
        %vm5344 = vcmp.gt.s32.totalorder 0, %v5343
        %v5345 = vsel %vm5344, 0, %v5343
        %v5346 = vsub.s32 32, %v5345
        %v5347 = vshll.u32 %v5338, %v5345
        %v5348 = vshrl.u32 %v5330, %v5346
        %v5349 = vor.u32 %v5347, %v5348
        %v5350 = vsub.s32 4294967266, %v5345
        %v5351 = vadd.s32 %v5350, 127
        %v5352 = vshll.u32 %v5351, 23
        %v5353 = vor.u32 4788187, %v5352
        %v5354 = vand.u32 2147483647, %v5353
        %v5356 = vcvt.s32.f32 %v5349
        %v5357 = vmul.f32 %v5356, %v5354
        %v5358 = vxor.u32 %v5357, 2147483648
        %v5359 = vsel %vm5276, %v5358, %v5357
        %v5360 = vsub.s32 4, %v5336
        %v5361 = vsel %vm5276, %v5360, %v5336
        %v5362 = vsel %vm5275, %v678, %v5359
        %v5363 = vsel %vm5275, 0, %v5361
        %v5364 = vcosq.f32.pop %v5362
        %v5365 = vsinq.f32.pop %v5362
        %vm5366 = vweird.f32 %v678
        %v5367 = vadd.s32 %v5363, 3
        %v5368 = vand.u32 %v5367, 3
        %vm5369 = vcmp.lt.s32.totalorder %v5368, 2
        %vm5370 = vcmp.eq.s32.totalorder %v5368, 0
        %v5371 = vxor.u32 %v5365, 2147483648
        %v5372 = vsel %vm5370, %v5364, %v5371
        %vm5373 = vcmp.eq.s32.totalorder %v5368, 2
        %v5374 = vxor.u32 %v5364, 2147483648
        %v5375 = vsel %vm5373, %v5374, %v5365
        %v5376 = vsel %vm5369, %v5372, %v5375
        %v5377 = vsel %vm5366, nan, %v5376
        %v5378 = vand.u32 2147483647, %v679
        %vm5379 = vcmp.le.f32.partialorder %v5378, 0.7853982
        %vm5380 = vcmp.lt.s32.totalorder %v679, 0
        %v5381 = vand.u32 %v679, 2139095040
        %v5382 = vshrl.u32 %v5381, 23
        %v5383 = vsub.s32 %v5382, 127
        %v5384 = vand.u32 2147483647, %v679
        %v5385 = vand.u32 %v5384, 8388607
        %v5386 = vor.u32 %v5385, 8388608
        %v5387 = vsub.s32 0, %v5386
        %v5388 = vadd.s32 %v5383, 1
        %vm5389 = vcmp.gt.s32.totalorder %v5388, 0
        %v5390 = vsel %vm5389, %v5388, 0
        %v5391 = vshrl.u32 %v5390, 5
        %v5392 = vand.u32 %v5390, 31
        %v5393 = vsub.s32 32, %v5392
        %v5394 = vshrl.u32 683565275, %v5393
        %v5395 = vshll.u32 683565275, %v5392
        %v5396 = vshrl.u32 2475754826, %v5393
        %v5397 = vor.u32 %v5395, %v5396
        %v5398 = vshll.u32 2475754826, %v5392
        %v5399 = vshrl.u32 2131351028, %v5393
        %v5400 = vor.u32 %v5398, %v5399
        %v5401 = vshll.u32 2131351028, %v5392
        %v5402 = vshrl.u32 2102212464, %v5393
        %v5403 = vor.u32 %v5401, %v5402
        %v5404 = vshll.u32 2102212464, %v5392
        %v5405 = vshrl.u32 920167782, %v5393
        %v5406 = vor.u32 %v5404, %v5405
        %v5407 = vshll.u32 920167782, %v5392
        %v5408 = vshrl.u32 1326507024, %v5393
        %v5409 = vor.u32 %v5407, %v5408
        %vm5410 = vcmp.lt.s32.totalorder %v5391, 1
        %vm5411 = vcmp.lt.s32.totalorder %v5391, 2
        %vm5412 = vcmp.lt.s32.totalorder %v5391, 3
        %vm5413 = vcmp.lt.s32.totalorder %v5391, 4
        %v5414 = vsel %vm5410, %v5394, %v5397
        %v5415 = vsel %vm5413, %v5403, 2102212464
        %v5416 = vsel %vm5412, %v5400, %v5415
        %v5417 = vsel %vm5411, %v5414, %v5416
        %v5418 = vsel %vm5410, %v5397, %v5400
        %v5419 = vsel %vm5413, %v5406, 920167782
        %v5420 = vsel %vm5412, %v5403, %v5419
        %v5421 = vsel %vm5411, %v5418, %v5420
        %v5422 = vsel %vm5410, %v5400, %v5403
        %v5423 = vsel %vm5413, %v5409, 1326507024
        %v5424 = vsel %vm5412, %v5406, %v5423
        %v5425 = vsel %vm5411, %v5422, %v5424
        %v5426 = vshll.u32 %v5386, 8
        %v5427 = vmul.u32.u64.compose %v5426, %v5425
        %v5428 = vextract.low.u32 %v5427
        %v5429 = vextract.high.u32 %v5427
        %v5430 = vmul.u32.u64.compose %v5426, %v5421
        %v5431 = vextract.low.u32 %v5430
        %v5432 = vextract.high.u32 %v5430
        %v5433 = vmul.u32 %v5426, %v5417
        %v5434 = vadd.s32 %v5429, %v5431
        %vm5435 = vc.u32 %v5429, %v5431
        %v5436 = vadd.s32 %v5432, 1
        %v5437 = vsel %vm5435, %v5436, %v5432
        %v5438 = vadd.s32 %v5433, %v5437
        %v5439 = vadd.s32 %v5438, 536870912
        %v5440 = vshrl.u32 %v5439, 30
        %v5441 = vshll.u32 %v5440, 30
        %v5442 = vsub.s32 %v5438, %v5441
        %vm5443 = vcmp.lt.s32.totalorder %v5442, 0
        %v5444 = vsub.s32 0, %v5442
        %v5445 = vsel %vm5443, %v5444, %v5442
        %v5446 = vclz %v5445
        %v5447 = vsub.s32 %v5446, 2
        %vm5448 = vcmp.gt.s32.totalorder 0, %v5447
        %v5449 = vsel %vm5448, 0, %v5447
        %v5450 = vsub.s32 32, %v5449
        %v5451 = vshll.u32 %v5442, %v5449
        %v5452 = vshrl.u32 %v5434, %v5450
        %v5453 = vor.u32 %v5451, %v5452
        %v5454 = vsub.s32 4294967266, %v5449
        %v5455 = vadd.s32 %v5454, 127
        %v5456 = vshll.u32 %v5455, 23
        %v5457 = vor.u32 4788187, %v5456
        %v5458 = vand.u32 2147483647, %v5457
        %v5460 = vcvt.s32.f32 %v5453
        %v5461 = vmul.f32 %v5460, %v5458
        %v5462 = vxor.u32 %v5461, 2147483648
        %v5463 = vsel %vm5380, %v5462, %v5461
        %v5464 = vsub.s32 4, %v5440
        %v5465 = vsel %vm5380, %v5464, %v5440
        %v5466 = vsel %vm5379, %v679, %v5463
        %v5467 = vsel %vm5379, 0, %v5465
        %v5468 = vcosq.f32.pop %v5466
        %v5469 = vsinq.f32.pop %v5466
        %vm5470 = vweird.f32 %v679
        %v5471 = vadd.s32 %v5467, 3
        %v5472 = vand.u32 %v5471, 3
        %vm5473 = vcmp.lt.s32.totalorder %v5472, 2
        %vm5474 = vcmp.eq.s32.totalorder %v5472, 0
        %v5475 = vxor.u32 %v5469, 2147483648
        %v5476 = vsel %vm5474, %v5468, %v5475
        %vm5477 = vcmp.eq.s32.totalorder %v5472, 2
        %v5478 = vxor.u32 %v5468, 2147483648
        %v5479 = vsel %vm5477, %v5478, %v5469
        %v5480 = vsel %vm5473, %v5476, %v5479
        %v5481 = vsel %vm5470, nan, %v5480
        %v5482 = vand.u32 2147483647, %v680
        %vm5483 = vcmp.le.f32.partialorder %v5482, 0.7853982
        %vm5484 = vcmp.lt.s32.totalorder %v680, 0
        %v5485 = vand.u32 %v680, 2139095040
        %v5486 = vshrl.u32 %v5485, 23
        %v5487 = vsub.s32 %v5486, 127
        %v5488 = vand.u32 2147483647, %v680
        %v5489 = vand.u32 %v5488, 8388607
        %v5490 = vor.u32 %v5489, 8388608
        %v5491 = vsub.s32 0, %v5490
        %v5492 = vadd.s32 %v5487, 1
        %vm5493 = vcmp.gt.s32.totalorder %v5492, 0
        %v5494 = vsel %vm5493, %v5492, 0
        %v5495 = vshrl.u32 %v5494, 5
        %v5496 = vand.u32 %v5494, 31
        %v5497 = vsub.s32 32, %v5496
        %v5498 = vshrl.u32 683565275, %v5497
        %v5499 = vshll.u32 683565275, %v5496
        %v5500 = vshrl.u32 2475754826, %v5497
        %v5501 = vor.u32 %v5499, %v5500
        %v5502 = vshll.u32 2475754826, %v5496
        %v5503 = vshrl.u32 2131351028, %v5497
        %v5504 = vor.u32 %v5502, %v5503
        %v5505 = vshll.u32 2131351028, %v5496
        %v5506 = vshrl.u32 2102212464, %v5497
        %v5507 = vor.u32 %v5505, %v5506
        %v5508 = vshll.u32 2102212464, %v5496
        %v5509 = vshrl.u32 920167782, %v5497
        %v5510 = vor.u32 %v5508, %v5509
        %v5511 = vshll.u32 920167782, %v5496
        %v5512 = vshrl.u32 1326507024, %v5497
        %v5513 = vor.u32 %v5511, %v5512
        %vm5514 = vcmp.lt.s32.totalorder %v5495, 1
        %vm5515 = vcmp.lt.s32.totalorder %v5495, 2
        %vm5516 = vcmp.lt.s32.totalorder %v5495, 3
        %vm5517 = vcmp.lt.s32.totalorder %v5495, 4
        %v5518 = vsel %vm5514, %v5498, %v5501
        %v5519 = vsel %vm5517, %v5507, 2102212464
        %v5520 = vsel %vm5516, %v5504, %v5519
        %v5521 = vsel %vm5515, %v5518, %v5520
        %v5522 = vsel %vm5514, %v5501, %v5504
        %v5523 = vsel %vm5517, %v5510, 920167782
        %v5524 = vsel %vm5516, %v5507, %v5523
        %v5525 = vsel %vm5515, %v5522, %v5524
        %v5526 = vsel %vm5514, %v5504, %v5507
        %v5527 = vsel %vm5517, %v5513, 1326507024
        %v5528 = vsel %vm5516, %v5510, %v5527
        %v5529 = vsel %vm5515, %v5526, %v5528
        %v5530 = vshll.u32 %v5490, 8
        %v5531 = vmul.u32.u64.compose %v5530, %v5529
        %v5532 = vextract.low.u32 %v5531
        %v5533 = vextract.high.u32 %v5531
        %v5534 = vmul.u32.u64.compose %v5530, %v5525
        %v5535 = vextract.low.u32 %v5534
        %v5536 = vextract.high.u32 %v5534
        %v5537 = vmul.u32 %v5530, %v5521
        %v5538 = vadd.s32 %v5533, %v5535
        %vm5539 = vc.u32 %v5533, %v5535
        %v5540 = vadd.s32 %v5536, 1
        %v5541 = vsel %vm5539, %v5540, %v5536
        %v5542 = vadd.s32 %v5537, %v5541
        %v5543 = vadd.s32 %v5542, 536870912
        %v5544 = vshrl.u32 %v5543, 30
        %v5545 = vshll.u32 %v5544, 30
        %v5546 = vsub.s32 %v5542, %v5545
        %vm5547 = vcmp.lt.s32.totalorder %v5546, 0
        %v5548 = vsub.s32 0, %v5546
        %v5549 = vsel %vm5547, %v5548, %v5546
        %v5550 = vclz %v5549
        %v5551 = vsub.s32 %v5550, 2
        %vm5552 = vcmp.gt.s32.totalorder 0, %v5551
        %v5553 = vsel %vm5552, 0, %v5551
        %v5554 = vsub.s32 32, %v5553
        %v5555 = vshll.u32 %v5546, %v5553
        %v5556 = vshrl.u32 %v5538, %v5554
        %v5557 = vor.u32 %v5555, %v5556
        %v5558 = vsub.s32 4294967266, %v5553
        %v5559 = vadd.s32 %v5558, 127
        %v5560 = vshll.u32 %v5559, 23
        %v5561 = vor.u32 4788187, %v5560
        %v5562 = vand.u32 2147483647, %v5561
        %v5564 = vcvt.s32.f32 %v5557
        %v5565 = vmul.f32 %v5564, %v5562
        %v5566 = vxor.u32 %v5565, 2147483648
        %v5567 = vsel %vm5484, %v5566, %v5565
        %v5568 = vsub.s32 4, %v5544
        %v5569 = vsel %vm5484, %v5568, %v5544
        %v5570 = vsel %vm5483, %v680, %v5567
        %v5571 = vsel %vm5483, 0, %v5569
        %v5572 = vcosq.f32.pop %v5570
        %v5573 = vsinq.f32.pop %v5570
        %vm5574 = vweird.f32 %v680
        %v5575 = vadd.s32 %v5571, 3
        %v5576 = vand.u32 %v5575, 3
        %vm5577 = vcmp.lt.s32.totalorder %v5576, 2
        %vm5578 = vcmp.eq.s32.totalorder %v5576, 0
        %v5579 = vxor.u32 %v5573, 2147483648
        %v5580 = vsel %vm5578, %v5572, %v5579
        %vm5581 = vcmp.eq.s32.totalorder %v5576, 2
        %v5582 = vxor.u32 %v5572, 2147483648
        %v5583 = vsel %vm5581, %v5582, %v5573
        %v5584 = vsel %vm5577, %v5580, %v5583
        %v5585 = vsel %vm5574, nan, %v5584
        %v5586 = vand.u32 2147483647, %v681
        %vm5587 = vcmp.le.f32.partialorder %v5586, 0.7853982
        %vm5588 = vcmp.lt.s32.totalorder %v681, 0
        %v5589 = vand.u32 %v681, 2139095040
        %v5590 = vshrl.u32 %v5589, 23
        %v5591 = vsub.s32 %v5590, 127
        %v5592 = vand.u32 2147483647, %v681
        %v5593 = vand.u32 %v5592, 8388607
        %v5594 = vor.u32 %v5593, 8388608
        %v5595 = vsub.s32 0, %v5594
        %v5596 = vadd.s32 %v5591, 1
        %vm5597 = vcmp.gt.s32.totalorder %v5596, 0
        %v5598 = vsel %vm5597, %v5596, 0
        %v5599 = vshrl.u32 %v5598, 5
        %v5600 = vand.u32 %v5598, 31
        %v5601 = vsub.s32 32, %v5600
        %v5602 = vshrl.u32 683565275, %v5601
        %v5603 = vshll.u32 683565275, %v5600
        %v5604 = vshrl.u32 2475754826, %v5601
        %v5605 = vor.u32 %v5603, %v5604
        %v5606 = vshll.u32 2475754826, %v5600
        %v5607 = vshrl.u32 2131351028, %v5601
        %v5608 = vor.u32 %v5606, %v5607
        %v5609 = vshll.u32 2131351028, %v5600
        %v5610 = vshrl.u32 2102212464, %v5601
        %v5611 = vor.u32 %v5609, %v5610
        %v5612 = vshll.u32 2102212464, %v5600
        %v5613 = vshrl.u32 920167782, %v5601
        %v5614 = vor.u32 %v5612, %v5613
        %v5615 = vshll.u32 920167782, %v5600
        %v5616 = vshrl.u32 1326507024, %v5601
        %v5617 = vor.u32 %v5615, %v5616
        %vm5618 = vcmp.lt.s32.totalorder %v5599, 1
        %vm5619 = vcmp.lt.s32.totalorder %v5599, 2
        %vm5620 = vcmp.lt.s32.totalorder %v5599, 3
        %vm5621 = vcmp.lt.s32.totalorder %v5599, 4
        %v5622 = vsel %vm5618, %v5602, %v5605
        %v5623 = vsel %vm5621, %v5611, 2102212464
        %v5624 = vsel %vm5620, %v5608, %v5623
        %v5625 = vsel %vm5619, %v5622, %v5624
        %v5626 = vsel %vm5618, %v5605, %v5608
        %v5627 = vsel %vm5621, %v5614, 920167782
        %v5628 = vsel %vm5620, %v5611, %v5627
        %v5629 = vsel %vm5619, %v5626, %v5628
        %v5630 = vsel %vm5618, %v5608, %v5611
        %v5631 = vsel %vm5621, %v5617, 1326507024
        %v5632 = vsel %vm5620, %v5614, %v5631
        %v5633 = vsel %vm5619, %v5630, %v5632
        %v5634 = vshll.u32 %v5594, 8
        %v5635 = vmul.u32.u64.compose %v5634, %v5633
        %v5636 = vextract.low.u32 %v5635
        %v5637 = vextract.high.u32 %v5635
        %v5638 = vmul.u32.u64.compose %v5634, %v5629
        %v5639 = vextract.low.u32 %v5638
        %v5640 = vextract.high.u32 %v5638
        %v5641 = vmul.u32 %v5634, %v5625
        %v5642 = vadd.s32 %v5637, %v5639
        %vm5643 = vc.u32 %v5637, %v5639
        %v5644 = vadd.s32 %v5640, 1
        %v5645 = vsel %vm5643, %v5644, %v5640
        %v5646 = vadd.s32 %v5641, %v5645
        %v5647 = vadd.s32 %v5646, 536870912
        %v5648 = vshrl.u32 %v5647, 30
        %v5649 = vshll.u32 %v5648, 30
        %v5650 = vsub.s32 %v5646, %v5649
        %vm5651 = vcmp.lt.s32.totalorder %v5650, 0
        %v5652 = vsub.s32 0, %v5650
        %v5653 = vsel %vm5651, %v5652, %v5650
        %v5654 = vclz %v5653
        %v5655 = vsub.s32 %v5654, 2
        %vm5656 = vcmp.gt.s32.totalorder 0, %v5655
        %v5657 = vsel %vm5656, 0, %v5655
        %v5658 = vsub.s32 32, %v5657
        %v5659 = vshll.u32 %v5650, %v5657
        %v5660 = vshrl.u32 %v5642, %v5658
        %v5661 = vor.u32 %v5659, %v5660
        %v5662 = vsub.s32 4294967266, %v5657
        %v5663 = vadd.s32 %v5662, 127
        %v5664 = vshll.u32 %v5663, 23
        %v5665 = vor.u32 4788187, %v5664
        %v5666 = vand.u32 2147483647, %v5665
        %v5668 = vcvt.s32.f32 %v5661
        %v5669 = vmul.f32 %v5668, %v5666
        %v5670 = vxor.u32 %v5669, 2147483648
        %v5671 = vsel %vm5588, %v5670, %v5669
        %v5672 = vsub.s32 4, %v5648
        %v5673 = vsel %vm5588, %v5672, %v5648
        %v5674 = vsel %vm5587, %v681, %v5671
        %v5675 = vsel %vm5587, 0, %v5673
        %v5676 = vcosq.f32.pop %v5674
        %v5677 = vsinq.f32.pop %v5674
        %vm5678 = vweird.f32 %v681
        %v5679 = vadd.s32 %v5675, 3
        %v5680 = vand.u32 %v5679, 3
        %vm5681 = vcmp.lt.s32.totalorder %v5680, 2
        %vm5682 = vcmp.eq.s32.totalorder %v5680, 0
        %v5683 = vxor.u32 %v5677, 2147483648
        %v5684 = vsel %vm5682, %v5676, %v5683
        %vm5685 = vcmp.eq.s32.totalorder %v5680, 2
        %v5686 = vxor.u32 %v5676, 2147483648
        %v5687 = vsel %vm5685, %v5686, %v5677
        %v5688 = vsel %vm5681, %v5684, %v5687
        %v5689 = vsel %vm5678, nan, %v5688
        %v5690 = vand.u32 2147483647, %v682
        %vm5691 = vcmp.le.f32.partialorder %v5690, 0.7853982
        %vm5692 = vcmp.lt.s32.totalorder %v682, 0
        %v5693 = vand.u32 %v682, 2139095040
        %v5694 = vshrl.u32 %v5693, 23
        %v5695 = vsub.s32 %v5694, 127
        %v5696 = vand.u32 2147483647, %v682
        %v5697 = vand.u32 %v5696, 8388607
        %v5698 = vor.u32 %v5697, 8388608
        %v5699 = vsub.s32 0, %v5698
        %v5700 = vadd.s32 %v5695, 1
        %vm5701 = vcmp.gt.s32.totalorder %v5700, 0
        %v5702 = vsel %vm5701, %v5700, 0
        %v5703 = vshrl.u32 %v5702, 5
        %v5704 = vand.u32 %v5702, 31
        %v5705 = vsub.s32 32, %v5704
        %v5706 = vshrl.u32 683565275, %v5705
        %v5707 = vshll.u32 683565275, %v5704
        %v5708 = vshrl.u32 2475754826, %v5705
        %v5709 = vor.u32 %v5707, %v5708
        %v5710 = vshll.u32 2475754826, %v5704
        %v5711 = vshrl.u32 2131351028, %v5705
        %v5712 = vor.u32 %v5710, %v5711
        %v5713 = vshll.u32 2131351028, %v5704
        %v5714 = vshrl.u32 2102212464, %v5705
        %v5715 = vor.u32 %v5713, %v5714
        %v5716 = vshll.u32 2102212464, %v5704
        %v5717 = vshrl.u32 920167782, %v5705
        %v5718 = vor.u32 %v5716, %v5717
        %v5719 = vshll.u32 920167782, %v5704
        %v5720 = vshrl.u32 1326507024, %v5705
        %v5721 = vor.u32 %v5719, %v5720
        %vm5722 = vcmp.lt.s32.totalorder %v5703, 1
        %vm5723 = vcmp.lt.s32.totalorder %v5703, 2
        %vm5724 = vcmp.lt.s32.totalorder %v5703, 3
        %vm5725 = vcmp.lt.s32.totalorder %v5703, 4
        %v5726 = vsel %vm5722, %v5706, %v5709
        %v5727 = vsel %vm5725, %v5715, 2102212464
        %v5728 = vsel %vm5724, %v5712, %v5727
        %v5729 = vsel %vm5723, %v5726, %v5728
        %v5730 = vsel %vm5722, %v5709, %v5712
        %v5731 = vsel %vm5725, %v5718, 920167782
        %v5732 = vsel %vm5724, %v5715, %v5731
        %v5733 = vsel %vm5723, %v5730, %v5732
        %v5734 = vsel %vm5722, %v5712, %v5715
        %v5735 = vsel %vm5725, %v5721, 1326507024
        %v5736 = vsel %vm5724, %v5718, %v5735
        %v5737 = vsel %vm5723, %v5734, %v5736
        %v5738 = vshll.u32 %v5698, 8
        %v5739 = vmul.u32.u64.compose %v5738, %v5737
        %v5740 = vextract.low.u32 %v5739
        %v5741 = vextract.high.u32 %v5739
        %v5742 = vmul.u32.u64.compose %v5738, %v5733
        %v5743 = vextract.low.u32 %v5742
        %v5744 = vextract.high.u32 %v5742
        %v5745 = vmul.u32 %v5738, %v5729
        %v5746 = vadd.s32 %v5741, %v5743
        %vm5747 = vc.u32 %v5741, %v5743
        %v5748 = vadd.s32 %v5744, 1
        %v5749 = vsel %vm5747, %v5748, %v5744
        %v5750 = vadd.s32 %v5745, %v5749
        %v5751 = vadd.s32 %v5750, 536870912
        %v5752 = vshrl.u32 %v5751, 30
        %v5753 = vshll.u32 %v5752, 30
        %v5754 = vsub.s32 %v5750, %v5753
        %vm5755 = vcmp.lt.s32.totalorder %v5754, 0
        %v5756 = vsub.s32 0, %v5754
        %v5757 = vsel %vm5755, %v5756, %v5754
        %v5758 = vclz %v5757
        %v5759 = vsub.s32 %v5758, 2
        %vm5760 = vcmp.gt.s32.totalorder 0, %v5759
        %v5761 = vsel %vm5760, 0, %v5759
        %v5762 = vsub.s32 32, %v5761
        %v5763 = vshll.u32 %v5754, %v5761
        %v5764 = vshrl.u32 %v5746, %v5762
        %v5765 = vor.u32 %v5763, %v5764
        %v5766 = vsub.s32 4294967266, %v5761
        %v5767 = vadd.s32 %v5766, 127
        %v5768 = vshll.u32 %v5767, 23
        %v5769 = vor.u32 4788187, %v5768
        %v5770 = vand.u32 2147483647, %v5769
        %v5772 = vcvt.s32.f32 %v5765
        %v5773 = vmul.f32 %v5772, %v5770
        %v5774 = vxor.u32 %v5773, 2147483648
        %v5775 = vsel %vm5692, %v5774, %v5773
        %v5776 = vsub.s32 4, %v5752
        %v5777 = vsel %vm5692, %v5776, %v5752
        %v5778 = vsel %vm5691, %v682, %v5775
        %v5779 = vsel %vm5691, 0, %v5777
        %v5780 = vcosq.f32.pop %v5778
        %v5781 = vsinq.f32.pop %v5778
        %vm5782 = vweird.f32 %v682
        %v5783 = vadd.s32 %v5779, 3
        %v5784 = vand.u32 %v5783, 3
        %vm5785 = vcmp.lt.s32.totalorder %v5784, 2
        %vm5786 = vcmp.eq.s32.totalorder %v5784, 0
        %v5787 = vxor.u32 %v5781, 2147483648
        %v5788 = vsel %vm5786, %v5780, %v5787
        %vm5789 = vcmp.eq.s32.totalorder %v5784, 2
        %v5790 = vxor.u32 %v5780, 2147483648
        %v5791 = vsel %vm5789, %v5790, %v5781
        %v5792 = vsel %vm5785, %v5788, %v5791
        %v5793 = vsel %vm5782, nan, %v5792
        %v5794 = vand.u32 2147483647, %v683
        %vm5795 = vcmp.le.f32.partialorder %v5794, 0.7853982
        %vm5796 = vcmp.lt.s32.totalorder %v683, 0
        %v5797 = vand.u32 %v683, 2139095040
        %v5798 = vshrl.u32 %v5797, 23
        %v5799 = vsub.s32 %v5798, 127
        %v5800 = vand.u32 2147483647, %v683
        %v5801 = vand.u32 %v5800, 8388607
        %v5802 = vor.u32 %v5801, 8388608
        %v5803 = vsub.s32 0, %v5802
        %v5804 = vadd.s32 %v5799, 1
        %vm5805 = vcmp.gt.s32.totalorder %v5804, 0
        %v5806 = vsel %vm5805, %v5804, 0
        %v5807 = vshrl.u32 %v5806, 5
        %v5808 = vand.u32 %v5806, 31
        %v5809 = vsub.s32 32, %v5808
        %v5810 = vshrl.u32 683565275, %v5809
        %v5811 = vshll.u32 683565275, %v5808
        %v5812 = vshrl.u32 2475754826, %v5809
        %v5813 = vor.u32 %v5811, %v5812
        %v5814 = vshll.u32 2475754826, %v5808
        %v5815 = vshrl.u32 2131351028, %v5809
        %v5816 = vor.u32 %v5814, %v5815
        %v5817 = vshll.u32 2131351028, %v5808
        %v5818 = vshrl.u32 2102212464, %v5809
        %v5819 = vor.u32 %v5817, %v5818
        %v5820 = vshll.u32 2102212464, %v5808
        %v5821 = vshrl.u32 920167782, %v5809
        %v5822 = vor.u32 %v5820, %v5821
        %v5823 = vshll.u32 920167782, %v5808
        %v5824 = vshrl.u32 1326507024, %v5809
        %v5825 = vor.u32 %v5823, %v5824
        %vm5826 = vcmp.lt.s32.totalorder %v5807, 1
        %vm5827 = vcmp.lt.s32.totalorder %v5807, 2
        %vm5828 = vcmp.lt.s32.totalorder %v5807, 3
        %vm5829 = vcmp.lt.s32.totalorder %v5807, 4
        %v5830 = vsel %vm5826, %v5810, %v5813
        %v5831 = vsel %vm5829, %v5819, 2102212464
        %v5832 = vsel %vm5828, %v5816, %v5831
        %v5833 = vsel %vm5827, %v5830, %v5832
        %v5834 = vsel %vm5826, %v5813, %v5816
        %v5835 = vsel %vm5829, %v5822, 920167782
        %v5836 = vsel %vm5828, %v5819, %v5835
        %v5837 = vsel %vm5827, %v5834, %v5836
        %v5838 = vsel %vm5826, %v5816, %v5819
        %v5839 = vsel %vm5829, %v5825, 1326507024
        %v5840 = vsel %vm5828, %v5822, %v5839
        %v5841 = vsel %vm5827, %v5838, %v5840
        %v5842 = vshll.u32 %v5802, 8
        %v5843 = vmul.u32.u64.compose %v5842, %v5841
        %v5844 = vextract.low.u32 %v5843
        %v5845 = vextract.high.u32 %v5843
        %v5846 = vmul.u32.u64.compose %v5842, %v5837
        %v5847 = vextract.low.u32 %v5846
        %v5848 = vextract.high.u32 %v5846
        %v5849 = vmul.u32 %v5842, %v5833
        %v5850 = vadd.s32 %v5845, %v5847
        %vm5851 = vc.u32 %v5845, %v5847
        %v5852 = vadd.s32 %v5848, 1
        %v5853 = vsel %vm5851, %v5852, %v5848
        %v5854 = vadd.s32 %v5849, %v5853
        %v5855 = vadd.s32 %v5854, 536870912
        %v5856 = vshrl.u32 %v5855, 30
        %v5857 = vshll.u32 %v5856, 30
        %v5858 = vsub.s32 %v5854, %v5857
        %vm5859 = vcmp.lt.s32.totalorder %v5858, 0
        %v5860 = vsub.s32 0, %v5858
        %v5861 = vsel %vm5859, %v5860, %v5858
        %v5862 = vclz %v5861
        %v5863 = vsub.s32 %v5862, 2
        %vm5864 = vcmp.gt.s32.totalorder 0, %v5863
        %v5865 = vsel %vm5864, 0, %v5863
        %v5866 = vsub.s32 32, %v5865
        %v5867 = vshll.u32 %v5858, %v5865
        %v5868 = vshrl.u32 %v5850, %v5866
        %v5869 = vor.u32 %v5867, %v5868
        %v5870 = vsub.s32 4294967266, %v5865
        %v5871 = vadd.s32 %v5870, 127
        %v5872 = vshll.u32 %v5871, 23
        %v5873 = vor.u32 4788187, %v5872
        %v5874 = vand.u32 2147483647, %v5873
        %v5876 = vcvt.s32.f32 %v5869
        %v5877 = vmul.f32 %v5876, %v5874
        %v5878 = vxor.u32 %v5877, 2147483648
        %v5879 = vsel %vm5796, %v5878, %v5877
        %v5880 = vsub.s32 4, %v5856
        %v5881 = vsel %vm5796, %v5880, %v5856
        %v5882 = vsel %vm5795, %v683, %v5879
        %v5883 = vsel %vm5795, 0, %v5881
        %v5884 = vcosq.f32.pop %v5882
        %v5885 = vsinq.f32.pop %v5882
        %vm5886 = vweird.f32 %v683
        %v5887 = vadd.s32 %v5883, 3
        %v5888 = vand.u32 %v5887, 3
        %vm5889 = vcmp.lt.s32.totalorder %v5888, 2
        %vm5890 = vcmp.eq.s32.totalorder %v5888, 0
        %v5891 = vxor.u32 %v5885, 2147483648
        %v5892 = vsel %vm5890, %v5884, %v5891
        %vm5893 = vcmp.eq.s32.totalorder %v5888, 2
        %v5894 = vxor.u32 %v5884, 2147483648
        %v5895 = vsel %vm5893, %v5894, %v5885
        %v5896 = vsel %vm5889, %v5892, %v5895
        %v5897 = vsel %vm5886, nan, %v5896
        %v5898 = vand.u32 2147483647, %v684
        %vm5899 = vcmp.le.f32.partialorder %v5898, 0.7853982
        %vm5900 = vcmp.lt.s32.totalorder %v684, 0
        %v5901 = vand.u32 %v684, 2139095040
        %v5902 = vshrl.u32 %v5901, 23
        %v5903 = vsub.s32 %v5902, 127
        %v5904 = vand.u32 2147483647, %v684
        %v5905 = vand.u32 %v5904, 8388607
        %v5906 = vor.u32 %v5905, 8388608
        %v5907 = vsub.s32 0, %v5906
        %v5908 = vadd.s32 %v5903, 1
        %vm5909 = vcmp.gt.s32.totalorder %v5908, 0
        %v5910 = vsel %vm5909, %v5908, 0
        %v5911 = vshrl.u32 %v5910, 5
        %v5912 = vand.u32 %v5910, 31
        %v5913 = vsub.s32 32, %v5912
        %v5914 = vshrl.u32 683565275, %v5913
        %v5915 = vshll.u32 683565275, %v5912
        %v5916 = vshrl.u32 2475754826, %v5913
        %v5917 = vor.u32 %v5915, %v5916
        %v5918 = vshll.u32 2475754826, %v5912
        %v5919 = vshrl.u32 2131351028, %v5913
        %v5920 = vor.u32 %v5918, %v5919
        %v5921 = vshll.u32 2131351028, %v5912
        %v5922 = vshrl.u32 2102212464, %v5913
        %v5923 = vor.u32 %v5921, %v5922
        %v5924 = vshll.u32 2102212464, %v5912
        %v5925 = vshrl.u32 920167782, %v5913
        %v5926 = vor.u32 %v5924, %v5925
        %v5927 = vshll.u32 920167782, %v5912
        %v5928 = vshrl.u32 1326507024, %v5913
        %v5929 = vor.u32 %v5927, %v5928
        %vm5930 = vcmp.lt.s32.totalorder %v5911, 1
        %vm5931 = vcmp.lt.s32.totalorder %v5911, 2
        %vm5932 = vcmp.lt.s32.totalorder %v5911, 3
        %vm5933 = vcmp.lt.s32.totalorder %v5911, 4
        %v5934 = vsel %vm5930, %v5914, %v5917
        %v5935 = vsel %vm5933, %v5923, 2102212464
        %v5936 = vsel %vm5932, %v5920, %v5935
        %v5937 = vsel %vm5931, %v5934, %v5936
        %v5938 = vsel %vm5930, %v5917, %v5920
        %v5939 = vsel %vm5933, %v5926, 920167782
        %v5940 = vsel %vm5932, %v5923, %v5939
        %v5941 = vsel %vm5931, %v5938, %v5940
        %v5942 = vsel %vm5930, %v5920, %v5923
        %v5943 = vsel %vm5933, %v5929, 1326507024
        %v5944 = vsel %vm5932, %v5926, %v5943
        %v5945 = vsel %vm5931, %v5942, %v5944
        %v5946 = vshll.u32 %v5906, 8
        %v5947 = vmul.u32.u64.compose %v5946, %v5945
        %v5948 = vextract.low.u32 %v5947
        %v5949 = vextract.high.u32 %v5947
        %v5950 = vmul.u32.u64.compose %v5946, %v5941
        %v5951 = vextract.low.u32 %v5950
        %v5952 = vextract.high.u32 %v5950
        %v5953 = vmul.u32 %v5946, %v5937
        %v5954 = vadd.s32 %v5949, %v5951
        %vm5955 = vc.u32 %v5949, %v5951
        %v5956 = vadd.s32 %v5952, 1
        %v5957 = vsel %vm5955, %v5956, %v5952
        %v5958 = vadd.s32 %v5953, %v5957
        %v5959 = vadd.s32 %v5958, 536870912
        %v5960 = vshrl.u32 %v5959, 30
        %v5961 = vshll.u32 %v5960, 30
        %v5962 = vsub.s32 %v5958, %v5961
        %vm5963 = vcmp.lt.s32.totalorder %v5962, 0
        %v5964 = vsub.s32 0, %v5962
        %v5965 = vsel %vm5963, %v5964, %v5962
        %v5966 = vclz %v5965
        %v5967 = vsub.s32 %v5966, 2
        %vm5968 = vcmp.gt.s32.totalorder 0, %v5967
        %v5969 = vsel %vm5968, 0, %v5967
        %v5970 = vsub.s32 32, %v5969
        %v5971 = vshll.u32 %v5962, %v5969
        %v5972 = vshrl.u32 %v5954, %v5970
        %v5973 = vor.u32 %v5971, %v5972
        %v5974 = vsub.s32 4294967266, %v5969
        %v5975 = vadd.s32 %v5974, 127
        %v5976 = vshll.u32 %v5975, 23
        %v5977 = vor.u32 4788187, %v5976
        %v5978 = vand.u32 2147483647, %v5977
        %v5980 = vcvt.s32.f32 %v5973
        %v5981 = vmul.f32 %v5980, %v5978
        %v5982 = vxor.u32 %v5981, 2147483648
        %v5983 = vsel %vm5900, %v5982, %v5981
        %v5984 = vsub.s32 4, %v5960
        %v5985 = vsel %vm5900, %v5984, %v5960
        %v5986 = vsel %vm5899, %v684, %v5983
        %v5987 = vsel %vm5899, 0, %v5985
        %v5988 = vcosq.f32.pop %v5986
        %v5989 = vsinq.f32.pop %v5986
        %vm5990 = vweird.f32 %v684
        %v5991 = vadd.s32 %v5987, 3
        %v5992 = vand.u32 %v5991, 3
        %vm5993 = vcmp.lt.s32.totalorder %v5992, 2
        %vm5994 = vcmp.eq.s32.totalorder %v5992, 0
        %v5995 = vxor.u32 %v5989, 2147483648
        %v5996 = vsel %vm5994, %v5988, %v5995
        %vm5997 = vcmp.eq.s32.totalorder %v5992, 2
        %v5998 = vxor.u32 %v5988, 2147483648
        %v5999 = vsel %vm5997, %v5998, %v5989
        %v6000 = vsel %vm5993, %v5996, %v5999
        %v6001 = vsel %vm5990, nan, %v6000
        %v6002 = vand.u32 2147483647, %v685
        %vm6003 = vcmp.le.f32.partialorder %v6002, 0.7853982
        %vm6004 = vcmp.lt.s32.totalorder %v685, 0
        %v6005 = vand.u32 %v685, 2139095040
        %v6006 = vshrl.u32 %v6005, 23
        %v6007 = vsub.s32 %v6006, 127
        %v6008 = vand.u32 2147483647, %v685
        %v6009 = vand.u32 %v6008, 8388607
        %v6010 = vor.u32 %v6009, 8388608
        %v6011 = vsub.s32 0, %v6010
        %v6012 = vadd.s32 %v6007, 1
        %vm6013 = vcmp.gt.s32.totalorder %v6012, 0
        %v6014 = vsel %vm6013, %v6012, 0
        %v6015 = vshrl.u32 %v6014, 5
        %v6016 = vand.u32 %v6014, 31
        %v6017 = vsub.s32 32, %v6016
        %v6018 = vshrl.u32 683565275, %v6017
        %v6019 = vshll.u32 683565275, %v6016
        %v6020 = vshrl.u32 2475754826, %v6017
        %v6021 = vor.u32 %v6019, %v6020
        %v6022 = vshll.u32 2475754826, %v6016
        %v6023 = vshrl.u32 2131351028, %v6017
        %v6024 = vor.u32 %v6022, %v6023
        %v6025 = vshll.u32 2131351028, %v6016
        %v6026 = vshrl.u32 2102212464, %v6017
        %v6027 = vor.u32 %v6025, %v6026
        %v6028 = vshll.u32 2102212464, %v6016
        %v6029 = vshrl.u32 920167782, %v6017
        %v6030 = vor.u32 %v6028, %v6029
        %v6031 = vshll.u32 920167782, %v6016
        %v6032 = vshrl.u32 1326507024, %v6017
        %v6033 = vor.u32 %v6031, %v6032
        %vm6034 = vcmp.lt.s32.totalorder %v6015, 1
        %vm6035 = vcmp.lt.s32.totalorder %v6015, 2
        %vm6036 = vcmp.lt.s32.totalorder %v6015, 3
        %vm6037 = vcmp.lt.s32.totalorder %v6015, 4
        %v6038 = vsel %vm6034, %v6018, %v6021
        %v6039 = vsel %vm6037, %v6027, 2102212464
        %v6040 = vsel %vm6036, %v6024, %v6039
        %v6041 = vsel %vm6035, %v6038, %v6040
        %v6042 = vsel %vm6034, %v6021, %v6024
        %v6043 = vsel %vm6037, %v6030, 920167782
        %v6044 = vsel %vm6036, %v6027, %v6043
        %v6045 = vsel %vm6035, %v6042, %v6044
        %v6046 = vsel %vm6034, %v6024, %v6027
        %v6047 = vsel %vm6037, %v6033, 1326507024
        %v6048 = vsel %vm6036, %v6030, %v6047
        %v6049 = vsel %vm6035, %v6046, %v6048
        %v6050 = vshll.u32 %v6010, 8
        %v6051 = vmul.u32.u64.compose %v6050, %v6049
        %v6052 = vextract.low.u32 %v6051
        %v6053 = vextract.high.u32 %v6051
        %v6054 = vmul.u32.u64.compose %v6050, %v6045
        %v6055 = vextract.low.u32 %v6054
        %v6056 = vextract.high.u32 %v6054
        %v6057 = vmul.u32 %v6050, %v6041
        %v6058 = vadd.s32 %v6053, %v6055
        %vm6059 = vc.u32 %v6053, %v6055
        %v6060 = vadd.s32 %v6056, 1
        %v6061 = vsel %vm6059, %v6060, %v6056
        %v6062 = vadd.s32 %v6057, %v6061
        %v6063 = vadd.s32 %v6062, 536870912
        %v6064 = vshrl.u32 %v6063, 30
        %v6065 = vshll.u32 %v6064, 30
        %v6066 = vsub.s32 %v6062, %v6065
        %vm6067 = vcmp.lt.s32.totalorder %v6066, 0
        %v6068 = vsub.s32 0, %v6066
        %v6069 = vsel %vm6067, %v6068, %v6066
        %v6070 = vclz %v6069
        %v6071 = vsub.s32 %v6070, 2
        %vm6072 = vcmp.gt.s32.totalorder 0, %v6071
        %v6073 = vsel %vm6072, 0, %v6071
        %v6074 = vsub.s32 32, %v6073
        %v6075 = vshll.u32 %v6066, %v6073
        %v6076 = vshrl.u32 %v6058, %v6074
        %v6077 = vor.u32 %v6075, %v6076
        %v6078 = vsub.s32 4294967266, %v6073
        %v6079 = vadd.s32 %v6078, 127
        %v6080 = vshll.u32 %v6079, 23
        %v6081 = vor.u32 4788187, %v6080
        %v6082 = vand.u32 2147483647, %v6081
        %v6084 = vcvt.s32.f32 %v6077
        %v6085 = vmul.f32 %v6084, %v6082
        %v6086 = vxor.u32 %v6085, 2147483648
        %v6087 = vsel %vm6004, %v6086, %v6085
        %v6088 = vsub.s32 4, %v6064
        %v6089 = vsel %vm6004, %v6088, %v6064
        %v6090 = vsel %vm6003, %v685, %v6087
        %v6091 = vsel %vm6003, 0, %v6089
        %v6092 = vcosq.f32.pop %v6090
        %v6093 = vsinq.f32.pop %v6090
        %vm6094 = vweird.f32 %v685
        %v6095 = vadd.s32 %v6091, 3
        %v6096 = vand.u32 %v6095, 3
        %vm6097 = vcmp.lt.s32.totalorder %v6096, 2
        %vm6098 = vcmp.eq.s32.totalorder %v6096, 0
        %v6099 = vxor.u32 %v6093, 2147483648
        %v6100 = vsel %vm6098, %v6092, %v6099
        %vm6101 = vcmp.eq.s32.totalorder %v6096, 2
        %v6102 = vxor.u32 %v6092, 2147483648
        %v6103 = vsel %vm6101, %v6102, %v6093
        %v6104 = vsel %vm6097, %v6100, %v6103
        %v6105 = vsel %vm6094, nan, %v6104
        %v6106 = vand.u32 2147483647, %v686
        %vm6107 = vcmp.le.f32.partialorder %v6106, 0.7853982
        %vm6108 = vcmp.lt.s32.totalorder %v686, 0
        %v6109 = vand.u32 %v686, 2139095040
        %v6110 = vshrl.u32 %v6109, 23
        %v6111 = vsub.s32 %v6110, 127
        %v6112 = vand.u32 2147483647, %v686
        %v6113 = vand.u32 %v6112, 8388607
        %v6114 = vor.u32 %v6113, 8388608
        %v6115 = vsub.s32 0, %v6114
        %v6116 = vadd.s32 %v6111, 1
        %vm6117 = vcmp.gt.s32.totalorder %v6116, 0
        %v6118 = vsel %vm6117, %v6116, 0
        %v6119 = vshrl.u32 %v6118, 5
        %v6120 = vand.u32 %v6118, 31
        %v6121 = vsub.s32 32, %v6120
        %v6122 = vshrl.u32 683565275, %v6121
        %v6123 = vshll.u32 683565275, %v6120
        %v6124 = vshrl.u32 2475754826, %v6121
        %v6125 = vor.u32 %v6123, %v6124
        %v6126 = vshll.u32 2475754826, %v6120
        %v6127 = vshrl.u32 2131351028, %v6121
        %v6128 = vor.u32 %v6126, %v6127
        %v6129 = vshll.u32 2131351028, %v6120
        %v6130 = vshrl.u32 2102212464, %v6121
        %v6131 = vor.u32 %v6129, %v6130
        %v6132 = vshll.u32 2102212464, %v6120
        %v6133 = vshrl.u32 920167782, %v6121
        %v6134 = vor.u32 %v6132, %v6133
        %v6135 = vshll.u32 920167782, %v6120
        %v6136 = vshrl.u32 1326507024, %v6121
        %v6137 = vor.u32 %v6135, %v6136
        %vm6138 = vcmp.lt.s32.totalorder %v6119, 1
        %vm6139 = vcmp.lt.s32.totalorder %v6119, 2
        %vm6140 = vcmp.lt.s32.totalorder %v6119, 3
        %vm6141 = vcmp.lt.s32.totalorder %v6119, 4
        %v6142 = vsel %vm6138, %v6122, %v6125
        %v6143 = vsel %vm6141, %v6131, 2102212464
        %v6144 = vsel %vm6140, %v6128, %v6143
        %v6145 = vsel %vm6139, %v6142, %v6144
        %v6146 = vsel %vm6138, %v6125, %v6128
        %v6147 = vsel %vm6141, %v6134, 920167782
        %v6148 = vsel %vm6140, %v6131, %v6147
        %v6149 = vsel %vm6139, %v6146, %v6148
        %v6150 = vsel %vm6138, %v6128, %v6131
        %v6151 = vsel %vm6141, %v6137, 1326507024
        %v6152 = vsel %vm6140, %v6134, %v6151
        %v6153 = vsel %vm6139, %v6150, %v6152
        %v6154 = vshll.u32 %v6114, 8
        %v6155 = vmul.u32.u64.compose %v6154, %v6153
        %v6156 = vextract.low.u32 %v6155
        %v6157 = vextract.high.u32 %v6155
        %v6158 = vmul.u32.u64.compose %v6154, %v6149
        %v6159 = vextract.low.u32 %v6158
        %v6160 = vextract.high.u32 %v6158
        %v6161 = vmul.u32 %v6154, %v6145
        %v6162 = vadd.s32 %v6157, %v6159
        %vm6163 = vc.u32 %v6157, %v6159
        %v6164 = vadd.s32 %v6160, 1
        %v6165 = vsel %vm6163, %v6164, %v6160
        %v6166 = vadd.s32 %v6161, %v6165
        %v6167 = vadd.s32 %v6166, 536870912
        %v6168 = vshrl.u32 %v6167, 30
        %v6169 = vshll.u32 %v6168, 30
        %v6170 = vsub.s32 %v6166, %v6169
        %vm6171 = vcmp.lt.s32.totalorder %v6170, 0
        %v6172 = vsub.s32 0, %v6170
        %v6173 = vsel %vm6171, %v6172, %v6170
        %v6174 = vclz %v6173
        %v6175 = vsub.s32 %v6174, 2
        %vm6176 = vcmp.gt.s32.totalorder 0, %v6175
        %v6177 = vsel %vm6176, 0, %v6175
        %v6178 = vsub.s32 32, %v6177
        %v6179 = vshll.u32 %v6170, %v6177
        %v6180 = vshrl.u32 %v6162, %v6178
        %v6181 = vor.u32 %v6179, %v6180
        %v6182 = vsub.s32 4294967266, %v6177
        %v6183 = vadd.s32 %v6182, 127
        %v6184 = vshll.u32 %v6183, 23
        %v6185 = vor.u32 4788187, %v6184
        %v6186 = vand.u32 2147483647, %v6185
        %v6188 = vcvt.s32.f32 %v6181
        %v6189 = vmul.f32 %v6188, %v6186
        %v6190 = vxor.u32 %v6189, 2147483648
        %v6191 = vsel %vm6108, %v6190, %v6189
        %v6192 = vsub.s32 4, %v6168
        %v6193 = vsel %vm6108, %v6192, %v6168
        %v6194 = vsel %vm6107, %v686, %v6191
        %v6195 = vsel %vm6107, 0, %v6193
        %v6196 = vcosq.f32.pop %v6194
        %v6197 = vsinq.f32.pop %v6194
        %vm6198 = vweird.f32 %v686
        %v6199 = vadd.s32 %v6195, 3
        %v6200 = vand.u32 %v6199, 3
        %vm6201 = vcmp.lt.s32.totalorder %v6200, 2
        %vm6202 = vcmp.eq.s32.totalorder %v6200, 0
        %v6203 = vxor.u32 %v6197, 2147483648
        %v6204 = vsel %vm6202, %v6196, %v6203
        %vm6205 = vcmp.eq.s32.totalorder %v6200, 2
        %v6206 = vxor.u32 %v6196, 2147483648
        %v6207 = vsel %vm6205, %v6206, %v6197
        %v6208 = vsel %vm6201, %v6204, %v6207
        %v6209 = vsel %vm6198, nan, %v6208
        %v6210 = vand.u32 2147483647, %v687
        %vm6211 = vcmp.le.f32.partialorder %v6210, 0.7853982
        %vm6212 = vcmp.lt.s32.totalorder %v687, 0
        %v6213 = vand.u32 %v687, 2139095040
        %v6214 = vshrl.u32 %v6213, 23
        %v6215 = vsub.s32 %v6214, 127
        %v6216 = vand.u32 2147483647, %v687
        %v6217 = vand.u32 %v6216, 8388607
        %v6218 = vor.u32 %v6217, 8388608
        %v6219 = vsub.s32 0, %v6218
        %v6220 = vadd.s32 %v6215, 1
        %vm6221 = vcmp.gt.s32.totalorder %v6220, 0
        %v6222 = vsel %vm6221, %v6220, 0
        %v6223 = vshrl.u32 %v6222, 5
        %v6224 = vand.u32 %v6222, 31
        %v6225 = vsub.s32 32, %v6224
        %v6226 = vshrl.u32 683565275, %v6225
        %v6227 = vshll.u32 683565275, %v6224
        %v6228 = vshrl.u32 2475754826, %v6225
        %v6229 = vor.u32 %v6227, %v6228
        %v6230 = vshll.u32 2475754826, %v6224
        %v6231 = vshrl.u32 2131351028, %v6225
        %v6232 = vor.u32 %v6230, %v6231
        %v6233 = vshll.u32 2131351028, %v6224
        %v6234 = vshrl.u32 2102212464, %v6225
        %v6235 = vor.u32 %v6233, %v6234
        %v6236 = vshll.u32 2102212464, %v6224
        %v6237 = vshrl.u32 920167782, %v6225
        %v6238 = vor.u32 %v6236, %v6237
        %v6239 = vshll.u32 920167782, %v6224
        %v6240 = vshrl.u32 1326507024, %v6225
        %v6241 = vor.u32 %v6239, %v6240
        %vm6242 = vcmp.lt.s32.totalorder %v6223, 1
        %vm6243 = vcmp.lt.s32.totalorder %v6223, 2
        %vm6244 = vcmp.lt.s32.totalorder %v6223, 3
        %vm6245 = vcmp.lt.s32.totalorder %v6223, 4
        %v6246 = vsel %vm6242, %v6226, %v6229
        %v6247 = vsel %vm6245, %v6235, 2102212464
        %v6248 = vsel %vm6244, %v6232, %v6247
        %v6249 = vsel %vm6243, %v6246, %v6248
        %v6250 = vsel %vm6242, %v6229, %v6232
        %v6251 = vsel %vm6245, %v6238, 920167782
        %v6252 = vsel %vm6244, %v6235, %v6251
        %v6253 = vsel %vm6243, %v6250, %v6252
        %v6254 = vsel %vm6242, %v6232, %v6235
        %v6255 = vsel %vm6245, %v6241, 1326507024
        %v6256 = vsel %vm6244, %v6238, %v6255
        %v6257 = vsel %vm6243, %v6254, %v6256
        %v6258 = vshll.u32 %v6218, 8
        %v6259 = vmul.u32.u64.compose %v6258, %v6257
        %v6260 = vextract.low.u32 %v6259
        %v6261 = vextract.high.u32 %v6259
        %v6262 = vmul.u32.u64.compose %v6258, %v6253
        %v6263 = vextract.low.u32 %v6262
        %v6264 = vextract.high.u32 %v6262
        %v6265 = vmul.u32 %v6258, %v6249
        %v6266 = vadd.s32 %v6261, %v6263
        %vm6267 = vc.u32 %v6261, %v6263
        %v6268 = vadd.s32 %v6264, 1
        %v6269 = vsel %vm6267, %v6268, %v6264
        %v6270 = vadd.s32 %v6265, %v6269
        %v6271 = vadd.s32 %v6270, 536870912
        %v6272 = vshrl.u32 %v6271, 30
        %v6273 = vshll.u32 %v6272, 30
        %v6274 = vsub.s32 %v6270, %v6273
        %vm6275 = vcmp.lt.s32.totalorder %v6274, 0
        %v6276 = vsub.s32 0, %v6274
        %v6277 = vsel %vm6275, %v6276, %v6274
        %v6278 = vclz %v6277
        %v6279 = vsub.s32 %v6278, 2
        %vm6280 = vcmp.gt.s32.totalorder 0, %v6279
        %v6281 = vsel %vm6280, 0, %v6279
        %v6282 = vsub.s32 32, %v6281
        %v6283 = vshll.u32 %v6274, %v6281
        %v6284 = vshrl.u32 %v6266, %v6282
        %v6285 = vor.u32 %v6283, %v6284
        %v6286 = vsub.s32 4294967266, %v6281
        %v6287 = vadd.s32 %v6286, 127
        %v6288 = vshll.u32 %v6287, 23
        %v6289 = vor.u32 4788187, %v6288
        %v6290 = vand.u32 2147483647, %v6289
        %v6292 = vcvt.s32.f32 %v6285
        %v6293 = vmul.f32 %v6292, %v6290
        %v6294 = vxor.u32 %v6293, 2147483648
        %v6295 = vsel %vm6212, %v6294, %v6293
        %v6296 = vsub.s32 4, %v6272
        %v6297 = vsel %vm6212, %v6296, %v6272
        %v6298 = vsel %vm6211, %v687, %v6295
        %v6299 = vsel %vm6211, 0, %v6297
        %v6300 = vcosq.f32.pop %v6298
        %v6301 = vsinq.f32.pop %v6298
        %vm6302 = vweird.f32 %v687
        %v6303 = vadd.s32 %v6299, 3
        %v6304 = vand.u32 %v6303, 3
        %vm6305 = vcmp.lt.s32.totalorder %v6304, 2
        %vm6306 = vcmp.eq.s32.totalorder %v6304, 0
        %v6307 = vxor.u32 %v6301, 2147483648
        %v6308 = vsel %vm6306, %v6300, %v6307
        %vm6309 = vcmp.eq.s32.totalorder %v6304, 2
        %v6310 = vxor.u32 %v6300, 2147483648
        %v6311 = vsel %vm6309, %v6310, %v6301
        %v6312 = vsel %vm6305, %v6308, %v6311
        %v6313 = vsel %vm6302, nan, %v6312
        %v6314 = vand.u32 2147483647, %v688
        %vm6315 = vcmp.le.f32.partialorder %v6314, 0.7853982
        %vm6316 = vcmp.lt.s32.totalorder %v688, 0
        %v6317 = vand.u32 %v688, 2139095040
        %v6318 = vshrl.u32 %v6317, 23
        %v6319 = vsub.s32 %v6318, 127
        %v6320 = vand.u32 2147483647, %v688
        %v6321 = vand.u32 %v6320, 8388607
        %v6322 = vor.u32 %v6321, 8388608
        %v6323 = vsub.s32 0, %v6322
        %v6324 = vadd.s32 %v6319, 1
        %vm6325 = vcmp.gt.s32.totalorder %v6324, 0
        %v6326 = vsel %vm6325, %v6324, 0
        %v6327 = vshrl.u32 %v6326, 5
        %v6328 = vand.u32 %v6326, 31
        %v6329 = vsub.s32 32, %v6328
        %v6330 = vshrl.u32 683565275, %v6329
        %v6331 = vshll.u32 683565275, %v6328
        %v6332 = vshrl.u32 2475754826, %v6329
        %v6333 = vor.u32 %v6331, %v6332
        %v6334 = vshll.u32 2475754826, %v6328
        %v6335 = vshrl.u32 2131351028, %v6329
        %v6336 = vor.u32 %v6334, %v6335
        %v6337 = vshll.u32 2131351028, %v6328
        %v6338 = vshrl.u32 2102212464, %v6329
        %v6339 = vor.u32 %v6337, %v6338
        %v6340 = vshll.u32 2102212464, %v6328
        %v6341 = vshrl.u32 920167782, %v6329
        %v6342 = vor.u32 %v6340, %v6341
        %v6343 = vshll.u32 920167782, %v6328
        %v6344 = vshrl.u32 1326507024, %v6329
        %v6345 = vor.u32 %v6343, %v6344
        %vm6346 = vcmp.lt.s32.totalorder %v6327, 1
        %vm6347 = vcmp.lt.s32.totalorder %v6327, 2
        %vm6348 = vcmp.lt.s32.totalorder %v6327, 3
        %vm6349 = vcmp.lt.s32.totalorder %v6327, 4
        %v6350 = vsel %vm6346, %v6330, %v6333
        %v6351 = vsel %vm6349, %v6339, 2102212464
        %v6352 = vsel %vm6348, %v6336, %v6351
        %v6353 = vsel %vm6347, %v6350, %v6352
        %v6354 = vsel %vm6346, %v6333, %v6336
        %v6355 = vsel %vm6349, %v6342, 920167782
        %v6356 = vsel %vm6348, %v6339, %v6355
        %v6357 = vsel %vm6347, %v6354, %v6356
        %v6358 = vsel %vm6346, %v6336, %v6339
        %v6359 = vsel %vm6349, %v6345, 1326507024
        %v6360 = vsel %vm6348, %v6342, %v6359
        %v6361 = vsel %vm6347, %v6358, %v6360
        %v6362 = vshll.u32 %v6322, 8
        %v6363 = vmul.u32.u64.compose %v6362, %v6361
        %v6364 = vextract.low.u32 %v6363
        %v6365 = vextract.high.u32 %v6363
        %v6366 = vmul.u32.u64.compose %v6362, %v6357
        %v6367 = vextract.low.u32 %v6366
        %v6368 = vextract.high.u32 %v6366
        %v6369 = vmul.u32 %v6362, %v6353
        %v6370 = vadd.s32 %v6365, %v6367
        %vm6371 = vc.u32 %v6365, %v6367
        %v6372 = vadd.s32 %v6368, 1
        %v6373 = vsel %vm6371, %v6372, %v6368
        %v6374 = vadd.s32 %v6369, %v6373
        %v6375 = vadd.s32 %v6374, 536870912
        %v6376 = vshrl.u32 %v6375, 30
        %v6377 = vshll.u32 %v6376, 30
        %v6378 = vsub.s32 %v6374, %v6377
        %vm6379 = vcmp.lt.s32.totalorder %v6378, 0
        %v6380 = vsub.s32 0, %v6378
        %v6381 = vsel %vm6379, %v6380, %v6378
        %v6382 = vclz %v6381
        %v6383 = vsub.s32 %v6382, 2
        %vm6384 = vcmp.gt.s32.totalorder 0, %v6383
        %v6385 = vsel %vm6384, 0, %v6383
        %v6386 = vsub.s32 32, %v6385
        %v6387 = vshll.u32 %v6378, %v6385
        %v6388 = vshrl.u32 %v6370, %v6386
        %v6389 = vor.u32 %v6387, %v6388
        %v6390 = vsub.s32 4294967266, %v6385
        %v6391 = vadd.s32 %v6390, 127
        %v6392 = vshll.u32 %v6391, 23
        %v6393 = vor.u32 4788187, %v6392
        %v6394 = vand.u32 2147483647, %v6393
        %v6396 = vcvt.s32.f32 %v6389
        %v6397 = vmul.f32 %v6396, %v6394
        %v6398 = vxor.u32 %v6397, 2147483648
        %v6399 = vsel %vm6316, %v6398, %v6397
        %v6400 = vsub.s32 4, %v6376
        %v6401 = vsel %vm6316, %v6400, %v6376
        %v6402 = vsel %vm6315, %v688, %v6399
        %v6403 = vsel %vm6315, 0, %v6401
        %v6404 = vcosq.f32.pop %v6402
        %v6405 = vsinq.f32.pop %v6402
        %vm6406 = vweird.f32 %v688
        %v6407 = vadd.s32 %v6403, 3
        %v6408 = vand.u32 %v6407, 3
        %vm6409 = vcmp.lt.s32.totalorder %v6408, 2
        %vm6410 = vcmp.eq.s32.totalorder %v6408, 0
        %v6411 = vxor.u32 %v6405, 2147483648
        %v6412 = vsel %vm6410, %v6404, %v6411
        %vm6413 = vcmp.eq.s32.totalorder %v6408, 2
        %v6414 = vxor.u32 %v6404, 2147483648
        %v6415 = vsel %vm6413, %v6414, %v6405
        %v6416 = vsel %vm6409, %v6412, %v6415
        %v6417 = vsel %vm6406, nan, %v6416
        %v6418 = vand.u32 2147483647, %v689
        %vm6419 = vcmp.le.f32.partialorder %v6418, 0.7853982
        %vm6420 = vcmp.lt.s32.totalorder %v689, 0
        %v6421 = vand.u32 %v689, 2139095040
        %v6422 = vshrl.u32 %v6421, 23
        %v6423 = vsub.s32 %v6422, 127
        %v6424 = vand.u32 2147483647, %v689
        %v6425 = vand.u32 %v6424, 8388607
        %v6426 = vor.u32 %v6425, 8388608
        %v6427 = vsub.s32 0, %v6426
        %v6428 = vadd.s32 %v6423, 1
        %vm6429 = vcmp.gt.s32.totalorder %v6428, 0
        %v6430 = vsel %vm6429, %v6428, 0
        %v6431 = vshrl.u32 %v6430, 5
        %v6432 = vand.u32 %v6430, 31
        %v6433 = vsub.s32 32, %v6432
        %v6434 = vshrl.u32 683565275, %v6433
        %v6435 = vshll.u32 683565275, %v6432
        %v6436 = vshrl.u32 2475754826, %v6433
        %v6437 = vor.u32 %v6435, %v6436
        %v6438 = vshll.u32 2475754826, %v6432
        %v6439 = vshrl.u32 2131351028, %v6433
        %v6440 = vor.u32 %v6438, %v6439
        %v6441 = vshll.u32 2131351028, %v6432
        %v6442 = vshrl.u32 2102212464, %v6433
        %v6443 = vor.u32 %v6441, %v6442
        %v6444 = vshll.u32 2102212464, %v6432
        %v6445 = vshrl.u32 920167782, %v6433
        %v6446 = vor.u32 %v6444, %v6445
        %v6447 = vshll.u32 920167782, %v6432
        %v6448 = vshrl.u32 1326507024, %v6433
        %v6449 = vor.u32 %v6447, %v6448
        %vm6450 = vcmp.lt.s32.totalorder %v6431, 1
        %vm6451 = vcmp.lt.s32.totalorder %v6431, 2
        %vm6452 = vcmp.lt.s32.totalorder %v6431, 3
        %vm6453 = vcmp.lt.s32.totalorder %v6431, 4
        %v6454 = vsel %vm6450, %v6434, %v6437
        %v6455 = vsel %vm6453, %v6443, 2102212464
        %v6456 = vsel %vm6452, %v6440, %v6455
        %v6457 = vsel %vm6451, %v6454, %v6456
        %v6458 = vsel %vm6450, %v6437, %v6440
        %v6459 = vsel %vm6453, %v6446, 920167782
        %v6460 = vsel %vm6452, %v6443, %v6459
        %v6461 = vsel %vm6451, %v6458, %v6460
        %v6462 = vsel %vm6450, %v6440, %v6443
        %v6463 = vsel %vm6453, %v6449, 1326507024
        %v6464 = vsel %vm6452, %v6446, %v6463
        %v6465 = vsel %vm6451, %v6462, %v6464
        %v6466 = vshll.u32 %v6426, 8
        %v6467 = vmul.u32.u64.compose %v6466, %v6465
        %v6468 = vextract.low.u32 %v6467
        %v6469 = vextract.high.u32 %v6467
        %v6470 = vmul.u32.u64.compose %v6466, %v6461
        %v6471 = vextract.low.u32 %v6470
        %v6472 = vextract.high.u32 %v6470
        %v6473 = vmul.u32 %v6466, %v6457
        %v6474 = vadd.s32 %v6469, %v6471
        %vm6475 = vc.u32 %v6469, %v6471
        %v6476 = vadd.s32 %v6472, 1
        %v6477 = vsel %vm6475, %v6476, %v6472
        %v6478 = vadd.s32 %v6473, %v6477
        %v6479 = vadd.s32 %v6478, 536870912
        %v6480 = vshrl.u32 %v6479, 30
        %v6481 = vshll.u32 %v6480, 30
        %v6482 = vsub.s32 %v6478, %v6481
        %vm6483 = vcmp.lt.s32.totalorder %v6482, 0
        %v6484 = vsub.s32 0, %v6482
        %v6485 = vsel %vm6483, %v6484, %v6482
        %v6486 = vclz %v6485
        %v6487 = vsub.s32 %v6486, 2
        %vm6488 = vcmp.gt.s32.totalorder 0, %v6487
        %v6489 = vsel %vm6488, 0, %v6487
        %v6490 = vsub.s32 32, %v6489
        %v6491 = vshll.u32 %v6482, %v6489
        %v6492 = vshrl.u32 %v6474, %v6490
        %v6493 = vor.u32 %v6491, %v6492
        %v6494 = vsub.s32 4294967266, %v6489
        %v6495 = vadd.s32 %v6494, 127
        %v6496 = vshll.u32 %v6495, 23
        %v6497 = vor.u32 4788187, %v6496
        %v6498 = vand.u32 2147483647, %v6497
        %v6500 = vcvt.s32.f32 %v6493
        %v6501 = vmul.f32 %v6500, %v6498
        %v6502 = vxor.u32 %v6501, 2147483648
        %v6503 = vsel %vm6420, %v6502, %v6501
        %v6504 = vsub.s32 4, %v6480
        %v6505 = vsel %vm6420, %v6504, %v6480
        %v6506 = vsel %vm6419, %v689, %v6503
        %v6507 = vsel %vm6419, 0, %v6505
        %v6508 = vcosq.f32.pop %v6506
        %v6509 = vsinq.f32.pop %v6506
        %vm6510 = vweird.f32 %v689
        %v6511 = vadd.s32 %v6507, 3
        %v6512 = vand.u32 %v6511, 3
        %vm6513 = vcmp.lt.s32.totalorder %v6512, 2
        %vm6514 = vcmp.eq.s32.totalorder %v6512, 0
        %v6515 = vxor.u32 %v6509, 2147483648
        %v6516 = vsel %vm6514, %v6508, %v6515
        %vm6517 = vcmp.eq.s32.totalorder %v6512, 2
        %v6518 = vxor.u32 %v6508, 2147483648
        %v6519 = vsel %vm6517, %v6518, %v6509
        %v6520 = vsel %vm6513, %v6516, %v6519
        %v6521 = vsel %vm6510, nan, %v6520
        %v6522 = vand.u32 2147483647, %v690
        %vm6523 = vcmp.le.f32.partialorder %v6522, 0.7853982
        %vm6524 = vcmp.lt.s32.totalorder %v690, 0
        %v6525 = vand.u32 %v690, 2139095040
        %v6526 = vshrl.u32 %v6525, 23
        %v6527 = vsub.s32 %v6526, 127
        %v6528 = vand.u32 2147483647, %v690
        %v6529 = vand.u32 %v6528, 8388607
        %v6530 = vor.u32 %v6529, 8388608
        %v6531 = vsub.s32 0, %v6530
        %v6532 = vadd.s32 %v6527, 1
        %vm6533 = vcmp.gt.s32.totalorder %v6532, 0
        %v6534 = vsel %vm6533, %v6532, 0
        %v6535 = vshrl.u32 %v6534, 5
        %v6536 = vand.u32 %v6534, 31
        %v6537 = vsub.s32 32, %v6536
        %v6538 = vshrl.u32 683565275, %v6537
        %v6539 = vshll.u32 683565275, %v6536
        %v6540 = vshrl.u32 2475754826, %v6537
        %v6541 = vor.u32 %v6539, %v6540
        %v6542 = vshll.u32 2475754826, %v6536
        %v6543 = vshrl.u32 2131351028, %v6537
        %v6544 = vor.u32 %v6542, %v6543
        %v6545 = vshll.u32 2131351028, %v6536
        %v6546 = vshrl.u32 2102212464, %v6537
        %v6547 = vor.u32 %v6545, %v6546
        %v6548 = vshll.u32 2102212464, %v6536
        %v6549 = vshrl.u32 920167782, %v6537
        %v6550 = vor.u32 %v6548, %v6549
        %v6551 = vshll.u32 920167782, %v6536
        %v6552 = vshrl.u32 1326507024, %v6537
        %v6553 = vor.u32 %v6551, %v6552
        %vm6554 = vcmp.lt.s32.totalorder %v6535, 1
        %vm6555 = vcmp.lt.s32.totalorder %v6535, 2
        %vm6556 = vcmp.lt.s32.totalorder %v6535, 3
        %vm6557 = vcmp.lt.s32.totalorder %v6535, 4
        %v6558 = vsel %vm6554, %v6538, %v6541
        %v6559 = vsel %vm6557, %v6547, 2102212464
        %v6560 = vsel %vm6556, %v6544, %v6559
        %v6561 = vsel %vm6555, %v6558, %v6560
        %v6562 = vsel %vm6554, %v6541, %v6544
        %v6563 = vsel %vm6557, %v6550, 920167782
        %v6564 = vsel %vm6556, %v6547, %v6563
        %v6565 = vsel %vm6555, %v6562, %v6564
        %v6566 = vsel %vm6554, %v6544, %v6547
        %v6567 = vsel %vm6557, %v6553, 1326507024
        %v6568 = vsel %vm6556, %v6550, %v6567
        %v6569 = vsel %vm6555, %v6566, %v6568
        %v6570 = vshll.u32 %v6530, 8
        %v6571 = vmul.u32.u64.compose %v6570, %v6569
        %v6572 = vextract.low.u32 %v6571
        %v6573 = vextract.high.u32 %v6571
        %v6574 = vmul.u32.u64.compose %v6570, %v6565
        %v6575 = vextract.low.u32 %v6574
        %v6576 = vextract.high.u32 %v6574
        %v6577 = vmul.u32 %v6570, %v6561
        %v6578 = vadd.s32 %v6573, %v6575
        %vm6579 = vc.u32 %v6573, %v6575
        %v6580 = vadd.s32 %v6576, 1
        %v6581 = vsel %vm6579, %v6580, %v6576
        %v6582 = vadd.s32 %v6577, %v6581
        %v6583 = vadd.s32 %v6582, 536870912
        %v6584 = vshrl.u32 %v6583, 30
        %v6585 = vshll.u32 %v6584, 30
        %v6586 = vsub.s32 %v6582, %v6585
        %vm6587 = vcmp.lt.s32.totalorder %v6586, 0
        %v6588 = vsub.s32 0, %v6586
        %v6589 = vsel %vm6587, %v6588, %v6586
        %v6590 = vclz %v6589
        %v6591 = vsub.s32 %v6590, 2
        %vm6592 = vcmp.gt.s32.totalorder 0, %v6591
        %v6593 = vsel %vm6592, 0, %v6591
        %v6594 = vsub.s32 32, %v6593
        %v6595 = vshll.u32 %v6586, %v6593
        %v6596 = vshrl.u32 %v6578, %v6594
        %v6597 = vor.u32 %v6595, %v6596
        %v6598 = vsub.s32 4294967266, %v6593
        %v6599 = vadd.s32 %v6598, 127
        %v6600 = vshll.u32 %v6599, 23
        %v6601 = vor.u32 4788187, %v6600
        %v6602 = vand.u32 2147483647, %v6601
        %v6604 = vcvt.s32.f32 %v6597
        %v6605 = vmul.f32 %v6604, %v6602
        %v6606 = vxor.u32 %v6605, 2147483648
        %v6607 = vsel %vm6524, %v6606, %v6605
        %v6608 = vsub.s32 4, %v6584
        %v6609 = vsel %vm6524, %v6608, %v6584
        %v6610 = vsel %vm6523, %v690, %v6607
        %v6611 = vsel %vm6523, 0, %v6609
        %v6612 = vcosq.f32.pop %v6610
        %v6613 = vsinq.f32.pop %v6610
        %vm6614 = vweird.f32 %v690
        %v6615 = vadd.s32 %v6611, 3
        %v6616 = vand.u32 %v6615, 3
        %vm6617 = vcmp.lt.s32.totalorder %v6616, 2
        %vm6618 = vcmp.eq.s32.totalorder %v6616, 0
        %v6619 = vxor.u32 %v6613, 2147483648
        %v6620 = vsel %vm6618, %v6612, %v6619
        %vm6621 = vcmp.eq.s32.totalorder %v6616, 2
        %v6622 = vxor.u32 %v6612, 2147483648
        %v6623 = vsel %vm6621, %v6622, %v6613
        %v6624 = vsel %vm6617, %v6620, %v6623
        %v6625 = vsel %vm6614, nan, %v6624
        %v6626 = vand.u32 2147483647, %v691
        %vm6627 = vcmp.le.f32.partialorder %v6626, 0.7853982
        %vm6628 = vcmp.lt.s32.totalorder %v691, 0
        %v6629 = vand.u32 %v691, 2139095040
        %v6630 = vshrl.u32 %v6629, 23
        %v6631 = vsub.s32 %v6630, 127
        %v6632 = vand.u32 2147483647, %v691
        %v6633 = vand.u32 %v6632, 8388607
        %v6634 = vor.u32 %v6633, 8388608
        %v6635 = vsub.s32 0, %v6634
        %v6636 = vadd.s32 %v6631, 1
        %vm6637 = vcmp.gt.s32.totalorder %v6636, 0
        %v6638 = vsel %vm6637, %v6636, 0
        %v6639 = vshrl.u32 %v6638, 5
        %v6640 = vand.u32 %v6638, 31
        %v6641 = vsub.s32 32, %v6640
        %v6642 = vshrl.u32 683565275, %v6641
        %v6643 = vshll.u32 683565275, %v6640
        %v6644 = vshrl.u32 2475754826, %v6641
        %v6645 = vor.u32 %v6643, %v6644
        %v6646 = vshll.u32 2475754826, %v6640
        %v6647 = vshrl.u32 2131351028, %v6641
        %v6648 = vor.u32 %v6646, %v6647
        %v6649 = vshll.u32 2131351028, %v6640
        %v6650 = vshrl.u32 2102212464, %v6641
        %v6651 = vor.u32 %v6649, %v6650
        %v6652 = vshll.u32 2102212464, %v6640
        %v6653 = vshrl.u32 920167782, %v6641
        %v6654 = vor.u32 %v6652, %v6653
        %v6655 = vshll.u32 920167782, %v6640
        %v6656 = vshrl.u32 1326507024, %v6641
        %v6657 = vor.u32 %v6655, %v6656
        %vm6658 = vcmp.lt.s32.totalorder %v6639, 1
        %vm6659 = vcmp.lt.s32.totalorder %v6639, 2
        %vm6660 = vcmp.lt.s32.totalorder %v6639, 3
        %vm6661 = vcmp.lt.s32.totalorder %v6639, 4
        %v6662 = vsel %vm6658, %v6642, %v6645
        %v6663 = vsel %vm6661, %v6651, 2102212464
        %v6664 = vsel %vm6660, %v6648, %v6663
        %v6665 = vsel %vm6659, %v6662, %v6664
        %v6666 = vsel %vm6658, %v6645, %v6648
        %v6667 = vsel %vm6661, %v6654, 920167782
        %v6668 = vsel %vm6660, %v6651, %v6667
        %v6669 = vsel %vm6659, %v6666, %v6668
        %v6670 = vsel %vm6658, %v6648, %v6651
        %v6671 = vsel %vm6661, %v6657, 1326507024
        %v6672 = vsel %vm6660, %v6654, %v6671
        %v6673 = vsel %vm6659, %v6670, %v6672
        %v6674 = vshll.u32 %v6634, 8
        %v6675 = vmul.u32.u64.compose %v6674, %v6673
        %v6676 = vextract.low.u32 %v6675
        %v6677 = vextract.high.u32 %v6675
        %v6678 = vmul.u32.u64.compose %v6674, %v6669
        %v6679 = vextract.low.u32 %v6678
        %v6680 = vextract.high.u32 %v6678
        %v6681 = vmul.u32 %v6674, %v6665
        %v6682 = vadd.s32 %v6677, %v6679
        %vm6683 = vc.u32 %v6677, %v6679
        %v6684 = vadd.s32 %v6680, 1
        %v6685 = vsel %vm6683, %v6684, %v6680
        %v6686 = vadd.s32 %v6681, %v6685
        %v6687 = vadd.s32 %v6686, 536870912
        %v6688 = vshrl.u32 %v6687, 30
        %v6689 = vshll.u32 %v6688, 30
        %v6690 = vsub.s32 %v6686, %v6689
        %vm6691 = vcmp.lt.s32.totalorder %v6690, 0
        %v6692 = vsub.s32 0, %v6690
        %v6693 = vsel %vm6691, %v6692, %v6690
        %v6694 = vclz %v6693
        %v6695 = vsub.s32 %v6694, 2
        %vm6696 = vcmp.gt.s32.totalorder 0, %v6695
        %v6697 = vsel %vm6696, 0, %v6695
        %v6698 = vsub.s32 32, %v6697
        %v6699 = vshll.u32 %v6690, %v6697
        %v6700 = vshrl.u32 %v6682, %v6698
        %v6701 = vor.u32 %v6699, %v6700
        %v6702 = vsub.s32 4294967266, %v6697
        %v6703 = vadd.s32 %v6702, 127
        %v6704 = vshll.u32 %v6703, 23
        %v6705 = vor.u32 4788187, %v6704
        %v6706 = vand.u32 2147483647, %v6705
        %v6708 = vcvt.s32.f32 %v6701
        %v6709 = vmul.f32 %v6708, %v6706
        %v6710 = vxor.u32 %v6709, 2147483648
        %v6711 = vsel %vm6628, %v6710, %v6709
        %v6712 = vsub.s32 4, %v6688
        %v6713 = vsel %vm6628, %v6712, %v6688
        %v6714 = vsel %vm6627, %v691, %v6711
        %v6715 = vsel %vm6627, 0, %v6713
        %v6716 = vcosq.f32.pop %v6714
        %v6717 = vsinq.f32.pop %v6714
        %vm6718 = vweird.f32 %v691
        %v6719 = vadd.s32 %v6715, 3
        %v6720 = vand.u32 %v6719, 3
        %vm6721 = vcmp.lt.s32.totalorder %v6720, 2
        %vm6722 = vcmp.eq.s32.totalorder %v6720, 0
        %v6723 = vxor.u32 %v6717, 2147483648
        %v6724 = vsel %vm6722, %v6716, %v6723
        %vm6725 = vcmp.eq.s32.totalorder %v6720, 2
        %v6726 = vxor.u32 %v6716, 2147483648
        %v6727 = vsel %vm6725, %v6726, %v6717
        %v6728 = vsel %vm6721, %v6724, %v6727
        %v6729 = vsel %vm6718, nan, %v6728
        %v6730 = vand.u32 2147483647, %v692
        %vm6731 = vcmp.le.f32.partialorder %v6730, 0.7853982
        %vm6732 = vcmp.lt.s32.totalorder %v692, 0
        %v6733 = vand.u32 %v692, 2139095040
        %v6734 = vshrl.u32 %v6733, 23
        %v6735 = vsub.s32 %v6734, 127
        %v6736 = vand.u32 2147483647, %v692
        %v6737 = vand.u32 %v6736, 8388607
        %v6738 = vor.u32 %v6737, 8388608
        %v6739 = vsub.s32 0, %v6738
        %v6740 = vadd.s32 %v6735, 1
        %vm6741 = vcmp.gt.s32.totalorder %v6740, 0
        %v6742 = vsel %vm6741, %v6740, 0
        %v6743 = vshrl.u32 %v6742, 5
        %v6744 = vand.u32 %v6742, 31
        %v6745 = vsub.s32 32, %v6744
        %v6746 = vshrl.u32 683565275, %v6745
        %v6747 = vshll.u32 683565275, %v6744
        %v6748 = vshrl.u32 2475754826, %v6745
        %v6749 = vor.u32 %v6747, %v6748
        %v6750 = vshll.u32 2475754826, %v6744
        %v6751 = vshrl.u32 2131351028, %v6745
        %v6752 = vor.u32 %v6750, %v6751
        %v6753 = vshll.u32 2131351028, %v6744
        %v6754 = vshrl.u32 2102212464, %v6745
        %v6755 = vor.u32 %v6753, %v6754
        %v6756 = vshll.u32 2102212464, %v6744
        %v6757 = vshrl.u32 920167782, %v6745
        %v6758 = vor.u32 %v6756, %v6757
        %v6759 = vshll.u32 920167782, %v6744
        %v6760 = vshrl.u32 1326507024, %v6745
        %v6761 = vor.u32 %v6759, %v6760
        %vm6762 = vcmp.lt.s32.totalorder %v6743, 1
        %vm6763 = vcmp.lt.s32.totalorder %v6743, 2
        %vm6764 = vcmp.lt.s32.totalorder %v6743, 3
        %vm6765 = vcmp.lt.s32.totalorder %v6743, 4
        %v6766 = vsel %vm6762, %v6746, %v6749
        %v6767 = vsel %vm6765, %v6755, 2102212464
        %v6768 = vsel %vm6764, %v6752, %v6767
        %v6769 = vsel %vm6763, %v6766, %v6768
        %v6770 = vsel %vm6762, %v6749, %v6752
        %v6771 = vsel %vm6765, %v6758, 920167782
        %v6772 = vsel %vm6764, %v6755, %v6771
        %v6773 = vsel %vm6763, %v6770, %v6772
        %v6774 = vsel %vm6762, %v6752, %v6755
        %v6775 = vsel %vm6765, %v6761, 1326507024
        %v6776 = vsel %vm6764, %v6758, %v6775
        %v6777 = vsel %vm6763, %v6774, %v6776
        %v6778 = vshll.u32 %v6738, 8
        %v6779 = vmul.u32.u64.compose %v6778, %v6777
        %v6780 = vextract.low.u32 %v6779
        %v6781 = vextract.high.u32 %v6779
        %v6782 = vmul.u32.u64.compose %v6778, %v6773
        %v6783 = vextract.low.u32 %v6782
        %v6784 = vextract.high.u32 %v6782
        %v6785 = vmul.u32 %v6778, %v6769
        %v6786 = vadd.s32 %v6781, %v6783
        %vm6787 = vc.u32 %v6781, %v6783
        %v6788 = vadd.s32 %v6784, 1
        %v6789 = vsel %vm6787, %v6788, %v6784
        %v6790 = vadd.s32 %v6785, %v6789
        %v6791 = vadd.s32 %v6790, 536870912
        %v6792 = vshrl.u32 %v6791, 30
        %v6793 = vshll.u32 %v6792, 30
        %v6794 = vsub.s32 %v6790, %v6793
        %vm6795 = vcmp.lt.s32.totalorder %v6794, 0
        %v6796 = vsub.s32 0, %v6794
        %v6797 = vsel %vm6795, %v6796, %v6794
        %v6798 = vclz %v6797
        %v6799 = vsub.s32 %v6798, 2
        %vm6800 = vcmp.gt.s32.totalorder 0, %v6799
        %v6801 = vsel %vm6800, 0, %v6799
        %v6802 = vsub.s32 32, %v6801
        %v6803 = vshll.u32 %v6794, %v6801
        %v6804 = vshrl.u32 %v6786, %v6802
        %v6805 = vor.u32 %v6803, %v6804
        %v6806 = vsub.s32 4294967266, %v6801
        %v6807 = vadd.s32 %v6806, 127
        %v6808 = vshll.u32 %v6807, 23
        %v6809 = vor.u32 4788187, %v6808
        %v6810 = vand.u32 2147483647, %v6809
        %v6812 = vcvt.s32.f32 %v6805
        %v6813 = vmul.f32 %v6812, %v6810
        %v6814 = vxor.u32 %v6813, 2147483648
        %v6815 = vsel %vm6732, %v6814, %v6813
        %v6816 = vsub.s32 4, %v6792
        %v6817 = vsel %vm6732, %v6816, %v6792
        %v6818 = vsel %vm6731, %v692, %v6815
        %v6819 = vsel %vm6731, 0, %v6817
        %v6820 = vcosq.f32.pop %v6818
        %v6821 = vsinq.f32.pop %v6818
        %vm6822 = vweird.f32 %v692
        %v6823 = vadd.s32 %v6819, 3
        %v6824 = vand.u32 %v6823, 3
        %vm6825 = vcmp.lt.s32.totalorder %v6824, 2
        %vm6826 = vcmp.eq.s32.totalorder %v6824, 0
        %v6827 = vxor.u32 %v6821, 2147483648
        %v6828 = vsel %vm6826, %v6820, %v6827
        %vm6829 = vcmp.eq.s32.totalorder %v6824, 2
        %v6830 = vxor.u32 %v6820, 2147483648
        %v6831 = vsel %vm6829, %v6830, %v6821
        %v6832 = vsel %vm6825, %v6828, %v6831
        %v6833 = vsel %vm6822, nan, %v6832
        %v6834 = vand.u32 2147483647, %v693
        %vm6835 = vcmp.le.f32.partialorder %v6834, 0.7853982
        %vm6836 = vcmp.lt.s32.totalorder %v693, 0
        %v6837 = vand.u32 %v693, 2139095040
        %v6838 = vshrl.u32 %v6837, 23
        %v6839 = vsub.s32 %v6838, 127
        %v6840 = vand.u32 2147483647, %v693
        %v6841 = vand.u32 %v6840, 8388607
        %v6842 = vor.u32 %v6841, 8388608
        %v6843 = vsub.s32 0, %v6842
        %v6844 = vadd.s32 %v6839, 1
        %vm6845 = vcmp.gt.s32.totalorder %v6844, 0
        %v6846 = vsel %vm6845, %v6844, 0
        %v6847 = vshrl.u32 %v6846, 5
        %v6848 = vand.u32 %v6846, 31
        %v6849 = vsub.s32 32, %v6848
        %v6850 = vshrl.u32 683565275, %v6849
        %v6851 = vshll.u32 683565275, %v6848
        %v6852 = vshrl.u32 2475754826, %v6849
        %v6853 = vor.u32 %v6851, %v6852
        %v6854 = vshll.u32 2475754826, %v6848
        %v6855 = vshrl.u32 2131351028, %v6849
        %v6856 = vor.u32 %v6854, %v6855
        %v6857 = vshll.u32 2131351028, %v6848
        %v6858 = vshrl.u32 2102212464, %v6849
        %v6859 = vor.u32 %v6857, %v6858
        %v6860 = vshll.u32 2102212464, %v6848
        %v6861 = vshrl.u32 920167782, %v6849
        %v6862 = vor.u32 %v6860, %v6861
        %v6863 = vshll.u32 920167782, %v6848
        %v6864 = vshrl.u32 1326507024, %v6849
        %v6865 = vor.u32 %v6863, %v6864
        %vm6866 = vcmp.lt.s32.totalorder %v6847, 1
        %vm6867 = vcmp.lt.s32.totalorder %v6847, 2
        %vm6868 = vcmp.lt.s32.totalorder %v6847, 3
        %vm6869 = vcmp.lt.s32.totalorder %v6847, 4
        %v6870 = vsel %vm6866, %v6850, %v6853
        %v6871 = vsel %vm6869, %v6859, 2102212464
        %v6872 = vsel %vm6868, %v6856, %v6871
        %v6873 = vsel %vm6867, %v6870, %v6872
        %v6874 = vsel %vm6866, %v6853, %v6856
        %v6875 = vsel %vm6869, %v6862, 920167782
        %v6876 = vsel %vm6868, %v6859, %v6875
        %v6877 = vsel %vm6867, %v6874, %v6876
        %v6878 = vsel %vm6866, %v6856, %v6859
        %v6879 = vsel %vm6869, %v6865, 1326507024
        %v6880 = vsel %vm6868, %v6862, %v6879
        %v6881 = vsel %vm6867, %v6878, %v6880
        %v6882 = vshll.u32 %v6842, 8
        %v6883 = vmul.u32.u64.compose %v6882, %v6881
        %v6884 = vextract.low.u32 %v6883
        %v6885 = vextract.high.u32 %v6883
        %v6886 = vmul.u32.u64.compose %v6882, %v6877
        %v6887 = vextract.low.u32 %v6886
        %v6888 = vextract.high.u32 %v6886
        %v6889 = vmul.u32 %v6882, %v6873
        %v6890 = vadd.s32 %v6885, %v6887
        %vm6891 = vc.u32 %v6885, %v6887
        %v6892 = vadd.s32 %v6888, 1
        %v6893 = vsel %vm6891, %v6892, %v6888
        %v6894 = vadd.s32 %v6889, %v6893
        %v6895 = vadd.s32 %v6894, 536870912
        %v6896 = vshrl.u32 %v6895, 30
        %v6897 = vshll.u32 %v6896, 30
        %v6898 = vsub.s32 %v6894, %v6897
        %vm6899 = vcmp.lt.s32.totalorder %v6898, 0
        %v6900 = vsub.s32 0, %v6898
        %v6901 = vsel %vm6899, %v6900, %v6898
        %v6902 = vclz %v6901
        %v6903 = vsub.s32 %v6902, 2
        %vm6904 = vcmp.gt.s32.totalorder 0, %v6903
        %v6905 = vsel %vm6904, 0, %v6903
        %v6906 = vsub.s32 32, %v6905
        %v6907 = vshll.u32 %v6898, %v6905
        %v6908 = vshrl.u32 %v6890, %v6906
        %v6909 = vor.u32 %v6907, %v6908
        %v6910 = vsub.s32 4294967266, %v6905
        %v6911 = vadd.s32 %v6910, 127
        %v6912 = vshll.u32 %v6911, 23
        %v6913 = vor.u32 4788187, %v6912
        %v6914 = vand.u32 2147483647, %v6913
        %v6916 = vcvt.s32.f32 %v6909
        %v6917 = vmul.f32 %v6916, %v6914
        %v6918 = vxor.u32 %v6917, 2147483648
        %v6919 = vsel %vm6836, %v6918, %v6917
        %v6920 = vsub.s32 4, %v6896
        %v6921 = vsel %vm6836, %v6920, %v6896
        %v6922 = vsel %vm6835, %v693, %v6919
        %v6923 = vsel %vm6835, 0, %v6921
        %v6924 = vcosq.f32.pop %v6922
        %v6925 = vsinq.f32.pop %v6922
        %vm6926 = vweird.f32 %v693
        %v6927 = vadd.s32 %v6923, 3
        %v6928 = vand.u32 %v6927, 3
        %vm6929 = vcmp.lt.s32.totalorder %v6928, 2
        %vm6930 = vcmp.eq.s32.totalorder %v6928, 0
        %v6931 = vxor.u32 %v6925, 2147483648
        %v6932 = vsel %vm6930, %v6924, %v6931
        %vm6933 = vcmp.eq.s32.totalorder %v6928, 2
        %v6934 = vxor.u32 %v6924, 2147483648
        %v6935 = vsel %vm6933, %v6934, %v6925
        %v6936 = vsel %vm6929, %v6932, %v6935
        %v6937 = vsel %vm6926, nan, %v6936
        %v6938 = vand.u32 2147483647, %v694
        %vm6939 = vcmp.le.f32.partialorder %v6938, 0.7853982
        %vm6940 = vcmp.lt.s32.totalorder %v694, 0
        %v6941 = vand.u32 %v694, 2139095040
        %v6942 = vshrl.u32 %v6941, 23
        %v6943 = vsub.s32 %v6942, 127
        %v6944 = vand.u32 2147483647, %v694
        %v6945 = vand.u32 %v6944, 8388607
        %v6946 = vor.u32 %v6945, 8388608
        %v6947 = vsub.s32 0, %v6946
        %v6948 = vadd.s32 %v6943, 1
        %vm6949 = vcmp.gt.s32.totalorder %v6948, 0
        %v6950 = vsel %vm6949, %v6948, 0
        %v6951 = vshrl.u32 %v6950, 5
        %v6952 = vand.u32 %v6950, 31
        %v6953 = vsub.s32 32, %v6952
        %v6954 = vshrl.u32 683565275, %v6953
        %v6955 = vshll.u32 683565275, %v6952
        %v6956 = vshrl.u32 2475754826, %v6953
        %v6957 = vor.u32 %v6955, %v6956
        %v6958 = vshll.u32 2475754826, %v6952
        %v6959 = vshrl.u32 2131351028, %v6953
        %v6960 = vor.u32 %v6958, %v6959
        %v6961 = vshll.u32 2131351028, %v6952
        %v6962 = vshrl.u32 2102212464, %v6953
        %v6963 = vor.u32 %v6961, %v6962
        %v6964 = vshll.u32 2102212464, %v6952
        %v6965 = vshrl.u32 920167782, %v6953
        %v6966 = vor.u32 %v6964, %v6965
        %v6967 = vshll.u32 920167782, %v6952
        %v6968 = vshrl.u32 1326507024, %v6953
        %v6969 = vor.u32 %v6967, %v6968
        %vm6970 = vcmp.lt.s32.totalorder %v6951, 1
        %vm6971 = vcmp.lt.s32.totalorder %v6951, 2
        %vm6972 = vcmp.lt.s32.totalorder %v6951, 3
        %vm6973 = vcmp.lt.s32.totalorder %v6951, 4
        %v6974 = vsel %vm6970, %v6954, %v6957
        %v6975 = vsel %vm6973, %v6963, 2102212464
        %v6976 = vsel %vm6972, %v6960, %v6975
        %v6977 = vsel %vm6971, %v6974, %v6976
        %v6978 = vsel %vm6970, %v6957, %v6960
        %v6979 = vsel %vm6973, %v6966, 920167782
        %v6980 = vsel %vm6972, %v6963, %v6979
        %v6981 = vsel %vm6971, %v6978, %v6980
        %v6982 = vsel %vm6970, %v6960, %v6963
        %v6983 = vsel %vm6973, %v6969, 1326507024
        %v6984 = vsel %vm6972, %v6966, %v6983
        %v6985 = vsel %vm6971, %v6982, %v6984
        %v6986 = vshll.u32 %v6946, 8
        %v6987 = vmul.u32.u64.compose %v6986, %v6985
        %v6988 = vextract.low.u32 %v6987
        %v6989 = vextract.high.u32 %v6987
        %v6990 = vmul.u32.u64.compose %v6986, %v6981
        %v6991 = vextract.low.u32 %v6990
        %v6992 = vextract.high.u32 %v6990
        %v6993 = vmul.u32 %v6986, %v6977
        %v6994 = vadd.s32 %v6989, %v6991
        %vm6995 = vc.u32 %v6989, %v6991
        %v6996 = vadd.s32 %v6992, 1
        %v6997 = vsel %vm6995, %v6996, %v6992
        %v6998 = vadd.s32 %v6993, %v6997
        %v6999 = vadd.s32 %v6998, 536870912
        %v7000 = vshrl.u32 %v6999, 30
        %v7001 = vshll.u32 %v7000, 30
        %v7002 = vsub.s32 %v6998, %v7001
        %vm7003 = vcmp.lt.s32.totalorder %v7002, 0
        %v7004 = vsub.s32 0, %v7002
        %v7005 = vsel %vm7003, %v7004, %v7002
        %v7006 = vclz %v7005
        %v7007 = vsub.s32 %v7006, 2
        %vm7008 = vcmp.gt.s32.totalorder 0, %v7007
        %v7009 = vsel %vm7008, 0, %v7007
        %v7010 = vsub.s32 32, %v7009
        %v7011 = vshll.u32 %v7002, %v7009
        %v7012 = vshrl.u32 %v6994, %v7010
        %v7013 = vor.u32 %v7011, %v7012
        %v7014 = vsub.s32 4294967266, %v7009
        %v7015 = vadd.s32 %v7014, 127
        %v7016 = vshll.u32 %v7015, 23
        %v7017 = vor.u32 4788187, %v7016
        %v7018 = vand.u32 2147483647, %v7017
        %v7020 = vcvt.s32.f32 %v7013
        %v7021 = vmul.f32 %v7020, %v7018
        %v7022 = vxor.u32 %v7021, 2147483648
        %v7023 = vsel %vm6940, %v7022, %v7021
        %v7024 = vsub.s32 4, %v7000
        %v7025 = vsel %vm6940, %v7024, %v7000
        %v7026 = vsel %vm6939, %v694, %v7023
        %v7027 = vsel %vm6939, 0, %v7025
        %v7028 = vcosq.f32.pop %v7026
        %v7029 = vsinq.f32.pop %v7026
        %vm7030 = vweird.f32 %v694
        %v7031 = vadd.s32 %v7027, 3
        %v7032 = vand.u32 %v7031, 3
        %vm7033 = vcmp.lt.s32.totalorder %v7032, 2
        %vm7034 = vcmp.eq.s32.totalorder %v7032, 0
        %v7035 = vxor.u32 %v7029, 2147483648
        %v7036 = vsel %vm7034, %v7028, %v7035
        %vm7037 = vcmp.eq.s32.totalorder %v7032, 2
        %v7038 = vxor.u32 %v7028, 2147483648
        %v7039 = vsel %vm7037, %v7038, %v7029
        %v7040 = vsel %vm7033, %v7036, %v7039
        %v7041 = vsel %vm7030, nan, %v7040
        %v7042 = vand.u32 2147483647, %v695
        %vm7043 = vcmp.le.f32.partialorder %v7042, 0.7853982
        %vm7044 = vcmp.lt.s32.totalorder %v695, 0
        %v7045 = vand.u32 %v695, 2139095040
        %v7046 = vshrl.u32 %v7045, 23
        %v7047 = vsub.s32 %v7046, 127
        %v7048 = vand.u32 2147483647, %v695
        %v7049 = vand.u32 %v7048, 8388607
        %v7050 = vor.u32 %v7049, 8388608
        %v7051 = vsub.s32 0, %v7050
        %v7052 = vadd.s32 %v7047, 1
        %vm7053 = vcmp.gt.s32.totalorder %v7052, 0
        %v7054 = vsel %vm7053, %v7052, 0
        %v7055 = vshrl.u32 %v7054, 5
        %v7056 = vand.u32 %v7054, 31
        %v7057 = vsub.s32 32, %v7056
        %v7058 = vshrl.u32 683565275, %v7057
        %v7059 = vshll.u32 683565275, %v7056
        %v7060 = vshrl.u32 2475754826, %v7057
        %v7061 = vor.u32 %v7059, %v7060
        %v7062 = vshll.u32 2475754826, %v7056
        %v7063 = vshrl.u32 2131351028, %v7057
        %v7064 = vor.u32 %v7062, %v7063
        %v7065 = vshll.u32 2131351028, %v7056
        %v7066 = vshrl.u32 2102212464, %v7057
        %v7067 = vor.u32 %v7065, %v7066
        %v7068 = vshll.u32 2102212464, %v7056
        %v7069 = vshrl.u32 920167782, %v7057
        %v7070 = vor.u32 %v7068, %v7069
        %v7071 = vshll.u32 920167782, %v7056
        %v7072 = vshrl.u32 1326507024, %v7057
        %v7073 = vor.u32 %v7071, %v7072
        %vm7074 = vcmp.lt.s32.totalorder %v7055, 1
        %vm7075 = vcmp.lt.s32.totalorder %v7055, 2
        %vm7076 = vcmp.lt.s32.totalorder %v7055, 3
        %vm7077 = vcmp.lt.s32.totalorder %v7055, 4
        %v7078 = vsel %vm7074, %v7058, %v7061
        %v7079 = vsel %vm7077, %v7067, 2102212464
        %v7080 = vsel %vm7076, %v7064, %v7079
        %v7081 = vsel %vm7075, %v7078, %v7080
        %v7082 = vsel %vm7074, %v7061, %v7064
        %v7083 = vsel %vm7077, %v7070, 920167782
        %v7084 = vsel %vm7076, %v7067, %v7083
        %v7085 = vsel %vm7075, %v7082, %v7084
        %v7086 = vsel %vm7074, %v7064, %v7067
        %v7087 = vsel %vm7077, %v7073, 1326507024
        %v7088 = vsel %vm7076, %v7070, %v7087
        %v7089 = vsel %vm7075, %v7086, %v7088
        %v7090 = vshll.u32 %v7050, 8
        %v7091 = vmul.u32.u64.compose %v7090, %v7089
        %v7092 = vextract.low.u32 %v7091
        %v7093 = vextract.high.u32 %v7091
        %v7094 = vmul.u32.u64.compose %v7090, %v7085
        %v7095 = vextract.low.u32 %v7094
        %v7096 = vextract.high.u32 %v7094
        %v7097 = vmul.u32 %v7090, %v7081
        %v7098 = vadd.s32 %v7093, %v7095
        %vm7099 = vc.u32 %v7093, %v7095
        %v7100 = vadd.s32 %v7096, 1
        %v7101 = vsel %vm7099, %v7100, %v7096
        %v7102 = vadd.s32 %v7097, %v7101
        %v7103 = vadd.s32 %v7102, 536870912
        %v7104 = vshrl.u32 %v7103, 30
        %v7105 = vshll.u32 %v7104, 30
        %v7106 = vsub.s32 %v7102, %v7105
        %vm7107 = vcmp.lt.s32.totalorder %v7106, 0
        %v7108 = vsub.s32 0, %v7106
        %v7109 = vsel %vm7107, %v7108, %v7106
        %v7110 = vclz %v7109
        %v7111 = vsub.s32 %v7110, 2
        %vm7112 = vcmp.gt.s32.totalorder 0, %v7111
        %v7113 = vsel %vm7112, 0, %v7111
        %v7114 = vsub.s32 32, %v7113
        %v7115 = vshll.u32 %v7106, %v7113
        %v7116 = vshrl.u32 %v7098, %v7114
        %v7117 = vor.u32 %v7115, %v7116
        %v7118 = vsub.s32 4294967266, %v7113
        %v7119 = vadd.s32 %v7118, 127
        %v7120 = vshll.u32 %v7119, 23
        %v7121 = vor.u32 4788187, %v7120
        %v7122 = vand.u32 2147483647, %v7121
        %v7124 = vcvt.s32.f32 %v7117
        %v7125 = vmul.f32 %v7124, %v7122
        %v7126 = vxor.u32 %v7125, 2147483648
        %v7127 = vsel %vm7044, %v7126, %v7125
        %v7128 = vsub.s32 4, %v7104
        %v7129 = vsel %vm7044, %v7128, %v7104
        %v7130 = vsel %vm7043, %v695, %v7127
        %v7131 = vsel %vm7043, 0, %v7129
        %v7132 = vcosq.f32.pop %v7130
        %v7133 = vsinq.f32.pop %v7130
        %vm7134 = vweird.f32 %v695
        %v7135 = vadd.s32 %v7131, 3
        %v7136 = vand.u32 %v7135, 3
        %vm7137 = vcmp.lt.s32.totalorder %v7136, 2
        %vm7138 = vcmp.eq.s32.totalorder %v7136, 0
        %v7139 = vxor.u32 %v7133, 2147483648
        %v7140 = vsel %vm7138, %v7132, %v7139
        %vm7141 = vcmp.eq.s32.totalorder %v7136, 2
        %v7142 = vxor.u32 %v7132, 2147483648
        %v7143 = vsel %vm7141, %v7142, %v7133
        %v7144 = vsel %vm7137, %v7140, %v7143
        %v7145 = vsel %vm7134, nan, %v7144
        %v7146 = vand.u32 2147483647, %v696
        %vm7147 = vcmp.le.f32.partialorder %v7146, 0.7853982
        %vm7148 = vcmp.lt.s32.totalorder %v696, 0
        %v7149 = vand.u32 %v696, 2139095040
        %v7150 = vshrl.u32 %v7149, 23
        %v7151 = vsub.s32 %v7150, 127
        %v7152 = vand.u32 2147483647, %v696
        %v7153 = vand.u32 %v7152, 8388607
        %v7154 = vor.u32 %v7153, 8388608
        %v7155 = vsub.s32 0, %v7154
        %v7156 = vadd.s32 %v7151, 1
        %vm7157 = vcmp.gt.s32.totalorder %v7156, 0
        %v7158 = vsel %vm7157, %v7156, 0
        %v7159 = vshrl.u32 %v7158, 5
        %v7160 = vand.u32 %v7158, 31
        %v7161 = vsub.s32 32, %v7160
        %v7162 = vshrl.u32 683565275, %v7161
        %v7163 = vshll.u32 683565275, %v7160
        %v7164 = vshrl.u32 2475754826, %v7161
        %v7165 = vor.u32 %v7163, %v7164
        %v7166 = vshll.u32 2475754826, %v7160
        %v7167 = vshrl.u32 2131351028, %v7161
        %v7168 = vor.u32 %v7166, %v7167
        %v7169 = vshll.u32 2131351028, %v7160
        %v7170 = vshrl.u32 2102212464, %v7161
        %v7171 = vor.u32 %v7169, %v7170
        %v7172 = vshll.u32 2102212464, %v7160
        %v7173 = vshrl.u32 920167782, %v7161
        %v7174 = vor.u32 %v7172, %v7173
        %v7175 = vshll.u32 920167782, %v7160
        %v7176 = vshrl.u32 1326507024, %v7161
        %v7177 = vor.u32 %v7175, %v7176
        %vm7178 = vcmp.lt.s32.totalorder %v7159, 1
        %vm7179 = vcmp.lt.s32.totalorder %v7159, 2
        %vm7180 = vcmp.lt.s32.totalorder %v7159, 3
        %vm7181 = vcmp.lt.s32.totalorder %v7159, 4
        %v7182 = vsel %vm7178, %v7162, %v7165
        %v7183 = vsel %vm7181, %v7171, 2102212464
        %v7184 = vsel %vm7180, %v7168, %v7183
        %v7185 = vsel %vm7179, %v7182, %v7184
        %v7186 = vsel %vm7178, %v7165, %v7168
        %v7187 = vsel %vm7181, %v7174, 920167782
        %v7188 = vsel %vm7180, %v7171, %v7187
        %v7189 = vsel %vm7179, %v7186, %v7188
        %v7190 = vsel %vm7178, %v7168, %v7171
        %v7191 = vsel %vm7181, %v7177, 1326507024
        %v7192 = vsel %vm7180, %v7174, %v7191
        %v7193 = vsel %vm7179, %v7190, %v7192
        %v7194 = vshll.u32 %v7154, 8
        %v7195 = vmul.u32.u64.compose %v7194, %v7193
        %v7196 = vextract.low.u32 %v7195
        %v7197 = vextract.high.u32 %v7195
        %v7198 = vmul.u32.u64.compose %v7194, %v7189
        %v7199 = vextract.low.u32 %v7198
        %v7200 = vextract.high.u32 %v7198
        %v7201 = vmul.u32 %v7194, %v7185
        %v7202 = vadd.s32 %v7197, %v7199
        %vm7203 = vc.u32 %v7197, %v7199
        %v7204 = vadd.s32 %v7200, 1
        %v7205 = vsel %vm7203, %v7204, %v7200
        %v7206 = vadd.s32 %v7201, %v7205
        %v7207 = vadd.s32 %v7206, 536870912
        %v7208 = vshrl.u32 %v7207, 30
        %v7209 = vshll.u32 %v7208, 30
        %v7210 = vsub.s32 %v7206, %v7209
        %vm7211 = vcmp.lt.s32.totalorder %v7210, 0
        %v7212 = vsub.s32 0, %v7210
        %v7213 = vsel %vm7211, %v7212, %v7210
        %v7214 = vclz %v7213
        %v7215 = vsub.s32 %v7214, 2
        %vm7216 = vcmp.gt.s32.totalorder 0, %v7215
        %v7217 = vsel %vm7216, 0, %v7215
        %v7218 = vsub.s32 32, %v7217
        %v7219 = vshll.u32 %v7210, %v7217
        %v7220 = vshrl.u32 %v7202, %v7218
        %v7221 = vor.u32 %v7219, %v7220
        %v7222 = vsub.s32 4294967266, %v7217
        %v7223 = vadd.s32 %v7222, 127
        %v7224 = vshll.u32 %v7223, 23
        %v7225 = vor.u32 4788187, %v7224
        %v7226 = vand.u32 2147483647, %v7225
        %v7228 = vcvt.s32.f32 %v7221
        %v7229 = vmul.f32 %v7228, %v7226
        %v7230 = vxor.u32 %v7229, 2147483648
        %v7231 = vsel %vm7148, %v7230, %v7229
        %v7232 = vsub.s32 4, %v7208
        %v7233 = vsel %vm7148, %v7232, %v7208
        %v7234 = vsel %vm7147, %v696, %v7231
        %v7235 = vsel %vm7147, 0, %v7233
        %v7236 = vcosq.f32.pop %v7234
        %v7237 = vsinq.f32.pop %v7234
        %vm7238 = vweird.f32 %v696
        %v7239 = vadd.s32 %v7235, 3
        %v7240 = vand.u32 %v7239, 3
        %vm7241 = vcmp.lt.s32.totalorder %v7240, 2
        %vm7242 = vcmp.eq.s32.totalorder %v7240, 0
        %v7243 = vxor.u32 %v7237, 2147483648
        %v7244 = vsel %vm7242, %v7236, %v7243
        %vm7245 = vcmp.eq.s32.totalorder %v7240, 2
        %v7246 = vxor.u32 %v7236, 2147483648
        %v7247 = vsel %vm7245, %v7246, %v7237
        %v7248 = vsel %vm7241, %v7244, %v7247
        %v7249 = vsel %vm7238, nan, %v7248
        %v7250 = vand.u32 2147483647, %v697
        %vm7251 = vcmp.le.f32.partialorder %v7250, 0.7853982
        %vm7252 = vcmp.lt.s32.totalorder %v697, 0
        %v7253 = vand.u32 %v697, 2139095040
        %v7254 = vshrl.u32 %v7253, 23
        %v7255 = vsub.s32 %v7254, 127
        %v7256 = vand.u32 2147483647, %v697
        %v7257 = vand.u32 %v7256, 8388607
        %v7258 = vor.u32 %v7257, 8388608
        %v7259 = vsub.s32 0, %v7258
        %v7260 = vadd.s32 %v7255, 1
        %vm7261 = vcmp.gt.s32.totalorder %v7260, 0
        %v7262 = vsel %vm7261, %v7260, 0
        %v7263 = vshrl.u32 %v7262, 5
        %v7264 = vand.u32 %v7262, 31
        %v7265 = vsub.s32 32, %v7264
        %v7266 = vshrl.u32 683565275, %v7265
        %v7267 = vshll.u32 683565275, %v7264
        %v7268 = vshrl.u32 2475754826, %v7265
        %v7269 = vor.u32 %v7267, %v7268
        %v7270 = vshll.u32 2475754826, %v7264
        %v7271 = vshrl.u32 2131351028, %v7265
        %v7272 = vor.u32 %v7270, %v7271
        %v7273 = vshll.u32 2131351028, %v7264
        %v7274 = vshrl.u32 2102212464, %v7265
        %v7275 = vor.u32 %v7273, %v7274
        %v7276 = vshll.u32 2102212464, %v7264
        %v7277 = vshrl.u32 920167782, %v7265
        %v7278 = vor.u32 %v7276, %v7277
        %v7279 = vshll.u32 920167782, %v7264
        %v7280 = vshrl.u32 1326507024, %v7265
        %v7281 = vor.u32 %v7279, %v7280
        %vm7282 = vcmp.lt.s32.totalorder %v7263, 1
        %vm7283 = vcmp.lt.s32.totalorder %v7263, 2
        %vm7284 = vcmp.lt.s32.totalorder %v7263, 3
        %vm7285 = vcmp.lt.s32.totalorder %v7263, 4
        %v7286 = vsel %vm7282, %v7266, %v7269
        %v7287 = vsel %vm7285, %v7275, 2102212464
        %v7288 = vsel %vm7284, %v7272, %v7287
        %v7289 = vsel %vm7283, %v7286, %v7288
        %v7290 = vsel %vm7282, %v7269, %v7272
        %v7291 = vsel %vm7285, %v7278, 920167782
        %v7292 = vsel %vm7284, %v7275, %v7291
        %v7293 = vsel %vm7283, %v7290, %v7292
        %v7294 = vsel %vm7282, %v7272, %v7275
        %v7295 = vsel %vm7285, %v7281, 1326507024
        %v7296 = vsel %vm7284, %v7278, %v7295
        %v7297 = vsel %vm7283, %v7294, %v7296
        %v7298 = vshll.u32 %v7258, 8
        %v7299 = vmul.u32.u64.compose %v7298, %v7297
        %v7300 = vextract.low.u32 %v7299
        %v7301 = vextract.high.u32 %v7299
        %v7302 = vmul.u32.u64.compose %v7298, %v7293
        %v7303 = vextract.low.u32 %v7302
        %v7304 = vextract.high.u32 %v7302
        %v7305 = vmul.u32 %v7298, %v7289
        %v7306 = vadd.s32 %v7301, %v7303
        %vm7307 = vc.u32 %v7301, %v7303
        %v7308 = vadd.s32 %v7304, 1
        %v7309 = vsel %vm7307, %v7308, %v7304
        %v7310 = vadd.s32 %v7305, %v7309
        %v7311 = vadd.s32 %v7310, 536870912
        %v7312 = vshrl.u32 %v7311, 30
        %v7313 = vshll.u32 %v7312, 30
        %v7314 = vsub.s32 %v7310, %v7313
        %vm7315 = vcmp.lt.s32.totalorder %v7314, 0
        %v7316 = vsub.s32 0, %v7314
        %v7317 = vsel %vm7315, %v7316, %v7314
        %v7318 = vclz %v7317
        %v7319 = vsub.s32 %v7318, 2
        %vm7320 = vcmp.gt.s32.totalorder 0, %v7319
        %v7321 = vsel %vm7320, 0, %v7319
        %v7322 = vsub.s32 32, %v7321
        %v7323 = vshll.u32 %v7314, %v7321
        %v7324 = vshrl.u32 %v7306, %v7322
        %v7325 = vor.u32 %v7323, %v7324
        %v7326 = vsub.s32 4294967266, %v7321
        %v7327 = vadd.s32 %v7326, 127
        %v7328 = vshll.u32 %v7327, 23
        %v7329 = vor.u32 4788187, %v7328
        %v7330 = vand.u32 2147483647, %v7329
        %v7332 = vcvt.s32.f32 %v7325
        %v7333 = vmul.f32 %v7332, %v7330
        %v7334 = vxor.u32 %v7333, 2147483648
        %v7335 = vsel %vm7252, %v7334, %v7333
        %v7336 = vsub.s32 4, %v7312
        %v7337 = vsel %vm7252, %v7336, %v7312
        %v7338 = vsel %vm7251, %v697, %v7335
        %v7339 = vsel %vm7251, 0, %v7337
        %v7340 = vcosq.f32.pop %v7338
        %v7341 = vsinq.f32.pop %v7338
        %vm7342 = vweird.f32 %v697
        %v7343 = vadd.s32 %v7339, 3
        %v7344 = vand.u32 %v7343, 3
        %vm7345 = vcmp.lt.s32.totalorder %v7344, 2
        %vm7346 = vcmp.eq.s32.totalorder %v7344, 0
        %v7347 = vxor.u32 %v7341, 2147483648
        %v7348 = vsel %vm7346, %v7340, %v7347
        %vm7349 = vcmp.eq.s32.totalorder %v7344, 2
        %v7350 = vxor.u32 %v7340, 2147483648
        %v7351 = vsel %vm7349, %v7350, %v7341
        %v7352 = vsel %vm7345, %v7348, %v7351
        %v7353 = vsel %vm7342, nan, %v7352
        %7354 = vst [vmem:[%s164] sm:$0xff] %v801
        %7355 = vst [vmem:[%s164 + $0x8] sm:$0xff] %v905
        %7356 = vst [vmem:[%s164 + $0x10] sm:$0xff] %v1009
        %7357 = vst [vmem:[%s164 + $0x18] sm:$0xff] %v1113
        %7358 = vst [vmem:[%s164 + $0x20] sm:$0xff] %v1217
        %7359 = vst [vmem:[%s164 + $0x28] sm:$0xff] %v1321
        %7360 = vst [vmem:[%s164 + $0x30] sm:$0xff] %v1425
        %7361 = vst [vmem:[%s164 + $0x38] sm:$0xff] %v1529
        %7362 = vst [vmem:[%s164 + $0x40] sm:$0xff] %v1633
        %7363 = vst [vmem:[%s164 + $0x48] sm:$0xff] %v1737
        %7364 = vst [vmem:[%s164 + $0x50] sm:$0xff] %v1841
        %7365 = vst [vmem:[%s164 + $0x58] sm:$0xff] %v1945
        %7366 = vst [vmem:[%s164 + $0x60] sm:$0xff] %v2049
        %7367 = vst [vmem:[%s164 + $0x68] sm:$0xff] %v2153
        %7368 = vst [vmem:[%s164 + $0x70] sm:$0xff] %v2257
        %7369 = vst [vmem:[%s164 + $0x78] sm:$0xff] %v2361
        %7370 = vst [vmem:[%s164 + $0x80] sm:$0xff] %v2465
        %7371 = vst [vmem:[%s164 + $0x88] sm:$0xff] %v2569
        %7372 = vst [vmem:[%s164 + $0x90] sm:$0xff] %v2673
        %7373 = vst [vmem:[%s164 + $0x98] sm:$0xff] %v2777
        %7374 = vst [vmem:[%s164 + $0xa0] sm:$0xff] %v2881
        %7375 = vst [vmem:[%s164 + $0xa8] sm:$0xff] %v2985
        %7376 = vst [vmem:[%s164 + $0xb0] sm:$0xff] %v3089
        %7377 = vst [vmem:[%s164 + $0xb8] sm:$0xff] %v3193
        %7378 = vst [vmem:[%s164 + $0xc0] sm:$0xff] %v3297
        %7379 = vst [vmem:[%s164 + $0xc8] sm:$0xff] %v3401
        %7380 = vst [vmem:[%s164 + $0xd0] sm:$0xff] %v3505
        %7381 = vst [vmem:[%s164 + $0xd8] sm:$0xff] %v3609
        %7382 = vst [vmem:[%s164 + $0xe0] sm:$0xff] %v3713
        %7383 = vst [vmem:[%s164 + $0xe8] sm:$0xff] %v3817
        %7384 = vst [vmem:[%s164 + $0xf0] sm:$0xff] %v3921
        %7385 = vst [vmem:[%s164 + $0xf8] sm:$0xff] %v4025
        %7386 = vst [vmem:[%s164 + $0x100] sm:$0xff] %v4129
        %7387 = vst [vmem:[%s164 + $0x108] sm:$0xff] %v4233
        %7388 = vst [vmem:[%s164 + $0x110] sm:$0xff] %v4337
        %7389 = vst [vmem:[%s164 + $0x118] sm:$0xff] %v4441
        %7390 = vst [vmem:[%s164 + $0x120] sm:$0xff] %v4545
        %7391 = vst [vmem:[%s164 + $0x128] sm:$0xff] %v4649
        %7392 = vst [vmem:[%s164 + $0x130] sm:$0xff] %v4753
        %7393 = vst [vmem:[%s164 + $0x138] sm:$0xff] %v4857
        %7394 = vst [vmem:[%s164 + $0x140] sm:$0xff] %v4961
        %7395 = vst [vmem:[%s164 + $0x148] sm:$0xff] %v5065
        %7396 = vst [vmem:[%s164 + $0x150] sm:$0xff] %v5169
        %7397 = vst [vmem:[%s164 + $0x158] sm:$0xff] %v5273
        %7398 = vst [vmem:[%s164 + $0x160] sm:$0xff] %v5377
        %7399 = vst [vmem:[%s164 + $0x168] sm:$0xff] %v5481
        %7400 = vst [vmem:[%s164 + $0x170] sm:$0xff] %v5585
        %7401 = vst [vmem:[%s164 + $0x178] sm:$0xff] %v5689
        %7402 = vst [vmem:[%s164 + $0x180] sm:$0xff] %v5793
        %7403 = vst [vmem:[%s164 + $0x188] sm:$0xff] %v5897
        %7404 = vst [vmem:[%s164 + $0x190] sm:$0xff] %v6001
        %7405 = vst [vmem:[%s164 + $0x198] sm:$0xff] %v6105
        %7406 = vst [vmem:[%s164 + $0x1a0] sm:$0xff] %v6209
        %7407 = vst [vmem:[%s164 + $0x1a8] sm:$0xff] %v6313
        %7408 = vst [vmem:[%s164 + $0x1b0] sm:$0xff] %v6417
        %7409 = vst [vmem:[%s164 + $0x1b8] sm:$0xff] %v6521
        %7410 = vst [vmem:[%s164 + $0x1c0] sm:$0xff] %v6625
        %7411 = vst [vmem:[%s164 + $0x1c8] sm:$0xff] %v6729
        %7412 = vst [vmem:[%s164 + $0x1d0] sm:$0xff] %v6833
        %7413 = vst [vmem:[%s164 + $0x1d8] sm:$0xff] %v6937
        %7414 = vst [vmem:[%s164 + $0x1e0] sm:$0xff] %v7041
        %7415 = vst [vmem:[%s164 + $0x1e8] sm:$0xff] %v7145
        %7416 = vst [vmem:[%s164 + $0x1f0] sm:$0xff] %v7249
        %7417 = vst [vmem:[%s164 + $0x1f8] sm:$0xff] %v7353
        %s7418 = sand.u32 %s93, 1
        %s7419 = scalar_lea.sflag [#allocation3], %s7418
        %s7420 = sand.u32 %s93, 1
        %s7421 = smul.addr %s7420, 512
        %s7422 = scalar_lea.vmem [#allocation2], %s7421
        // Predicated region
        $region33: #{tpu_custom_call.1} parent=31 // pred_check
          %p7423 = pneg %p103
        $region34: #{tpu_custom_call.1} parent=31 // pred_check_branch
          %7425 = sbr.rel (%p7423) target = $region36
        $region35: #{tpu_custom_call.1} parent=31 // pred_region
          %s7426 = smul.u32 64, %s17
          %s7428 = ssub.s32 8192, 8192
          %7429 = vsyncadd %s7419, %s7428
          %s7430 = smul.addr %s7426, 128
          %s7431 = scalar_lea.hbm %s3, %s7430
          %s7432 = sshll.u32 %s7422, 4
          %s7433 = int_to_ptr.vmem [resolvable:$true] %s7432
          %7438 = dma.vmem_to_hbm [thread:$0]  %s7433, 8192, %s7431, %s7419, 128, 128, 8
        $region36: #{tpu_custom_call.1} parent=31 // pred_fallthru
          _
      $region32: #{tpu_custom_call.1} parent=5 // pred_fallthru
        _
      %p7439 = scmp.le.s32.totalorder 2, %s12
      // Predicated region
      $region37: #{tpu_custom_call.1} parent=5 // pred_check
        %p7440 = pneg %p7439
      $region38: #{tpu_custom_call.1} parent=5 // pred_check_branch
        %7442 = sbr.rel (%p7440) target = $region40
      $region39: #{tpu_custom_call.1} parent=5 // pred_region
        %s7443 = ssub.s32 %s12, 2
        // Predicated region
        $region41: #{tpu_custom_call.1} parent=39 // pred_check
          %p7444 = pneg %p109
        $region42: #{tpu_custom_call.1} parent=39 // pred_check_branch
          %7446 = sbr.rel (%p7444) target = $region44
        $region43: #{tpu_custom_call.1} parent=39 // pred_region
          %s7447 = sand.u32 %s94, 1
          %s7448 = scalar_lea.sflag [#allocation3], %s7447
          %s7449 = sand.u32 %s94, 1
          %s7450 = smul.addr %s7449, 512
          %s7451 = scalar_lea.vmem [#allocation2], %s7450
          %7452 = dma.done %s7448, 8192
        $region44: #{tpu_custom_call.1} parent=39 // pred_fallthru
          _
      $region40: #{tpu_custom_call.1} parent=5 // pred_fallthru
        _
    $region6: #{tpu_custom_call.1} parent=1 // loop_footer
      %s16 = sadd.s32 1, %s12
    $region7: #{tpu_custom_call.1} parent=1 // loop_footer_branch
      %11 = sbr.rel target = $region3
    $region8: #{tpu_custom_call.1} parent=1 // loop_exit
      _
    %7453 = vsyncpa [#allocation3], 1
    %s7454 = scalar_lea.sflag [#allocation3], 1
    %7455 = vsyncpa %s7454, 1

</llo_original>
